<compile_context>
chip_gen: v7x
topology: tpu7x:2x2x1
jax: 0.10.0
libtpu: 0.0.40
codegen_flags: <defaults>
</compile_context>

<pallas_src>
import math
import jax
import jax.numpy as jnp
from jax.experimental import pallas as pl
from jax.experimental.pallas import tpu as pltpu

H = 16                 # h_channel
H2 = 2 * H             # both same_face branches fused on the sublane axis
FACE_ATTR = 23         # face_attri_size
GEO_DIM = 10           # geo_encoding_dim
FINALDEPTH = 3
NUM_INTERACTIONS = 3
EPS = 1e-5             # BatchNorm1d eps


def _vmem_spec():
    return pl.BlockSpec(memory_space=pltpu.MemorySpace.VMEM)


def _vmem_limit_bytes():
    # Generation-aware VMEM budget: leave headroom under physical capacity
    # (64 MiB on v7x, 128 MiB on v5e/v6e).
    try:
        cap = pltpu.get_tpu_info().vmem_capacity_bytes
    except Exception:
        cap = 64 * 1024 * 1024
    return int(min(cap - 8 * 1024 * 1024, 100 * 1024 * 1024))


# --------------------------- fused Pallas kernel ----------------------------

def smodel_kernel(geoT_ref, idx_ref, icol_ref, mT_ref, nfT_ref,
                  wgT_ref, bgT_ref, ggT_ref, begT_ref,
                  w0T_ref, b0T_ref, g0T_ref, be0T_ref,
                  w1T_ref, b1T_ref, g1T_ref, be1T_ref,
                  foldT_ref, out_ref):
    E = geoT_ref.shape[1]
    N = nfT_ref.shape[1]
    ones_e = jnp.ones((E, 1), jnp.float32)     # MXU lane(E)-axis reduction vector

    # ---------------- geo MLP: Linear(56->16) + BN(train) + ReLU ------------
    g = jnp.dot(wgT_ref[...], geoT_ref[...],
                preferred_element_type=jnp.float32) + bgT_ref[...]        # [H, E]
    gmean = jnp.dot(g, ones_e, preferred_element_type=jnp.float32) * (1.0 / E)
    gd = g - gmean
    gvar = jnp.dot(gd * gd, ones_e, preferred_element_type=jnp.float32) * (1.0 / E)
    geo_enc = jnp.maximum(gd * jax.lax.rsqrt(gvar + EPS) * ggT_ref[...]
                          + begT_ref[...], 0.0)                            # [H, E]

    # -------- one-hot gather/scatter matrices built in-kernel from indices --
    idx = idx_ref[...]                                                     # [3, E]
    iota_ne = jax.lax.broadcasted_iota(jnp.int32, (N, E), 0)
    g_i = (iota_ne == idx[0:1, :]).astype(jnp.float32)                     # [N, E]
    g_j = (iota_ne == idx[1:2, :]).astype(jnp.float32)
    g_k = (iota_ne == idx[2:3, :]).astype(jnp.float32)
    iota_en = jax.lax.broadcasted_iota(jnp.int32, (E, N), 1)
    scat_i = (iota_en == icol_ref[...]).astype(jnp.float32)                # [E, N]

    # -------- hoisted per-edge quantities (shared by all interactions) ------
    m = mT_ref[...]                                                        # [1, E]
    row2 = jax.lax.broadcasted_iota(jnp.int32, (H2, E), 0)
    m2 = jnp.where(row2 < H, m, 1.0 - m)                                   # [2H, E]
    col2 = jax.lax.broadcasted_iota(jnp.int32, (H2, 1), 0)
    cnt = jnp.sum(m, axis=1, keepdims=True)                                # [1, 1]
    cnt2 = jnp.where(col2 < H, cnt, E - cnt)                               # [2H, 1]
    inv_cnt2 = 1.0 / jnp.maximum(cnt2, 1.0)   # guard: empty branch stays finite
    foldT = foldT_ref[...]                                                 # [H, 2H]

    def bn_relu(x, gamma, beta):
        # training-mode BatchNorm1d over each branch's masked edges,
        # two-pass statistics (matches reference numerics); lane(E)-axis
        # reductions offloaded to the MXU via ones-vector matmuls.
        mean = jnp.dot(x * m2, ones_e,
                       preferred_element_type=jnp.float32) * inv_cnt2      # [2H,1]
        d = x - mean
        var = jnp.dot(d * d * m2, ones_e,
                      preferred_element_type=jnp.float32) * inv_cnt2       # [2H,1]
        return jnp.maximum(d * jax.lax.rsqrt(var + EPS) * gamma + beta, 0.0)

    # ------------------------- 3 SPNN interactions --------------------------
    nfT = nfT_ref[...]                                                     # [H, N]
    for t in range(NUM_INTERACTIONS):
        # gather nf[i]/nf[j]/nf[k] via [H,N]@[N,E] one-hot matmuls, then one
        # fused Linear(4H -> 2H, both branches) over the aligned sublane slab.
        nfi = jnp.dot(nfT, g_i, preferred_element_type=jnp.float32)        # [H, E]
        nfj = jnp.dot(nfT, g_j, preferred_element_type=jnp.float32)
        nfk = jnp.dot(nfT, g_k, preferred_element_type=jnp.float32)
        xin = jnp.concatenate([nfi, nfj, nfk, geo_enc], axis=0)            # [4H, E]
        x = jnp.dot(w0T_ref[t], xin,
                    preferred_element_type=jnp.float32) + b0T_ref[t]       # [2H, E]
        x = bn_relu(x, g0T_ref[t], be0T_ref[t])

        for l in range(FINALDEPTH):            # block-diagonal Linear(H->H) x2
            x = jnp.dot(w1T_ref[t, l], x,
                        preferred_element_type=jnp.float32) + b1T_ref[t, l]
            x = bn_relu(x, g1T_ref[t, l], be1T_ref[t, l])

        # x >= 0 after the final BN+ReLU, so the reference leaky_relu is the
        # identity (dead op removed) and att is folded into foldT.  Mask each
        # edge to its owning branch, scatter-add over i (MXU matmul against
        # the [E,N] one-hot), then att-scale + sum the two branch halves.
        x = x * m2
        nf2 = jnp.dot(x, scat_i, preferred_element_type=jnp.float32)       # [2H, N]
        nfT = jnp.dot(foldT, nf2, preferred_element_type=jnp.float32)      # [H, N]
        out_ref[t, :, :] = nfT


# --------------------------- weight fusion ----------------------------------

def fuse_params(params):
    """Transpose all weights to the lane-dense [out, in] layout, fold the two
    same_face branches onto the sublane axis and stack the interactions."""
    fp = {}
    g = params['geo']
    fp['wgT'] = g['wg'].T            # [H, 56]
    fp['bgT'] = g['bg'].T            # [H, 1]
    fp['ggT'] = g['gg'].T
    fp['begT'] = g['beg'].T
    att = params['att']              # [1, 2]
    eye = jnp.eye(H, dtype=jnp.float32)
    fp['foldT'] = jnp.concatenate([att[0, 0] * eye, att[0, 1] * eye], axis=1)  # [H,2H]

    w0T, b0T, g0T, be0T, w1T, b1T, g1T, be1T = ([] for _ in range(8))
    zl = jnp.zeros((H, H), jnp.float32)
    for wp in params['interactions']:
        # wp['w0']: [2, 4, H_in, H_out] = (branch, slot{i,j,k,geo}, in, out)
        w0T.append(jnp.concatenate(
            [jnp.concatenate([wp['w0'][b, s].T for s in range(4)], axis=1)
             for b in range(2)], axis=0))                                  # [2H, 4H]
        b0T.append(jnp.concatenate([wp['b0'][0].T, wp['b0'][1].T], axis=0))  # [2H,1]
        g0T.append(jnp.concatenate([wp['g0'][0].T, wp['g0'][1].T], axis=0))
        be0T.append(jnp.concatenate([wp['be0'][0].T, wp['be0'][1].T], axis=0))
        w1T.append(jnp.stack(
            [jnp.concatenate(
                [jnp.concatenate([wp['w1'][0, l].T, zl], axis=1),
                 jnp.concatenate([zl, wp['w1'][1, l].T], axis=1)], axis=0)
             for l in range(FINALDEPTH)]))                                 # [FD,2H,2H]
        b1T.append(jnp.stack(
            [jnp.concatenate([wp['b1'][0, l].T, wp['b1'][1, l].T], axis=0)
             for l in range(FINALDEPTH)]))
        g1T.append(jnp.stack(
            [jnp.concatenate([wp['g1'][0, l].T, wp['g1'][1, l].T], axis=0)
             for l in range(FINALDEPTH)]))
        be1T.append(jnp.stack(
            [jnp.concatenate([wp['be1'][0, l].T, wp['be1'][1, l].T], axis=0)
             for l in range(FINALDEPTH)]))
    fp['w0T'] = jnp.stack(w0T); fp['b0T'] = jnp.stack(b0T)
    fp['g0T'] = jnp.stack(g0T); fp['be0T'] = jnp.stack(be0T)
    fp['w1T'] = jnp.stack(w1T); fp['b1T'] = jnp.stack(b1T)
    fp['g1T'] = jnp.stack(g1T); fp['be1T'] = jnp.stack(be1T)
    return fp


# ------------------- geo-feature glue (plain JAX) ---------------------------

def calculate_face_angle(v1, v2):
    cross = jnp.cross(v1, v2, axis=1)
    return math.pi - jnp.arctan2(jnp.linalg.norm(cross, axis=1),
                                 jnp.sum(v1 * v2, axis=1))


def get_angle(v1, v2):
    # TODO(synk): get_angle is not defined in the provided source; assumed the
    # standard atan2(||v1 x v2||, v1 . v2) used in companion geometric-GNN code.
    cross = jnp.cross(v1, v2, axis=1)
    return jnp.arctan2(jnp.linalg.norm(cross, axis=1), jnp.sum(v1 * v2, axis=1))


def build_geo_raw(coords, face_norm, face_x, edge_whichface,
                  edge_index_2rd, edx_jk, edx_ij):
    i, j, k = edge_index_2rd
    wf_ij = edge_whichface[edx_ij]
    wf_jk = edge_whichface[edx_jk]
    angle_face = calculate_face_angle(face_norm[wf_ij], face_norm[wf_jk]) * 0.0
    d_ij = jnp.linalg.norm(coords[j] - coords[i], axis=1)
    d_jk = jnp.linalg.norm(coords[j] - coords[k], axis=1)
    theta = get_angle(coords[j] - coords[i], coords[k] - coords[j])
    same_face = wf_ij == wf_jk
    geo4 = jnp.stack([d_ij, d_jk, theta, angle_face], axis=-1)
    geo = jnp.concatenate([geo4, coords[j], coords[i],
                           face_x[wf_ij], face_x[wf_jk]], axis=-1)   # [E, 56]
    return geo, same_face


# ------------------------------ wrapper --------------------------------------

def smodel_forward(params, inputs):
    (input_feature, coords, face_norm, face_x, edge_whichface,
     edge_index, edge_index_2rd, edx_jk, edx_ij, batch, edge_rep) = inputs
    assert edge_rep, "only the edge_rep=True path is implemented"

    geo_raw, same_face = build_geo_raw(coords, face_norm, face_x,
                                       edge_whichface, edge_index_2rd,
                                       edx_jk, edx_ij)
    i, j, k = edge_index_2rd
    N = input_feature.shape[0]

    idx = edge_index_2rd.astype(jnp.int32)               # [3, E] (rows i, j, k)
    icol = i.astype(jnp.int32)[:, None]                  # [E, 1]
    maskT = same_face.astype(jnp.float32)[None, :]       # [1, E]
    geoT = geo_raw.T                                     # [56, E] lane-dense
    nfT = input_feature.T                                # [H, N]  lane-dense

    fp = fuse_params(params)
    args = (geoT, idx, icol, maskT, nfT,
            fp['wgT'], fp['bgT'], fp['ggT'], fp['begT'],
            fp['w0T'], fp['b0T'], fp['g0T'], fp['be0T'],
            fp['w1T'], fp['b1T'], fp['g1T'], fp['be1T'],
            fp['foldT'])

    out = pl.pallas_call(
        smodel_kernel,
        out_shape=jax.ShapeDtypeStruct((NUM_INTERACTIONS, H, N), jnp.float32),
        in_specs=[_vmem_spec()] * len(args),
        out_specs=_vmem_spec(),
        compiler_params=pltpu.CompilerParams(vmem_limit_bytes=_vmem_limit_bytes()),
    )(*args)
    return [out[t].T for t in range(NUM_INTERACTIONS)]


# ------------------- deterministic parameter init ---------------------------

def init_params(key):
    keys = iter(jax.random.split(key, 64))

    def lin(in_dim, out_dim):
        w = jax.random.normal(next(keys), (in_dim, out_dim), jnp.float32) / jnp.sqrt(in_dim)
        b = jax.random.normal(next(keys), (1, out_dim), jnp.float32) * 0.1
        return w, b

    params = {}
    wg, bg = lin(GEO_DIM + 2 * FACE_ATTR, H)
    params['geo'] = dict(wg=wg, bg=bg,
                         gg=jnp.ones((1, H), jnp.float32),
                         beg=jnp.zeros((1, H), jnp.float32))
    params['att'] = jnp.ones((1, 2), jnp.float32)          # Parameter(torch.ones(2))

    interactions = []
    for _ in range(NUM_INTERACTIONS):
        w0_b, b0_b, w1_b, b1_b = [], [], [], []
        for _branch in range(2):
            w0, b0 = lin(4 * H, H)                         # Linear(3H + H -> H)
            w0_b.append(w0.reshape(4, H, H))
            b0_b.append(b0)
            w1s, b1s = [], []
            for _l in range(FINALDEPTH):
                w1, b1 = lin(H, H)
                w1s.append(w1)
                b1s.append(b1)
            w1_b.append(jnp.stack(w1s))
            b1_b.append(jnp.stack(b1s))
        interactions.append(dict(
            w0=jnp.stack(w0_b), b0=jnp.stack(b0_b),
            g0=jnp.ones((2, 1, H), jnp.float32), be0=jnp.zeros((2, 1, H), jnp.float32),
            w1=jnp.stack(w1_b), b1=jnp.stack(b1_b),
            g1=jnp.ones((2, FINALDEPTH, 1, H), jnp.float32),
            be1=jnp.zeros((2, FINALDEPTH, 1, H), jnp.float32)))
    params['interactions'] = interactions
    return params


# ------------------- pure-JAX reference (mirrors PyTorch) -------------------

def _mm(a, b):
    return jnp.dot(a, b, precision=jax.lax.Precision.HIGHEST)


def _ref_bn_relu(x, gamma, beta):
    mean = x.mean(axis=0, keepdims=True)
    var = ((x - mean) ** 2).mean(axis=0, keepdims=True)
    return jnp.maximum((x - mean) / jnp.sqrt(var + EPS) * gamma + beta, 0.0)


def ref_forward(params, inputs):
    (input_feature, coords, face_norm, face_x, edge_whichface,
     edge_index, edge_index_2rd, edx_jk, edx_ij, batch, edge_rep) = inputs
    geo_raw, same_face = build_geo_raw(coords, face_norm, face_x,
                                       edge_whichface, edge_index_2rd,
                                       edx_jk, edx_ij)
    g = params['geo']
    geo_enc = _ref_bn_relu(_mm(geo_raw, g['wg']) + g['bg'], g['gg'], g['beg'])

    i, j, k = edge_index_2rd
    nf = input_feature
    outs = []
    for t in range(NUM_INTERACTIONS):
        wp = params['interactions'][t]
        xcat = jnp.concatenate([nf[i], nf[j], nf[k], geo_enc], axis=-1)
        x_out = jnp.zeros((xcat.shape[0], H), jnp.float32)
        for idx, mbool in enumerate([same_face, ~same_face]):
            rows = jnp.where(mbool)[0]
            x = xcat[rows]
            x = _mm(x, wp['w0'][idx].reshape(4 * H, H)) + wp['b0'][idx]
            x = _ref_bn_relu(x, wp['g0'][idx], wp['be0'][idx])
            for l in range(FINALDEPTH):
                x = _mm(x, wp['w1'][idx, l]) + wp['b1'][idx, l]
                x = _ref_bn_relu(x, wp['g1'][idx, l], wp['be1'][idx, l])
            x = jnp.where(x >= 0, x, 0.01 * x) * params['att'][0, idx]
            x_out = x_out.at[rows].add(x)
        nf = jax.ops.segment_sum(x_out, i, num_segments=nf.shape[0])
        outs.append(nf)
    return outs


# ------------------------------- main ----------------------------------------

if __name__ == "__main__":
    key = jax.random.PRNGKey(0)
    kp, kd = jax.random.split(key)
    params = init_params(kp)

    N, E2, NE, NF = 8, 16, 12, 6         # nodes, 2nd-order edges, edges, faces
    ks = jax.random.split(kd, 8)
    input_feature = jax.random.normal(ks[0], (N, H), jnp.float32)
    coords = jax.random.normal(ks[1], (N, 3), jnp.float32)
    face_norm = jax.random.normal(ks[2], (NF, 3), jnp.float32)
    face_x = jax.random.normal(ks[3], (NF, FACE_ATTR), jnp.float32)
    edge_whichface = (jnp.arange(NE) % NF).astype(jnp.int32)
    edge_index = jnp.stack([jnp.arange(NE) % N, (jnp.arange(NE) + 1) % N]).astype(jnp.int32)
    i_idx = jax.random.randint(ks[4], (E2,), 0, N).astype(jnp.int32)
    j_idx = jax.random.randint(ks[5], (E2,), 0, N).astype(jnp.int32)
    k_idx = jax.random.randint(ks[6], (E2,), 0, N).astype(jnp.int32)
    edge_index_2rd = jnp.stack([i_idx, j_idx, k_idx])
    edx_ij = ((jnp.arange(E2) * 3) % NE).astype(jnp.int32)
    # even triplets share a face with their jk edge (same_face=True), odd do not
    edx_jk = jnp.where(jnp.arange(E2) % 2 == 0, edx_ij, (edx_ij + 1) % NE).astype(jnp.int32)
    batch = jnp.zeros((N,), jnp.int32)

    inputs = (input_feature, coords, face_norm, face_x, edge_whichface,
              edge_index, edge_index_2rd, edx_jk, edx_ij, batch, True)

    outs = smodel_forward(params, inputs)
    outs = [jax.block_until_ready(o) for o in outs]

    refs = ref_forward(params, inputs)
    max_diff = max(float(jnp.max(jnp.abs(o - r))) for o, r in zip(outs, refs))
    assert max_diff < 2e-3, f"mismatch vs reference: max |diff| = {max_diff}"
    print("KERNEL_OK")
</pallas_src>

<mosaic_0001>
module attributes {stable_mosaic.version = 11 : i64} {
  func.func @smodel_kernel(%arg0: memref<56x16xf32, #tpu.memory_space<vmem>>, %arg1: memref<3x16xi32, #tpu.memory_space<vmem>>, %arg2: memref<16x1xi32, #tpu.memory_space<vmem>>, %arg3: memref<1x16xf32, #tpu.memory_space<vmem>>, %arg4: memref<16x8xf32, #tpu.memory_space<vmem>>, %arg5: memref<16x56xf32, #tpu.memory_space<vmem>>, %arg6: memref<16x1xf32, #tpu.memory_space<vmem>>, %arg7: memref<16x1xf32, #tpu.memory_space<vmem>>, %arg8: memref<16x1xf32, #tpu.memory_space<vmem>>, %arg9: memref<3x32x64xf32, #tpu.memory_space<vmem>>, %arg10: memref<3x32x1xf32, #tpu.memory_space<vmem>>, %arg11: memref<3x32x1xf32, #tpu.memory_space<vmem>>, %arg12: memref<3x32x1xf32, #tpu.memory_space<vmem>>, %arg13: memref<3x3x32x32xf32, #tpu.memory_space<vmem>>, %arg14: memref<3x3x32x1xf32, #tpu.memory_space<vmem>>, %arg15: memref<3x3x32x1xf32, #tpu.memory_space<vmem>>, %arg16: memref<3x3x32x1xf32, #tpu.memory_space<vmem>>, %arg17: memref<16x32xf32, #tpu.memory_space<vmem>>, %arg18: memref<3x16x8xf32, #tpu.memory_space<vmem>>) attributes {dimension_semantics = [], scalar_prefetch = 0 : i64, scratch_operands = 0 : i64, tpu.core_type = #tpu.core_type<tc>} {
    %cst = arith.constant 1.000000e+00 : f32
    %0 = vector.broadcast %cst : f32 to vector<16x1xf32>
    %c0 = arith.constant 0 : index
    %c0_0 = arith.constant 0 : index
    %1 = vector.load %arg5[%c0, %c0_0] : memref<16x56xf32, #tpu.memory_space<vmem>>, vector<16x56xf32>
    %c0_1 = arith.constant 0 : index
    %c0_2 = arith.constant 0 : index
    %2 = vector.load %arg0[%c0_1, %c0_2] : memref<56x16xf32, #tpu.memory_space<vmem>>, vector<56x16xf32>
    %cst_3 = arith.constant dense<0.000000e+00> : vector<16x16xf32>
    %3 = tpu.matmul %1, %2, %cst_3 {dimension_numbers = #tpu.dot_dimension_numbers<[1], [0], [0], [1], [0, 0, 1, 1], [], []>} : vector<16x56xf32>, vector<56x16xf32>, vector<16x16xf32> -> vector<16x16xf32>
    %c0_4 = arith.constant 0 : index
    %c0_5 = arith.constant 0 : index
    %4 = vector.load %arg6[%c0_4, %c0_5] : memref<16x1xf32, #tpu.memory_space<vmem>>, vector<16x1xf32>
    %5 = vector.broadcast %4 : vector<16x1xf32> to vector<16x16xf32>
    %6 = arith.addf %3, %5 : vector<16x16xf32>
    %cst_6 = arith.constant dense<0.000000e+00> : vector<16x1xf32>
    %7 = tpu.matmul %6, %0, %cst_6 {dimension_numbers = #tpu.dot_dimension_numbers<[1], [0], [0], [1], [0, 0, 1, 1], [], []>} : vector<16x16xf32>, vector<16x1xf32>, vector<16x1xf32> -> vector<16x1xf32>
    %cst_7 = arith.constant 6.250000e-02 : f32
    %8 = vector.broadcast %cst_7 : f32 to vector<16x1xf32>
    %9 = arith.mulf %7, %8 : vector<16x1xf32>
    %10 = vector.broadcast %9 : vector<16x1xf32> to vector<16x16xf32>
    %11 = arith.subf %6, %10 : vector<16x16xf32>
    %12 = arith.mulf %11, %11 : vector<16x16xf32>
    %cst_8 = arith.constant dense<0.000000e+00> : vector<16x1xf32>
    %13 = tpu.matmul %12, %0, %cst_8 {dimension_numbers = #tpu.dot_dimension_numbers<[1], [0], [0], [1], [0, 0, 1, 1], [], []>} : vector<16x16xf32>, vector<16x1xf32>, vector<16x1xf32> -> vector<16x1xf32>
    %cst_9 = arith.constant 6.250000e-02 : f32
    %14 = vector.broadcast %cst_9 : f32 to vector<16x1xf32>
    %15 = arith.mulf %13, %14 : vector<16x1xf32>
    %cst_10 = arith.constant 9.99999974E-6 : f32
    %16 = vector.broadcast %cst_10 : f32 to vector<16x1xf32>
    %17 = arith.addf %15, %16 : vector<16x1xf32>
    %18 = math.rsqrt %17 : vector<16x1xf32>
    %19 = vector.broadcast %18 : vector<16x1xf32> to vector<16x16xf32>
    %20 = arith.mulf %11, %19 : vector<16x16xf32>
    %c0_11 = arith.constant 0 : index
    %c0_12 = arith.constant 0 : index
    %21 = vector.load %arg7[%c0_11, %c0_12] : memref<16x1xf32, #tpu.memory_space<vmem>>, vector<16x1xf32>
    %22 = vector.broadcast %21 : vector<16x1xf32> to vector<16x16xf32>
    %23 = arith.mulf %20, %22 : vector<16x16xf32>
    %c0_13 = arith.constant 0 : index
    %c0_14 = arith.constant 0 : index
    %24 = vector.load %arg8[%c0_13, %c0_14] : memref<16x1xf32, #tpu.memory_space<vmem>>, vector<16x1xf32>
    %25 = vector.broadcast %24 : vector<16x1xf32> to vector<16x16xf32>
    %26 = arith.addf %23, %25 : vector<16x16xf32>
    %cst_15 = arith.constant 0.000000e+00 : f32
    %27 = vector.broadcast %cst_15 : f32 to vector<16x16xf32>
    %28 = arith.maximumf %26, %27 : vector<16x16xf32>
    %c0_16 = arith.constant 0 : index
    %c0_17 = arith.constant 0 : index
    %29 = vector.load %arg1[%c0_16, %c0_17] : memref<3x16xi32, #tpu.memory_space<vmem>>, vector<3x16xi32>
    %30 = tpu.iota {dimensions = array<i32: 0>} : vector<8x16xi32>
    %31 = vector.extract_strided_slice %29 {offsets = [0, 0], sizes = [1, 16], strides = [1, 1]} : vector<3x16xi32> to vector<1x16xi32>
    %32 = vector.broadcast %31 : vector<1x16xi32> to vector<8x16xi32>
    %33 = arith.cmpi eq, %30, %32 : vector<8x16xi32>
    %34 = arith.extui %33 : vector<8x16xi1> to vector<8x16xi32>
    %35 = arith.sitofp %34 : vector<8x16xi32> to vector<8x16xf32>
    %36 = vector.extract_strided_slice %29 {offsets = [1, 0], sizes = [1, 16], strides = [1, 1]} : vector<3x16xi32> to vector<1x16xi32>
    %37 = vector.broadcast %36 : vector<1x16xi32> to vector<8x16xi32>
    %38 = arith.cmpi eq, %30, %37 : vector<8x16xi32>
    %39 = arith.extui %38 : vector<8x16xi1> to vector<8x16xi32>
    %40 = arith.sitofp %39 : vector<8x16xi32> to vector<8x16xf32>
    %41 = vector.extract_strided_slice %29 {offsets = [2, 0], sizes = [1, 16], strides = [1, 1]} : vector<3x16xi32> to vector<1x16xi32>
    %42 = vector.broadcast %41 : vector<1x16xi32> to vector<8x16xi32>
    %43 = arith.cmpi eq, %30, %42 : vector<8x16xi32>
    %44 = arith.extui %43 : vector<8x16xi1> to vector<8x16xi32>
    %45 = arith.sitofp %44 : vector<8x16xi32> to vector<8x16xf32>
    %46 = tpu.iota {dimensions = array<i32: 1>} : vector<16x8xi32>
    %c0_18 = arith.constant 0 : index
    %c0_19 = arith.constant 0 : index
    %47 = vector.load %arg2[%c0_18, %c0_19] : memref<16x1xi32, #tpu.memory_space<vmem>>, vector<16x1xi32>
    %48 = vector.broadcast %47 : vector<16x1xi32> to vector<16x8xi32>
    %49 = arith.cmpi eq, %46, %48 : vector<16x8xi32>
    %50 = arith.extui %49 : vector<16x8xi1> to vector<16x8xi32>
    %51 = arith.sitofp %50 : vector<16x8xi32> to vector<16x8xf32>
    %c0_20 = arith.constant 0 : index
    %c0_21 = arith.constant 0 : index
    %52 = vector.load %arg3[%c0_20, %c0_21] : memref<1x16xf32, #tpu.memory_space<vmem>>, vector<1x16xf32>
    %53 = tpu.iota {dimensions = array<i32: 0>} : vector<32x16xi32>
    %c16_i32 = arith.constant 16 : i32
    %54 = vector.broadcast %c16_i32 : i32 to vector<32x16xi32>
    %55 = arith.cmpi slt, %53, %54 : vector<32x16xi32>
    %cst_22 = arith.constant 1.000000e+00 : f32
    %56 = vector.broadcast %cst_22 : f32 to vector<1x16xf32>
    %57 = arith.subf %56, %52 : vector<1x16xf32>
    %58 = vector.shape_cast %52 : vector<1x16xf32> to vector<1x16xf32>
    %59 = vector.broadcast %58 : vector<1x16xf32> to vector<32x16xf32>
    %60 = vector.shape_cast %57 : vector<1x16xf32> to vector<1x16xf32>
    %61 = vector.broadcast %60 : vector<1x16xf32> to vector<32x16xf32>
    %62 = arith.select %55, %59, %61 : vector<32x16xi1>, vector<32x16xf32>
    %63 = tpu.iota {dimensions = array<i32: 0>} : vector<32x1xi32>
    %cst_23 = arith.constant dense<0.000000e+00> : vector<1xf32>
    %64 = vector.multi_reduction <add>, %52, %cst_23 [1] : vector<1x16xf32> to vector<1xf32>
    %65 = vector.shape_cast %64 : vector<1xf32> to vector<1x1xf32>
    %c16_i32_24 = arith.constant 16 : i32
    %66 = vector.broadcast %c16_i32_24 : i32 to vector<32x1xi32>
    %67 = arith.cmpi slt, %63, %66 : vector<32x1xi32>
    %cst_25 = arith.constant 1.600000e+01 : f32
    %68 = vector.broadcast %cst_25 : f32 to vector<1x1xf32>
    %69 = arith.subf %68, %65 : vector<1x1xf32>
    %70 = vector.shape_cast %65 : vector<1x1xf32> to vector<1x1xf32>
    %71 = vector.broadcast %70 : vector<1x1xf32> to vector<32x1xf32>
    %72 = vector.shape_cast %69 : vector<1x1xf32> to vector<1x1xf32>
    %73 = vector.broadcast %72 : vector<1x1xf32> to vector<32x1xf32>
    %74 = arith.select %67, %71, %73 : vector<32x1xi1>, vector<32x1xf32>
    %cst_26 = arith.constant 1.000000e+00 : f32
    %75 = vector.broadcast %cst_26 : f32 to vector<32x1xf32>
    %76 = arith.maximumf %74, %75 : vector<32x1xf32>
    %cst_27 = arith.constant 1.000000e+00 : f32
    %77 = vector.broadcast %cst_27 : f32 to vector<32x1xf32>
    %78 = arith.divf %77, %76 : vector<32x1xf32>
    %c0_28 = arith.constant 0 : index
    %c0_29 = arith.constant 0 : index
    %79 = vector.load %arg17[%c0_28, %c0_29] : memref<16x32xf32, #tpu.memory_space<vmem>>, vector<16x32xf32>
    %c0_30 = arith.constant 0 : index
    %c0_31 = arith.constant 0 : index
    %80 = vector.load %arg4[%c0_30, %c0_31] : memref<16x8xf32, #tpu.memory_space<vmem>>, vector<16x8xf32>
    %cst_32 = arith.constant dense<0.000000e+00> : vector<16x16xf32>
    %81 = tpu.matmul %80, %35, %cst_32 {dimension_numbers = #tpu.dot_dimension_numbers<[1], [0], [0], [1], [0, 0, 1, 1], [], []>} : vector<16x8xf32>, vector<8x16xf32>, vector<16x16xf32> -> vector<16x16xf32>
    %cst_33 = arith.constant dense<0.000000e+00> : vector<16x16xf32>
    %82 = tpu.matmul %80, %40, %cst_33 {dimension_numbers = #tpu.dot_dimension_numbers<[1], [0], [0], [1], [0, 0, 1, 1], [], []>} : vector<16x8xf32>, vector<8x16xf32>, vector<16x16xf32> -> vector<16x16xf32>
    %cst_34 = arith.constant dense<0.000000e+00> : vector<16x16xf32>
    %83 = tpu.matmul %80, %45, %cst_34 {dimension_numbers = #tpu.dot_dimension_numbers<[1], [0], [0], [1], [0, 0, 1, 1], [], []>} : vector<16x8xf32>, vector<8x16xf32>, vector<16x16xf32> -> vector<16x16xf32>
    %84 = tpu.concatenate %81, %82, %83, %28 in 0 : vector<16x16xf32>, vector<16x16xf32>, vector<16x16xf32>, vector<16x16xf32> -> vector<64x16xf32>
    %c0_35 = arith.constant 0 : index
    %c0_36 = arith.constant 0 : index
    %c0_37 = arith.constant 0 : index
    %85 = vector.load %arg9[%c0_35, %c0_36, %c0_37] : memref<3x32x64xf32, #tpu.memory_space<vmem>>, vector<1x32x64xf32>
    %86 = vector.shape_cast %85 : vector<1x32x64xf32> to vector<32x64xf32>
    %cst_38 = arith.constant dense<0.000000e+00> : vector<32x16xf32>
    %87 = tpu.matmul %86, %84, %cst_38 {dimension_numbers = #tpu.dot_dimension_numbers<[1], [0], [0], [1], [0, 0, 1, 1], [], []>} : vector<32x64xf32>, vector<64x16xf32>, vector<32x16xf32> -> vector<32x16xf32>
    %c0_39 = arith.constant 0 : index
    %c0_40 = arith.constant 0 : index
    %c0_41 = arith.constant 0 : index
    %88 = vector.load %arg10[%c0_39, %c0_40, %c0_41] : memref<3x32x1xf32, #tpu.memory_space<vmem>>, vector<1x32x1xf32>
    %89 = vector.shape_cast %88 : vector<1x32x1xf32> to vector<32x1xf32>
    %90 = vector.broadcast %89 : vector<32x1xf32> to vector<32x16xf32>
    %91 = arith.addf %87, %90 : vector<32x16xf32>
    %c0_42 = arith.constant 0 : index
    %c0_43 = arith.constant 0 : index
    %c0_44 = arith.constant 0 : index
    %92 = vector.load %arg11[%c0_42, %c0_43, %c0_44] : memref<3x32x1xf32, #tpu.memory_space<vmem>>, vector<1x32x1xf32>
    %93 = vector.shape_cast %92 : vector<1x32x1xf32> to vector<32x1xf32>
    %c0_45 = arith.constant 0 : index
    %c0_46 = arith.constant 0 : index
    %c0_47 = arith.constant 0 : index
    %94 = vector.load %arg12[%c0_45, %c0_46, %c0_47] : memref<3x32x1xf32, #tpu.memory_space<vmem>>, vector<1x32x1xf32>
    %95 = vector.shape_cast %94 : vector<1x32x1xf32> to vector<32x1xf32>
    %96 = arith.mulf %91, %62 : vector<32x16xf32>
    %cst_48 = arith.constant dense<0.000000e+00> : vector<32x1xf32>
    %97 = tpu.matmul %96, %0, %cst_48 {dimension_numbers = #tpu.dot_dimension_numbers<[1], [0], [0], [1], [0, 0, 1, 1], [], []>} : vector<32x16xf32>, vector<16x1xf32>, vector<32x1xf32> -> vector<32x1xf32>
    %98 = arith.mulf %97, %78 : vector<32x1xf32>
    %99 = vector.broadcast %98 : vector<32x1xf32> to vector<32x16xf32>
    %100 = arith.subf %91, %99 : vector<32x16xf32>
    %101 = arith.mulf %100, %100 : vector<32x16xf32>
    %102 = arith.mulf %101, %62 : vector<32x16xf32>
    %cst_49 = arith.constant dense<0.000000e+00> : vector<32x1xf32>
    %103 = tpu.matmul %102, %0, %cst_49 {dimension_numbers = #tpu.dot_dimension_numbers<[1], [0], [0], [1], [0, 0, 1, 1], [], []>} : vector<32x16xf32>, vector<16x1xf32>, vector<32x1xf32> -> vector<32x1xf32>
    %104 = arith.mulf %103, %78 : vector<32x1xf32>
    %cst_50 = arith.constant 9.99999974E-6 : f32
    %105 = vector.broadcast %cst_50 : f32 to vector<32x1xf32>
    %106 = arith.addf %104, %105 : vector<32x1xf32>
    %107 = math.rsqrt %106 : vector<32x1xf32>
    %108 = vector.broadcast %107 : vector<32x1xf32> to vector<32x16xf32>
    %109 = arith.mulf %100, %108 : vector<32x16xf32>
    %110 = vector.broadcast %93 : vector<32x1xf32> to vector<32x16xf32>
    %111 = arith.mulf %109, %110 : vector<32x16xf32>
    %112 = vector.broadcast %95 : vector<32x1xf32> to vector<32x16xf32>
    %113 = arith.addf %111, %112 : vector<32x16xf32>
    %cst_51 = arith.constant 0.000000e+00 : f32
    %114 = vector.broadcast %cst_51 : f32 to vector<32x16xf32>
    %115 = arith.maximumf %113, %114 : vector<32x16xf32>
    %c0_52 = arith.constant 0 : index
    %c0_53 = arith.constant 0 : index
    %c0_54 = arith.constant 0 : index
    %c0_55 = arith.constant 0 : index
    %116 = vector.load %arg13[%c0_52, %c0_53, %c0_54, %c0_55] : memref<3x3x32x32xf32, #tpu.memory_space<vmem>>, vector<1x1x32x32xf32>
    %117 = vector.shape_cast %116 : vector<1x1x32x32xf32> to vector<32x32xf32>
    %cst_56 = arith.constant dense<0.000000e+00> : vector<32x16xf32>
    %118 = tpu.matmul %117, %115, %cst_56 {dimension_numbers = #tpu.dot_dimension_numbers<[1], [0], [0], [1], [0, 0, 1, 1], [], []>} : vector<32x32xf32>, vector<32x16xf32>, vector<32x16xf32> -> vector<32x16xf32>
    %c0_57 = arith.constant 0 : index
    %c0_58 = arith.constant 0 : index
    %c0_59 = arith.constant 0 : index
    %c0_60 = arith.constant 0 : index
    %119 = vector.load %arg14[%c0_57, %c0_58, %c0_59, %c0_60] : memref<3x3x32x1xf32, #tpu.memory_space<vmem>>, vector<1x1x32x1xf32>
    %120 = vector.shape_cast %119 : vector<1x1x32x1xf32> to vector<32x1xf32>
    %121 = vector.broadcast %120 : vector<32x1xf32> to vector<32x16xf32>
    %122 = arith.addf %118, %121 : vector<32x16xf32>
    %c0_61 = arith.constant 0 : index
    %c0_62 = arith.constant 0 : index
    %c0_63 = arith.constant 0 : index
    %c0_64 = arith.constant 0 : index
    %123 = vector.load %arg15[%c0_61, %c0_62, %c0_63, %c0_64] : memref<3x3x32x1xf32, #tpu.memory_space<vmem>>, vector<1x1x32x1xf32>
    %124 = vector.shape_cast %123 : vector<1x1x32x1xf32> to vector<32x1xf32>
    %c0_65 = arith.constant 0 : index
    %c0_66 = arith.constant 0 : index
    %c0_67 = arith.constant 0 : index
    %c0_68 = arith.constant 0 : index
    %125 = vector.load %arg16[%c0_65, %c0_66, %c0_67, %c0_68] : memref<3x3x32x1xf32, #tpu.memory_space<vmem>>, vector<1x1x32x1xf32>
    %126 = vector.shape_cast %125 : vector<1x1x32x1xf32> to vector<32x1xf32>
    %127 = arith.mulf %122, %62 : vector<32x16xf32>
    %cst_69 = arith.constant dense<0.000000e+00> : vector<32x1xf32>
    %128 = tpu.matmul %127, %0, %cst_69 {dimension_numbers = #tpu.dot_dimension_numbers<[1], [0], [0], [1], [0, 0, 1, 1], [], []>} : vector<32x16xf32>, vector<16x1xf32>, vector<32x1xf32> -> vector<32x1xf32>
    %129 = arith.mulf %128, %78 : vector<32x1xf32>
    %130 = vector.broadcast %129 : vector<32x1xf32> to vector<32x16xf32>
    %131 = arith.subf %122, %130 : vector<32x16xf32>
    %132 = arith.mulf %131, %131 : vector<32x16xf32>
    %133 = arith.mulf %132, %62 : vector<32x16xf32>
    %cst_70 = arith.constant dense<0.000000e+00> : vector<32x1xf32>
    %134 = tpu.matmul %133, %0, %cst_70 {dimension_numbers = #tpu.dot_dimension_numbers<[1], [0], [0], [1], [0, 0, 1, 1], [], []>} : vector<32x16xf32>, vector<16x1xf32>, vector<32x1xf32> -> vector<32x1xf32>
    %135 = arith.mulf %134, %78 : vector<32x1xf32>
    %cst_71 = arith.constant 9.99999974E-6 : f32
    %136 = vector.broadcast %cst_71 : f32 to vector<32x1xf32>
    %137 = arith.addf %135, %136 : vector<32x1xf32>
    %138 = math.rsqrt %137 : vector<32x1xf32>
    %139 = vector.broadcast %138 : vector<32x1xf32> to vector<32x16xf32>
    %140 = arith.mulf %131, %139 : vector<32x16xf32>
    %141 = vector.broadcast %124 : vector<32x1xf32> to vector<32x16xf32>
    %142 = arith.mulf %140, %141 : vector<32x16xf32>
    %143 = vector.broadcast %126 : vector<32x1xf32> to vector<32x16xf32>
    %144 = arith.addf %142, %143 : vector<32x16xf32>
    %cst_72 = arith.constant 0.000000e+00 : f32
    %145 = vector.broadcast %cst_72 : f32 to vector<32x16xf32>
    %146 = arith.maximumf %144, %145 : vector<32x16xf32>
    %c0_73 = arith.constant 0 : index
    %c1 = arith.constant 1 : index
    %c0_74 = arith.constant 0 : index
    %c0_75 = arith.constant 0 : index
    %147 = vector.load %arg13[%c0_73, %c1, %c0_74, %c0_75] : memref<3x3x32x32xf32, #tpu.memory_space<vmem>>, vector<1x1x32x32xf32>
    %148 = vector.shape_cast %147 : vector<1x1x32x32xf32> to vector<32x32xf32>
    %cst_76 = arith.constant dense<0.000000e+00> : vector<32x16xf32>
    %149 = tpu.matmul %148, %146, %cst_76 {dimension_numbers = #tpu.dot_dimension_numbers<[1], [0], [0], [1], [0, 0, 1, 1], [], []>} : vector<32x32xf32>, vector<32x16xf32>, vector<32x16xf32> -> vector<32x16xf32>
    %c0_77 = arith.constant 0 : index
    %c1_78 = arith.constant 1 : index
    %c0_79 = arith.constant 0 : index
    %c0_80 = arith.constant 0 : index
    %150 = vector.load %arg14[%c0_77, %c1_78, %c0_79, %c0_80] : memref<3x3x32x1xf32, #tpu.memory_space<vmem>>, vector<1x1x32x1xf32>
    %151 = vector.shape_cast %150 : vector<1x1x32x1xf32> to vector<32x1xf32>
    %152 = vector.broadcast %151 : vector<32x1xf32> to vector<32x16xf32>
    %153 = arith.addf %149, %152 : vector<32x16xf32>
    %c0_81 = arith.constant 0 : index
    %c1_82 = arith.constant 1 : index
    %c0_83 = arith.constant 0 : index
    %c0_84 = arith.constant 0 : index
    %154 = vector.load %arg15[%c0_81, %c1_82, %c0_83, %c0_84] : memref<3x3x32x1xf32, #tpu.memory_space<vmem>>, vector<1x1x32x1xf32>
    %155 = vector.shape_cast %154 : vector<1x1x32x1xf32> to vector<32x1xf32>
    %c0_85 = arith.constant 0 : index
    %c1_86 = arith.constant 1 : index
    %c0_87 = arith.constant 0 : index
    %c0_88 = arith.constant 0 : index
    %156 = vector.load %arg16[%c0_85, %c1_86, %c0_87, %c0_88] : memref<3x3x32x1xf32, #tpu.memory_space<vmem>>, vector<1x1x32x1xf32>
    %157 = vector.shape_cast %156 : vector<1x1x32x1xf32> to vector<32x1xf32>
    %158 = arith.mulf %153, %62 : vector<32x16xf32>
    %cst_89 = arith.constant dense<0.000000e+00> : vector<32x1xf32>
    %159 = tpu.matmul %158, %0, %cst_89 {dimension_numbers = #tpu.dot_dimension_numbers<[1], [0], [0], [1], [0, 0, 1, 1], [], []>} : vector<32x16xf32>, vector<16x1xf32>, vector<32x1xf32> -> vector<32x1xf32>
    %160 = arith.mulf %159, %78 : vector<32x1xf32>
    %161 = vector.broadcast %160 : vector<32x1xf32> to vector<32x16xf32>
    %162 = arith.subf %153, %161 : vector<32x16xf32>
    %163 = arith.mulf %162, %162 : vector<32x16xf32>
    %164 = arith.mulf %163, %62 : vector<32x16xf32>
    %cst_90 = arith.constant dense<0.000000e+00> : vector<32x1xf32>
    %165 = tpu.matmul %164, %0, %cst_90 {dimension_numbers = #tpu.dot_dimension_numbers<[1], [0], [0], [1], [0, 0, 1, 1], [], []>} : vector<32x16xf32>, vector<16x1xf32>, vector<32x1xf32> -> vector<32x1xf32>
    %166 = arith.mulf %165, %78 : vector<32x1xf32>
    %cst_91 = arith.constant 9.99999974E-6 : f32
    %167 = vector.broadcast %cst_91 : f32 to vector<32x1xf32>
    %168 = arith.addf %166, %167 : vector<32x1xf32>
    %169 = math.rsqrt %168 : vector<32x1xf32>
    %170 = vector.broadcast %169 : vector<32x1xf32> to vector<32x16xf32>
    %171 = arith.mulf %162, %170 : vector<32x16xf32>
    %172 = vector.broadcast %155 : vector<32x1xf32> to vector<32x16xf32>
    %173 = arith.mulf %171, %172 : vector<32x16xf32>
    %174 = vector.broadcast %157 : vector<32x1xf32> to vector<32x16xf32>
    %175 = arith.addf %173, %174 : vector<32x16xf32>
    %cst_92 = arith.constant 0.000000e+00 : f32
    %176 = vector.broadcast %cst_92 : f32 to vector<32x16xf32>
    %177 = arith.maximumf %175, %176 : vector<32x16xf32>
    %c0_93 = arith.constant 0 : index
    %c2 = arith.constant 2 : index
    %c0_94 = arith.constant 0 : index
    %c0_95 = arith.constant 0 : index
    %178 = vector.load %arg13[%c0_93, %c2, %c0_94, %c0_95] : memref<3x3x32x32xf32, #tpu.memory_space<vmem>>, vector<1x1x32x32xf32>
    %179 = vector.shape_cast %178 : vector<1x1x32x32xf32> to vector<32x32xf32>
    %cst_96 = arith.constant dense<0.000000e+00> : vector<32x16xf32>
    %180 = tpu.matmul %179, %177, %cst_96 {dimension_numbers = #tpu.dot_dimension_numbers<[1], [0], [0], [1], [0, 0, 1, 1], [], []>} : vector<32x32xf32>, vector<32x16xf32>, vector<32x16xf32> -> vector<32x16xf32>
    %c0_97 = arith.constant 0 : index
    %c2_98 = arith.constant 2 : index
    %c0_99 = arith.constant 0 : index
    %c0_100 = arith.constant 0 : index
    %181 = vector.load %arg14[%c0_97, %c2_98, %c0_99, %c0_100] : memref<3x3x32x1xf32, #tpu.memory_space<vmem>>, vector<1x1x32x1xf32>
    %182 = vector.shape_cast %181 : vector<1x1x32x1xf32> to vector<32x1xf32>
    %183 = vector.broadcast %182 : vector<32x1xf32> to vector<32x16xf32>
    %184 = arith.addf %180, %183 : vector<32x16xf32>
    %c0_101 = arith.constant 0 : index
    %c2_102 = arith.constant 2 : index
    %c0_103 = arith.constant 0 : index
    %c0_104 = arith.constant 0 : index
    %185 = vector.load %arg15[%c0_101, %c2_102, %c0_103, %c0_104] : memref<3x3x32x1xf32, #tpu.memory_space<vmem>>, vector<1x1x32x1xf32>
    %186 = vector.shape_cast %185 : vector<1x1x32x1xf32> to vector<32x1xf32>
    %c0_105 = arith.constant 0 : index
    %c2_106 = arith.constant 2 : index
    %c0_107 = arith.constant 0 : index
    %c0_108 = arith.constant 0 : index
    %187 = vector.load %arg16[%c0_105, %c2_106, %c0_107, %c0_108] : memref<3x3x32x1xf32, #tpu.memory_space<vmem>>, vector<1x1x32x1xf32>
    %188 = vector.shape_cast %187 : vector<1x1x32x1xf32> to vector<32x1xf32>
    %189 = arith.mulf %184, %62 : vector<32x16xf32>
    %cst_109 = arith.constant dense<0.000000e+00> : vector<32x1xf32>
    %190 = tpu.matmul %189, %0, %cst_109 {dimension_numbers = #tpu.dot_dimension_numbers<[1], [0], [0], [1], [0, 0, 1, 1], [], []>} : vector<32x16xf32>, vector<16x1xf32>, vector<32x1xf32> -> vector<32x1xf32>
    %191 = arith.mulf %190, %78 : vector<32x1xf32>
    %192 = vector.broadcast %191 : vector<32x1xf32> to vector<32x16xf32>
    %193 = arith.subf %184, %192 : vector<32x16xf32>
    %194 = arith.mulf %193, %193 : vector<32x16xf32>
    %195 = arith.mulf %194, %62 : vector<32x16xf32>
    %cst_110 = arith.constant dense<0.000000e+00> : vector<32x1xf32>
    %196 = tpu.matmul %195, %0, %cst_110 {dimension_numbers = #tpu.dot_dimension_numbers<[1], [0], [0], [1], [0, 0, 1, 1], [], []>} : vector<32x16xf32>, vector<16x1xf32>, vector<32x1xf32> -> vector<32x1xf32>
    %197 = arith.mulf %196, %78 : vector<32x1xf32>
    %cst_111 = arith.constant 9.99999974E-6 : f32
    %198 = vector.broadcast %cst_111 : f32 to vector<32x1xf32>
    %199 = arith.addf %197, %198 : vector<32x1xf32>
    %200 = math.rsqrt %199 : vector<32x1xf32>
    %201 = vector.broadcast %200 : vector<32x1xf32> to vector<32x16xf32>
    %202 = arith.mulf %193, %201 : vector<32x16xf32>
    %203 = vector.broadcast %186 : vector<32x1xf32> to vector<32x16xf32>
    %204 = arith.mulf %202, %203 : vector<32x16xf32>
    %205 = vector.broadcast %188 : vector<32x1xf32> to vector<32x16xf32>
    %206 = arith.addf %204, %205 : vector<32x16xf32>
    %cst_112 = arith.constant 0.000000e+00 : f32
    %207 = vector.broadcast %cst_112 : f32 to vector<32x16xf32>
    %208 = arith.maximumf %206, %207 : vector<32x16xf32>
    %209 = arith.mulf %208, %62 : vector<32x16xf32>
    %cst_113 = arith.constant dense<0.000000e+00> : vector<32x8xf32>
    %210 = tpu.matmul %209, %51, %cst_113 {dimension_numbers = #tpu.dot_dimension_numbers<[1], [0], [0], [1], [0, 0, 1, 1], [], []>} : vector<32x16xf32>, vector<16x8xf32>, vector<32x8xf32> -> vector<32x8xf32>
    %cst_114 = arith.constant dense<0.000000e+00> : vector<16x8xf32>
    %211 = tpu.matmul %79, %210, %cst_114 {dimension_numbers = #tpu.dot_dimension_numbers<[1], [0], [0], [1], [0, 0, 1, 1], [], []>} : vector<16x32xf32>, vector<32x8xf32>, vector<16x8xf32> -> vector<16x8xf32>
    %c0_115 = arith.constant 0 : index
    %c0_116 = arith.constant 0 : index
    %c0_117 = arith.constant 0 : index
    %212 = vector.load %arg18[%c0_115, %c0_116, %c0_117] : memref<3x16x8xf32, #tpu.memory_space<vmem>>, vector<1x16x8xf32>
    %213 = vector.shape_cast %212 : vector<1x16x8xf32> to vector<16x8xf32>
    %214 = vector.shape_cast %211 : vector<16x8xf32> to vector<1x16x8xf32>
    tpu.vector_store %arg18[%c0_115, %c0_116, %c0_117], %214 {strides = array<i32>} : memref<3x16x8xf32, #tpu.memory_space<vmem>>, vector<1x16x8xf32>,
    %cst_118 = arith.constant dense<0.000000e+00> : vector<16x16xf32>
    %215 = tpu.matmul %211, %35, %cst_118 {dimension_numbers = #tpu.dot_dimension_numbers<[1], [0], [0], [1], [0, 0, 1, 1], [], []>} : vector<16x8xf32>, vector<8x16xf32>, vector<16x16xf32> -> vector<16x16xf32>
    %cst_119 = arith.constant dense<0.000000e+00> : vector<16x16xf32>
    %216 = tpu.matmul %211, %40, %cst_119 {dimension_numbers = #tpu.dot_dimension_numbers<[1], [0], [0], [1], [0, 0, 1, 1], [], []>} : vector<16x8xf32>, vector<8x16xf32>, vector<16x16xf32> -> vector<16x16xf32>
    %cst_120 = arith.constant dense<0.000000e+00> : vector<16x16xf32>
    %217 = tpu.matmul %211, %45, %cst_120 {dimension_numbers = #tpu.dot_dimension_numbers<[1], [0], [0], [1], [0, 0, 1, 1], [], []>} : vector<16x8xf32>, vector<8x16xf32>, vector<16x16xf32> -> vector<16x16xf32>
    %218 = tpu.concatenate %215, %216, %217, %28 in 0 : vector<16x16xf32>, vector<16x16xf32>, vector<16x16xf32>, vector<16x16xf32> -> vector<64x16xf32>
    %c1_121 = arith.constant 1 : index
    %c0_122 = arith.constant 0 : index
    %c0_123 = arith.constant 0 : index
    %219 = vector.load %arg9[%c1_121, %c0_122, %c0_123] : memref<3x32x64xf32, #tpu.memory_space<vmem>>, vector<1x32x64xf32>
    %220 = vector.shape_cast %219 : vector<1x32x64xf32> to vector<32x64xf32>
    %cst_124 = arith.constant dense<0.000000e+00> : vector<32x16xf32>
    %221 = tpu.matmul %220, %218, %cst_124 {dimension_numbers = #tpu.dot_dimension_numbers<[1], [0], [0], [1], [0, 0, 1, 1], [], []>} : vector<32x64xf32>, vector<64x16xf32>, vector<32x16xf32> -> vector<32x16xf32>
    %c1_125 = arith.constant 1 : index
    %c0_126 = arith.constant 0 : index
    %c0_127 = arith.constant 0 : index
    %222 = vector.load %arg10[%c1_125, %c0_126, %c0_127] : memref<3x32x1xf32, #tpu.memory_space<vmem>>, vector<1x32x1xf32>
    %223 = vector.shape_cast %222 : vector<1x32x1xf32> to vector<32x1xf32>
    %224 = vector.broadcast %223 : vector<32x1xf32> to vector<32x16xf32>
    %225 = arith.addf %221, %224 : vector<32x16xf32>
    %c1_128 = arith.constant 1 : index
    %c0_129 = arith.constant 0 : index
    %c0_130 = arith.constant 0 : index
    %226 = vector.load %arg11[%c1_128, %c0_129, %c0_130] : memref<3x32x1xf32, #tpu.memory_space<vmem>>, vector<1x32x1xf32>
    %227 = vector.shape_cast %226 : vector<1x32x1xf32> to vector<32x1xf32>
    %c1_131 = arith.constant 1 : index
    %c0_132 = arith.constant 0 : index
    %c0_133 = arith.constant 0 : index
    %228 = vector.load %arg12[%c1_131, %c0_132, %c0_133] : memref<3x32x1xf32, #tpu.memory_space<vmem>>, vector<1x32x1xf32>
    %229 = vector.shape_cast %228 : vector<1x32x1xf32> to vector<32x1xf32>
    %230 = arith.mulf %225, %62 : vector<32x16xf32>
    %cst_134 = arith.constant dense<0.000000e+00> : vector<32x1xf32>
    %231 = tpu.matmul %230, %0, %cst_134 {dimension_numbers = #tpu.dot_dimension_numbers<[1], [0], [0], [1], [0, 0, 1, 1], [], []>} : vector<32x16xf32>, vector<16x1xf32>, vector<32x1xf32> -> vector<32x1xf32>
    %232 = arith.mulf %231, %78 : vector<32x1xf32>
    %233 = vector.broadcast %232 : vector<32x1xf32> to vector<32x16xf32>
    %234 = arith.subf %225, %233 : vector<32x16xf32>
    %235 = arith.mulf %234, %234 : vector<32x16xf32>
    %236 = arith.mulf %235, %62 : vector<32x16xf32>
    %cst_135 = arith.constant dense<0.000000e+00> : vector<32x1xf32>
    %237 = tpu.matmul %236, %0, %cst_135 {dimension_numbers = #tpu.dot_dimension_numbers<[1], [0], [0], [1], [0, 0, 1, 1], [], []>} : vector<32x16xf32>, vector<16x1xf32>, vector<32x1xf32> -> vector<32x1xf32>
    %238 = arith.mulf %237, %78 : vector<32x1xf32>
    %cst_136 = arith.constant 9.99999974E-6 : f32
    %239 = vector.broadcast %cst_136 : f32 to vector<32x1xf32>
    %240 = arith.addf %238, %239 : vector<32x1xf32>
    %241 = math.rsqrt %240 : vector<32x1xf32>
    %242 = vector.broadcast %241 : vector<32x1xf32> to vector<32x16xf32>
    %243 = arith.mulf %234, %242 : vector<32x16xf32>
    %244 = vector.broadcast %227 : vector<32x1xf32> to vector<32x16xf32>
    %245 = arith.mulf %243, %244 : vector<32x16xf32>
    %246 = vector.broadcast %229 : vector<32x1xf32> to vector<32x16xf32>
    %247 = arith.addf %245, %246 : vector<32x16xf32>
    %cst_137 = arith.constant 0.000000e+00 : f32
    %248 = vector.broadcast %cst_137 : f32 to vector<32x16xf32>
    %249 = arith.maximumf %247, %248 : vector<32x16xf32>
    %c1_138 = arith.constant 1 : index
    %c0_139 = arith.constant 0 : index
    %c0_140 = arith.constant 0 : index
    %c0_141 = arith.constant 0 : index
    %250 = vector.load %arg13[%c1_138, %c0_139, %c0_140, %c0_141] : memref<3x3x32x32xf32, #tpu.memory_space<vmem>>, vector<1x1x32x32xf32>
    %251 = vector.shape_cast %250 : vector<1x1x32x32xf32> to vector<32x32xf32>
    %cst_142 = arith.constant dense<0.000000e+00> : vector<32x16xf32>
    %252 = tpu.matmul %251, %249, %cst_142 {dimension_numbers = #tpu.dot_dimension_numbers<[1], [0], [0], [1], [0, 0, 1, 1], [], []>} : vector<32x32xf32>, vector<32x16xf32>, vector<32x16xf32> -> vector<32x16xf32>
    %c1_143 = arith.constant 1 : index
    %c0_144 = arith.constant 0 : index
    %c0_145 = arith.constant 0 : index
    %c0_146 = arith.constant 0 : index
    %253 = vector.load %arg14[%c1_143, %c0_144, %c0_145, %c0_146] : memref<3x3x32x1xf32, #tpu.memory_space<vmem>>, vector<1x1x32x1xf32>
    %254 = vector.shape_cast %253 : vector<1x1x32x1xf32> to vector<32x1xf32>
    %255 = vector.broadcast %254 : vector<32x1xf32> to vector<32x16xf32>
    %256 = arith.addf %252, %255 : vector<32x16xf32>
    %c1_147 = arith.constant 1 : index
    %c0_148 = arith.constant 0 : index
    %c0_149 = arith.constant 0 : index
    %c0_150 = arith.constant 0 : index
    %257 = vector.load %arg15[%c1_147, %c0_148, %c0_149, %c0_150] : memref<3x3x32x1xf32, #tpu.memory_space<vmem>>, vector<1x1x32x1xf32>
    %258 = vector.shape_cast %257 : vector<1x1x32x1xf32> to vector<32x1xf32>
    %c1_151 = arith.constant 1 : index
    %c0_152 = arith.constant 0 : index
    %c0_153 = arith.constant 0 : index
    %c0_154 = arith.constant 0 : index
    %259 = vector.load %arg16[%c1_151, %c0_152, %c0_153, %c0_154] : memref<3x3x32x1xf32, #tpu.memory_space<vmem>>, vector<1x1x32x1xf32>
    %260 = vector.shape_cast %259 : vector<1x1x32x1xf32> to vector<32x1xf32>
    %261 = arith.mulf %256, %62 : vector<32x16xf32>
    %cst_155 = arith.constant dense<0.000000e+00> : vector<32x1xf32>
    %262 = tpu.matmul %261, %0, %cst_155 {dimension_numbers = #tpu.dot_dimension_numbers<[1], [0], [0], [1], [0, 0, 1, 1], [], []>} : vector<32x16xf32>, vector<16x1xf32>, vector<32x1xf32> -> vector<32x1xf32>
    %263 = arith.mulf %262, %78 : vector<32x1xf32>
    %264 = vector.broadcast %263 : vector<32x1xf32> to vector<32x16xf32>
    %265 = arith.subf %256, %264 : vector<32x16xf32>
    %266 = arith.mulf %265, %265 : vector<32x16xf32>
    %267 = arith.mulf %266, %62 : vector<32x16xf32>
    %cst_156 = arith.constant dense<0.000000e+00> : vector<32x1xf32>
    %268 = tpu.matmul %267, %0, %cst_156 {dimension_numbers = #tpu.dot_dimension_numbers<[1], [0], [0], [1], [0, 0, 1, 1], [], []>} : vector<32x16xf32>, vector<16x1xf32>, vector<32x1xf32> -> vector<32x1xf32>
    %269 = arith.mulf %268, %78 : vector<32x1xf32>
    %cst_157 = arith.constant 9.99999974E-6 : f32
    %270 = vector.broadcast %cst_157 : f32 to vector<32x1xf32>
    %271 = arith.addf %269, %270 : vector<32x1xf32>
    %272 = math.rsqrt %271 : vector<32x1xf32>
    %273 = vector.broadcast %272 : vector<32x1xf32> to vector<32x16xf32>
    %274 = arith.mulf %265, %273 : vector<32x16xf32>
    %275 = vector.broadcast %258 : vector<32x1xf32> to vector<32x16xf32>
    %276 = arith.mulf %274, %275 : vector<32x16xf32>
    %277 = vector.broadcast %260 : vector<32x1xf32> to vector<32x16xf32>
    %278 = arith.addf %276, %277 : vector<32x16xf32>
    %cst_158 = arith.constant 0.000000e+00 : f32
    %279 = vector.broadcast %cst_158 : f32 to vector<32x16xf32>
    %280 = arith.maximumf %278, %279 : vector<32x16xf32>
    %c1_159 = arith.constant 1 : index
    %c1_160 = arith.constant 1 : index
    %c0_161 = arith.constant 0 : index
    %c0_162 = arith.constant 0 : index
    %281 = vector.load %arg13[%c1_159, %c1_160, %c0_161, %c0_162] : memref<3x3x32x32xf32, #tpu.memory_space<vmem>>, vector<1x1x32x32xf32>
    %282 = vector.shape_cast %281 : vector<1x1x32x32xf32> to vector<32x32xf32>
    %cst_163 = arith.constant dense<0.000000e+00> : vector<32x16xf32>
    %283 = tpu.matmul %282, %280, %cst_163 {dimension_numbers = #tpu.dot_dimension_numbers<[1], [0], [0], [1], [0, 0, 1, 1], [], []>} : vector<32x32xf32>, vector<32x16xf32>, vector<32x16xf32> -> vector<32x16xf32>
    %c1_164 = arith.constant 1 : index
    %c1_165 = arith.constant 1 : index
    %c0_166 = arith.constant 0 : index
    %c0_167 = arith.constant 0 : index
    %284 = vector.load %arg14[%c1_164, %c1_165, %c0_166, %c0_167] : memref<3x3x32x1xf32, #tpu.memory_space<vmem>>, vector<1x1x32x1xf32>
    %285 = vector.shape_cast %284 : vector<1x1x32x1xf32> to vector<32x1xf32>
    %286 = vector.broadcast %285 : vector<32x1xf32> to vector<32x16xf32>
    %287 = arith.addf %283, %286 : vector<32x16xf32>
    %c1_168 = arith.constant 1 : index
    %c1_169 = arith.constant 1 : index
    %c0_170 = arith.constant 0 : index
    %c0_171 = arith.constant 0 : index
    %288 = vector.load %arg15[%c1_168, %c1_169, %c0_170, %c0_171] : memref<3x3x32x1xf32, #tpu.memory_space<vmem>>, vector<1x1x32x1xf32>
    %289 = vector.shape_cast %288 : vector<1x1x32x1xf32> to vector<32x1xf32>
    %c1_172 = arith.constant 1 : index
    %c1_173 = arith.constant 1 : index
    %c0_174 = arith.constant 0 : index
    %c0_175 = arith.constant 0 : index
    %290 = vector.load %arg16[%c1_172, %c1_173, %c0_174, %c0_175] : memref<3x3x32x1xf32, #tpu.memory_space<vmem>>, vector<1x1x32x1xf32>
    %291 = vector.shape_cast %290 : vector<1x1x32x1xf32> to vector<32x1xf32>
    %292 = arith.mulf %287, %62 : vector<32x16xf32>
    %cst_176 = arith.constant dense<0.000000e+00> : vector<32x1xf32>
    %293 = tpu.matmul %292, %0, %cst_176 {dimension_numbers = #tpu.dot_dimension_numbers<[1], [0], [0], [1], [0, 0, 1, 1], [], []>} : vector<32x16xf32>, vector<16x1xf32>, vector<32x1xf32> -> vector<32x1xf32>
    %294 = arith.mulf %293, %78 : vector<32x1xf32>
    %295 = vector.broadcast %294 : vector<32x1xf32> to vector<32x16xf32>
    %296 = arith.subf %287, %295 : vector<32x16xf32>
    %297 = arith.mulf %296, %296 : vector<32x16xf32>
    %298 = arith.mulf %297, %62 : vector<32x16xf32>
    %cst_177 = arith.constant dense<0.000000e+00> : vector<32x1xf32>
    %299 = tpu.matmul %298, %0, %cst_177 {dimension_numbers = #tpu.dot_dimension_numbers<[1], [0], [0], [1], [0, 0, 1, 1], [], []>} : vector<32x16xf32>, vector<16x1xf32>, vector<32x1xf32> -> vector<32x1xf32>
    %300 = arith.mulf %299, %78 : vector<32x1xf32>
    %cst_178 = arith.constant 9.99999974E-6 : f32
    %301 = vector.broadcast %cst_178 : f32 to vector<32x1xf32>
    %302 = arith.addf %300, %301 : vector<32x1xf32>
    %303 = math.rsqrt %302 : vector<32x1xf32>
    %304 = vector.broadcast %303 : vector<32x1xf32> to vector<32x16xf32>
    %305 = arith.mulf %296, %304 : vector<32x16xf32>
    %306 = vector.broadcast %289 : vector<32x1xf32> to vector<32x16xf32>
    %307 = arith.mulf %305, %306 : vector<32x16xf32>
    %308 = vector.broadcast %291 : vector<32x1xf32> to vector<32x16xf32>
    %309 = arith.addf %307, %308 : vector<32x16xf32>
    %cst_179 = arith.constant 0.000000e+00 : f32
    %310 = vector.broadcast %cst_179 : f32 to vector<32x16xf32>
    %311 = arith.maximumf %309, %310 : vector<32x16xf32>
    %c1_180 = arith.constant 1 : index
    %c2_181 = arith.constant 2 : index
    %c0_182 = arith.constant 0 : index
    %c0_183 = arith.constant 0 : index
    %312 = vector.load %arg13[%c1_180, %c2_181, %c0_182, %c0_183] : memref<3x3x32x32xf32, #tpu.memory_space<vmem>>, vector<1x1x32x32xf32>
    %313 = vector.shape_cast %312 : vector<1x1x32x32xf32> to vector<32x32xf32>
    %cst_184 = arith.constant dense<0.000000e+00> : vector<32x16xf32>
    %314 = tpu.matmul %313, %311, %cst_184 {dimension_numbers = #tpu.dot_dimension_numbers<[1], [0], [0], [1], [0, 0, 1, 1], [], []>} : vector<32x32xf32>, vector<32x16xf32>, vector<32x16xf32> -> vector<32x16xf32>
    %c1_185 = arith.constant 1 : index
    %c2_186 = arith.constant 2 : index
    %c0_187 = arith.constant 0 : index
    %c0_188 = arith.constant 0 : index
    %315 = vector.load %arg14[%c1_185, %c2_186, %c0_187, %c0_188] : memref<3x3x32x1xf32, #tpu.memory_space<vmem>>, vector<1x1x32x1xf32>
    %316 = vector.shape_cast %315 : vector<1x1x32x1xf32> to vector<32x1xf32>
    %317 = vector.broadcast %316 : vector<32x1xf32> to vector<32x16xf32>
    %318 = arith.addf %314, %317 : vector<32x16xf32>
    %c1_189 = arith.constant 1 : index
    %c2_190 = arith.constant 2 : index
    %c0_191 = arith.constant 0 : index
    %c0_192 = arith.constant 0 : index
    %319 = vector.load %arg15[%c1_189, %c2_190, %c0_191, %c0_192] : memref<3x3x32x1xf32, #tpu.memory_space<vmem>>, vector<1x1x32x1xf32>
    %320 = vector.shape_cast %319 : vector<1x1x32x1xf32> to vector<32x1xf32>
    %c1_193 = arith.constant 1 : index
    %c2_194 = arith.constant 2 : index
    %c0_195 = arith.constant 0 : index
    %c0_196 = arith.constant 0 : index
    %321 = vector.load %arg16[%c1_193, %c2_194, %c0_195, %c0_196] : memref<3x3x32x1xf32, #tpu.memory_space<vmem>>, vector<1x1x32x1xf32>
    %322 = vector.shape_cast %321 : vector<1x1x32x1xf32> to vector<32x1xf32>
    %323 = arith.mulf %318, %62 : vector<32x16xf32>
    %cst_197 = arith.constant dense<0.000000e+00> : vector<32x1xf32>
    %324 = tpu.matmul %323, %0, %cst_197 {dimension_numbers = #tpu.dot_dimension_numbers<[1], [0], [0], [1], [0, 0, 1, 1], [], []>} : vector<32x16xf32>, vector<16x1xf32>, vector<32x1xf32> -> vector<32x1xf32>
    %325 = arith.mulf %324, %78 : vector<32x1xf32>
    %326 = vector.broadcast %325 : vector<32x1xf32> to vector<32x16xf32>
    %327 = arith.subf %318, %326 : vector<32x16xf32>
    %328 = arith.mulf %327, %327 : vector<32x16xf32>
    %329 = arith.mulf %328, %62 : vector<32x16xf32>
    %cst_198 = arith.constant dense<0.000000e+00> : vector<32x1xf32>
    %330 = tpu.matmul %329, %0, %cst_198 {dimension_numbers = #tpu.dot_dimension_numbers<[1], [0], [0], [1], [0, 0, 1, 1], [], []>} : vector<32x16xf32>, vector<16x1xf32>, vector<32x1xf32> -> vector<32x1xf32>
    %331 = arith.mulf %330, %78 : vector<32x1xf32>
    %cst_199 = arith.constant 9.99999974E-6 : f32
    %332 = vector.broadcast %cst_199 : f32 to vector<32x1xf32>
    %333 = arith.addf %331, %332 : vector<32x1xf32>
    %334 = math.rsqrt %333 : vector<32x1xf32>
    %335 = vector.broadcast %334 : vector<32x1xf32> to vector<32x16xf32>
    %336 = arith.mulf %327, %335 : vector<32x16xf32>
    %337 = vector.broadcast %320 : vector<32x1xf32> to vector<32x16xf32>
    %338 = arith.mulf %336, %337 : vector<32x16xf32>
    %339 = vector.broadcast %322 : vector<32x1xf32> to vector<32x16xf32>
    %340 = arith.addf %338, %339 : vector<32x16xf32>
    %cst_200 = arith.constant 0.000000e+00 : f32
    %341 = vector.broadcast %cst_200 : f32 to vector<32x16xf32>
    %342 = arith.maximumf %340, %341 : vector<32x16xf32>
    %343 = arith.mulf %342, %62 : vector<32x16xf32>
    %cst_201 = arith.constant dense<0.000000e+00> : vector<32x8xf32>
    %344 = tpu.matmul %343, %51, %cst_201 {dimension_numbers = #tpu.dot_dimension_numbers<[1], [0], [0], [1], [0, 0, 1, 1], [], []>} : vector<32x16xf32>, vector<16x8xf32>, vector<32x8xf32> -> vector<32x8xf32>
    %cst_202 = arith.constant dense<0.000000e+00> : vector<16x8xf32>
    %345 = tpu.matmul %79, %344, %cst_202 {dimension_numbers = #tpu.dot_dimension_numbers<[1], [0], [0], [1], [0, 0, 1, 1], [], []>} : vector<16x32xf32>, vector<32x8xf32>, vector<16x8xf32> -> vector<16x8xf32>
    %c1_203 = arith.constant 1 : index
    %c0_204 = arith.constant 0 : index
    %c0_205 = arith.constant 0 : index
    %346 = vector.load %arg18[%c1_203, %c0_204, %c0_205] : memref<3x16x8xf32, #tpu.memory_space<vmem>>, vector<1x16x8xf32>
    %347 = vector.shape_cast %346 : vector<1x16x8xf32> to vector<16x8xf32>
    %348 = vector.shape_cast %345 : vector<16x8xf32> to vector<1x16x8xf32>
    tpu.vector_store %arg18[%c1_203, %c0_204, %c0_205], %348 {strides = array<i32>} : memref<3x16x8xf32, #tpu.memory_space<vmem>>, vector<1x16x8xf32>,
    %cst_206 = arith.constant dense<0.000000e+00> : vector<16x16xf32>
    %349 = tpu.matmul %345, %35, %cst_206 {dimension_numbers = #tpu.dot_dimension_numbers<[1], [0], [0], [1], [0, 0, 1, 1], [], []>} : vector<16x8xf32>, vector<8x16xf32>, vector<16x16xf32> -> vector<16x16xf32>
    %cst_207 = arith.constant dense<0.000000e+00> : vector<16x16xf32>
    %350 = tpu.matmul %345, %40, %cst_207 {dimension_numbers = #tpu.dot_dimension_numbers<[1], [0], [0], [1], [0, 0, 1, 1], [], []>} : vector<16x8xf32>, vector<8x16xf32>, vector<16x16xf32> -> vector<16x16xf32>
    %cst_208 = arith.constant dense<0.000000e+00> : vector<16x16xf32>
    %351 = tpu.matmul %345, %45, %cst_208 {dimension_numbers = #tpu.dot_dimension_numbers<[1], [0], [0], [1], [0, 0, 1, 1], [], []>} : vector<16x8xf32>, vector<8x16xf32>, vector<16x16xf32> -> vector<16x16xf32>
    %352 = tpu.concatenate %349, %350, %351, %28 in 0 : vector<16x16xf32>, vector<16x16xf32>, vector<16x16xf32>, vector<16x16xf32> -> vector<64x16xf32>
    %c2_209 = arith.constant 2 : index
    %c0_210 = arith.constant 0 : index
    %c0_211 = arith.constant 0 : index
    %353 = vector.load %arg9[%c2_209, %c0_210, %c0_211] : memref<3x32x64xf32, #tpu.memory_space<vmem>>, vector<1x32x64xf32>
    %354 = vector.shape_cast %353 : vector<1x32x64xf32> to vector<32x64xf32>
    %cst_212 = arith.constant dense<0.000000e+00> : vector<32x16xf32>
    %355 = tpu.matmul %354, %352, %cst_212 {dimension_numbers = #tpu.dot_dimension_numbers<[1], [0], [0], [1], [0, 0, 1, 1], [], []>} : vector<32x64xf32>, vector<64x16xf32>, vector<32x16xf32> -> vector<32x16xf32>
    %c2_213 = arith.constant 2 : index
    %c0_214 = arith.constant 0 : index
    %c0_215 = arith.constant 0 : index
    %356 = vector.load %arg10[%c2_213, %c0_214, %c0_215] : memref<3x32x1xf32, #tpu.memory_space<vmem>>, vector<1x32x1xf32>
    %357 = vector.shape_cast %356 : vector<1x32x1xf32> to vector<32x1xf32>
    %358 = vector.broadcast %357 : vector<32x1xf32> to vector<32x16xf32>
    %359 = arith.addf %355, %358 : vector<32x16xf32>
    %c2_216 = arith.constant 2 : index
    %c0_217 = arith.constant 0 : index
    %c0_218 = arith.constant 0 : index
    %360 = vector.load %arg11[%c2_216, %c0_217, %c0_218] : memref<3x32x1xf32, #tpu.memory_space<vmem>>, vector<1x32x1xf32>
    %361 = vector.shape_cast %360 : vector<1x32x1xf32> to vector<32x1xf32>
    %c2_219 = arith.constant 2 : index
    %c0_220 = arith.constant 0 : index
    %c0_221 = arith.constant 0 : index
    %362 = vector.load %arg12[%c2_219, %c0_220, %c0_221] : memref<3x32x1xf32, #tpu.memory_space<vmem>>, vector<1x32x1xf32>
    %363 = vector.shape_cast %362 : vector<1x32x1xf32> to vector<32x1xf32>
    %364 = arith.mulf %359, %62 : vector<32x16xf32>
    %cst_222 = arith.constant dense<0.000000e+00> : vector<32x1xf32>
    %365 = tpu.matmul %364, %0, %cst_222 {dimension_numbers = #tpu.dot_dimension_numbers<[1], [0], [0], [1], [0, 0, 1, 1], [], []>} : vector<32x16xf32>, vector<16x1xf32>, vector<32x1xf32> -> vector<32x1xf32>
    %366 = arith.mulf %365, %78 : vector<32x1xf32>
    %367 = vector.broadcast %366 : vector<32x1xf32> to vector<32x16xf32>
    %368 = arith.subf %359, %367 : vector<32x16xf32>
    %369 = arith.mulf %368, %368 : vector<32x16xf32>
    %370 = arith.mulf %369, %62 : vector<32x16xf32>
    %cst_223 = arith.constant dense<0.000000e+00> : vector<32x1xf32>
    %371 = tpu.matmul %370, %0, %cst_223 {dimension_numbers = #tpu.dot_dimension_numbers<[1], [0], [0], [1], [0, 0, 1, 1], [], []>} : vector<32x16xf32>, vector<16x1xf32>, vector<32x1xf32> -> vector<32x1xf32>
    %372 = arith.mulf %371, %78 : vector<32x1xf32>
    %cst_224 = arith.constant 9.99999974E-6 : f32
    %373 = vector.broadcast %cst_224 : f32 to vector<32x1xf32>
    %374 = arith.addf %372, %373 : vector<32x1xf32>
    %375 = math.rsqrt %374 : vector<32x1xf32>
    %376 = vector.broadcast %375 : vector<32x1xf32> to vector<32x16xf32>
    %377 = arith.mulf %368, %376 : vector<32x16xf32>
    %378 = vector.broadcast %361 : vector<32x1xf32> to vector<32x16xf32>
    %379 = arith.mulf %377, %378 : vector<32x16xf32>
    %380 = vector.broadcast %363 : vector<32x1xf32> to vector<32x16xf32>
    %381 = arith.addf %379, %380 : vector<32x16xf32>
    %cst_225 = arith.constant 0.000000e+00 : f32
    %382 = vector.broadcast %cst_225 : f32 to vector<32x16xf32>
    %383 = arith.maximumf %381, %382 : vector<32x16xf32>
    %c2_226 = arith.constant 2 : index
    %c0_227 = arith.constant 0 : index
    %c0_228 = arith.constant 0 : index
    %c0_229 = arith.constant 0 : index
    %384 = vector.load %arg13[%c2_226, %c0_227, %c0_228, %c0_229] : memref<3x3x32x32xf32, #tpu.memory_space<vmem>>, vector<1x1x32x32xf32>
    %385 = vector.shape_cast %384 : vector<1x1x32x32xf32> to vector<32x32xf32>
    %cst_230 = arith.constant dense<0.000000e+00> : vector<32x16xf32>
    %386 = tpu.matmul %385, %383, %cst_230 {dimension_numbers = #tpu.dot_dimension_numbers<[1], [0], [0], [1], [0, 0, 1, 1], [], []>} : vector<32x32xf32>, vector<32x16xf32>, vector<32x16xf32> -> vector<32x16xf32>
    %c2_231 = arith.constant 2 : index
    %c0_232 = arith.constant 0 : index
    %c0_233 = arith.constant 0 : index
    %c0_234 = arith.constant 0 : index
    %387 = vector.load %arg14[%c2_231, %c0_232, %c0_233, %c0_234] : memref<3x3x32x1xf32, #tpu.memory_space<vmem>>, vector<1x1x32x1xf32>
    %388 = vector.shape_cast %387 : vector<1x1x32x1xf32> to vector<32x1xf32>
    %389 = vector.broadcast %388 : vector<32x1xf32> to vector<32x16xf32>
    %390 = arith.addf %386, %389 : vector<32x16xf32>
    %c2_235 = arith.constant 2 : index
    %c0_236 = arith.constant 0 : index
    %c0_237 = arith.constant 0 : index
    %c0_238 = arith.constant 0 : index
    %391 = vector.load %arg15[%c2_235, %c0_236, %c0_237, %c0_238] : memref<3x3x32x1xf32, #tpu.memory_space<vmem>>, vector<1x1x32x1xf32>
    %392 = vector.shape_cast %391 : vector<1x1x32x1xf32> to vector<32x1xf32>
    %c2_239 = arith.constant 2 : index
    %c0_240 = arith.constant 0 : index
    %c0_241 = arith.constant 0 : index
    %c0_242 = arith.constant 0 : index
    %393 = vector.load %arg16[%c2_239, %c0_240, %c0_241, %c0_242] : memref<3x3x32x1xf32, #tpu.memory_space<vmem>>, vector<1x1x32x1xf32>
    %394 = vector.shape_cast %393 : vector<1x1x32x1xf32> to vector<32x1xf32>
    %395 = arith.mulf %390, %62 : vector<32x16xf32>
    %cst_243 = arith.constant dense<0.000000e+00> : vector<32x1xf32>
    %396 = tpu.matmul %395, %0, %cst_243 {dimension_numbers = #tpu.dot_dimension_numbers<[1], [0], [0], [1], [0, 0, 1, 1], [], []>} : vector<32x16xf32>, vector<16x1xf32>, vector<32x1xf32> -> vector<32x1xf32>
    %397 = arith.mulf %396, %78 : vector<32x1xf32>
    %398 = vector.broadcast %397 : vector<32x1xf32> to vector<32x16xf32>
    %399 = arith.subf %390, %398 : vector<32x16xf32>
    %400 = arith.mulf %399, %399 : vector<32x16xf32>
    %401 = arith.mulf %400, %62 : vector<32x16xf32>
    %cst_244 = arith.constant dense<0.000000e+00> : vector<32x1xf32>
    %402 = tpu.matmul %401, %0, %cst_244 {dimension_numbers = #tpu.dot_dimension_numbers<[1], [0], [0], [1], [0, 0, 1, 1], [], []>} : vector<32x16xf32>, vector<16x1xf32>, vector<32x1xf32> -> vector<32x1xf32>
    %403 = arith.mulf %402, %78 : vector<32x1xf32>
    %cst_245 = arith.constant 9.99999974E-6 : f32
    %404 = vector.broadcast %cst_245 : f32 to vector<32x1xf32>
    %405 = arith.addf %403, %404 : vector<32x1xf32>
    %406 = math.rsqrt %405 : vector<32x1xf32>
    %407 = vector.broadcast %406 : vector<32x1xf32> to vector<32x16xf32>
    %408 = arith.mulf %399, %407 : vector<32x16xf32>
    %409 = vector.broadcast %392 : vector<32x1xf32> to vector<32x16xf32>
    %410 = arith.mulf %408, %409 : vector<32x16xf32>
    %411 = vector.broadcast %394 : vector<32x1xf32> to vector<32x16xf32>
    %412 = arith.addf %410, %411 : vector<32x16xf32>
    %cst_246 = arith.constant 0.000000e+00 : f32
    %413 = vector.broadcast %cst_246 : f32 to vector<32x16xf32>
    %414 = arith.maximumf %412, %413 : vector<32x16xf32>
    %c2_247 = arith.constant 2 : index
    %c1_248 = arith.constant 1 : index
    %c0_249 = arith.constant 0 : index
    %c0_250 = arith.constant 0 : index
    %415 = vector.load %arg13[%c2_247, %c1_248, %c0_249, %c0_250] : memref<3x3x32x32xf32, #tpu.memory_space<vmem>>, vector<1x1x32x32xf32>
    %416 = vector.shape_cast %415 : vector<1x1x32x32xf32> to vector<32x32xf32>
    %cst_251 = arith.constant dense<0.000000e+00> : vector<32x16xf32>
    %417 = tpu.matmul %416, %414, %cst_251 {dimension_numbers = #tpu.dot_dimension_numbers<[1], [0], [0], [1], [0, 0, 1, 1], [], []>} : vector<32x32xf32>, vector<32x16xf32>, vector<32x16xf32> -> vector<32x16xf32>
    %c2_252 = arith.constant 2 : index
    %c1_253 = arith.constant 1 : index
    %c0_254 = arith.constant 0 : index
    %c0_255 = arith.constant 0 : index
    %418 = vector.load %arg14[%c2_252, %c1_253, %c0_254, %c0_255] : memref<3x3x32x1xf32, #tpu.memory_space<vmem>>, vector<1x1x32x1xf32>
    %419 = vector.shape_cast %418 : vector<1x1x32x1xf32> to vector<32x1xf32>
    %420 = vector.broadcast %419 : vector<32x1xf32> to vector<32x16xf32>
    %421 = arith.addf %417, %420 : vector<32x16xf32>
    %c2_256 = arith.constant 2 : index
    %c1_257 = arith.constant 1 : index
    %c0_258 = arith.constant 0 : index
    %c0_259 = arith.constant 0 : index
    %422 = vector.load %arg15[%c2_256, %c1_257, %c0_258, %c0_259] : memref<3x3x32x1xf32, #tpu.memory_space<vmem>>, vector<1x1x32x1xf32>
    %423 = vector.shape_cast %422 : vector<1x1x32x1xf32> to vector<32x1xf32>
    %c2_260 = arith.constant 2 : index
    %c1_261 = arith.constant 1 : index
    %c0_262 = arith.constant 0 : index
    %c0_263 = arith.constant 0 : index
    %424 = vector.load %arg16[%c2_260, %c1_261, %c0_262, %c0_263] : memref<3x3x32x1xf32, #tpu.memory_space<vmem>>, vector<1x1x32x1xf32>
    %425 = vector.shape_cast %424 : vector<1x1x32x1xf32> to vector<32x1xf32>
    %426 = arith.mulf %421, %62 : vector<32x16xf32>
    %cst_264 = arith.constant dense<0.000000e+00> : vector<32x1xf32>
    %427 = tpu.matmul %426, %0, %cst_264 {dimension_numbers = #tpu.dot_dimension_numbers<[1], [0], [0], [1], [0, 0, 1, 1], [], []>} : vector<32x16xf32>, vector<16x1xf32>, vector<32x1xf32> -> vector<32x1xf32>
    %428 = arith.mulf %427, %78 : vector<32x1xf32>
    %429 = vector.broadcast %428 : vector<32x1xf32> to vector<32x16xf32>
    %430 = arith.subf %421, %429 : vector<32x16xf32>
    %431 = arith.mulf %430, %430 : vector<32x16xf32>
    %432 = arith.mulf %431, %62 : vector<32x16xf32>
    %cst_265 = arith.constant dense<0.000000e+00> : vector<32x1xf32>
    %433 = tpu.matmul %432, %0, %cst_265 {dimension_numbers = #tpu.dot_dimension_numbers<[1], [0], [0], [1], [0, 0, 1, 1], [], []>} : vector<32x16xf32>, vector<16x1xf32>, vector<32x1xf32> -> vector<32x1xf32>
    %434 = arith.mulf %433, %78 : vector<32x1xf32>
    %cst_266 = arith.constant 9.99999974E-6 : f32
    %435 = vector.broadcast %cst_266 : f32 to vector<32x1xf32>
    %436 = arith.addf %434, %435 : vector<32x1xf32>
    %437 = math.rsqrt %436 : vector<32x1xf32>
    %438 = vector.broadcast %437 : vector<32x1xf32> to vector<32x16xf32>
    %439 = arith.mulf %430, %438 : vector<32x16xf32>
    %440 = vector.broadcast %423 : vector<32x1xf32> to vector<32x16xf32>
    %441 = arith.mulf %439, %440 : vector<32x16xf32>
    %442 = vector.broadcast %425 : vector<32x1xf32> to vector<32x16xf32>
    %443 = arith.addf %441, %442 : vector<32x16xf32>
    %cst_267 = arith.constant 0.000000e+00 : f32
    %444 = vector.broadcast %cst_267 : f32 to vector<32x16xf32>
    %445 = arith.maximumf %443, %444 : vector<32x16xf32>
    %c2_268 = arith.constant 2 : index
    %c2_269 = arith.constant 2 : index
    %c0_270 = arith.constant 0 : index
    %c0_271 = arith.constant 0 : index
    %446 = vector.load %arg13[%c2_268, %c2_269, %c0_270, %c0_271] : memref<3x3x32x32xf32, #tpu.memory_space<vmem>>, vector<1x1x32x32xf32>
    %447 = vector.shape_cast %446 : vector<1x1x32x32xf32> to vector<32x32xf32>
    %cst_272 = arith.constant dense<0.000000e+00> : vector<32x16xf32>
    %448 = tpu.matmul %447, %445, %cst_272 {dimension_numbers = #tpu.dot_dimension_numbers<[1], [0], [0], [1], [0, 0, 1, 1], [], []>} : vector<32x32xf32>, vector<32x16xf32>, vector<32x16xf32> -> vector<32x16xf32>
    %c2_273 = arith.constant 2 : index
    %c2_274 = arith.constant 2 : index
    %c0_275 = arith.constant 0 : index
    %c0_276 = arith.constant 0 : index
    %449 = vector.load %arg14[%c2_273, %c2_274, %c0_275, %c0_276] : memref<3x3x32x1xf32, #tpu.memory_space<vmem>>, vector<1x1x32x1xf32>
    %450 = vector.shape_cast %449 : vector<1x1x32x1xf32> to vector<32x1xf32>
    %451 = vector.broadcast %450 : vector<32x1xf32> to vector<32x16xf32>
    %452 = arith.addf %448, %451 : vector<32x16xf32>
    %c2_277 = arith.constant 2 : index
    %c2_278 = arith.constant 2 : index
    %c0_279 = arith.constant 0 : index
    %c0_280 = arith.constant 0 : index
    %453 = vector.load %arg15[%c2_277, %c2_278, %c0_279, %c0_280] : memref<3x3x32x1xf32, #tpu.memory_space<vmem>>, vector<1x1x32x1xf32>
    %454 = vector.shape_cast %453 : vector<1x1x32x1xf32> to vector<32x1xf32>
    %c2_281 = arith.constant 2 : index
    %c2_282 = arith.constant 2 : index
    %c0_283 = arith.constant 0 : index
    %c0_284 = arith.constant 0 : index
    %455 = vector.load %arg16[%c2_281, %c2_282, %c0_283, %c0_284] : memref<3x3x32x1xf32, #tpu.memory_space<vmem>>, vector<1x1x32x1xf32>
    %456 = vector.shape_cast %455 : vector<1x1x32x1xf32> to vector<32x1xf32>
    %457 = arith.mulf %452, %62 : vector<32x16xf32>
    %cst_285 = arith.constant dense<0.000000e+00> : vector<32x1xf32>
    %458 = tpu.matmul %457, %0, %cst_285 {dimension_numbers = #tpu.dot_dimension_numbers<[1], [0], [0], [1], [0, 0, 1, 1], [], []>} : vector<32x16xf32>, vector<16x1xf32>, vector<32x1xf32> -> vector<32x1xf32>
    %459 = arith.mulf %458, %78 : vector<32x1xf32>
    %460 = vector.broadcast %459 : vector<32x1xf32> to vector<32x16xf32>
    %461 = arith.subf %452, %460 : vector<32x16xf32>
    %462 = arith.mulf %461, %461 : vector<32x16xf32>
    %463 = arith.mulf %462, %62 : vector<32x16xf32>
    %cst_286 = arith.constant dense<0.000000e+00> : vector<32x1xf32>
    %464 = tpu.matmul %463, %0, %cst_286 {dimension_numbers = #tpu.dot_dimension_numbers<[1], [0], [0], [1], [0, 0, 1, 1], [], []>} : vector<32x16xf32>, vector<16x1xf32>, vector<32x1xf32> -> vector<32x1xf32>
    %465 = arith.mulf %464, %78 : vector<32x1xf32>
    %cst_287 = arith.constant 9.99999974E-6 : f32
    %466 = vector.broadcast %cst_287 : f32 to vector<32x1xf32>
    %467 = arith.addf %465, %466 : vector<32x1xf32>
    %468 = math.rsqrt %467 : vector<32x1xf32>
    %469 = vector.broadcast %468 : vector<32x1xf32> to vector<32x16xf32>
    %470 = arith.mulf %461, %469 : vector<32x16xf32>
    %471 = vector.broadcast %454 : vector<32x1xf32> to vector<32x16xf32>
    %472 = arith.mulf %470, %471 : vector<32x16xf32>
    %473 = vector.broadcast %456 : vector<32x1xf32> to vector<32x16xf32>
    %474 = arith.addf %472, %473 : vector<32x16xf32>
    %cst_288 = arith.constant 0.000000e+00 : f32
    %475 = vector.broadcast %cst_288 : f32 to vector<32x16xf32>
    %476 = arith.maximumf %474, %475 : vector<32x16xf32>
    %477 = arith.mulf %476, %62 : vector<32x16xf32>
    %cst_289 = arith.constant dense<0.000000e+00> : vector<32x8xf32>
    %478 = tpu.matmul %477, %51, %cst_289 {dimension_numbers = #tpu.dot_dimension_numbers<[1], [0], [0], [1], [0, 0, 1, 1], [], []>} : vector<32x16xf32>, vector<16x8xf32>, vector<32x8xf32> -> vector<32x8xf32>
    %cst_290 = arith.constant dense<0.000000e+00> : vector<16x8xf32>
    %479 = tpu.matmul %79, %478, %cst_290 {dimension_numbers = #tpu.dot_dimension_numbers<[1], [0], [0], [1], [0, 0, 1, 1], [], []>} : vector<16x32xf32>, vector<32x8xf32>, vector<16x8xf32> -> vector<16x8xf32>
    %c2_291 = arith.constant 2 : index
    %c0_292 = arith.constant 0 : index
    %c0_293 = arith.constant 0 : index
    %480 = vector.load %arg18[%c2_291, %c0_292, %c0_293] : memref<3x16x8xf32, #tpu.memory_space<vmem>>, vector<1x16x8xf32>
    %481 = vector.shape_cast %480 : vector<1x16x8xf32> to vector<16x8xf32>
    %482 = vector.shape_cast %479 : vector<16x8xf32> to vector<1x16x8xf32>
    tpu.vector_store %arg18[%c2_291, %c0_292, %c0_293], %482 {strides = array<i32>} : memref<3x16x8xf32, #tpu.memory_space<vmem>>, vector<1x16x8xf32>,
    return
  }
}

</mosaic_0001>

<llo_original>
// kernel: tpu_custom_call.1
$region0: #{tpu_custom_call.1}
  #allocation0 [shape = 'u32[]', space=smem, size = 0x4, offset = 0x4, fixed_abs, tag = 'smem constant byte address 0x4 - core index']
  #allocation1 [shape = 'u32[144,128]{1,0:T(1,128)}', space=vmem, size = 0x12000, scoped, tag = 'internal scratch']
  %s0 = inlined_call_operand.vmem [shape: f32[56,16], index: 0, kind: input, shape index: {}]
  %s1 = inlined_call_operand.vmem [shape: s32[3,16], index: 1, kind: input, shape index: {}]
  %s2 = inlined_call_operand.vmem [shape: s32[16,1], index: 2, kind: input, shape index: {}]
  %s3 = inlined_call_operand.vmem [shape: f32[1,16], index: 3, kind: input, shape index: {}]
  %s4 = inlined_call_operand.vmem [shape: f32[16,8], index: 4, kind: input, shape index: {}]
  %s5 = inlined_call_operand.vmem [shape: f32[16,56], index: 5, kind: input, shape index: {}]
  %s6 = inlined_call_operand.vmem [shape: f32[16,1], index: 6, kind: input, shape index: {}]
  %s7 = inlined_call_operand.vmem [shape: f32[16,1], index: 7, kind: input, shape index: {}]
  %s8 = inlined_call_operand.vmem [shape: f32[16,1], index: 8, kind: input, shape index: {}]
  %s9 = inlined_call_operand.vmem [shape: f32[3,32,64], index: 9, kind: input, shape index: {}]
  %s10 = inlined_call_operand.vmem [shape: f32[3,32,1], index: 10, kind: input, shape index: {}]
  %s11 = inlined_call_operand.vmem [shape: f32[3,32,1], index: 11, kind: input, shape index: {}]
  %s12 = inlined_call_operand.vmem [shape: f32[3,32,1], index: 12, kind: input, shape index: {}]
  %s13 = inlined_call_operand.vmem [shape: f32[3,3,32,32], index: 13, kind: input, shape index: {}]
  %s14 = inlined_call_operand.vmem [shape: f32[3,3,32,1], index: 14, kind: input, shape index: {}]
  %s15 = inlined_call_operand.vmem [shape: f32[3,3,32,1], index: 15, kind: input, shape index: {}]
  %s16 = inlined_call_operand.vmem [shape: f32[3,3,32,1], index: 16, kind: input, shape index: {}]
  %s17 = inlined_call_operand.vmem [shape: f32[16,32], index: 17, kind: input, shape index: {}]
  %s18 = inlined_call_operand.vmem [shape: f32[3,16,8], index: 18, kind: output, shape index: {}]
  %s19 = sld [smem:[#allocation0]]
  $region82: #{tpu_custom_call.1} parent=0
    _
  %s21 = ssub.s32 1, %s19
  %s22 = scalar_select 0, %s21, %s19
  // Predicated region
  $region2: #{tpu_custom_call.1} parent=0 // pred_check
    _
  $region3: #{tpu_custom_call.1} parent=0 // pred_check_branch
    %24 = sbr.rel (0) target = $region5
  $region4: #{tpu_custom_call.1} parent=0 // pred_region
    _
  $region5: #{tpu_custom_call.1} parent=0 // pred_fallthru
    _
  // Predicated region
  $region6: #{tpu_custom_call.1} parent=0 // pred_check
    _
  $region7: #{tpu_custom_call.1} parent=0 // pred_check_branch
    %26 = sbr.rel (0) target = $region9
  $region8: #{tpu_custom_call.1} parent=0 // pred_region
    _
  $region9: #{tpu_custom_call.1} parent=0 // pred_fallthru
    _
  // Predicated region
  $region10: #{tpu_custom_call.1} parent=0 // pred_check
    _
  $region11: #{tpu_custom_call.1} parent=0 // pred_check_branch
    %28 = sbr.rel (0) target = $region13
  $region12: #{tpu_custom_call.1} parent=0 // pred_region
    _
  $region13: #{tpu_custom_call.1} parent=0 // pred_fallthru
    _
  // Predicated region
  $region14: #{tpu_custom_call.1} parent=0 // pred_check
    _
  $region15: #{tpu_custom_call.1} parent=0 // pred_check_branch
    %30 = sbr.rel (0) target = $region17
  $region16: #{tpu_custom_call.1} parent=0 // pred_region
    _
  $region17: #{tpu_custom_call.1} parent=0 // pred_fallthru
    _
  // Predicated region
  $region18: #{tpu_custom_call.1} parent=0 // pred_check
    _
  $region19: #{tpu_custom_call.1} parent=0 // pred_check_branch
    %32 = sbr.rel (0) target = $region21
  $region20: #{tpu_custom_call.1} parent=0 // pred_region
    _
  $region21: #{tpu_custom_call.1} parent=0 // pred_fallthru
    _
  // Predicated region
  $region22: #{tpu_custom_call.1} parent=0 // pred_check
    _
  $region23: #{tpu_custom_call.1} parent=0 // pred_check_branch
    %34 = sbr.rel (0) target = $region25
  $region24: #{tpu_custom_call.1} parent=0 // pred_region
    _
  $region25: #{tpu_custom_call.1} parent=0 // pred_fallthru
    _
  // Predicated region
  $region26: #{tpu_custom_call.1} parent=0 // pred_check
    _
  $region27: #{tpu_custom_call.1} parent=0 // pred_check_branch
    %36 = sbr.rel (0) target = $region29
  $region28: #{tpu_custom_call.1} parent=0 // pred_region
    _
  $region29: #{tpu_custom_call.1} parent=0 // pred_fallthru
    _
  // Predicated region
  $region30: #{tpu_custom_call.1} parent=0 // pred_check
    _
  $region31: #{tpu_custom_call.1} parent=0 // pred_check_branch
    %38 = sbr.rel (0) target = $region33
  $region32: #{tpu_custom_call.1} parent=0 // pred_region
    _
  $region33: #{tpu_custom_call.1} parent=0 // pred_fallthru
    _
  // Predicated region
  $region34: #{tpu_custom_call.1} parent=0 // pred_check
    _
  $region35: #{tpu_custom_call.1} parent=0 // pred_check_branch
    %40 = sbr.rel (0) target = $region37
  $region36: #{tpu_custom_call.1} parent=0 // pred_region
    _
  $region37: #{tpu_custom_call.1} parent=0 // pred_fallthru
    _
  // Predicated region
  $region38: #{tpu_custom_call.1} parent=0 // pred_check
    _
  $region39: #{tpu_custom_call.1} parent=0 // pred_check_branch
    %42 = sbr.rel (0) target = $region41
  $region40: #{tpu_custom_call.1} parent=0 // pred_region
    _
  $region41: #{tpu_custom_call.1} parent=0 // pred_fallthru
    _
  // Predicated region
  $region42: #{tpu_custom_call.1} parent=0 // pred_check
    _
  $region43: #{tpu_custom_call.1} parent=0 // pred_check_branch
    %44 = sbr.rel (0) target = $region45
  $region44: #{tpu_custom_call.1} parent=0 // pred_region
    _
  $region45: #{tpu_custom_call.1} parent=0 // pred_fallthru
    _
  // Predicated region
  $region46: #{tpu_custom_call.1} parent=0 // pred_check
    _
  $region47: #{tpu_custom_call.1} parent=0 // pred_check_branch
    %46 = sbr.rel (0) target = $region49
  $region48: #{tpu_custom_call.1} parent=0 // pred_region
    _
  $region49: #{tpu_custom_call.1} parent=0 // pred_fallthru
    _
  // Predicated region
  $region50: #{tpu_custom_call.1} parent=0 // pred_check
    _
  $region51: #{tpu_custom_call.1} parent=0 // pred_check_branch
    %48 = sbr.rel (0) target = $region53
  $region52: #{tpu_custom_call.1} parent=0 // pred_region
    _
  $region53: #{tpu_custom_call.1} parent=0 // pred_fallthru
    _
  // Predicated region
  $region54: #{tpu_custom_call.1} parent=0 // pred_check
    _
  $region55: #{tpu_custom_call.1} parent=0 // pred_check_branch
    %50 = sbr.rel (0) target = $region57
  $region56: #{tpu_custom_call.1} parent=0 // pred_region
    _
  $region57: #{tpu_custom_call.1} parent=0 // pred_fallthru
    _
  // Predicated region
  $region58: #{tpu_custom_call.1} parent=0 // pred_check
    _
  $region59: #{tpu_custom_call.1} parent=0 // pred_check_branch
    %52 = sbr.rel (0) target = $region61
  $region60: #{tpu_custom_call.1} parent=0 // pred_region
    _
  $region61: #{tpu_custom_call.1} parent=0 // pred_fallthru
    _
  // Predicated region
  $region62: #{tpu_custom_call.1} parent=0 // pred_check
    _
  $region63: #{tpu_custom_call.1} parent=0 // pred_check_branch
    %54 = sbr.rel (0) target = $region65
  $region64: #{tpu_custom_call.1} parent=0 // pred_region
    _
  $region65: #{tpu_custom_call.1} parent=0 // pred_fallthru
    _
  // Predicated region
  $region66: #{tpu_custom_call.1} parent=0 // pred_check
    _
  $region67: #{tpu_custom_call.1} parent=0 // pred_check_branch
    %56 = sbr.rel (0) target = $region69
  $region68: #{tpu_custom_call.1} parent=0 // pred_region
    _
  $region69: #{tpu_custom_call.1} parent=0 // pred_fallthru
    _
  // Predicated region
  $region70: #{tpu_custom_call.1} parent=0 // pred_check
    _
  $region71: #{tpu_custom_call.1} parent=0 // pred_check_branch
    %58 = sbr.rel (0) target = $region73
  $region72: #{tpu_custom_call.1} parent=0 // pred_region
    _
  $region73: #{tpu_custom_call.1} parent=0 // pred_fallthru
    _
  %v59 = vld [vmem:[%s5] sm:$0xff]
  %v60 = vld [vmem:[%s5 + $0x8] sm:$0xff]
  %v61 = vld [vmem:[%s0] sm:$0xff]
  %v62 = vld [vmem:[%s0 + $0x8] sm:$0xff]
  %v63 = vld [vmem:[%s0 + $0x10] sm:$0xff]
  %v64 = vld [vmem:[%s0 + $0x18] sm:$0xff]
  %v65 = vld [vmem:[%s0 + $0x20] sm:$0xff]
  %v66 = vld [vmem:[%s0 + $0x28] sm:$0xff]
  %v67 = vld [vmem:[%s0 + $0x30] sm:$0xff]
  %v68 = vld [vmem:[%s6] sm:$0xff]
  %v69 = vld [vmem:[%s6 + $0x8] sm:$0xff]
  %71 = vset.pattern.permute.xlu0 0
  %72 = vperm.xlu0 %71, %v68
  %v73 = vpop.permute.xlu0 %72
  %76 = vset.pattern.permute.xlu0 0
  %77 = vperm.xlu0 %76, %v69
  %v78 = vpop.permute.xlu0 %77
  %vm80 = vcmask 457728
  %v82 = vsel %vm80, %v59, 0
  %v85 = vsel %vm80, %v60, 0
  %87 = vmatprep.subr.mxu0 0.0
  %88 = vmatpush1.msra.mxu0 %v61
  %89 = vmatprep.subr.mxu0 0.0
  %90 = vmatpush1.msra.mxu0 %v62
  %91 = vmatprep.subr.mxu0 0.0
  %92 = vmatpush1.msra.mxu0 %v63
  %93 = vmatprep.subr.mxu0 0.0
  %94 = vmatpush1.msra.mxu0 %v64
  %95 = vmatprep.subr.mxu0 0.0
  %96 = vmatpush1.msra.mxu0 %v65
  %97 = vmatprep.subr.mxu0 0.0
  %98 = vmatpush1.msra.mxu0 %v66
  %99 = vmatprep.subr.mxu0 0.0
  %100 = vmatpush1.msra.mxu0 %v67
  %101 = vmatprep.subr.mxu0 0.0
  %102 = vmatpush1.msra.mxu0 0.0
  %103 = vmatprep.subr.mxu0 0.0
  %104 = vmatpush1.msra.mxu0 0.0
  %105 = vmatprep.subr.mxu0 0.0
  %106 = vmatpush1.msra.mxu0 0.0
  %107 = vmatprep.subr.mxu0 0.0
  %108 = vmatpush1.msra.mxu0 0.0
  %109 = vmatprep.subr.mxu0 0.0
  %110 = vmatpush1.msra.mxu0 0.0
  %111 = vmatprep.subr.mxu0 0.0
  %112 = vmatpush1.msra.mxu0 0.0
  %113 = vmatprep.subr.mxu0 0.0
  %114 = vmatpush1.msra.mxu0 0.0
  %115 = vmatprep.subr.mxu0 0.0
  %116 = vmatpush1.msra.mxu0 0.0
  %117 = vmatprep.subr.mxu0 0.0
  %118 = vmatpush1.msra.mxu0 0.0
  %119 = vmatprep.subr.mxu0 0.0
  %120 = vmatpush1.msra.mxu0 0.0
  %121 = vmatprep.subr.mxu0 0.0
  %122 = vmatpush1.msra.mxu0 0.0
  %123 = vmatprep.subr.mxu0 0.0
  %124 = vmatpush1.msra.mxu0 0.0
  %125 = vmatprep.subr.mxu0 0.0
  %126 = vmatpush1.msra.mxu0 0.0
  %127 = vmatprep.subr.mxu0 0.0
  %128 = vmatpush1.msra.mxu0 0.0
  %129 = vmatprep.subr.mxu0 0.0
  %130 = vmatpush1.msra.mxu0 0.0
  %131 = vmatprep.subr.mxu0 0.0
  %132 = vmatpush1.msra.mxu0 0.0
  %133 = vmatprep.subr.mxu0 0.0
  %134 = vmatpush1.msra.mxu0 0.0
  %135 = vmatprep.subr.mxu0 0.0
  %136 = vmatpush1.msra.mxu0 0.0
  %137 = vmatprep.subr.mxu0 0.0
  %138 = vmatpush1.msra.mxu0 0.0
  %139 = vmatprep.subr.mxu0 0.0
  %140 = vmatpush1.msra.mxu0 0.0
  %141 = vmatprep.subr.mxu0 0.0
  %142 = vmatpush1.msra.mxu0 0.0
  %143 = vmatprep.subr.mxu0 0.0
  %144 = vmatpush1.msra.mxu0 0.0
  %145 = vmatprep.subr.mxu0 0.0
  %146 = vmatpush1.msra.mxu0 0.0
  %147 = vmatprep.subr.mxu0 0.0
  %148 = vmatpush1.msra.mxu0 0.0
  %149 = vmatprep.subr.mxu0 0.0
  %150 = vmatpush1.msra.mxu0 0.0
  %151 = vmatprep.mubr.f32.mxu0 0.0
  %152 = vmatmul.mubr.f32.gmra.mrb[0].mxu0 %v82
  %v153 = vpop.f32.mrb[0].mxu0
  %v154 = vadd.f32 %v73, %v153
  %v155 = vpop.f32.mrb[0].mxu0
  %156 = vmatprep.mubr.f32.mxu0 0.0
  %157 = vmatmul.mubr.f32.gmra.mrb[0].mxu0 %v85
  %v158 = vpop.f32.mrb[0].mxu0
  %v159 = vadd.f32 %v78, %v158
  %v160 = vpop.f32.mrb[0].mxu0
  %161 = vdwg.mxu0
  %vm162 = vcmask 130048
  %v164 = vsel %vm162, %v154, 0
  %v167 = vsel %vm162, %v159, 0
  %169 = vmatprep.subr.mxu0 0.0
  %170 = vmatpush1.msra.mxu0 1.0
  %171 = vmatprep.subr.mxu0 0.0
  %172 = vmatpush1.msra.mxu0 1.0
  %173 = vmatprep.subr.mxu0 0.0
  %174 = vmatpush1.msra.mxu0 0.0
  %175 = vmatprep.subr.mxu0 0.0
  %176 = vmatpush1.msra.mxu0 0.0
  %177 = vmatprep.subr.mxu0 0.0
  %178 = vmatpush1.msra.mxu0 0.0
  %179 = vmatprep.subr.mxu0 0.0
  %180 = vmatpush1.msra.mxu0 0.0
  %181 = vmatprep.subr.mxu0 0.0
  %182 = vmatpush1.msra.mxu0 0.0
  %183 = vmatprep.subr.mxu0 0.0
  %184 = vmatpush1.msra.mxu0 0.0
  %185 = vmatprep.subr.mxu0 0.0
  %186 = vmatpush1.msra.mxu0 0.0
  %187 = vmatprep.subr.mxu0 0.0
  %188 = vmatpush1.msra.mxu0 0.0
  %189 = vmatprep.subr.mxu0 0.0
  %190 = vmatpush1.msra.mxu0 0.0
  %191 = vmatprep.subr.mxu0 0.0
  %192 = vmatpush1.msra.mxu0 0.0
  %193 = vmatprep.subr.mxu0 0.0
  %194 = vmatpush1.msra.mxu0 0.0
  %195 = vmatprep.subr.mxu0 0.0
  %196 = vmatpush1.msra.mxu0 0.0
  %197 = vmatprep.subr.mxu0 0.0
  %198 = vmatpush1.msra.mxu0 0.0
  %199 = vmatprep.subr.mxu0 0.0
  %200 = vmatpush1.msra.mxu0 0.0
  %201 = vmatprep.subr.mxu0 0.0
  %202 = vmatpush1.msra.mxu0 0.0
  %203 = vmatprep.subr.mxu0 0.0
  %204 = vmatpush1.msra.mxu0 0.0
  %205 = vmatprep.subr.mxu0 0.0
  %206 = vmatpush1.msra.mxu0 0.0
  %207 = vmatprep.subr.mxu0 0.0
  %208 = vmatpush1.msra.mxu0 0.0
  %209 = vmatprep.subr.mxu0 0.0
  %210 = vmatpush1.msra.mxu0 0.0
  %211 = vmatprep.subr.mxu0 0.0
  %212 = vmatpush1.msra.mxu0 0.0
  %213 = vmatprep.subr.mxu0 0.0
  %214 = vmatpush1.msra.mxu0 0.0
  %215 = vmatprep.subr.mxu0 0.0
  %216 = vmatpush1.msra.mxu0 0.0
  %217 = vmatprep.subr.mxu0 0.0
  %218 = vmatpush1.msra.mxu0 0.0
  %219 = vmatprep.subr.mxu0 0.0
  %220 = vmatpush1.msra.mxu0 0.0
  %221 = vmatprep.subr.mxu0 0.0
  %222 = vmatpush1.msra.mxu0 0.0
  %223 = vmatprep.subr.mxu0 0.0
  %224 = vmatpush1.msra.mxu0 0.0
  %225 = vmatprep.subr.mxu0 0.0
  %226 = vmatpush1.msra.mxu0 0.0
  %227 = vmatprep.subr.mxu0 0.0
  %228 = vmatpush1.msra.mxu0 0.0
  %229 = vmatprep.subr.mxu0 0.0
  %230 = vmatpush1.msra.mxu0 0.0
  %231 = vmatprep.subr.mxu0 0.0
  %232 = vmatpush1.msra.mxu0 0.0
  %233 = vmatprep.mubr.f32.mxu0 0.0
  %234 = vmatmul.mubr.f32.gmra.mrb[0].mxu0 %v164
  %v235 = vpop.f32.mrb[0].mxu0
  %v236 = vadd.f32 0.0, %v235
  %v237 = vpop.f32.mrb[0].mxu0
  %238 = vmatprep.mubr.f32.mxu0 0.0
  %239 = vmatmul.mubr.f32.gmra.mrb[0].mxu0 %v167
  %v240 = vpop.f32.mrb[0].mxu0
  %v241 = vadd.f32 0.0, %v240
  %v242 = vpop.f32.mrb[0].mxu0
  %243 = vdwg.mxu0
  %v244 = vmul.f32 %v236, 0.0625
  %v245 = vmul.f32 %v241, 0.0625
  %247 = vset.pattern.permute.xlu0 0
  %248 = vperm.xlu0 %247, %v244
  %v249 = vpop.permute.xlu0 %248
  %252 = vset.pattern.permute.xlu0 0
  %253 = vperm.xlu0 %252, %v245
  %v254 = vpop.permute.xlu0 %253
  %v256 = vsub.f32 %v154, %v249
  %v257 = vsub.f32 %v159, %v254
  %v258 = vmul.f32 %v256, %v256
  %v259 = vmul.f32 %v257, %v257
  %v261 = vsel %vm162, %v258, 0
  %v264 = vsel %vm162, %v259, 0
  %266 = vmatprep.subr.mxu0 0.0
  %267 = vmatpush1.msra.mxu0 1.0
  %268 = vmatprep.subr.mxu0 0.0
  %269 = vmatpush1.msra.mxu0 1.0
  %270 = vmatprep.subr.mxu0 0.0
  %271 = vmatpush1.msra.mxu0 0.0
  %272 = vmatprep.subr.mxu0 0.0
  %273 = vmatpush1.msra.mxu0 0.0
  %274 = vmatprep.subr.mxu0 0.0
  %275 = vmatpush1.msra.mxu0 0.0
  %276 = vmatprep.subr.mxu0 0.0
  %277 = vmatpush1.msra.mxu0 0.0
  %278 = vmatprep.subr.mxu0 0.0
  %279 = vmatpush1.msra.mxu0 0.0
  %280 = vmatprep.subr.mxu0 0.0
  %281 = vmatpush1.msra.mxu0 0.0
  %282 = vmatprep.subr.mxu0 0.0
  %283 = vmatpush1.msra.mxu0 0.0
  %284 = vmatprep.subr.mxu0 0.0
  %285 = vmatpush1.msra.mxu0 0.0
  %286 = vmatprep.subr.mxu0 0.0
  %287 = vmatpush1.msra.mxu0 0.0
  %288 = vmatprep.subr.mxu0 0.0
  %289 = vmatpush1.msra.mxu0 0.0
  %290 = vmatprep.subr.mxu0 0.0
  %291 = vmatpush1.msra.mxu0 0.0
  %292 = vmatprep.subr.mxu0 0.0
  %293 = vmatpush1.msra.mxu0 0.0
  %294 = vmatprep.subr.mxu0 0.0
  %295 = vmatpush1.msra.mxu0 0.0
  %296 = vmatprep.subr.mxu0 0.0
  %297 = vmatpush1.msra.mxu0 0.0
  %298 = vmatprep.subr.mxu0 0.0
  %299 = vmatpush1.msra.mxu0 0.0
  %300 = vmatprep.subr.mxu0 0.0
  %301 = vmatpush1.msra.mxu0 0.0
  %302 = vmatprep.subr.mxu0 0.0
  %303 = vmatpush1.msra.mxu0 0.0
  %304 = vmatprep.subr.mxu0 0.0
  %305 = vmatpush1.msra.mxu0 0.0
  %306 = vmatprep.subr.mxu0 0.0
  %307 = vmatpush1.msra.mxu0 0.0
  %308 = vmatprep.subr.mxu0 0.0
  %309 = vmatpush1.msra.mxu0 0.0
  %310 = vmatprep.subr.mxu0 0.0
  %311 = vmatpush1.msra.mxu0 0.0
  %312 = vmatprep.subr.mxu0 0.0
  %313 = vmatpush1.msra.mxu0 0.0
  %314 = vmatprep.subr.mxu0 0.0
  %315 = vmatpush1.msra.mxu0 0.0
  %316 = vmatprep.subr.mxu0 0.0
  %317 = vmatpush1.msra.mxu0 0.0
  %318 = vmatprep.subr.mxu0 0.0
  %319 = vmatpush1.msra.mxu0 0.0
  %320 = vmatprep.subr.mxu0 0.0
  %321 = vmatpush1.msra.mxu0 0.0
  %322 = vmatprep.subr.mxu0 0.0
  %323 = vmatpush1.msra.mxu0 0.0
  %324 = vmatprep.subr.mxu0 0.0
  %325 = vmatpush1.msra.mxu0 0.0
  %326 = vmatprep.subr.mxu0 0.0
  %327 = vmatpush1.msra.mxu0 0.0
  %328 = vmatprep.subr.mxu0 0.0
  %329 = vmatpush1.msra.mxu0 0.0
  %330 = vmatprep.mubr.f32.mxu0 0.0
  %331 = vmatmul.mubr.f32.gmra.mrb[0].mxu0 %v261
  %v332 = vpop.f32.mrb[0].mxu0
  %v333 = vadd.f32 0.0, %v332
  %v334 = vpop.f32.mrb[0].mxu0
  %335 = vmatprep.mubr.f32.mxu0 0.0
  %336 = vmatmul.mubr.f32.gmra.mrb[0].mxu0 %v264
  %v337 = vpop.f32.mrb[0].mxu0
  %v338 = vadd.f32 0.0, %v337
  %v339 = vpop.f32.mrb[0].mxu0
  %340 = vdwg.mxu0
  %v341 = vmul.f32 %v333, 0.0625
  %v342 = vmul.f32 %v338, 0.0625
  %v343 = vadd.f32 %v341, 1e-05
  %v344 = vadd.f32 %v342, 1e-05
  %v345 = vrsqrt.pop %v343
  %v346 = vrsqrt.pop %v344
  %348 = vset.pattern.permute.xlu0 0
  %349 = vperm.xlu0 %348, %v345
  %v350 = vpop.permute.xlu0 %349
  %353 = vset.pattern.permute.xlu0 0
  %354 = vperm.xlu0 %353, %v346
  %v355 = vpop.permute.xlu0 %354
  %v357 = vmul.f32 %v256, %v350
  %v358 = vmul.f32 %v257, %v355
  %v359 = vld [vmem:[%s7] sm:$0xff]
  %v360 = vld [vmem:[%s7 + $0x8] sm:$0xff]
  %362 = vset.pattern.permute.xlu0 0
  %363 = vperm.xlu0 %362, %v359
  %v364 = vpop.permute.xlu0 %363
  %367 = vset.pattern.permute.xlu0 0
  %368 = vperm.xlu0 %367, %v360
  %v369 = vpop.permute.xlu0 %368
  %v371 = vmul.f32 %v357, %v364
  %v372 = vmul.f32 %v358, %v369
  %v373 = vld [vmem:[%s8] sm:$0xff]
  %v374 = vld [vmem:[%s8 + $0x8] sm:$0xff]
  %376 = vset.pattern.permute.xlu0 0
  %377 = vperm.xlu0 %376, %v373
  %v378 = vpop.permute.xlu0 %377
  %381 = vset.pattern.permute.xlu0 0
  %382 = vperm.xlu0 %381, %v374
  %v383 = vpop.permute.xlu0 %382
  %v385 = vadd.f32 %v371, %v378
  %v386 = vadd.f32 %v372, %v383
  %v387 = vmax.f32 %v385, 0.0
  %v388 = vmax.f32 %v386, 0.0
  %v389 = vld [vmem:[%s1] sm:$0x7]
  %v390 = vlaneseq
  %v391 = vshrl.u32 %v390, 7
  %v392 = vlaneseq
  %v393 = vshrl.u32 %v392, 7
  %v394 = vsub.s32 0, %v393
  %v395 = vrot.slane %v389, %v394
  %vm396 = vcmp.eq.s32.totalorder %v391, %v395
  %v397 = vsel %vm396, 1, 0
  %v398 = vcvt.s32.f32 %v397
  %v399 = vlaneseq
  %v400 = vshrl.u32 %v399, 7
  %v401 = vsub.s32 1, %v400
  %v402 = vrot.slane %v389, %v401
  %vm403 = vcmp.eq.s32.totalorder %v391, %v402
  %v404 = vsel %vm403, 1, 0
  %v405 = vcvt.s32.f32 %v404
  %v406 = vlaneseq
  %v407 = vshrl.u32 %v406, 7
  %v408 = vsub.s32 2, %v407
  %v409 = vrot.slane %v389, %v408
  %vm410 = vcmp.eq.s32.totalorder %v391, %v409
  %v411 = vsel %vm410, 1, 0
  %v412 = vcvt.s32.f32 %v411
  %v413 = vlaneseq
  %v414 = vand.u32 %v413, 127
  %v415 = vld [vmem:[%s2] sm:$0xff]
  %v416 = vld [vmem:[%s2 + $0x8] sm:$0xff]
  %417 = vset.pattern.permute.xlu0 0
  %418 = vperm.xlu0 %417, %v415
  %v419 = vpop.permute.xlu0 %418
  %420 = vset.pattern.permute.xlu0 0
  %421 = vperm.xlu0 %420, %v416
  %v422 = vpop.permute.xlu0 %421
  %vm423 = vcmp.eq.s32.totalorder %v414, %v419
  %vm424 = vcmp.eq.s32.totalorder %v414, %v422
  %v425 = vsel %vm423, 1, 0
  %v426 = vsel %vm424, 1, 0
  %v427 = vcvt.s32.f32 %v425
  %v428 = vcvt.s32.f32 %v426
  %v429 = vld [vmem:[%s3] sm:$0x1]
  %v430 = vadd.s32 %v391, 8
  %v431 = vadd.s32 %v391, 16
  %v432 = vadd.s32 %v391, 24
  %vm433 = vcmp.lt.s32.totalorder %v391, 16
  %vm434 = vcmp.lt.s32.totalorder %v430, 16
  %vm435 = vcmp.lt.s32.totalorder %v431, 16
  %vm436 = vcmp.lt.s32.totalorder %v432, 16
  %v437 = vsub.f32 1.0, %v429
  %v439 = vlaneseq
  %v440 = vshrl.u32 %v439, 7
  %v441 = vsub.s32 0, %v440
  %v442 = vrot.slane %v429, %v441
  %v445 = vlaneseq
  %v446 = vshrl.u32 %v445, 7
  %v447 = vsub.s32 0, %v446
  %v448 = vrot.slane %v437, %v447
  %v450 = vsel %vm433, %v442, %v448
  %v451 = vsel %vm434, %v442, %v448
  %v452 = vsel %vm435, %v442, %v448
  %v453 = vsel %vm436, %v442, %v448
  %vm454 = vcmask 122880
  %v455 = vsel %vm454, %v429, 0.0
  %456 = vadd.xlane.f32.xlu0 %v455
  %v457 = vpop.xlane.xlu0 %456
  %v458 = vsub.f32 16.0, %v457
  %v459 = vlaneseq
  %v460 = vshrl.u32 %v459, 7
  %v461 = vsub.s32 0, %v460
  %v462 = vrot.slane %v457, %v461
  %v463 = vlaneseq
  %v464 = vshrl.u32 %v463, 7
  %v465 = vsub.s32 0, %v464
  %v466 = vrot.slane %v458, %v465
  %v467 = vsel %vm433, %v462, %v466
  %v468 = vsel %vm434, %v462, %v466
  %v469 = vsel %vm435, %v462, %v466
  %v470 = vsel %vm436, %v462, %v466
  %v471 = vmax.f32 %v467, 1.0
  %v472 = vmax.f32 %v468, 1.0
  %v473 = vmax.f32 %v469, 1.0
  %v474 = vmax.f32 %v470, 1.0
  %v475 = vrcp.pop %v471
  %v476 = vmul.f32 1.0, %v475
  %v477 = vrcp.pop %v472
  %v478 = vmul.f32 1.0, %v477
  %v479 = vrcp.pop %v473
  %v480 = vmul.f32 1.0, %v479
  %v481 = vrcp.pop %v474
  %v482 = vmul.f32 1.0, %v481
  %v483 = vld [vmem:[%s17] sm:$0xff]
  %v484 = vld [vmem:[%s17 + $0x8] sm:$0xff]
  %v485 = vld [vmem:[%s4] sm:$0xff]
  %v486 = vld [vmem:[%s4 + $0x8] sm:$0xff]
  %vm487 = vcmask 64512
  %v489 = vsel %vm487, %v485, 0
  %v492 = vsel %vm487, %v486, 0
  %494 = vmatprep.subr.mxu0 0.0
  %495 = vmatpush1.msra.mxu0 %v398
  %496 = vmatprep.subr.mxu0 0.0
  %497 = vmatpush1.msra.mxu0 0.0
  %498 = vmatprep.subr.mxu0 0.0
  %499 = vmatpush1.msra.mxu0 0.0
  %500 = vmatprep.subr.mxu0 0.0
  %501 = vmatpush1.msra.mxu0 0.0
  %502 = vmatprep.subr.mxu0 0.0
  %503 = vmatpush1.msra.mxu0 0.0
  %504 = vmatprep.subr.mxu0 0.0
  %505 = vmatpush1.msra.mxu0 0.0
  %506 = vmatprep.subr.mxu0 0.0
  %507 = vmatpush1.msra.mxu0 0.0
  %508 = vmatprep.subr.mxu0 0.0
  %509 = vmatpush1.msra.mxu0 0.0
  %510 = vmatprep.subr.mxu0 0.0
  %511 = vmatpush1.msra.mxu0 0.0
  %512 = vmatprep.subr.mxu0 0.0
  %513 = vmatpush1.msra.mxu0 0.0
  %514 = vmatprep.subr.mxu0 0.0
  %515 = vmatpush1.msra.mxu0 0.0
  %516 = vmatprep.subr.mxu0 0.0
  %517 = vmatpush1.msra.mxu0 0.0
  %518 = vmatprep.subr.mxu0 0.0
  %519 = vmatpush1.msra.mxu0 0.0
  %520 = vmatprep.subr.mxu0 0.0
  %521 = vmatpush1.msra.mxu0 0.0
  %522 = vmatprep.subr.mxu0 0.0
  %523 = vmatpush1.msra.mxu0 0.0
  %524 = vmatprep.subr.mxu0 0.0
  %525 = vmatpush1.msra.mxu0 0.0
  %526 = vmatprep.subr.mxu0 0.0
  %527 = vmatpush1.msra.mxu0 0.0
  %528 = vmatprep.subr.mxu0 0.0
  %529 = vmatpush1.msra.mxu0 0.0
  %530 = vmatprep.subr.mxu0 0.0
  %531 = vmatpush1.msra.mxu0 0.0
  %532 = vmatprep.subr.mxu0 0.0
  %533 = vmatpush1.msra.mxu0 0.0
  %534 = vmatprep.subr.mxu0 0.0
  %535 = vmatpush1.msra.mxu0 0.0
  %536 = vmatprep.subr.mxu0 0.0
  %537 = vmatpush1.msra.mxu0 0.0
  %538 = vmatprep.subr.mxu0 0.0
  %539 = vmatpush1.msra.mxu0 0.0
  %540 = vmatprep.subr.mxu0 0.0
  %541 = vmatpush1.msra.mxu0 0.0
  %542 = vmatprep.subr.mxu0 0.0
  %543 = vmatpush1.msra.mxu0 0.0
  %544 = vmatprep.subr.mxu0 0.0
  %545 = vmatpush1.msra.mxu0 0.0
  %546 = vmatprep.subr.mxu0 0.0
  %547 = vmatpush1.msra.mxu0 0.0
  %548 = vmatprep.subr.mxu0 0.0
  %549 = vmatpush1.msra.mxu0 0.0
  %550 = vmatprep.subr.mxu0 0.0
  %551 = vmatpush1.msra.mxu0 0.0
  %552 = vmatprep.subr.mxu0 0.0
  %553 = vmatpush1.msra.mxu0 0.0
  %554 = vmatprep.subr.mxu0 0.0
  %555 = vmatpush1.msra.mxu0 0.0
  %556 = vmatprep.subr.mxu0 0.0
  %557 = vmatpush1.msra.mxu0 0.0
  %558 = vmatprep.mubr.f32.mxu0 0.0
  %559 = vmatmul.mubr.f32.gmra.mrb[0].mxu0 %v489
  %v560 = vpop.f32.mrb[0].mxu0
  %v561 = vadd.f32 0.0, %v560
  %v562 = vpop.f32.mrb[0].mxu0
  %563 = vmatprep.mubr.f32.mxu0 0.0
  %564 = vmatmul.mubr.f32.gmra.mrb[0].mxu0 %v492
  %v565 = vpop.f32.mrb[0].mxu0
  %v566 = vadd.f32 0.0, %v565
  %v567 = vpop.f32.mrb[0].mxu0
  %568 = vdwg.mxu0
  %569 = vmatprep.subr.mxu0 0.0
  %570 = vmatpush1.msra.mxu0 %v405
  %571 = vmatprep.subr.mxu0 0.0
  %572 = vmatpush1.msra.mxu0 0.0
  %573 = vmatprep.subr.mxu0 0.0
  %574 = vmatpush1.msra.mxu0 0.0
  %575 = vmatprep.subr.mxu0 0.0
  %576 = vmatpush1.msra.mxu0 0.0
  %577 = vmatprep.subr.mxu0 0.0
  %578 = vmatpush1.msra.mxu0 0.0
  %579 = vmatprep.subr.mxu0 0.0
  %580 = vmatpush1.msra.mxu0 0.0
  %581 = vmatprep.subr.mxu0 0.0
  %582 = vmatpush1.msra.mxu0 0.0
  %583 = vmatprep.subr.mxu0 0.0
  %584 = vmatpush1.msra.mxu0 0.0
  %585 = vmatprep.subr.mxu0 0.0
  %586 = vmatpush1.msra.mxu0 0.0
  %587 = vmatprep.subr.mxu0 0.0
  %588 = vmatpush1.msra.mxu0 0.0
  %589 = vmatprep.subr.mxu0 0.0
  %590 = vmatpush1.msra.mxu0 0.0
  %591 = vmatprep.subr.mxu0 0.0
  %592 = vmatpush1.msra.mxu0 0.0
  %593 = vmatprep.subr.mxu0 0.0
  %594 = vmatpush1.msra.mxu0 0.0
  %595 = vmatprep.subr.mxu0 0.0
  %596 = vmatpush1.msra.mxu0 0.0
  %597 = vmatprep.subr.mxu0 0.0
  %598 = vmatpush1.msra.mxu0 0.0
  %599 = vmatprep.subr.mxu0 0.0
  %600 = vmatpush1.msra.mxu0 0.0
  %601 = vmatprep.subr.mxu0 0.0
  %602 = vmatpush1.msra.mxu0 0.0
  %603 = vmatprep.subr.mxu0 0.0
  %604 = vmatpush1.msra.mxu0 0.0
  %605 = vmatprep.subr.mxu0 0.0
  %606 = vmatpush1.msra.mxu0 0.0
  %607 = vmatprep.subr.mxu0 0.0
  %608 = vmatpush1.msra.mxu0 0.0
  %609 = vmatprep.subr.mxu0 0.0
  %610 = vmatpush1.msra.mxu0 0.0
  %611 = vmatprep.subr.mxu0 0.0
  %612 = vmatpush1.msra.mxu0 0.0
  %613 = vmatprep.subr.mxu0 0.0
  %614 = vmatpush1.msra.mxu0 0.0
  %615 = vmatprep.subr.mxu0 0.0
  %616 = vmatpush1.msra.mxu0 0.0
  %617 = vmatprep.subr.mxu0 0.0
  %618 = vmatpush1.msra.mxu0 0.0
  %619 = vmatprep.subr.mxu0 0.0
  %620 = vmatpush1.msra.mxu0 0.0
  %621 = vmatprep.subr.mxu0 0.0
  %622 = vmatpush1.msra.mxu0 0.0
  %623 = vmatprep.subr.mxu0 0.0
  %624 = vmatpush1.msra.mxu0 0.0
  %625 = vmatprep.subr.mxu0 0.0
  %626 = vmatpush1.msra.mxu0 0.0
  %627 = vmatprep.subr.mxu0 0.0
  %628 = vmatpush1.msra.mxu0 0.0
  %629 = vmatprep.subr.mxu0 0.0
  %630 = vmatpush1.msra.mxu0 0.0
  %631 = vmatprep.subr.mxu0 0.0
  %632 = vmatpush1.msra.mxu0 0.0
  %633 = vmatprep.mubr.f32.mxu0 0.0
  %634 = vmatmul.mubr.f32.gmra.mrb[0].mxu0 %v489
  %v635 = vpop.f32.mrb[0].mxu0
  %v636 = vadd.f32 0.0, %v635
  %v637 = vpop.f32.mrb[0].mxu0
  %638 = vmatprep.mubr.f32.mxu0 0.0
  %639 = vmatmul.mubr.f32.gmra.mrb[0].mxu0 %v492
  %v640 = vpop.f32.mrb[0].mxu0
  %v641 = vadd.f32 0.0, %v640
  %v642 = vpop.f32.mrb[0].mxu0
  %643 = vdwg.mxu0
  %644 = vmatprep.subr.mxu0 0.0
  %645 = vmatpush1.msra.mxu0 %v412
  %646 = vmatprep.subr.mxu0 0.0
  %647 = vmatpush1.msra.mxu0 0.0
  %648 = vmatprep.subr.mxu0 0.0
  %649 = vmatpush1.msra.mxu0 0.0
  %650 = vmatprep.subr.mxu0 0.0
  %651 = vmatpush1.msra.mxu0 0.0
  %652 = vmatprep.subr.mxu0 0.0
  %653 = vmatpush1.msra.mxu0 0.0
  %654 = vmatprep.subr.mxu0 0.0
  %655 = vmatpush1.msra.mxu0 0.0
  %656 = vmatprep.subr.mxu0 0.0
  %657 = vmatpush1.msra.mxu0 0.0
  %658 = vmatprep.subr.mxu0 0.0
  %659 = vmatpush1.msra.mxu0 0.0
  %660 = vmatprep.subr.mxu0 0.0
  %661 = vmatpush1.msra.mxu0 0.0
  %662 = vmatprep.subr.mxu0 0.0
  %663 = vmatpush1.msra.mxu0 0.0
  %664 = vmatprep.subr.mxu0 0.0
  %665 = vmatpush1.msra.mxu0 0.0
  %666 = vmatprep.subr.mxu0 0.0
  %667 = vmatpush1.msra.mxu0 0.0
  %668 = vmatprep.subr.mxu0 0.0
  %669 = vmatpush1.msra.mxu0 0.0
  %670 = vmatprep.subr.mxu0 0.0
  %671 = vmatpush1.msra.mxu0 0.0
  %672 = vmatprep.subr.mxu0 0.0
  %673 = vmatpush1.msra.mxu0 0.0
  %674 = vmatprep.subr.mxu0 0.0
  %675 = vmatpush1.msra.mxu0 0.0
  %676 = vmatprep.subr.mxu0 0.0
  %677 = vmatpush1.msra.mxu0 0.0
  %678 = vmatprep.subr.mxu0 0.0
  %679 = vmatpush1.msra.mxu0 0.0
  %680 = vmatprep.subr.mxu0 0.0
  %681 = vmatpush1.msra.mxu0 0.0
  %682 = vmatprep.subr.mxu0 0.0
  %683 = vmatpush1.msra.mxu0 0.0
  %684 = vmatprep.subr.mxu0 0.0
  %685 = vmatpush1.msra.mxu0 0.0
  %686 = vmatprep.subr.mxu0 0.0
  %687 = vmatpush1.msra.mxu0 0.0
  %688 = vmatprep.subr.mxu0 0.0
  %689 = vmatpush1.msra.mxu0 0.0
  %690 = vmatprep.subr.mxu0 0.0
  %691 = vmatpush1.msra.mxu0 0.0
  %692 = vmatprep.subr.mxu0 0.0
  %693 = vmatpush1.msra.mxu0 0.0
  %694 = vmatprep.subr.mxu0 0.0
  %695 = vmatpush1.msra.mxu0 0.0
  %696 = vmatprep.subr.mxu0 0.0
  %697 = vmatpush1.msra.mxu0 0.0
  %698 = vmatprep.subr.mxu0 0.0
  %699 = vmatpush1.msra.mxu0 0.0
  %700 = vmatprep.subr.mxu0 0.0
  %701 = vmatpush1.msra.mxu0 0.0
  %702 = vmatprep.subr.mxu0 0.0
  %703 = vmatpush1.msra.mxu0 0.0
  %704 = vmatprep.subr.mxu0 0.0
  %705 = vmatpush1.msra.mxu0 0.0
  %706 = vmatprep.subr.mxu0 0.0
  %707 = vmatpush1.msra.mxu0 0.0
  %708 = vmatprep.mubr.f32.mxu0 0.0
  %709 = vmatmul.mubr.f32.gmra.mrb[0].mxu0 %v489
  %v710 = vpop.f32.mrb[0].mxu0
  %v711 = vadd.f32 0.0, %v710
  %v712 = vpop.f32.mrb[0].mxu0
  %713 = vmatprep.mubr.f32.mxu0 0.0
  %714 = vmatmul.mubr.f32.gmra.mrb[0].mxu0 %v492
  %v715 = vpop.f32.mrb[0].mxu0
  %v716 = vadd.f32 0.0, %v715
  %v717 = vpop.f32.mrb[0].mxu0
  %718 = vdwg.mxu0
  %v719 = vld [vmem:[%s9] sm:$0xff]
  %v720 = vld [vmem:[%s9 + $0x8] sm:$0xff]
  %v721 = vld [vmem:[%s9 + $0x10] sm:$0xff]
  %v722 = vld [vmem:[%s9 + $0x18] sm:$0xff]
  %v723 = vld [vmem:[%s10] sm:$0xff]
  %v724 = vld [vmem:[%s10 + $0x8] sm:$0xff]
  %v725 = vld [vmem:[%s10 + $0x10] sm:$0xff]
  %v726 = vld [vmem:[%s10 + $0x18] sm:$0xff]
  %728 = vset.pattern.permute.xlu0 0
  %729 = vperm.xlu0 %728, %v723
  %v730 = vpop.permute.xlu0 %729
  %733 = vset.pattern.permute.xlu0 0
  %734 = vperm.xlu0 %733, %v724
  %v735 = vpop.permute.xlu0 %734
  %738 = vset.pattern.permute.xlu0 0
  %739 = vperm.xlu0 %738, %v725
  %v740 = vpop.permute.xlu0 %739
  %743 = vset.pattern.permute.xlu0 0
  %744 = vperm.xlu0 %743, %v726
  %v745 = vpop.permute.xlu0 %744
  %vm747 = vcmask 523264
  %v749 = vsel %vm747, %v719, 0
  %v752 = vsel %vm747, %v720, 0
  %v755 = vsel %vm747, %v721, 0
  %v758 = vsel %vm747, %v722, 0
  %760 = vmatprep.subr.mxu0 0.0
  %761 = vmatpush1.msra.mxu0 %v561
  %762 = vmatprep.subr.mxu0 0.0
  %763 = vmatpush1.msra.mxu0 %v566
  %764 = vmatprep.subr.mxu0 0.0
  %765 = vmatpush1.msra.mxu0 %v636
  %766 = vmatprep.subr.mxu0 0.0
  %767 = vmatpush1.msra.mxu0 %v641
  %768 = vmatprep.subr.mxu0 0.0
  %769 = vmatpush1.msra.mxu0 %v711
  %770 = vmatprep.subr.mxu0 0.0
  %771 = vmatpush1.msra.mxu0 %v716
  %772 = vmatprep.subr.mxu0 0.0
  %773 = vmatpush1.msra.mxu0 %v387
  %774 = vmatprep.subr.mxu0 0.0
  %775 = vmatpush1.msra.mxu0 %v388
  %776 = vmatprep.subr.mxu0 0.0
  %777 = vmatpush1.msra.mxu0 0.0
  %778 = vmatprep.subr.mxu0 0.0
  %779 = vmatpush1.msra.mxu0 0.0
  %780 = vmatprep.subr.mxu0 0.0
  %781 = vmatpush1.msra.mxu0 0.0
  %782 = vmatprep.subr.mxu0 0.0
  %783 = vmatpush1.msra.mxu0 0.0
  %784 = vmatprep.subr.mxu0 0.0
  %785 = vmatpush1.msra.mxu0 0.0
  %786 = vmatprep.subr.mxu0 0.0
  %787 = vmatpush1.msra.mxu0 0.0
  %788 = vmatprep.subr.mxu0 0.0
  %789 = vmatpush1.msra.mxu0 0.0
  %790 = vmatprep.subr.mxu0 0.0
  %791 = vmatpush1.msra.mxu0 0.0
  %792 = vmatprep.subr.mxu0 0.0
  %793 = vmatpush1.msra.mxu0 0.0
  %794 = vmatprep.subr.mxu0 0.0
  %795 = vmatpush1.msra.mxu0 0.0
  %796 = vmatprep.subr.mxu0 0.0
  %797 = vmatpush1.msra.mxu0 0.0
  %798 = vmatprep.subr.mxu0 0.0
  %799 = vmatpush1.msra.mxu0 0.0
  %800 = vmatprep.subr.mxu0 0.0
  %801 = vmatpush1.msra.mxu0 0.0
  %802 = vmatprep.subr.mxu0 0.0
  %803 = vmatpush1.msra.mxu0 0.0
  %804 = vmatprep.subr.mxu0 0.0
  %805 = vmatpush1.msra.mxu0 0.0
  %806 = vmatprep.subr.mxu0 0.0
  %807 = vmatpush1.msra.mxu0 0.0
  %808 = vmatprep.subr.mxu0 0.0
  %809 = vmatpush1.msra.mxu0 0.0
  %810 = vmatprep.subr.mxu0 0.0
  %811 = vmatpush1.msra.mxu0 0.0
  %812 = vmatprep.subr.mxu0 0.0
  %813 = vmatpush1.msra.mxu0 0.0
  %814 = vmatprep.subr.mxu0 0.0
  %815 = vmatpush1.msra.mxu0 0.0
  %816 = vmatprep.subr.mxu0 0.0
  %817 = vmatpush1.msra.mxu0 0.0
  %818 = vmatprep.subr.mxu0 0.0
  %819 = vmatpush1.msra.mxu0 0.0
  %820 = vmatprep.subr.mxu0 0.0
  %821 = vmatpush1.msra.mxu0 0.0
  %822 = vmatprep.subr.mxu0 0.0
  %823 = vmatpush1.msra.mxu0 0.0
  %824 = vmatprep.mubr.f32.mxu0 0.0
  %825 = vmatmul.mubr.f32.gmra.mrb[0].mxu0 %v749
  %v826 = vpop.f32.mrb[0].mxu0
  %v827 = vadd.f32 %v730, %v826
  %v828 = vpop.f32.mrb[0].mxu0
  %829 = vmatprep.mubr.f32.mxu0 0.0
  %830 = vmatmul.mubr.f32.gmra.mrb[0].mxu0 %v752
  %v831 = vpop.f32.mrb[0].mxu0
  %v832 = vadd.f32 %v735, %v831
  %v833 = vpop.f32.mrb[0].mxu0
  %834 = vmatprep.mubr.f32.mxu0 0.0
  %835 = vmatmul.mubr.f32.gmra.mrb[0].mxu0 %v755
  %v836 = vpop.f32.mrb[0].mxu0
  %v837 = vadd.f32 %v740, %v836
  %v838 = vpop.f32.mrb[0].mxu0
  %839 = vmatprep.mubr.f32.mxu0 0.0
  %840 = vmatmul.mubr.f32.gmra.mrb[0].mxu0 %v758
  %v841 = vpop.f32.mrb[0].mxu0
  %v842 = vadd.f32 %v745, %v841
  %v843 = vpop.f32.mrb[0].mxu0
  %844 = vdwg.mxu0
  %v845 = vld [vmem:[%s11] sm:$0xff]
  %v846 = vld [vmem:[%s11 + $0x8] sm:$0xff]
  %v847 = vld [vmem:[%s11 + $0x10] sm:$0xff]
  %v848 = vld [vmem:[%s11 + $0x18] sm:$0xff]
  %v849 = vld [vmem:[%s12] sm:$0xff]
  %v850 = vld [vmem:[%s12 + $0x8] sm:$0xff]
  %v851 = vld [vmem:[%s12 + $0x10] sm:$0xff]
  %v852 = vld [vmem:[%s12 + $0x18] sm:$0xff]
  %v853 = vmul.f32 %v827, %v450
  %v854 = vmul.f32 %v832, %v451
  %v855 = vmul.f32 %v837, %v452
  %v856 = vmul.f32 %v842, %v453
  %v858 = vsel %vm162, %v853, 0
  %v861 = vsel %vm162, %v854, 0
  %v864 = vsel %vm162, %v855, 0
  %v867 = vsel %vm162, %v856, 0
  %869 = vmatprep.subr.mxu0 0.0
  %870 = vmatpush1.msra.mxu0 1.0
  %871 = vmatprep.subr.mxu0 0.0
  %872 = vmatpush1.msra.mxu0 1.0
  %873 = vmatprep.subr.mxu0 0.0
  %874 = vmatpush1.msra.mxu0 0.0
  %875 = vmatprep.subr.mxu0 0.0
  %876 = vmatpush1.msra.mxu0 0.0
  %877 = vmatprep.subr.mxu0 0.0
  %878 = vmatpush1.msra.mxu0 0.0
  %879 = vmatprep.subr.mxu0 0.0
  %880 = vmatpush1.msra.mxu0 0.0
  %881 = vmatprep.subr.mxu0 0.0
  %882 = vmatpush1.msra.mxu0 0.0
  %883 = vmatprep.subr.mxu0 0.0
  %884 = vmatpush1.msra.mxu0 0.0
  %885 = vmatprep.subr.mxu0 0.0
  %886 = vmatpush1.msra.mxu0 0.0
  %887 = vmatprep.subr.mxu0 0.0
  %888 = vmatpush1.msra.mxu0 0.0
  %889 = vmatprep.subr.mxu0 0.0
  %890 = vmatpush1.msra.mxu0 0.0
  %891 = vmatprep.subr.mxu0 0.0
  %892 = vmatpush1.msra.mxu0 0.0
  %893 = vmatprep.subr.mxu0 0.0
  %894 = vmatpush1.msra.mxu0 0.0
  %895 = vmatprep.subr.mxu0 0.0
  %896 = vmatpush1.msra.mxu0 0.0
  %897 = vmatprep.subr.mxu0 0.0
  %898 = vmatpush1.msra.mxu0 0.0
  %899 = vmatprep.subr.mxu0 0.0
  %900 = vmatpush1.msra.mxu0 0.0
  %901 = vmatprep.subr.mxu0 0.0
  %902 = vmatpush1.msra.mxu0 0.0
  %903 = vmatprep.subr.mxu0 0.0
  %904 = vmatpush1.msra.mxu0 0.0
  %905 = vmatprep.subr.mxu0 0.0
  %906 = vmatpush1.msra.mxu0 0.0
  %907 = vmatprep.subr.mxu0 0.0
  %908 = vmatpush1.msra.mxu0 0.0
  %909 = vmatprep.subr.mxu0 0.0
  %910 = vmatpush1.msra.mxu0 0.0
  %911 = vmatprep.subr.mxu0 0.0
  %912 = vmatpush1.msra.mxu0 0.0
  %913 = vmatprep.subr.mxu0 0.0
  %914 = vmatpush1.msra.mxu0 0.0
  %915 = vmatprep.subr.mxu0 0.0
  %916 = vmatpush1.msra.mxu0 0.0
  %917 = vmatprep.subr.mxu0 0.0
  %918 = vmatpush1.msra.mxu0 0.0
  %919 = vmatprep.subr.mxu0 0.0
  %920 = vmatpush1.msra.mxu0 0.0
  %921 = vmatprep.subr.mxu0 0.0
  %922 = vmatpush1.msra.mxu0 0.0
  %923 = vmatprep.subr.mxu0 0.0
  %924 = vmatpush1.msra.mxu0 0.0
  %925 = vmatprep.subr.mxu0 0.0
  %926 = vmatpush1.msra.mxu0 0.0
  %927 = vmatprep.subr.mxu0 0.0
  %928 = vmatpush1.msra.mxu0 0.0
  %929 = vmatprep.subr.mxu0 0.0
  %930 = vmatpush1.msra.mxu0 0.0
  %931 = vmatprep.subr.mxu0 0.0
  %932 = vmatpush1.msra.mxu0 0.0
  %933 = vmatprep.mubr.f32.mxu0 0.0
  %934 = vmatmul.mubr.f32.gmra.mrb[0].mxu0 %v858
  %v935 = vpop.f32.mrb[0].mxu0
  %v936 = vadd.f32 0.0, %v935
  %v937 = vpop.f32.mrb[0].mxu0
  %938 = vmatprep.mubr.f32.mxu0 0.0
  %939 = vmatmul.mubr.f32.gmra.mrb[0].mxu0 %v861
  %v940 = vpop.f32.mrb[0].mxu0
  %v941 = vadd.f32 0.0, %v940
  %v942 = vpop.f32.mrb[0].mxu0
  %943 = vmatprep.mubr.f32.mxu0 0.0
  %944 = vmatmul.mubr.f32.gmra.mrb[0].mxu0 %v864
  %v945 = vpop.f32.mrb[0].mxu0
  %v946 = vadd.f32 0.0, %v945
  %v947 = vpop.f32.mrb[0].mxu0
  %948 = vmatprep.mubr.f32.mxu0 0.0
  %949 = vmatmul.mubr.f32.gmra.mrb[0].mxu0 %v867
  %v950 = vpop.f32.mrb[0].mxu0
  %v951 = vadd.f32 0.0, %v950
  %v952 = vpop.f32.mrb[0].mxu0
  %953 = vdwg.mxu0
  %v954 = vmul.f32 %v936, %v476
  %v955 = vmul.f32 %v941, %v478
  %v956 = vmul.f32 %v946, %v480
  %v957 = vmul.f32 %v951, %v482
  %959 = vset.pattern.permute.xlu0 0
  %960 = vperm.xlu0 %959, %v954
  %v961 = vpop.permute.xlu0 %960
  %964 = vset.pattern.permute.xlu0 0
  %965 = vperm.xlu0 %964, %v955
  %v966 = vpop.permute.xlu0 %965
  %969 = vset.pattern.permute.xlu0 0
  %970 = vperm.xlu0 %969, %v956
  %v971 = vpop.permute.xlu0 %970
  %974 = vset.pattern.permute.xlu0 0
  %975 = vperm.xlu0 %974, %v957
  %v976 = vpop.permute.xlu0 %975
  %v978 = vsub.f32 %v827, %v961
  %v979 = vsub.f32 %v832, %v966
  %v980 = vsub.f32 %v837, %v971
  %v981 = vsub.f32 %v842, %v976
  %v982 = vmul.f32 %v978, %v978
  %v983 = vmul.f32 %v979, %v979
  %v984 = vmul.f32 %v980, %v980
  %v985 = vmul.f32 %v981, %v981
  %v986 = vmul.f32 %v982, %v450
  %v987 = vmul.f32 %v983, %v451
  %v988 = vmul.f32 %v984, %v452
  %v989 = vmul.f32 %v985, %v453
  %v991 = vsel %vm162, %v986, 0
  %v994 = vsel %vm162, %v987, 0
  %v997 = vsel %vm162, %v988, 0
  %v1000 = vsel %vm162, %v989, 0
  %1002 = vmatprep.subr.mxu0 0.0
  %1003 = vmatpush1.msra.mxu0 1.0
  %1004 = vmatprep.subr.mxu0 0.0
  %1005 = vmatpush1.msra.mxu0 1.0
  %1006 = vmatprep.subr.mxu0 0.0
  %1007 = vmatpush1.msra.mxu0 0.0
  %1008 = vmatprep.subr.mxu0 0.0
  %1009 = vmatpush1.msra.mxu0 0.0
  %1010 = vmatprep.subr.mxu0 0.0
  %1011 = vmatpush1.msra.mxu0 0.0
  %1012 = vmatprep.subr.mxu0 0.0
  %1013 = vmatpush1.msra.mxu0 0.0
  %1014 = vmatprep.subr.mxu0 0.0
  %1015 = vmatpush1.msra.mxu0 0.0
  %1016 = vmatprep.subr.mxu0 0.0
  %1017 = vmatpush1.msra.mxu0 0.0
  %1018 = vmatprep.subr.mxu0 0.0
  %1019 = vmatpush1.msra.mxu0 0.0
  %1020 = vmatprep.subr.mxu0 0.0
  %1021 = vmatpush1.msra.mxu0 0.0
  %1022 = vmatprep.subr.mxu0 0.0
  %1023 = vmatpush1.msra.mxu0 0.0
  %1024 = vmatprep.subr.mxu0 0.0
  %1025 = vmatpush1.msra.mxu0 0.0
  %1026 = vmatprep.subr.mxu0 0.0
  %1027 = vmatpush1.msra.mxu0 0.0
  %1028 = vmatprep.subr.mxu0 0.0
  %1029 = vmatpush1.msra.mxu0 0.0
  %1030 = vmatprep.subr.mxu0 0.0
  %1031 = vmatpush1.msra.mxu0 0.0
  %1032 = vmatprep.subr.mxu0 0.0
  %1033 = vmatpush1.msra.mxu0 0.0
  %1034 = vmatprep.subr.mxu0 0.0
  %1035 = vmatpush1.msra.mxu0 0.0
  %1036 = vmatprep.subr.mxu0 0.0
  %1037 = vmatpush1.msra.mxu0 0.0
  %1038 = vmatprep.subr.mxu0 0.0
  %1039 = vmatpush1.msra.mxu0 0.0
  %1040 = vmatprep.subr.mxu0 0.0
  %1041 = vmatpush1.msra.mxu0 0.0
  %1042 = vmatprep.subr.mxu0 0.0
  %1043 = vmatpush1.msra.mxu0 0.0
  %1044 = vmatprep.subr.mxu0 0.0
  %1045 = vmatpush1.msra.mxu0 0.0
  %1046 = vmatprep.subr.mxu0 0.0
  %1047 = vmatpush1.msra.mxu0 0.0
  %1048 = vmatprep.subr.mxu0 0.0
  %1049 = vmatpush1.msra.mxu0 0.0
  %1050 = vmatprep.subr.mxu0 0.0
  %1051 = vmatpush1.msra.mxu0 0.0
  %1052 = vmatprep.subr.mxu0 0.0
  %1053 = vmatpush1.msra.mxu0 0.0
  %1054 = vmatprep.subr.mxu0 0.0
  %1055 = vmatpush1.msra.mxu0 0.0
  %1056 = vmatprep.subr.mxu0 0.0
  %1057 = vmatpush1.msra.mxu0 0.0
  %1058 = vmatprep.subr.mxu0 0.0
  %1059 = vmatpush1.msra.mxu0 0.0
  %1060 = vmatprep.subr.mxu0 0.0
  %1061 = vmatpush1.msra.mxu0 0.0
  %1062 = vmatprep.subr.mxu0 0.0
  %1063 = vmatpush1.msra.mxu0 0.0
  %1064 = vmatprep.subr.mxu0 0.0
  %1065 = vmatpush1.msra.mxu0 0.0
  %1066 = vmatprep.mubr.f32.mxu0 0.0
  %1067 = vmatmul.mubr.f32.gmra.mrb[0].mxu0 %v991
  %v1068 = vpop.f32.mrb[0].mxu0
  %v1069 = vadd.f32 0.0, %v1068
  %v1070 = vpop.f32.mrb[0].mxu0
  %1071 = vmatprep.mubr.f32.mxu0 0.0
  %1072 = vmatmul.mubr.f32.gmra.mrb[0].mxu0 %v994
  %v1073 = vpop.f32.mrb[0].mxu0
  %v1074 = vadd.f32 0.0, %v1073
  %v1075 = vpop.f32.mrb[0].mxu0
  %1076 = vmatprep.mubr.f32.mxu0 0.0
  %1077 = vmatmul.mubr.f32.gmra.mrb[0].mxu0 %v997
  %v1078 = vpop.f32.mrb[0].mxu0
  %v1079 = vadd.f32 0.0, %v1078
  %v1080 = vpop.f32.mrb[0].mxu0
  %1081 = vmatprep.mubr.f32.mxu0 0.0
  %1082 = vmatmul.mubr.f32.gmra.mrb[0].mxu0 %v1000
  %v1083 = vpop.f32.mrb[0].mxu0
  %v1084 = vadd.f32 0.0, %v1083
  %v1085 = vpop.f32.mrb[0].mxu0
  %1086 = vdwg.mxu0
  %v1087 = vmul.f32 %v1069, %v476
  %v1088 = vmul.f32 %v1074, %v478
  %v1089 = vmul.f32 %v1079, %v480
  %v1090 = vmul.f32 %v1084, %v482
  %v1091 = vadd.f32 %v1087, 1e-05
  %v1092 = vadd.f32 %v1088, 1e-05
  %v1093 = vadd.f32 %v1089, 1e-05
  %v1094 = vadd.f32 %v1090, 1e-05
  %v1095 = vrsqrt.pop %v1091
  %v1096 = vrsqrt.pop %v1092
  %v1097 = vrsqrt.pop %v1093
  %v1098 = vrsqrt.pop %v1094
  %1100 = vset.pattern.permute.xlu0 0
  %1101 = vperm.xlu0 %1100, %v1095
  %v1102 = vpop.permute.xlu0 %1101
  %1105 = vset.pattern.permute.xlu0 0
  %1106 = vperm.xlu0 %1105, %v1096
  %v1107 = vpop.permute.xlu0 %1106
  %1110 = vset.pattern.permute.xlu0 0
  %1111 = vperm.xlu0 %1110, %v1097
  %v1112 = vpop.permute.xlu0 %1111
  %1115 = vset.pattern.permute.xlu0 0
  %1116 = vperm.xlu0 %1115, %v1098
  %v1117 = vpop.permute.xlu0 %1116
  %v1119 = vmul.f32 %v978, %v1102
  %v1120 = vmul.f32 %v979, %v1107
  %v1121 = vmul.f32 %v980, %v1112
  %v1122 = vmul.f32 %v981, %v1117
  %1124 = vset.pattern.permute.xlu0 0
  %1125 = vperm.xlu0 %1124, %v845
  %v1126 = vpop.permute.xlu0 %1125
  %1129 = vset.pattern.permute.xlu0 0
  %1130 = vperm.xlu0 %1129, %v846
  %v1131 = vpop.permute.xlu0 %1130
  %1134 = vset.pattern.permute.xlu0 0
  %1135 = vperm.xlu0 %1134, %v847
  %v1136 = vpop.permute.xlu0 %1135
  %1139 = vset.pattern.permute.xlu0 0
  %1140 = vperm.xlu0 %1139, %v848
  %v1141 = vpop.permute.xlu0 %1140
  %v1143 = vmul.f32 %v1119, %v1126
  %v1144 = vmul.f32 %v1120, %v1131
  %v1145 = vmul.f32 %v1121, %v1136
  %v1146 = vmul.f32 %v1122, %v1141
  %1148 = vset.pattern.permute.xlu0 0
  %1149 = vperm.xlu0 %1148, %v849
  %v1150 = vpop.permute.xlu0 %1149
  %1153 = vset.pattern.permute.xlu0 0
  %1154 = vperm.xlu0 %1153, %v850
  %v1155 = vpop.permute.xlu0 %1154
  %1158 = vset.pattern.permute.xlu0 0
  %1159 = vperm.xlu0 %1158, %v851
  %v1160 = vpop.permute.xlu0 %1159
  %1163 = vset.pattern.permute.xlu0 0
  %1164 = vperm.xlu0 %1163, %v852
  %v1165 = vpop.permute.xlu0 %1164
  %v1167 = vadd.f32 %v1143, %v1150
  %v1168 = vadd.f32 %v1144, %v1155
  %v1169 = vadd.f32 %v1145, %v1160
  %v1170 = vadd.f32 %v1146, %v1165
  %v1171 = vmax.f32 %v1167, 0.0
  %v1172 = vmax.f32 %v1168, 0.0
  %v1173 = vmax.f32 %v1169, 0.0
  %v1174 = vmax.f32 %v1170, 0.0
  %v1175 = vld [vmem:[%s13] sm:$0xff]
  %v1176 = vld [vmem:[%s13 + $0x8] sm:$0xff]
  %v1177 = vld [vmem:[%s13 + $0x10] sm:$0xff]
  %v1178 = vld [vmem:[%s13 + $0x18] sm:$0xff]
  %v1179 = vld [vmem:[%s14] sm:$0xff]
  %v1180 = vld [vmem:[%s14 + $0x8] sm:$0xff]
  %v1181 = vld [vmem:[%s14 + $0x10] sm:$0xff]
  %v1182 = vld [vmem:[%s14 + $0x18] sm:$0xff]
  %1184 = vset.pattern.permute.xlu0 0
  %1185 = vperm.xlu0 %1184, %v1179
  %v1186 = vpop.permute.xlu0 %1185
  %1189 = vset.pattern.permute.xlu0 0
  %1190 = vperm.xlu0 %1189, %v1180
  %v1191 = vpop.permute.xlu0 %1190
  %1194 = vset.pattern.permute.xlu0 0
  %1195 = vperm.xlu0 %1194, %v1181
  %v1196 = vpop.permute.xlu0 %1195
  %1199 = vset.pattern.permute.xlu0 0
  %1200 = vperm.xlu0 %1199, %v1182
  %v1201 = vpop.permute.xlu0 %1200
  %vm1203 = vcmask 261120
  %v1205 = vsel %vm1203, %v1175, 0
  %v1208 = vsel %vm1203, %v1176, 0
  %v1211 = vsel %vm1203, %v1177, 0
  %v1214 = vsel %vm1203, %v1178, 0
  %1216 = vmatprep.subr.mxu0 0.0
  %1217 = vmatpush1.msra.mxu0 %v1171
  %1218 = vmatprep.subr.mxu0 0.0
  %1219 = vmatpush1.msra.mxu0 %v1172
  %1220 = vmatprep.subr.mxu0 0.0
  %1221 = vmatpush1.msra.mxu0 %v1173
  %1222 = vmatprep.subr.mxu0 0.0
  %1223 = vmatpush1.msra.mxu0 %v1174
  %1224 = vmatprep.subr.mxu0 0.0
  %1225 = vmatpush1.msra.mxu0 0.0
  %1226 = vmatprep.subr.mxu0 0.0
  %1227 = vmatpush1.msra.mxu0 0.0
  %1228 = vmatprep.subr.mxu0 0.0
  %1229 = vmatpush1.msra.mxu0 0.0
  %1230 = vmatprep.subr.mxu0 0.0
  %1231 = vmatpush1.msra.mxu0 0.0
  %1232 = vmatprep.subr.mxu0 0.0
  %1233 = vmatpush1.msra.mxu0 0.0
  %1234 = vmatprep.subr.mxu0 0.0
  %1235 = vmatpush1.msra.mxu0 0.0
  %1236 = vmatprep.subr.mxu0 0.0
  %1237 = vmatpush1.msra.mxu0 0.0
  %1238 = vmatprep.subr.mxu0 0.0
  %1239 = vmatpush1.msra.mxu0 0.0
  %1240 = vmatprep.subr.mxu0 0.0
  %1241 = vmatpush1.msra.mxu0 0.0
  %1242 = vmatprep.subr.mxu0 0.0
  %1243 = vmatpush1.msra.mxu0 0.0
  %1244 = vmatprep.subr.mxu0 0.0
  %1245 = vmatpush1.msra.mxu0 0.0
  %1246 = vmatprep.subr.mxu0 0.0
  %1247 = vmatpush1.msra.mxu0 0.0
  %1248 = vmatprep.subr.mxu0 0.0
  %1249 = vmatpush1.msra.mxu0 0.0
  %1250 = vmatprep.subr.mxu0 0.0
  %1251 = vmatpush1.msra.mxu0 0.0
  %1252 = vmatprep.subr.mxu0 0.0
  %1253 = vmatpush1.msra.mxu0 0.0
  %1254 = vmatprep.subr.mxu0 0.0
  %1255 = vmatpush1.msra.mxu0 0.0
  %1256 = vmatprep.subr.mxu0 0.0
  %1257 = vmatpush1.msra.mxu0 0.0
  %1258 = vmatprep.subr.mxu0 0.0
  %1259 = vmatpush1.msra.mxu0 0.0
  %1260 = vmatprep.subr.mxu0 0.0
  %1261 = vmatpush1.msra.mxu0 0.0
  %1262 = vmatprep.subr.mxu0 0.0
  %1263 = vmatpush1.msra.mxu0 0.0
  %1264 = vmatprep.subr.mxu0 0.0
  %1265 = vmatpush1.msra.mxu0 0.0
  %1266 = vmatprep.subr.mxu0 0.0
  %1267 = vmatpush1.msra.mxu0 0.0
  %1268 = vmatprep.subr.mxu0 0.0
  %1269 = vmatpush1.msra.mxu0 0.0
  %1270 = vmatprep.subr.mxu0 0.0
  %1271 = vmatpush1.msra.mxu0 0.0
  %1272 = vmatprep.subr.mxu0 0.0
  %1273 = vmatpush1.msra.mxu0 0.0
  %1274 = vmatprep.subr.mxu0 0.0
  %1275 = vmatpush1.msra.mxu0 0.0
  %1276 = vmatprep.subr.mxu0 0.0
  %1277 = vmatpush1.msra.mxu0 0.0
  %1278 = vmatprep.subr.mxu0 0.0
  %1279 = vmatpush1.msra.mxu0 0.0
  %1280 = vmatprep.mubr.f32.mxu0 0.0
  %1281 = vmatmul.mubr.f32.gmra.mrb[0].mxu0 %v1205
  %v1282 = vpop.f32.mrb[0].mxu0
  %v1283 = vadd.f32 %v1186, %v1282
  %v1284 = vpop.f32.mrb[0].mxu0
  %1285 = vmatprep.mubr.f32.mxu0 0.0
  %1286 = vmatmul.mubr.f32.gmra.mrb[0].mxu0 %v1208
  %v1287 = vpop.f32.mrb[0].mxu0
  %v1288 = vadd.f32 %v1191, %v1287
  %v1289 = vpop.f32.mrb[0].mxu0
  %1290 = vmatprep.mubr.f32.mxu0 0.0
  %1291 = vmatmul.mubr.f32.gmra.mrb[0].mxu0 %v1211
  %v1292 = vpop.f32.mrb[0].mxu0
  %v1293 = vadd.f32 %v1196, %v1292
  %v1294 = vpop.f32.mrb[0].mxu0
  %1295 = vmatprep.mubr.f32.mxu0 0.0
  %1296 = vmatmul.mubr.f32.gmra.mrb[0].mxu0 %v1214
  %v1297 = vpop.f32.mrb[0].mxu0
  %v1298 = vadd.f32 %v1201, %v1297
  %v1299 = vpop.f32.mrb[0].mxu0
  %1300 = vdwg.mxu0
  %v1301 = vld [vmem:[%s15] sm:$0xff]
  %v1302 = vld [vmem:[%s15 + $0x8] sm:$0xff]
  %v1303 = vld [vmem:[%s15 + $0x10] sm:$0xff]
  %v1304 = vld [vmem:[%s15 + $0x18] sm:$0xff]
  %v1305 = vld [vmem:[%s16] sm:$0xff]
  %v1306 = vld [vmem:[%s16 + $0x8] sm:$0xff]
  %v1307 = vld [vmem:[%s16 + $0x10] sm:$0xff]
  %v1308 = vld [vmem:[%s16 + $0x18] sm:$0xff]
  %v1309 = vmul.f32 %v1283, %v450
  %v1310 = vmul.f32 %v1288, %v451
  %v1311 = vmul.f32 %v1293, %v452
  %v1312 = vmul.f32 %v1298, %v453
  %v1314 = vsel %vm162, %v1309, 0
  %v1317 = vsel %vm162, %v1310, 0
  %v1320 = vsel %vm162, %v1311, 0
  %v1323 = vsel %vm162, %v1312, 0
  %1325 = vmatprep.subr.mxu0 0.0
  %1326 = vmatpush1.msra.mxu0 1.0
  %1327 = vmatprep.subr.mxu0 0.0
  %1328 = vmatpush1.msra.mxu0 1.0
  %1329 = vmatprep.subr.mxu0 0.0
  %1330 = vmatpush1.msra.mxu0 0.0
  %1331 = vmatprep.subr.mxu0 0.0
  %1332 = vmatpush1.msra.mxu0 0.0
  %1333 = vmatprep.subr.mxu0 0.0
  %1334 = vmatpush1.msra.mxu0 0.0
  %1335 = vmatprep.subr.mxu0 0.0
  %1336 = vmatpush1.msra.mxu0 0.0
  %1337 = vmatprep.subr.mxu0 0.0
  %1338 = vmatpush1.msra.mxu0 0.0
  %1339 = vmatprep.subr.mxu0 0.0
  %1340 = vmatpush1.msra.mxu0 0.0
  %1341 = vmatprep.subr.mxu0 0.0
  %1342 = vmatpush1.msra.mxu0 0.0
  %1343 = vmatprep.subr.mxu0 0.0
  %1344 = vmatpush1.msra.mxu0 0.0
  %1345 = vmatprep.subr.mxu0 0.0
  %1346 = vmatpush1.msra.mxu0 0.0
  %1347 = vmatprep.subr.mxu0 0.0
  %1348 = vmatpush1.msra.mxu0 0.0
  %1349 = vmatprep.subr.mxu0 0.0
  %1350 = vmatpush1.msra.mxu0 0.0
  %1351 = vmatprep.subr.mxu0 0.0
  %1352 = vmatpush1.msra.mxu0 0.0
  %1353 = vmatprep.subr.mxu0 0.0
  %1354 = vmatpush1.msra.mxu0 0.0
  %1355 = vmatprep.subr.mxu0 0.0
  %1356 = vmatpush1.msra.mxu0 0.0
  %1357 = vmatprep.subr.mxu0 0.0
  %1358 = vmatpush1.msra.mxu0 0.0
  %1359 = vmatprep.subr.mxu0 0.0
  %1360 = vmatpush1.msra.mxu0 0.0
  %1361 = vmatprep.subr.mxu0 0.0
  %1362 = vmatpush1.msra.mxu0 0.0
  %1363 = vmatprep.subr.mxu0 0.0
  %1364 = vmatpush1.msra.mxu0 0.0
  %1365 = vmatprep.subr.mxu0 0.0
  %1366 = vmatpush1.msra.mxu0 0.0
  %1367 = vmatprep.subr.mxu0 0.0
  %1368 = vmatpush1.msra.mxu0 0.0
  %1369 = vmatprep.subr.mxu0 0.0
  %1370 = vmatpush1.msra.mxu0 0.0
  %1371 = vmatprep.subr.mxu0 0.0
  %1372 = vmatpush1.msra.mxu0 0.0
  %1373 = vmatprep.subr.mxu0 0.0
  %1374 = vmatpush1.msra.mxu0 0.0
  %1375 = vmatprep.subr.mxu0 0.0
  %1376 = vmatpush1.msra.mxu0 0.0
  %1377 = vmatprep.subr.mxu0 0.0
  %1378 = vmatpush1.msra.mxu0 0.0
  %1379 = vmatprep.subr.mxu0 0.0
  %1380 = vmatpush1.msra.mxu0 0.0
  %1381 = vmatprep.subr.mxu0 0.0
  %1382 = vmatpush1.msra.mxu0 0.0
  %1383 = vmatprep.subr.mxu0 0.0
  %1384 = vmatpush1.msra.mxu0 0.0
  %1385 = vmatprep.subr.mxu0 0.0
  %1386 = vmatpush1.msra.mxu0 0.0
  %1387 = vmatprep.subr.mxu0 0.0
  %1388 = vmatpush1.msra.mxu0 0.0
  %1389 = vmatprep.mubr.f32.mxu0 0.0
  %1390 = vmatmul.mubr.f32.gmra.mrb[0].mxu0 %v1314
  %v1391 = vpop.f32.mrb[0].mxu0
  %v1392 = vadd.f32 0.0, %v1391
  %v1393 = vpop.f32.mrb[0].mxu0
  %1394 = vmatprep.mubr.f32.mxu0 0.0
  %1395 = vmatmul.mubr.f32.gmra.mrb[0].mxu0 %v1317
  %v1396 = vpop.f32.mrb[0].mxu0
  %v1397 = vadd.f32 0.0, %v1396
  %v1398 = vpop.f32.mrb[0].mxu0
  %1399 = vmatprep.mubr.f32.mxu0 0.0
  %1400 = vmatmul.mubr.f32.gmra.mrb[0].mxu0 %v1320
  %v1401 = vpop.f32.mrb[0].mxu0
  %v1402 = vadd.f32 0.0, %v1401
  %v1403 = vpop.f32.mrb[0].mxu0
  %1404 = vmatprep.mubr.f32.mxu0 0.0
  %1405 = vmatmul.mubr.f32.gmra.mrb[0].mxu0 %v1323
  %v1406 = vpop.f32.mrb[0].mxu0
  %v1407 = vadd.f32 0.0, %v1406
  %v1408 = vpop.f32.mrb[0].mxu0
  %1409 = vdwg.mxu0
  %v1410 = vmul.f32 %v1392, %v476
  %v1411 = vmul.f32 %v1397, %v478
  %v1412 = vmul.f32 %v1402, %v480
  %v1413 = vmul.f32 %v1407, %v482
  %1415 = vset.pattern.permute.xlu0 0
  %1416 = vperm.xlu0 %1415, %v1410
  %v1417 = vpop.permute.xlu0 %1416
  %1420 = vset.pattern.permute.xlu0 0
  %1421 = vperm.xlu0 %1420, %v1411
  %v1422 = vpop.permute.xlu0 %1421
  %1425 = vset.pattern.permute.xlu0 0
  %1426 = vperm.xlu0 %1425, %v1412
  %v1427 = vpop.permute.xlu0 %1426
  %1430 = vset.pattern.permute.xlu0 0
  %1431 = vperm.xlu0 %1430, %v1413
  %v1432 = vpop.permute.xlu0 %1431
  %v1434 = vsub.f32 %v1283, %v1417
  %v1435 = vsub.f32 %v1288, %v1422
  %v1436 = vsub.f32 %v1293, %v1427
  %v1437 = vsub.f32 %v1298, %v1432
  %v1438 = vmul.f32 %v1434, %v1434
  %v1439 = vmul.f32 %v1435, %v1435
  %v1440 = vmul.f32 %v1436, %v1436
  %v1441 = vmul.f32 %v1437, %v1437
  %v1442 = vmul.f32 %v1438, %v450
  %v1443 = vmul.f32 %v1439, %v451
  %v1444 = vmul.f32 %v1440, %v452
  %v1445 = vmul.f32 %v1441, %v453
  %v1447 = vsel %vm162, %v1442, 0
  %v1450 = vsel %vm162, %v1443, 0
  %v1453 = vsel %vm162, %v1444, 0
  %v1456 = vsel %vm162, %v1445, 0
  %1458 = vmatprep.subr.mxu0 0.0
  %1459 = vmatpush1.msra.mxu0 1.0
  %1460 = vmatprep.subr.mxu0 0.0
  %1461 = vmatpush1.msra.mxu0 1.0
  %1462 = vmatprep.subr.mxu0 0.0
  %1463 = vmatpush1.msra.mxu0 0.0
  %1464 = vmatprep.subr.mxu0 0.0
  %1465 = vmatpush1.msra.mxu0 0.0
  %1466 = vmatprep.subr.mxu0 0.0
  %1467 = vmatpush1.msra.mxu0 0.0
  %1468 = vmatprep.subr.mxu0 0.0
  %1469 = vmatpush1.msra.mxu0 0.0
  %1470 = vmatprep.subr.mxu0 0.0
  %1471 = vmatpush1.msra.mxu0 0.0
  %1472 = vmatprep.subr.mxu0 0.0
  %1473 = vmatpush1.msra.mxu0 0.0
  %1474 = vmatprep.subr.mxu0 0.0
  %1475 = vmatpush1.msra.mxu0 0.0
  %1476 = vmatprep.subr.mxu0 0.0
  %1477 = vmatpush1.msra.mxu0 0.0
  %1478 = vmatprep.subr.mxu0 0.0
  %1479 = vmatpush1.msra.mxu0 0.0
  %1480 = vmatprep.subr.mxu0 0.0
  %1481 = vmatpush1.msra.mxu0 0.0
  %1482 = vmatprep.subr.mxu0 0.0
  %1483 = vmatpush1.msra.mxu0 0.0
  %1484 = vmatprep.subr.mxu0 0.0
  %1485 = vmatpush1.msra.mxu0 0.0
  %1486 = vmatprep.subr.mxu0 0.0
  %1487 = vmatpush1.msra.mxu0 0.0
  %1488 = vmatprep.subr.mxu0 0.0
  %1489 = vmatpush1.msra.mxu0 0.0
  %1490 = vmatprep.subr.mxu0 0.0
  %1491 = vmatpush1.msra.mxu0 0.0
  %1492 = vmatprep.subr.mxu0 0.0
  %1493 = vmatpush1.msra.mxu0 0.0
  %1494 = vmatprep.subr.mxu0 0.0
  %1495 = vmatpush1.msra.mxu0 0.0
  %1496 = vmatprep.subr.mxu0 0.0
  %1497 = vmatpush1.msra.mxu0 0.0
  %1498 = vmatprep.subr.mxu0 0.0
  %1499 = vmatpush1.msra.mxu0 0.0
  %1500 = vmatprep.subr.mxu0 0.0
  %1501 = vmatpush1.msra.mxu0 0.0
  %1502 = vmatprep.subr.mxu0 0.0
  %1503 = vmatpush1.msra.mxu0 0.0
  %1504 = vmatprep.subr.mxu0 0.0
  %1505 = vmatpush1.msra.mxu0 0.0
  %1506 = vmatprep.subr.mxu0 0.0
  %1507 = vmatpush1.msra.mxu0 0.0
  %1508 = vmatprep.subr.mxu0 0.0
  %1509 = vmatpush1.msra.mxu0 0.0
  %1510 = vmatprep.subr.mxu0 0.0
  %1511 = vmatpush1.msra.mxu0 0.0
  %1512 = vmatprep.subr.mxu0 0.0
  %1513 = vmatpush1.msra.mxu0 0.0
  %1514 = vmatprep.subr.mxu0 0.0
  %1515 = vmatpush1.msra.mxu0 0.0
  %1516 = vmatprep.subr.mxu0 0.0
  %1517 = vmatpush1.msra.mxu0 0.0
  %1518 = vmatprep.subr.mxu0 0.0
  %1519 = vmatpush1.msra.mxu0 0.0
  %1520 = vmatprep.subr.mxu0 0.0
  %1521 = vmatpush1.msra.mxu0 0.0
  %1522 = vmatprep.mubr.f32.mxu0 0.0
  %1523 = vmatmul.mubr.f32.gmra.mrb[0].mxu0 %v1447
  %v1524 = vpop.f32.mrb[0].mxu0
  %v1525 = vadd.f32 0.0, %v1524
  %v1526 = vpop.f32.mrb[0].mxu0
  %1527 = vmatprep.mubr.f32.mxu0 0.0
  %1528 = vmatmul.mubr.f32.gmra.mrb[0].mxu0 %v1450
  %v1529 = vpop.f32.mrb[0].mxu0
  %v1530 = vadd.f32 0.0, %v1529
  %v1531 = vpop.f32.mrb[0].mxu0
  %1532 = vmatprep.mubr.f32.mxu0 0.0
  %1533 = vmatmul.mubr.f32.gmra.mrb[0].mxu0 %v1453
  %v1534 = vpop.f32.mrb[0].mxu0
  %v1535 = vadd.f32 0.0, %v1534
  %v1536 = vpop.f32.mrb[0].mxu0
  %1537 = vmatprep.mubr.f32.mxu0 0.0
  %1538 = vmatmul.mubr.f32.gmra.mrb[0].mxu0 %v1456
  %v1539 = vpop.f32.mrb[0].mxu0
  %v1540 = vadd.f32 0.0, %v1539
  %v1541 = vpop.f32.mrb[0].mxu0
  %1542 = vdwg.mxu0
  %v1543 = vmul.f32 %v1525, %v476
  %v1544 = vmul.f32 %v1530, %v478
  %v1545 = vmul.f32 %v1535, %v480
  %v1546 = vmul.f32 %v1540, %v482
  %v1547 = vadd.f32 %v1543, 1e-05
  %v1548 = vadd.f32 %v1544, 1e-05
  %v1549 = vadd.f32 %v1545, 1e-05
  %v1550 = vadd.f32 %v1546, 1e-05
  %v1551 = vrsqrt.pop %v1547
  %v1552 = vrsqrt.pop %v1548
  %v1553 = vrsqrt.pop %v1549
  %v1554 = vrsqrt.pop %v1550
  %1556 = vset.pattern.permute.xlu0 0
  %1557 = vperm.xlu0 %1556, %v1551
  %v1558 = vpop.permute.xlu0 %1557
  %1561 = vset.pattern.permute.xlu0 0
  %1562 = vperm.xlu0 %1561, %v1552
  %v1563 = vpop.permute.xlu0 %1562
  %1566 = vset.pattern.permute.xlu0 0
  %1567 = vperm.xlu0 %1566, %v1553
  %v1568 = vpop.permute.xlu0 %1567
  %1571 = vset.pattern.permute.xlu0 0
  %1572 = vperm.xlu0 %1571, %v1554
  %v1573 = vpop.permute.xlu0 %1572
  %v1575 = vmul.f32 %v1434, %v1558
  %v1576 = vmul.f32 %v1435, %v1563
  %v1577 = vmul.f32 %v1436, %v1568
  %v1578 = vmul.f32 %v1437, %v1573
  %1580 = vset.pattern.permute.xlu0 0
  %1581 = vperm.xlu0 %1580, %v1301
  %v1582 = vpop.permute.xlu0 %1581
  %1585 = vset.pattern.permute.xlu0 0
  %1586 = vperm.xlu0 %1585, %v1302
  %v1587 = vpop.permute.xlu0 %1586
  %1590 = vset.pattern.permute.xlu0 0
  %1591 = vperm.xlu0 %1590, %v1303
  %v1592 = vpop.permute.xlu0 %1591
  %1595 = vset.pattern.permute.xlu0 0
  %1596 = vperm.xlu0 %1595, %v1304
  %v1597 = vpop.permute.xlu0 %1596
  %v1599 = vmul.f32 %v1575, %v1582
  %v1600 = vmul.f32 %v1576, %v1587
  %v1601 = vmul.f32 %v1577, %v1592
  %v1602 = vmul.f32 %v1578, %v1597
  %1604 = vset.pattern.permute.xlu0 0
  %1605 = vperm.xlu0 %1604, %v1305
  %v1606 = vpop.permute.xlu0 %1605
  %1609 = vset.pattern.permute.xlu0 0
  %1610 = vperm.xlu0 %1609, %v1306
  %v1611 = vpop.permute.xlu0 %1610
  %1614 = vset.pattern.permute.xlu0 0
  %1615 = vperm.xlu0 %1614, %v1307
  %v1616 = vpop.permute.xlu0 %1615
  %1619 = vset.pattern.permute.xlu0 0
  %1620 = vperm.xlu0 %1619, %v1308
  %v1621 = vpop.permute.xlu0 %1620
  %v1623 = vadd.f32 %v1599, %v1606
  %v1624 = vadd.f32 %v1600, %v1611
  %v1625 = vadd.f32 %v1601, %v1616
  %v1626 = vadd.f32 %v1602, %v1621
  %v1627 = vmax.f32 %v1623, 0.0
  %v1628 = vmax.f32 %v1624, 0.0
  %v1629 = vmax.f32 %v1625, 0.0
  %v1630 = vmax.f32 %v1626, 0.0
  %s1631 = scalar_lea.vmem %s13, 32
  %v1632 = vld [vmem:[%s1631] sm:$0xff]
  %v1633 = vld [vmem:[%s1631 + $0x8] sm:$0xff]
  %v1634 = vld [vmem:[%s1631 + $0x10] sm:$0xff]
  %v1635 = vld [vmem:[%s1631 + $0x18] sm:$0xff]
  %s1636 = scalar_lea.vmem %s14, 32
  %v1637 = vld [vmem:[%s1636] sm:$0xff]
  %v1638 = vld [vmem:[%s1636 + $0x8] sm:$0xff]
  %v1639 = vld [vmem:[%s1636 + $0x10] sm:$0xff]
  %v1640 = vld [vmem:[%s1636 + $0x18] sm:$0xff]
  %1642 = vset.pattern.permute.xlu0 0
  %1643 = vperm.xlu0 %1642, %v1637
  %v1644 = vpop.permute.xlu0 %1643
  %1647 = vset.pattern.permute.xlu0 0
  %1648 = vperm.xlu0 %1647, %v1638
  %v1649 = vpop.permute.xlu0 %1648
  %1652 = vset.pattern.permute.xlu0 0
  %1653 = vperm.xlu0 %1652, %v1639
  %v1654 = vpop.permute.xlu0 %1653
  %1657 = vset.pattern.permute.xlu0 0
  %1658 = vperm.xlu0 %1657, %v1640
  %v1659 = vpop.permute.xlu0 %1658
  %v1662 = vsel %vm1203, %v1632, 0
  %v1665 = vsel %vm1203, %v1633, 0
  %v1668 = vsel %vm1203, %v1634, 0
  %v1671 = vsel %vm1203, %v1635, 0
  %1673 = vmatprep.subr.mxu0 0.0
  %1674 = vmatpush1.msra.mxu0 %v1627
  %1675 = vmatprep.subr.mxu0 0.0
  %1676 = vmatpush1.msra.mxu0 %v1628
  %1677 = vmatprep.subr.mxu0 0.0
  %1678 = vmatpush1.msra.mxu0 %v1629
  %1679 = vmatprep.subr.mxu0 0.0
  %1680 = vmatpush1.msra.mxu0 %v1630
  %1681 = vmatprep.subr.mxu0 0.0
  %1682 = vmatpush1.msra.mxu0 0.0
  %1683 = vmatprep.subr.mxu0 0.0
  %1684 = vmatpush1.msra.mxu0 0.0
  %1685 = vmatprep.subr.mxu0 0.0
  %1686 = vmatpush1.msra.mxu0 0.0
  %1687 = vmatprep.subr.mxu0 0.0
  %1688 = vmatpush1.msra.mxu0 0.0
  %1689 = vmatprep.subr.mxu0 0.0
  %1690 = vmatpush1.msra.mxu0 0.0
  %1691 = vmatprep.subr.mxu0 0.0
  %1692 = vmatpush1.msra.mxu0 0.0
  %1693 = vmatprep.subr.mxu0 0.0
  %1694 = vmatpush1.msra.mxu0 0.0
  %1695 = vmatprep.subr.mxu0 0.0
  %1696 = vmatpush1.msra.mxu0 0.0
  %1697 = vmatprep.subr.mxu0 0.0
  %1698 = vmatpush1.msra.mxu0 0.0
  %1699 = vmatprep.subr.mxu0 0.0
  %1700 = vmatpush1.msra.mxu0 0.0
  %1701 = vmatprep.subr.mxu0 0.0
  %1702 = vmatpush1.msra.mxu0 0.0
  %1703 = vmatprep.subr.mxu0 0.0
  %1704 = vmatpush1.msra.mxu0 0.0
  %1705 = vmatprep.subr.mxu0 0.0
  %1706 = vmatpush1.msra.mxu0 0.0
  %1707 = vmatprep.subr.mxu0 0.0
  %1708 = vmatpush1.msra.mxu0 0.0
  %1709 = vmatprep.subr.mxu0 0.0
  %1710 = vmatpush1.msra.mxu0 0.0
  %1711 = vmatprep.subr.mxu0 0.0
  %1712 = vmatpush1.msra.mxu0 0.0
  %1713 = vmatprep.subr.mxu0 0.0
  %1714 = vmatpush1.msra.mxu0 0.0
  %1715 = vmatprep.subr.mxu0 0.0
  %1716 = vmatpush1.msra.mxu0 0.0
  %1717 = vmatprep.subr.mxu0 0.0
  %1718 = vmatpush1.msra.mxu0 0.0
  %1719 = vmatprep.subr.mxu0 0.0
  %1720 = vmatpush1.msra.mxu0 0.0
  %1721 = vmatprep.subr.mxu0 0.0
  %1722 = vmatpush1.msra.mxu0 0.0
  %1723 = vmatprep.subr.mxu0 0.0
  %1724 = vmatpush1.msra.mxu0 0.0
  %1725 = vmatprep.subr.mxu0 0.0
  %1726 = vmatpush1.msra.mxu0 0.0
  %1727 = vmatprep.subr.mxu0 0.0
  %1728 = vmatpush1.msra.mxu0 0.0
  %1729 = vmatprep.subr.mxu0 0.0
  %1730 = vmatpush1.msra.mxu0 0.0
  %1731 = vmatprep.subr.mxu0 0.0
  %1732 = vmatpush1.msra.mxu0 0.0
  %1733 = vmatprep.subr.mxu0 0.0
  %1734 = vmatpush1.msra.mxu0 0.0
  %1735 = vmatprep.subr.mxu0 0.0
  %1736 = vmatpush1.msra.mxu0 0.0
  %1737 = vmatprep.mubr.f32.mxu0 0.0
  %1738 = vmatmul.mubr.f32.gmra.mrb[0].mxu0 %v1662
  %v1739 = vpop.f32.mrb[0].mxu0
  %v1740 = vadd.f32 %v1644, %v1739
  %v1741 = vpop.f32.mrb[0].mxu0
  %1742 = vmatprep.mubr.f32.mxu0 0.0
  %1743 = vmatmul.mubr.f32.gmra.mrb[0].mxu0 %v1665
  %v1744 = vpop.f32.mrb[0].mxu0
  %v1745 = vadd.f32 %v1649, %v1744
  %v1746 = vpop.f32.mrb[0].mxu0
  %1747 = vmatprep.mubr.f32.mxu0 0.0
  %1748 = vmatmul.mubr.f32.gmra.mrb[0].mxu0 %v1668
  %v1749 = vpop.f32.mrb[0].mxu0
  %v1750 = vadd.f32 %v1654, %v1749
  %v1751 = vpop.f32.mrb[0].mxu0
  %1752 = vmatprep.mubr.f32.mxu0 0.0
  %1753 = vmatmul.mubr.f32.gmra.mrb[0].mxu0 %v1671
  %v1754 = vpop.f32.mrb[0].mxu0
  %v1755 = vadd.f32 %v1659, %v1754
  %v1756 = vpop.f32.mrb[0].mxu0
  %1757 = vdwg.mxu0
  %s1758 = scalar_lea.vmem %s15, 32
  %v1759 = vld [vmem:[%s1758] sm:$0xff]
  %v1760 = vld [vmem:[%s1758 + $0x8] sm:$0xff]
  %v1761 = vld [vmem:[%s1758 + $0x10] sm:$0xff]
  %v1762 = vld [vmem:[%s1758 + $0x18] sm:$0xff]
  %s1763 = scalar_lea.vmem %s16, 32
  %v1764 = vld [vmem:[%s1763] sm:$0xff]
  %v1765 = vld [vmem:[%s1763 + $0x8] sm:$0xff]
  %v1766 = vld [vmem:[%s1763 + $0x10] sm:$0xff]
  %v1767 = vld [vmem:[%s1763 + $0x18] sm:$0xff]
  %v1768 = vmul.f32 %v1740, %v450
  %v1769 = vmul.f32 %v1745, %v451
  %v1770 = vmul.f32 %v1750, %v452
  %v1771 = vmul.f32 %v1755, %v453
  %v1773 = vsel %vm162, %v1768, 0
  %v1776 = vsel %vm162, %v1769, 0
  %v1779 = vsel %vm162, %v1770, 0
  %v1782 = vsel %vm162, %v1771, 0
  %1784 = vmatprep.subr.mxu0 0.0
  %1785 = vmatpush1.msra.mxu0 1.0
  %1786 = vmatprep.subr.mxu0 0.0
  %1787 = vmatpush1.msra.mxu0 1.0
  %1788 = vmatprep.subr.mxu0 0.0
  %1789 = vmatpush1.msra.mxu0 0.0
  %1790 = vmatprep.subr.mxu0 0.0
  %1791 = vmatpush1.msra.mxu0 0.0
  %1792 = vmatprep.subr.mxu0 0.0
  %1793 = vmatpush1.msra.mxu0 0.0
  %1794 = vmatprep.subr.mxu0 0.0
  %1795 = vmatpush1.msra.mxu0 0.0
  %1796 = vmatprep.subr.mxu0 0.0
  %1797 = vmatpush1.msra.mxu0 0.0
  %1798 = vmatprep.subr.mxu0 0.0
  %1799 = vmatpush1.msra.mxu0 0.0
  %1800 = vmatprep.subr.mxu0 0.0
  %1801 = vmatpush1.msra.mxu0 0.0
  %1802 = vmatprep.subr.mxu0 0.0
  %1803 = vmatpush1.msra.mxu0 0.0
  %1804 = vmatprep.subr.mxu0 0.0
  %1805 = vmatpush1.msra.mxu0 0.0
  %1806 = vmatprep.subr.mxu0 0.0
  %1807 = vmatpush1.msra.mxu0 0.0
  %1808 = vmatprep.subr.mxu0 0.0
  %1809 = vmatpush1.msra.mxu0 0.0
  %1810 = vmatprep.subr.mxu0 0.0
  %1811 = vmatpush1.msra.mxu0 0.0
  %1812 = vmatprep.subr.mxu0 0.0
  %1813 = vmatpush1.msra.mxu0 0.0
  %1814 = vmatprep.subr.mxu0 0.0
  %1815 = vmatpush1.msra.mxu0 0.0
  %1816 = vmatprep.subr.mxu0 0.0
  %1817 = vmatpush1.msra.mxu0 0.0
  %1818 = vmatprep.subr.mxu0 0.0
  %1819 = vmatpush1.msra.mxu0 0.0
  %1820 = vmatprep.subr.mxu0 0.0
  %1821 = vmatpush1.msra.mxu0 0.0
  %1822 = vmatprep.subr.mxu0 0.0
  %1823 = vmatpush1.msra.mxu0 0.0
  %1824 = vmatprep.subr.mxu0 0.0
  %1825 = vmatpush1.msra.mxu0 0.0
  %1826 = vmatprep.subr.mxu0 0.0
  %1827 = vmatpush1.msra.mxu0 0.0
  %1828 = vmatprep.subr.mxu0 0.0
  %1829 = vmatpush1.msra.mxu0 0.0
  %1830 = vmatprep.subr.mxu0 0.0
  %1831 = vmatpush1.msra.mxu0 0.0
  %1832 = vmatprep.subr.mxu0 0.0
  %1833 = vmatpush1.msra.mxu0 0.0
  %1834 = vmatprep.subr.mxu0 0.0
  %1835 = vmatpush1.msra.mxu0 0.0
  %1836 = vmatprep.subr.mxu0 0.0
  %1837 = vmatpush1.msra.mxu0 0.0
  %1838 = vmatprep.subr.mxu0 0.0
  %1839 = vmatpush1.msra.mxu0 0.0
  %1840 = vmatprep.subr.mxu0 0.0
  %1841 = vmatpush1.msra.mxu0 0.0
  %1842 = vmatprep.subr.mxu0 0.0
  %1843 = vmatpush1.msra.mxu0 0.0
  %1844 = vmatprep.subr.mxu0 0.0
  %1845 = vmatpush1.msra.mxu0 0.0
  %1846 = vmatprep.subr.mxu0 0.0
  %1847 = vmatpush1.msra.mxu0 0.0
  %1848 = vmatprep.mubr.f32.mxu0 0.0
  %1849 = vmatmul.mubr.f32.gmra.mrb[0].mxu0 %v1773
  %v1850 = vpop.f32.mrb[0].mxu0
  %v1851 = vadd.f32 0.0, %v1850
  %v1852 = vpop.f32.mrb[0].mxu0
  %1853 = vmatprep.mubr.f32.mxu0 0.0
  %1854 = vmatmul.mubr.f32.gmra.mrb[0].mxu0 %v1776
  %v1855 = vpop.f32.mrb[0].mxu0
  %v1856 = vadd.f32 0.0, %v1855
  %v1857 = vpop.f32.mrb[0].mxu0
  %1858 = vmatprep.mubr.f32.mxu0 0.0
  %1859 = vmatmul.mubr.f32.gmra.mrb[0].mxu0 %v1779
  %v1860 = vpop.f32.mrb[0].mxu0
  %v1861 = vadd.f32 0.0, %v1860
  %v1862 = vpop.f32.mrb[0].mxu0
  %1863 = vmatprep.mubr.f32.mxu0 0.0
  %1864 = vmatmul.mubr.f32.gmra.mrb[0].mxu0 %v1782
  %v1865 = vpop.f32.mrb[0].mxu0
  %v1866 = vadd.f32 0.0, %v1865
  %v1867 = vpop.f32.mrb[0].mxu0
  %1868 = vdwg.mxu0
  %v1869 = vmul.f32 %v1851, %v476
  %v1870 = vmul.f32 %v1856, %v478
  %v1871 = vmul.f32 %v1861, %v480
  %v1872 = vmul.f32 %v1866, %v482
  %1874 = vset.pattern.permute.xlu0 0
  %1875 = vperm.xlu0 %1874, %v1869
  %v1876 = vpop.permute.xlu0 %1875
  %1879 = vset.pattern.permute.xlu0 0
  %1880 = vperm.xlu0 %1879, %v1870
  %v1881 = vpop.permute.xlu0 %1880
  %1884 = vset.pattern.permute.xlu0 0
  %1885 = vperm.xlu0 %1884, %v1871
  %v1886 = vpop.permute.xlu0 %1885
  %1889 = vset.pattern.permute.xlu0 0
  %1890 = vperm.xlu0 %1889, %v1872
  %v1891 = vpop.permute.xlu0 %1890
  %v1893 = vsub.f32 %v1740, %v1876
  %v1894 = vsub.f32 %v1745, %v1881
  %v1895 = vsub.f32 %v1750, %v1886
  %v1896 = vsub.f32 %v1755, %v1891
  %v1897 = vmul.f32 %v1893, %v1893
  %v1898 = vmul.f32 %v1894, %v1894
  %v1899 = vmul.f32 %v1895, %v1895
  %v1900 = vmul.f32 %v1896, %v1896
  %v1901 = vmul.f32 %v1897, %v450
  %v1902 = vmul.f32 %v1898, %v451
  %v1903 = vmul.f32 %v1899, %v452
  %v1904 = vmul.f32 %v1900, %v453
  %v1906 = vsel %vm162, %v1901, 0
  %v1909 = vsel %vm162, %v1902, 0
  %v1912 = vsel %vm162, %v1903, 0
  %v1915 = vsel %vm162, %v1904, 0
  %1917 = vmatprep.subr.mxu0 0.0
  %1918 = vmatpush1.msra.mxu0 1.0
  %1919 = vmatprep.subr.mxu0 0.0
  %1920 = vmatpush1.msra.mxu0 1.0
  %1921 = vmatprep.subr.mxu0 0.0
  %1922 = vmatpush1.msra.mxu0 0.0
  %1923 = vmatprep.subr.mxu0 0.0
  %1924 = vmatpush1.msra.mxu0 0.0
  %1925 = vmatprep.subr.mxu0 0.0
  %1926 = vmatpush1.msra.mxu0 0.0
  %1927 = vmatprep.subr.mxu0 0.0
  %1928 = vmatpush1.msra.mxu0 0.0
  %1929 = vmatprep.subr.mxu0 0.0
  %1930 = vmatpush1.msra.mxu0 0.0
  %1931 = vmatprep.subr.mxu0 0.0
  %1932 = vmatpush1.msra.mxu0 0.0
  %1933 = vmatprep.subr.mxu0 0.0
  %1934 = vmatpush1.msra.mxu0 0.0
  %1935 = vmatprep.subr.mxu0 0.0
  %1936 = vmatpush1.msra.mxu0 0.0
  %1937 = vmatprep.subr.mxu0 0.0
  %1938 = vmatpush1.msra.mxu0 0.0
  %1939 = vmatprep.subr.mxu0 0.0
  %1940 = vmatpush1.msra.mxu0 0.0
  %1941 = vmatprep.subr.mxu0 0.0
  %1942 = vmatpush1.msra.mxu0 0.0
  %1943 = vmatprep.subr.mxu0 0.0
  %1944 = vmatpush1.msra.mxu0 0.0
  %1945 = vmatprep.subr.mxu0 0.0
  %1946 = vmatpush1.msra.mxu0 0.0
  %1947 = vmatprep.subr.mxu0 0.0
  %1948 = vmatpush1.msra.mxu0 0.0
  %1949 = vmatprep.subr.mxu0 0.0
  %1950 = vmatpush1.msra.mxu0 0.0
  %1951 = vmatprep.subr.mxu0 0.0
  %1952 = vmatpush1.msra.mxu0 0.0
  %1953 = vmatprep.subr.mxu0 0.0
  %1954 = vmatpush1.msra.mxu0 0.0
  %1955 = vmatprep.subr.mxu0 0.0
  %1956 = vmatpush1.msra.mxu0 0.0
  %1957 = vmatprep.subr.mxu0 0.0
  %1958 = vmatpush1.msra.mxu0 0.0
  %1959 = vmatprep.subr.mxu0 0.0
  %1960 = vmatpush1.msra.mxu0 0.0
  %1961 = vmatprep.subr.mxu0 0.0
  %1962 = vmatpush1.msra.mxu0 0.0
  %1963 = vmatprep.subr.mxu0 0.0
  %1964 = vmatpush1.msra.mxu0 0.0
  %1965 = vmatprep.subr.mxu0 0.0
  %1966 = vmatpush1.msra.mxu0 0.0
  %1967 = vmatprep.subr.mxu0 0.0
  %1968 = vmatpush1.msra.mxu0 0.0
  %1969 = vmatprep.subr.mxu0 0.0
  %1970 = vmatpush1.msra.mxu0 0.0
  %1971 = vmatprep.subr.mxu0 0.0
  %1972 = vmatpush1.msra.mxu0 0.0
  %1973 = vmatprep.subr.mxu0 0.0
  %1974 = vmatpush1.msra.mxu0 0.0
  %1975 = vmatprep.subr.mxu0 0.0
  %1976 = vmatpush1.msra.mxu0 0.0
  %1977 = vmatprep.subr.mxu0 0.0
  %1978 = vmatpush1.msra.mxu0 0.0
  %1979 = vmatprep.subr.mxu0 0.0
  %1980 = vmatpush1.msra.mxu0 0.0
  %1981 = vmatprep.mubr.f32.mxu0 0.0
  %1982 = vmatmul.mubr.f32.gmra.mrb[0].mxu0 %v1906
  %v1983 = vpop.f32.mrb[0].mxu0
  %v1984 = vadd.f32 0.0, %v1983
  %v1985 = vpop.f32.mrb[0].mxu0
  %1986 = vmatprep.mubr.f32.mxu0 0.0
  %1987 = vmatmul.mubr.f32.gmra.mrb[0].mxu0 %v1909
  %v1988 = vpop.f32.mrb[0].mxu0
  %v1989 = vadd.f32 0.0, %v1988
  %v1990 = vpop.f32.mrb[0].mxu0
  %1991 = vmatprep.mubr.f32.mxu0 0.0
  %1992 = vmatmul.mubr.f32.gmra.mrb[0].mxu0 %v1912
  %v1993 = vpop.f32.mrb[0].mxu0
  %v1994 = vadd.f32 0.0, %v1993
  %v1995 = vpop.f32.mrb[0].mxu0
  %1996 = vmatprep.mubr.f32.mxu0 0.0
  %1997 = vmatmul.mubr.f32.gmra.mrb[0].mxu0 %v1915
  %v1998 = vpop.f32.mrb[0].mxu0
  %v1999 = vadd.f32 0.0, %v1998
  %v2000 = vpop.f32.mrb[0].mxu0
  %2001 = vdwg.mxu0
  %v2002 = vmul.f32 %v1984, %v476
  %v2003 = vmul.f32 %v1989, %v478
  %v2004 = vmul.f32 %v1994, %v480
  %v2005 = vmul.f32 %v1999, %v482
  %v2006 = vadd.f32 %v2002, 1e-05
  %v2007 = vadd.f32 %v2003, 1e-05
  %v2008 = vadd.f32 %v2004, 1e-05
  %v2009 = vadd.f32 %v2005, 1e-05
  %v2010 = vrsqrt.pop %v2006
  %v2011 = vrsqrt.pop %v2007
  %v2012 = vrsqrt.pop %v2008
  %v2013 = vrsqrt.pop %v2009
  %2015 = vset.pattern.permute.xlu0 0
  %2016 = vperm.xlu0 %2015, %v2010
  %v2017 = vpop.permute.xlu0 %2016
  %2020 = vset.pattern.permute.xlu0 0
  %2021 = vperm.xlu0 %2020, %v2011
  %v2022 = vpop.permute.xlu0 %2021
  %2025 = vset.pattern.permute.xlu0 0
  %2026 = vperm.xlu0 %2025, %v2012
  %v2027 = vpop.permute.xlu0 %2026
  %2030 = vset.pattern.permute.xlu0 0
  %2031 = vperm.xlu0 %2030, %v2013
  %v2032 = vpop.permute.xlu0 %2031
  %v2034 = vmul.f32 %v1893, %v2017
  %v2035 = vmul.f32 %v1894, %v2022
  %v2036 = vmul.f32 %v1895, %v2027
  %v2037 = vmul.f32 %v1896, %v2032
  %2039 = vset.pattern.permute.xlu0 0
  %2040 = vperm.xlu0 %2039, %v1759
  %v2041 = vpop.permute.xlu0 %2040
  %2044 = vset.pattern.permute.xlu0 0
  %2045 = vperm.xlu0 %2044, %v1760
  %v2046 = vpop.permute.xlu0 %2045
  %2049 = vset.pattern.permute.xlu0 0
  %2050 = vperm.xlu0 %2049, %v1761
  %v2051 = vpop.permute.xlu0 %2050
  %2054 = vset.pattern.permute.xlu0 0
  %2055 = vperm.xlu0 %2054, %v1762
  %v2056 = vpop.permute.xlu0 %2055
  %v2058 = vmul.f32 %v2034, %v2041
  %v2059 = vmul.f32 %v2035, %v2046
  %v2060 = vmul.f32 %v2036, %v2051
  %v2061 = vmul.f32 %v2037, %v2056
  %2063 = vset.pattern.permute.xlu0 0
  %2064 = vperm.xlu0 %2063, %v1764
  %v2065 = vpop.permute.xlu0 %2064
  %2068 = vset.pattern.permute.xlu0 0
  %2069 = vperm.xlu0 %2068, %v1765
  %v2070 = vpop.permute.xlu0 %2069
  %2073 = vset.pattern.permute.xlu0 0
  %2074 = vperm.xlu0 %2073, %v1766
  %v2075 = vpop.permute.xlu0 %2074
  %2078 = vset.pattern.permute.xlu0 0
  %2079 = vperm.xlu0 %2078, %v1767
  %v2080 = vpop.permute.xlu0 %2079
  %v2082 = vadd.f32 %v2058, %v2065
  %v2083 = vadd.f32 %v2059, %v2070
  %v2084 = vadd.f32 %v2060, %v2075
  %v2085 = vadd.f32 %v2061, %v2080
  %v2086 = vmax.f32 %v2082, 0.0
  %v2087 = vmax.f32 %v2083, 0.0
  %v2088 = vmax.f32 %v2084, 0.0
  %v2089 = vmax.f32 %v2085, 0.0
  %s2090 = scalar_lea.vmem %s13, 64
  %v2091 = vld [vmem:[%s2090] sm:$0xff]
  %v2092 = vld [vmem:[%s2090 + $0x8] sm:$0xff]
  %v2093 = vld [vmem:[%s2090 + $0x10] sm:$0xff]
  %v2094 = vld [vmem:[%s2090 + $0x18] sm:$0xff]
  %s2095 = scalar_lea.vmem %s14, 64
  %v2096 = vld [vmem:[%s2095] sm:$0xff]
  %v2097 = vld [vmem:[%s2095 + $0x8] sm:$0xff]
  %v2098 = vld [vmem:[%s2095 + $0x10] sm:$0xff]
  %v2099 = vld [vmem:[%s2095 + $0x18] sm:$0xff]
  %2101 = vset.pattern.permute.xlu0 0
  %2102 = vperm.xlu0 %2101, %v2096
  %v2103 = vpop.permute.xlu0 %2102
  %2106 = vset.pattern.permute.xlu0 0
  %2107 = vperm.xlu0 %2106, %v2097
  %v2108 = vpop.permute.xlu0 %2107
  %2111 = vset.pattern.permute.xlu0 0
  %2112 = vperm.xlu0 %2111, %v2098
  %v2113 = vpop.permute.xlu0 %2112
  %2116 = vset.pattern.permute.xlu0 0
  %2117 = vperm.xlu0 %2116, %v2099
  %v2118 = vpop.permute.xlu0 %2117
  %v2121 = vsel %vm1203, %v2091, 0
  %v2124 = vsel %vm1203, %v2092, 0
  %v2127 = vsel %vm1203, %v2093, 0
  %v2130 = vsel %vm1203, %v2094, 0
  %2132 = vmatprep.subr.mxu0 0.0
  %2133 = vmatpush1.msra.mxu0 %v2086
  %2134 = vmatprep.subr.mxu0 0.0
  %2135 = vmatpush1.msra.mxu0 %v2087
  %2136 = vmatprep.subr.mxu0 0.0
  %2137 = vmatpush1.msra.mxu0 %v2088
  %2138 = vmatprep.subr.mxu0 0.0
  %2139 = vmatpush1.msra.mxu0 %v2089
  %2140 = vmatprep.subr.mxu0 0.0
  %2141 = vmatpush1.msra.mxu0 0.0
  %2142 = vmatprep.subr.mxu0 0.0
  %2143 = vmatpush1.msra.mxu0 0.0
  %2144 = vmatprep.subr.mxu0 0.0
  %2145 = vmatpush1.msra.mxu0 0.0
  %2146 = vmatprep.subr.mxu0 0.0
  %2147 = vmatpush1.msra.mxu0 0.0
  %2148 = vmatprep.subr.mxu0 0.0
  %2149 = vmatpush1.msra.mxu0 0.0
  %2150 = vmatprep.subr.mxu0 0.0
  %2151 = vmatpush1.msra.mxu0 0.0
  %2152 = vmatprep.subr.mxu0 0.0
  %2153 = vmatpush1.msra.mxu0 0.0
  %2154 = vmatprep.subr.mxu0 0.0
  %2155 = vmatpush1.msra.mxu0 0.0
  %2156 = vmatprep.subr.mxu0 0.0
  %2157 = vmatpush1.msra.mxu0 0.0
  %2158 = vmatprep.subr.mxu0 0.0
  %2159 = vmatpush1.msra.mxu0 0.0
  %2160 = vmatprep.subr.mxu0 0.0
  %2161 = vmatpush1.msra.mxu0 0.0
  %2162 = vmatprep.subr.mxu0 0.0
  %2163 = vmatpush1.msra.mxu0 0.0
  %2164 = vmatprep.subr.mxu0 0.0
  %2165 = vmatpush1.msra.mxu0 0.0
  %2166 = vmatprep.subr.mxu0 0.0
  %2167 = vmatpush1.msra.mxu0 0.0
  %2168 = vmatprep.subr.mxu0 0.0
  %2169 = vmatpush1.msra.mxu0 0.0
  %2170 = vmatprep.subr.mxu0 0.0
  %2171 = vmatpush1.msra.mxu0 0.0
  %2172 = vmatprep.subr.mxu0 0.0
  %2173 = vmatpush1.msra.mxu0 0.0
  %2174 = vmatprep.subr.mxu0 0.0
  %2175 = vmatpush1.msra.mxu0 0.0
  %2176 = vmatprep.subr.mxu0 0.0
  %2177 = vmatpush1.msra.mxu0 0.0
  %2178 = vmatprep.subr.mxu0 0.0
  %2179 = vmatpush1.msra.mxu0 0.0
  %2180 = vmatprep.subr.mxu0 0.0
  %2181 = vmatpush1.msra.mxu0 0.0
  %2182 = vmatprep.subr.mxu0 0.0
  %2183 = vmatpush1.msra.mxu0 0.0
  %2184 = vmatprep.subr.mxu0 0.0
  %2185 = vmatpush1.msra.mxu0 0.0
  %2186 = vmatprep.subr.mxu0 0.0
  %2187 = vmatpush1.msra.mxu0 0.0
  %2188 = vmatprep.subr.mxu0 0.0
  %2189 = vmatpush1.msra.mxu0 0.0
  %2190 = vmatprep.subr.mxu0 0.0
  %2191 = vmatpush1.msra.mxu0 0.0
  %2192 = vmatprep.subr.mxu0 0.0
  %2193 = vmatpush1.msra.mxu0 0.0
  %2194 = vmatprep.subr.mxu0 0.0
  %2195 = vmatpush1.msra.mxu0 0.0
  %2196 = vmatprep.mubr.f32.mxu0 0.0
  %2197 = vmatmul.mubr.f32.gmra.mrb[0].mxu0 %v2121
  %v2198 = vpop.f32.mrb[0].mxu0
  %v2199 = vadd.f32 %v2103, %v2198
  %v2200 = vpop.f32.mrb[0].mxu0
  %2201 = vmatprep.mubr.f32.mxu0 0.0
  %2202 = vmatmul.mubr.f32.gmra.mrb[0].mxu0 %v2124
  %v2203 = vpop.f32.mrb[0].mxu0
  %v2204 = vadd.f32 %v2108, %v2203
  %v2205 = vpop.f32.mrb[0].mxu0
  %2206 = vmatprep.mubr.f32.mxu0 0.0
  %2207 = vmatmul.mubr.f32.gmra.mrb[0].mxu0 %v2127
  %v2208 = vpop.f32.mrb[0].mxu0
  %v2209 = vadd.f32 %v2113, %v2208
  %v2210 = vpop.f32.mrb[0].mxu0
  %2211 = vmatprep.mubr.f32.mxu0 0.0
  %2212 = vmatmul.mubr.f32.gmra.mrb[0].mxu0 %v2130
  %v2213 = vpop.f32.mrb[0].mxu0
  %v2214 = vadd.f32 %v2118, %v2213
  %v2215 = vpop.f32.mrb[0].mxu0
  %2216 = vdwg.mxu0
  %s2217 = scalar_lea.vmem %s15, 64
  %v2218 = vld [vmem:[%s2217] sm:$0xff]
  %v2219 = vld [vmem:[%s2217 + $0x8] sm:$0xff]
  %v2220 = vld [vmem:[%s2217 + $0x10] sm:$0xff]
  %v2221 = vld [vmem:[%s2217 + $0x18] sm:$0xff]
  %s2222 = scalar_lea.vmem %s16, 64
  %v2223 = vld [vmem:[%s2222] sm:$0xff]
  %v2224 = vld [vmem:[%s2222 + $0x8] sm:$0xff]
  %v2225 = vld [vmem:[%s2222 + $0x10] sm:$0xff]
  %v2226 = vld [vmem:[%s2222 + $0x18] sm:$0xff]
  %v2227 = vmul.f32 %v2199, %v450
  %v2228 = vmul.f32 %v2204, %v451
  %v2229 = vmul.f32 %v2209, %v452
  %v2230 = vmul.f32 %v2214, %v453
  %v2232 = vsel %vm162, %v2227, 0
  %v2235 = vsel %vm162, %v2228, 0
  %v2238 = vsel %vm162, %v2229, 0
  %v2241 = vsel %vm162, %v2230, 0
  %2243 = vmatprep.subr.mxu0 0.0
  %2244 = vmatpush1.msra.mxu0 1.0
  %2245 = vmatprep.subr.mxu0 0.0
  %2246 = vmatpush1.msra.mxu0 1.0
  %2247 = vmatprep.subr.mxu0 0.0
  %2248 = vmatpush1.msra.mxu0 0.0
  %2249 = vmatprep.subr.mxu0 0.0
  %2250 = vmatpush1.msra.mxu0 0.0
  %2251 = vmatprep.subr.mxu0 0.0
  %2252 = vmatpush1.msra.mxu0 0.0
  %2253 = vmatprep.subr.mxu0 0.0
  %2254 = vmatpush1.msra.mxu0 0.0
  %2255 = vmatprep.subr.mxu0 0.0
  %2256 = vmatpush1.msra.mxu0 0.0
  %2257 = vmatprep.subr.mxu0 0.0
  %2258 = vmatpush1.msra.mxu0 0.0
  %2259 = vmatprep.subr.mxu0 0.0
  %2260 = vmatpush1.msra.mxu0 0.0
  %2261 = vmatprep.subr.mxu0 0.0
  %2262 = vmatpush1.msra.mxu0 0.0
  %2263 = vmatprep.subr.mxu0 0.0
  %2264 = vmatpush1.msra.mxu0 0.0
  %2265 = vmatprep.subr.mxu0 0.0
  %2266 = vmatpush1.msra.mxu0 0.0
  %2267 = vmatprep.subr.mxu0 0.0
  %2268 = vmatpush1.msra.mxu0 0.0
  %2269 = vmatprep.subr.mxu0 0.0
  %2270 = vmatpush1.msra.mxu0 0.0
  %2271 = vmatprep.subr.mxu0 0.0
  %2272 = vmatpush1.msra.mxu0 0.0
  %2273 = vmatprep.subr.mxu0 0.0
  %2274 = vmatpush1.msra.mxu0 0.0
  %2275 = vmatprep.subr.mxu0 0.0
  %2276 = vmatpush1.msra.mxu0 0.0
  %2277 = vmatprep.subr.mxu0 0.0
  %2278 = vmatpush1.msra.mxu0 0.0
  %2279 = vmatprep.subr.mxu0 0.0
  %2280 = vmatpush1.msra.mxu0 0.0
  %2281 = vmatprep.subr.mxu0 0.0
  %2282 = vmatpush1.msra.mxu0 0.0
  %2283 = vmatprep.subr.mxu0 0.0
  %2284 = vmatpush1.msra.mxu0 0.0
  %2285 = vmatprep.subr.mxu0 0.0
  %2286 = vmatpush1.msra.mxu0 0.0
  %2287 = vmatprep.subr.mxu0 0.0
  %2288 = vmatpush1.msra.mxu0 0.0
  %2289 = vmatprep.subr.mxu0 0.0
  %2290 = vmatpush1.msra.mxu0 0.0
  %2291 = vmatprep.subr.mxu0 0.0
  %2292 = vmatpush1.msra.mxu0 0.0
  %2293 = vmatprep.subr.mxu0 0.0
  %2294 = vmatpush1.msra.mxu0 0.0
  %2295 = vmatprep.subr.mxu0 0.0
  %2296 = vmatpush1.msra.mxu0 0.0
  %2297 = vmatprep.subr.mxu0 0.0
  %2298 = vmatpush1.msra.mxu0 0.0
  %2299 = vmatprep.subr.mxu0 0.0
  %2300 = vmatpush1.msra.mxu0 0.0
  %2301 = vmatprep.subr.mxu0 0.0
  %2302 = vmatpush1.msra.mxu0 0.0
  %2303 = vmatprep.subr.mxu0 0.0
  %2304 = vmatpush1.msra.mxu0 0.0
  %2305 = vmatprep.subr.mxu0 0.0
  %2306 = vmatpush1.msra.mxu0 0.0
  %2307 = vmatprep.mubr.f32.mxu0 0.0
  %2308 = vmatmul.mubr.f32.gmra.mrb[0].mxu0 %v2232
  %v2309 = vpop.f32.mrb[0].mxu0
  %v2310 = vadd.f32 0.0, %v2309
  %v2311 = vpop.f32.mrb[0].mxu0
  %2312 = vmatprep.mubr.f32.mxu0 0.0
  %2313 = vmatmul.mubr.f32.gmra.mrb[0].mxu0 %v2235
  %v2314 = vpop.f32.mrb[0].mxu0
  %v2315 = vadd.f32 0.0, %v2314
  %v2316 = vpop.f32.mrb[0].mxu0
  %2317 = vmatprep.mubr.f32.mxu0 0.0
  %2318 = vmatmul.mubr.f32.gmra.mrb[0].mxu0 %v2238
  %v2319 = vpop.f32.mrb[0].mxu0
  %v2320 = vadd.f32 0.0, %v2319
  %v2321 = vpop.f32.mrb[0].mxu0
  %2322 = vmatprep.mubr.f32.mxu0 0.0
  %2323 = vmatmul.mubr.f32.gmra.mrb[0].mxu0 %v2241
  %v2324 = vpop.f32.mrb[0].mxu0
  %v2325 = vadd.f32 0.0, %v2324
  %v2326 = vpop.f32.mrb[0].mxu0
  %2327 = vdwg.mxu0
  %v2328 = vmul.f32 %v2310, %v476
  %v2329 = vmul.f32 %v2315, %v478
  %v2330 = vmul.f32 %v2320, %v480
  %v2331 = vmul.f32 %v2325, %v482
  %2333 = vset.pattern.permute.xlu0 0
  %2334 = vperm.xlu0 %2333, %v2328
  %v2335 = vpop.permute.xlu0 %2334
  %2338 = vset.pattern.permute.xlu0 0
  %2339 = vperm.xlu0 %2338, %v2329
  %v2340 = vpop.permute.xlu0 %2339
  %2343 = vset.pattern.permute.xlu0 0
  %2344 = vperm.xlu0 %2343, %v2330
  %v2345 = vpop.permute.xlu0 %2344
  %2348 = vset.pattern.permute.xlu0 0
  %2349 = vperm.xlu0 %2348, %v2331
  %v2350 = vpop.permute.xlu0 %2349
  %v2352 = vsub.f32 %v2199, %v2335
  %v2353 = vsub.f32 %v2204, %v2340
  %v2354 = vsub.f32 %v2209, %v2345
  %v2355 = vsub.f32 %v2214, %v2350
  %v2356 = vmul.f32 %v2352, %v2352
  %v2357 = vmul.f32 %v2353, %v2353
  %v2358 = vmul.f32 %v2354, %v2354
  %v2359 = vmul.f32 %v2355, %v2355
  %v2360 = vmul.f32 %v2356, %v450
  %v2361 = vmul.f32 %v2357, %v451
  %v2362 = vmul.f32 %v2358, %v452
  %v2363 = vmul.f32 %v2359, %v453
  %v2365 = vsel %vm162, %v2360, 0
  %v2368 = vsel %vm162, %v2361, 0
  %v2371 = vsel %vm162, %v2362, 0
  %v2374 = vsel %vm162, %v2363, 0
  %2376 = vmatprep.subr.mxu0 0.0
  %2377 = vmatpush1.msra.mxu0 1.0
  %2378 = vmatprep.subr.mxu0 0.0
  %2379 = vmatpush1.msra.mxu0 1.0
  %2380 = vmatprep.subr.mxu0 0.0
  %2381 = vmatpush1.msra.mxu0 0.0
  %2382 = vmatprep.subr.mxu0 0.0
  %2383 = vmatpush1.msra.mxu0 0.0
  %2384 = vmatprep.subr.mxu0 0.0
  %2385 = vmatpush1.msra.mxu0 0.0
  %2386 = vmatprep.subr.mxu0 0.0
  %2387 = vmatpush1.msra.mxu0 0.0
  %2388 = vmatprep.subr.mxu0 0.0
  %2389 = vmatpush1.msra.mxu0 0.0
  %2390 = vmatprep.subr.mxu0 0.0
  %2391 = vmatpush1.msra.mxu0 0.0
  %2392 = vmatprep.subr.mxu0 0.0
  %2393 = vmatpush1.msra.mxu0 0.0
  %2394 = vmatprep.subr.mxu0 0.0
  %2395 = vmatpush1.msra.mxu0 0.0
  %2396 = vmatprep.subr.mxu0 0.0
  %2397 = vmatpush1.msra.mxu0 0.0
  %2398 = vmatprep.subr.mxu0 0.0
  %2399 = vmatpush1.msra.mxu0 0.0
  %2400 = vmatprep.subr.mxu0 0.0
  %2401 = vmatpush1.msra.mxu0 0.0
  %2402 = vmatprep.subr.mxu0 0.0
  %2403 = vmatpush1.msra.mxu0 0.0
  %2404 = vmatprep.subr.mxu0 0.0
  %2405 = vmatpush1.msra.mxu0 0.0
  %2406 = vmatprep.subr.mxu0 0.0
  %2407 = vmatpush1.msra.mxu0 0.0
  %2408 = vmatprep.subr.mxu0 0.0
  %2409 = vmatpush1.msra.mxu0 0.0
  %2410 = vmatprep.subr.mxu0 0.0
  %2411 = vmatpush1.msra.mxu0 0.0
  %2412 = vmatprep.subr.mxu0 0.0
  %2413 = vmatpush1.msra.mxu0 0.0
  %2414 = vmatprep.subr.mxu0 0.0
  %2415 = vmatpush1.msra.mxu0 0.0
  %2416 = vmatprep.subr.mxu0 0.0
  %2417 = vmatpush1.msra.mxu0 0.0
  %2418 = vmatprep.subr.mxu0 0.0
  %2419 = vmatpush1.msra.mxu0 0.0
  %2420 = vmatprep.subr.mxu0 0.0
  %2421 = vmatpush1.msra.mxu0 0.0
  %2422 = vmatprep.subr.mxu0 0.0
  %2423 = vmatpush1.msra.mxu0 0.0
  %2424 = vmatprep.subr.mxu0 0.0
  %2425 = vmatpush1.msra.mxu0 0.0
  %2426 = vmatprep.subr.mxu0 0.0
  %2427 = vmatpush1.msra.mxu0 0.0
  %2428 = vmatprep.subr.mxu0 0.0
  %2429 = vmatpush1.msra.mxu0 0.0
  %2430 = vmatprep.subr.mxu0 0.0
  %2431 = vmatpush1.msra.mxu0 0.0
  %2432 = vmatprep.subr.mxu0 0.0
  %2433 = vmatpush1.msra.mxu0 0.0
  %2434 = vmatprep.subr.mxu0 0.0
  %2435 = vmatpush1.msra.mxu0 0.0
  %2436 = vmatprep.subr.mxu0 0.0
  %2437 = vmatpush1.msra.mxu0 0.0
  %2438 = vmatprep.subr.mxu0 0.0
  %2439 = vmatpush1.msra.mxu0 0.0
  %2440 = vmatprep.mubr.f32.mxu0 0.0
  %2441 = vmatmul.mubr.f32.gmra.mrb[0].mxu0 %v2365
  %v2442 = vpop.f32.mrb[0].mxu0
  %v2443 = vadd.f32 0.0, %v2442
  %v2444 = vpop.f32.mrb[0].mxu0
  %2445 = vmatprep.mubr.f32.mxu0 0.0
  %2446 = vmatmul.mubr.f32.gmra.mrb[0].mxu0 %v2368
  %v2447 = vpop.f32.mrb[0].mxu0
  %v2448 = vadd.f32 0.0, %v2447
  %v2449 = vpop.f32.mrb[0].mxu0
  %2450 = vmatprep.mubr.f32.mxu0 0.0
  %2451 = vmatmul.mubr.f32.gmra.mrb[0].mxu0 %v2371
  %v2452 = vpop.f32.mrb[0].mxu0
  %v2453 = vadd.f32 0.0, %v2452
  %v2454 = vpop.f32.mrb[0].mxu0
  %2455 = vmatprep.mubr.f32.mxu0 0.0
  %2456 = vmatmul.mubr.f32.gmra.mrb[0].mxu0 %v2374
  %v2457 = vpop.f32.mrb[0].mxu0
  %v2458 = vadd.f32 0.0, %v2457
  %v2459 = vpop.f32.mrb[0].mxu0
  %2460 = vdwg.mxu0
  %v2461 = vmul.f32 %v2443, %v476
  %v2462 = vmul.f32 %v2448, %v478
  %v2463 = vmul.f32 %v2453, %v480
  %v2464 = vmul.f32 %v2458, %v482
  %v2465 = vadd.f32 %v2461, 1e-05
  %v2466 = vadd.f32 %v2462, 1e-05
  %v2467 = vadd.f32 %v2463, 1e-05
  %v2468 = vadd.f32 %v2464, 1e-05
  %v2469 = vrsqrt.pop %v2465
  %v2470 = vrsqrt.pop %v2466
  %v2471 = vrsqrt.pop %v2467
  %v2472 = vrsqrt.pop %v2468
  %2474 = vset.pattern.permute.xlu0 0
  %2475 = vperm.xlu0 %2474, %v2469
  %v2476 = vpop.permute.xlu0 %2475
  %2479 = vset.pattern.permute.xlu0 0
  %2480 = vperm.xlu0 %2479, %v2470
  %v2481 = vpop.permute.xlu0 %2480
  %2484 = vset.pattern.permute.xlu0 0
  %2485 = vperm.xlu0 %2484, %v2471
  %v2486 = vpop.permute.xlu0 %2485
  %2489 = vset.pattern.permute.xlu0 0
  %2490 = vperm.xlu0 %2489, %v2472
  %v2491 = vpop.permute.xlu0 %2490
  %v2493 = vmul.f32 %v2352, %v2476
  %v2494 = vmul.f32 %v2353, %v2481
  %v2495 = vmul.f32 %v2354, %v2486
  %v2496 = vmul.f32 %v2355, %v2491
  %2498 = vset.pattern.permute.xlu0 0
  %2499 = vperm.xlu0 %2498, %v2218
  %v2500 = vpop.permute.xlu0 %2499
  %2503 = vset.pattern.permute.xlu0 0
  %2504 = vperm.xlu0 %2503, %v2219
  %v2505 = vpop.permute.xlu0 %2504
  %2508 = vset.pattern.permute.xlu0 0
  %2509 = vperm.xlu0 %2508, %v2220
  %v2510 = vpop.permute.xlu0 %2509
  %2513 = vset.pattern.permute.xlu0 0
  %2514 = vperm.xlu0 %2513, %v2221
  %v2515 = vpop.permute.xlu0 %2514
  %v2517 = vmul.f32 %v2493, %v2500
  %v2518 = vmul.f32 %v2494, %v2505
  %v2519 = vmul.f32 %v2495, %v2510
  %v2520 = vmul.f32 %v2496, %v2515
  %2522 = vset.pattern.permute.xlu0 0
  %2523 = vperm.xlu0 %2522, %v2223
  %v2524 = vpop.permute.xlu0 %2523
  %2527 = vset.pattern.permute.xlu0 0
  %2528 = vperm.xlu0 %2527, %v2224
  %v2529 = vpop.permute.xlu0 %2528
  %2532 = vset.pattern.permute.xlu0 0
  %2533 = vperm.xlu0 %2532, %v2225
  %v2534 = vpop.permute.xlu0 %2533
  %2537 = vset.pattern.permute.xlu0 0
  %2538 = vperm.xlu0 %2537, %v2226
  %v2539 = vpop.permute.xlu0 %2538
  %v2541 = vadd.f32 %v2517, %v2524
  %v2542 = vadd.f32 %v2518, %v2529
  %v2543 = vadd.f32 %v2519, %v2534
  %v2544 = vadd.f32 %v2520, %v2539
  %v2545 = vmax.f32 %v2541, 0.0
  %v2546 = vmax.f32 %v2542, 0.0
  %v2547 = vmax.f32 %v2543, 0.0
  %v2548 = vmax.f32 %v2544, 0.0
  %v2549 = vmul.f32 %v2545, %v450
  %v2550 = vmul.f32 %v2546, %v451
  %v2551 = vmul.f32 %v2547, %v452
  %v2552 = vmul.f32 %v2548, %v453
  %v2554 = vsel %vm162, %v2549, 0
  %v2557 = vsel %vm162, %v2550, 0
  %v2560 = vsel %vm162, %v2551, 0
  %v2563 = vsel %vm162, %v2552, 0
  %2565 = vmatprep.subr.mxu0 0.0
  %2566 = vmatpush1.msra.mxu0 %v427
  %2567 = vmatprep.subr.mxu0 0.0
  %2568 = vmatpush1.msra.mxu0 %v428
  %2569 = vmatprep.subr.mxu0 0.0
  %2570 = vmatpush1.msra.mxu0 0.0
  %2571 = vmatprep.subr.mxu0 0.0
  %2572 = vmatpush1.msra.mxu0 0.0
  %2573 = vmatprep.subr.mxu0 0.0
  %2574 = vmatpush1.msra.mxu0 0.0
  %2575 = vmatprep.subr.mxu0 0.0
  %2576 = vmatpush1.msra.mxu0 0.0
  %2577 = vmatprep.subr.mxu0 0.0
  %2578 = vmatpush1.msra.mxu0 0.0
  %2579 = vmatprep.subr.mxu0 0.0
  %2580 = vmatpush1.msra.mxu0 0.0
  %2581 = vmatprep.subr.mxu0 0.0
  %2582 = vmatpush1.msra.mxu0 0.0
  %2583 = vmatprep.subr.mxu0 0.0
  %2584 = vmatpush1.msra.mxu0 0.0
  %2585 = vmatprep.subr.mxu0 0.0
  %2586 = vmatpush1.msra.mxu0 0.0
  %2587 = vmatprep.subr.mxu0 0.0
  %2588 = vmatpush1.msra.mxu0 0.0
  %2589 = vmatprep.subr.mxu0 0.0
  %2590 = vmatpush1.msra.mxu0 0.0
  %2591 = vmatprep.subr.mxu0 0.0
  %2592 = vmatpush1.msra.mxu0 0.0
  %2593 = vmatprep.subr.mxu0 0.0
  %2594 = vmatpush1.msra.mxu0 0.0
  %2595 = vmatprep.subr.mxu0 0.0
  %2596 = vmatpush1.msra.mxu0 0.0
  %2597 = vmatprep.subr.mxu0 0.0
  %2598 = vmatpush1.msra.mxu0 0.0
  %2599 = vmatprep.subr.mxu0 0.0
  %2600 = vmatpush1.msra.mxu0 0.0
  %2601 = vmatprep.subr.mxu0 0.0
  %2602 = vmatpush1.msra.mxu0 0.0
  %2603 = vmatprep.subr.mxu0 0.0
  %2604 = vmatpush1.msra.mxu0 0.0
  %2605 = vmatprep.subr.mxu0 0.0
  %2606 = vmatpush1.msra.mxu0 0.0
  %2607 = vmatprep.subr.mxu0 0.0
  %2608 = vmatpush1.msra.mxu0 0.0
  %2609 = vmatprep.subr.mxu0 0.0
  %2610 = vmatpush1.msra.mxu0 0.0
  %2611 = vmatprep.subr.mxu0 0.0
  %2612 = vmatpush1.msra.mxu0 0.0
  %2613 = vmatprep.subr.mxu0 0.0
  %2614 = vmatpush1.msra.mxu0 0.0
  %2615 = vmatprep.subr.mxu0 0.0
  %2616 = vmatpush1.msra.mxu0 0.0
  %2617 = vmatprep.subr.mxu0 0.0
  %2618 = vmatpush1.msra.mxu0 0.0
  %2619 = vmatprep.subr.mxu0 0.0
  %2620 = vmatpush1.msra.mxu0 0.0
  %2621 = vmatprep.subr.mxu0 0.0
  %2622 = vmatpush1.msra.mxu0 0.0
  %2623 = vmatprep.subr.mxu0 0.0
  %2624 = vmatpush1.msra.mxu0 0.0
  %2625 = vmatprep.subr.mxu0 0.0
  %2626 = vmatpush1.msra.mxu0 0.0
  %2627 = vmatprep.subr.mxu0 0.0
  %2628 = vmatpush1.msra.mxu0 0.0
  %2629 = vmatprep.mubr.f32.mxu0 0.0
  %2630 = vmatmul.mubr.f32.gmra.mrb[0].mxu0 %v2554
  %v2631 = vpop.f32.mrb[0].mxu0
  %v2632 = vadd.f32 0.0, %v2631
  %v2633 = vpop.f32.mrb[0].mxu0
  %2634 = vmatprep.mubr.f32.mxu0 0.0
  %2635 = vmatmul.mubr.f32.gmra.mrb[0].mxu0 %v2557
  %v2636 = vpop.f32.mrb[0].mxu0
  %v2637 = vadd.f32 0.0, %v2636
  %v2638 = vpop.f32.mrb[0].mxu0
  %2639 = vmatprep.mubr.f32.mxu0 0.0
  %2640 = vmatmul.mubr.f32.gmra.mrb[0].mxu0 %v2560
  %v2641 = vpop.f32.mrb[0].mxu0
  %v2642 = vadd.f32 0.0, %v2641
  %v2643 = vpop.f32.mrb[0].mxu0
  %2644 = vmatprep.mubr.f32.mxu0 0.0
  %2645 = vmatmul.mubr.f32.gmra.mrb[0].mxu0 %v2563
  %v2646 = vpop.f32.mrb[0].mxu0
  %v2647 = vadd.f32 0.0, %v2646
  %v2648 = vpop.f32.mrb[0].mxu0
  %2649 = vdwg.mxu0
  %v2651 = vsel %vm1203, %v483, 0
  %v2654 = vsel %vm1203, %v484, 0
  %2656 = vmatprep.subr.mxu0 0.0
  %2657 = vmatpush1.msra.mxu0 %v2632
  %2658 = vmatprep.subr.mxu0 0.0
  %2659 = vmatpush1.msra.mxu0 %v2637
  %2660 = vmatprep.subr.mxu0 0.0
  %2661 = vmatpush1.msra.mxu0 %v2642
  %2662 = vmatprep.subr.mxu0 0.0
  %2663 = vmatpush1.msra.mxu0 %v2647
  %2664 = vmatprep.subr.mxu0 0.0
  %2665 = vmatpush1.msra.mxu0 0.0
  %2666 = vmatprep.subr.mxu0 0.0
  %2667 = vmatpush1.msra.mxu0 0.0
  %2668 = vmatprep.subr.mxu0 0.0
  %2669 = vmatpush1.msra.mxu0 0.0
  %2670 = vmatprep.subr.mxu0 0.0
  %2671 = vmatpush1.msra.mxu0 0.0
  %2672 = vmatprep.subr.mxu0 0.0
  %2673 = vmatpush1.msra.mxu0 0.0
  %2674 = vmatprep.subr.mxu0 0.0
  %2675 = vmatpush1.msra.mxu0 0.0
  %2676 = vmatprep.subr.mxu0 0.0
  %2677 = vmatpush1.msra.mxu0 0.0
  %2678 = vmatprep.subr.mxu0 0.0
  %2679 = vmatpush1.msra.mxu0 0.0
  %2680 = vmatprep.subr.mxu0 0.0
  %2681 = vmatpush1.msra.mxu0 0.0
  %2682 = vmatprep.subr.mxu0 0.0
  %2683 = vmatpush1.msra.mxu0 0.0
  %2684 = vmatprep.subr.mxu0 0.0
  %2685 = vmatpush1.msra.mxu0 0.0
  %2686 = vmatprep.subr.mxu0 0.0
  %2687 = vmatpush1.msra.mxu0 0.0
  %2688 = vmatprep.subr.mxu0 0.0
  %2689 = vmatpush1.msra.mxu0 0.0
  %2690 = vmatprep.subr.mxu0 0.0
  %2691 = vmatpush1.msra.mxu0 0.0
  %2692 = vmatprep.subr.mxu0 0.0
  %2693 = vmatpush1.msra.mxu0 0.0
  %2694 = vmatprep.subr.mxu0 0.0
  %2695 = vmatpush1.msra.mxu0 0.0
  %2696 = vmatprep.subr.mxu0 0.0
  %2697 = vmatpush1.msra.mxu0 0.0
  %2698 = vmatprep.subr.mxu0 0.0
  %2699 = vmatpush1.msra.mxu0 0.0
  %2700 = vmatprep.subr.mxu0 0.0
  %2701 = vmatpush1.msra.mxu0 0.0
  %2702 = vmatprep.subr.mxu0 0.0
  %2703 = vmatpush1.msra.mxu0 0.0
  %2704 = vmatprep.subr.mxu0 0.0
  %2705 = vmatpush1.msra.mxu0 0.0
  %2706 = vmatprep.subr.mxu0 0.0
  %2707 = vmatpush1.msra.mxu0 0.0
  %2708 = vmatprep.subr.mxu0 0.0
  %2709 = vmatpush1.msra.mxu0 0.0
  %2710 = vmatprep.subr.mxu0 0.0
  %2711 = vmatpush1.msra.mxu0 0.0
  %2712 = vmatprep.subr.mxu0 0.0
  %2713 = vmatpush1.msra.mxu0 0.0
  %2714 = vmatprep.subr.mxu0 0.0
  %2715 = vmatpush1.msra.mxu0 0.0
  %2716 = vmatprep.subr.mxu0 0.0
  %2717 = vmatpush1.msra.mxu0 0.0
  %2718 = vmatprep.subr.mxu0 0.0
  %2719 = vmatpush1.msra.mxu0 0.0
  %2720 = vmatprep.mubr.f32.mxu0 0.0
  %2721 = vmatmul.mubr.f32.gmra.mrb[0].mxu0 %v2651
  %v2722 = vpop.f32.mrb[0].mxu0
  %v2723 = vadd.f32 0.0, %v2722
  %v2724 = vpop.f32.mrb[0].mxu0
  %2725 = vmatprep.mubr.f32.mxu0 0.0
  %2726 = vmatmul.mubr.f32.gmra.mrb[0].mxu0 %v2654
  %v2727 = vpop.f32.mrb[0].mxu0
  %v2728 = vadd.f32 0.0, %v2727
  %v2729 = vpop.f32.mrb[0].mxu0
  %2730 = vdwg.mxu0
  %2731 = vst.msk [vmem:[%s18] sm:$0xff] %vm487, %v2723
  %2732 = vst.msk [vmem:[%s18 + $0x8] sm:$0xff] %vm487, %v2728
  %v2734 = vsel %vm487, %v2723, 0
  %v2737 = vsel %vm487, %v2728, 0
  %2739 = vmatprep.subr.mxu0 0.0
  %2740 = vmatpush1.msra.mxu0 %v398
  %2741 = vmatprep.subr.mxu0 0.0
  %2742 = vmatpush1.msra.mxu0 0.0
  %2743 = vmatprep.subr.mxu0 0.0
  %2744 = vmatpush1.msra.mxu0 0.0
  %2745 = vmatprep.subr.mxu0 0.0
  %2746 = vmatpush1.msra.mxu0 0.0
  %2747 = vmatprep.subr.mxu0 0.0
  %2748 = vmatpush1.msra.mxu0 0.0
  %2749 = vmatprep.subr.mxu0 0.0
  %2750 = vmatpush1.msra.mxu0 0.0
  %2751 = vmatprep.subr.mxu0 0.0
  %2752 = vmatpush1.msra.mxu0 0.0
  %2753 = vmatprep.subr.mxu0 0.0
  %2754 = vmatpush1.msra.mxu0 0.0
  %2755 = vmatprep.subr.mxu0 0.0
  %2756 = vmatpush1.msra.mxu0 0.0
  %2757 = vmatprep.subr.mxu0 0.0
  %2758 = vmatpush1.msra.mxu0 0.0
  %2759 = vmatprep.subr.mxu0 0.0
  %2760 = vmatpush1.msra.mxu0 0.0
  %2761 = vmatprep.subr.mxu0 0.0
  %2762 = vmatpush1.msra.mxu0 0.0
  %2763 = vmatprep.subr.mxu0 0.0
  %2764 = vmatpush1.msra.mxu0 0.0
  %2765 = vmatprep.subr.mxu0 0.0
  %2766 = vmatpush1.msra.mxu0 0.0
  %2767 = vmatprep.subr.mxu0 0.0
  %2768 = vmatpush1.msra.mxu0 0.0
  %2769 = vmatprep.subr.mxu0 0.0
  %2770 = vmatpush1.msra.mxu0 0.0
  %2771 = vmatprep.subr.mxu0 0.0
  %2772 = vmatpush1.msra.mxu0 0.0
  %2773 = vmatprep.subr.mxu0 0.0
  %2774 = vmatpush1.msra.mxu0 0.0
  %2775 = vmatprep.subr.mxu0 0.0
  %2776 = vmatpush1.msra.mxu0 0.0
  %2777 = vmatprep.subr.mxu0 0.0
  %2778 = vmatpush1.msra.mxu0 0.0
  %2779 = vmatprep.subr.mxu0 0.0
  %2780 = vmatpush1.msra.mxu0 0.0
  %2781 = vmatprep.subr.mxu0 0.0
  %2782 = vmatpush1.msra.mxu0 0.0
  %2783 = vmatprep.subr.mxu0 0.0
  %2784 = vmatpush1.msra.mxu0 0.0
  %2785 = vmatprep.subr.mxu0 0.0
  %2786 = vmatpush1.msra.mxu0 0.0
  %2787 = vmatprep.subr.mxu0 0.0
  %2788 = vmatpush1.msra.mxu0 0.0
  %2789 = vmatprep.subr.mxu0 0.0
  %2790 = vmatpush1.msra.mxu0 0.0
  %2791 = vmatprep.subr.mxu0 0.0
  %2792 = vmatpush1.msra.mxu0 0.0
  %2793 = vmatprep.subr.mxu0 0.0
  %2794 = vmatpush1.msra.mxu0 0.0
  %2795 = vmatprep.subr.mxu0 0.0
  %2796 = vmatpush1.msra.mxu0 0.0
  %2797 = vmatprep.subr.mxu0 0.0
  %2798 = vmatpush1.msra.mxu0 0.0
  %2799 = vmatprep.subr.mxu0 0.0
  %2800 = vmatpush1.msra.mxu0 0.0
  %2801 = vmatprep.subr.mxu0 0.0
  %2802 = vmatpush1.msra.mxu0 0.0
  %2803 = vmatprep.mubr.f32.mxu0 0.0
  %2804 = vmatmul.mubr.f32.gmra.mrb[0].mxu0 %v2734
  %v2805 = vpop.f32.mrb[0].mxu0
  %v2806 = vadd.f32 0.0, %v2805
  %v2807 = vpop.f32.mrb[0].mxu0
  %2808 = vmatprep.mubr.f32.mxu0 0.0
  %2809 = vmatmul.mubr.f32.gmra.mrb[0].mxu0 %v2737
  %v2810 = vpop.f32.mrb[0].mxu0
  %v2811 = vadd.f32 0.0, %v2810
  %v2812 = vpop.f32.mrb[0].mxu0
  %2813 = vdwg.mxu0
  %2814 = vmatprep.subr.mxu0 0.0
  %2815 = vmatpush1.msra.mxu0 %v405
  %2816 = vmatprep.subr.mxu0 0.0
  %2817 = vmatpush1.msra.mxu0 0.0
  %2818 = vmatprep.subr.mxu0 0.0
  %2819 = vmatpush1.msra.mxu0 0.0
  %2820 = vmatprep.subr.mxu0 0.0
  %2821 = vmatpush1.msra.mxu0 0.0
  %2822 = vmatprep.subr.mxu0 0.0
  %2823 = vmatpush1.msra.mxu0 0.0
  %2824 = vmatprep.subr.mxu0 0.0
  %2825 = vmatpush1.msra.mxu0 0.0
  %2826 = vmatprep.subr.mxu0 0.0
  %2827 = vmatpush1.msra.mxu0 0.0
  %2828 = vmatprep.subr.mxu0 0.0
  %2829 = vmatpush1.msra.mxu0 0.0
  %2830 = vmatprep.subr.mxu0 0.0
  %2831 = vmatpush1.msra.mxu0 0.0
  %2832 = vmatprep.subr.mxu0 0.0
  %2833 = vmatpush1.msra.mxu0 0.0
  %2834 = vmatprep.subr.mxu0 0.0
  %2835 = vmatpush1.msra.mxu0 0.0
  %2836 = vmatprep.subr.mxu0 0.0
  %2837 = vmatpush1.msra.mxu0 0.0
  %2838 = vmatprep.subr.mxu0 0.0
  %2839 = vmatpush1.msra.mxu0 0.0
  %2840 = vmatprep.subr.mxu0 0.0
  %2841 = vmatpush1.msra.mxu0 0.0
  %2842 = vmatprep.subr.mxu0 0.0
  %2843 = vmatpush1.msra.mxu0 0.0
  %2844 = vmatprep.subr.mxu0 0.0
  %2845 = vmatpush1.msra.mxu0 0.0
  %2846 = vmatprep.subr.mxu0 0.0
  %2847 = vmatpush1.msra.mxu0 0.0
  %2848 = vmatprep.subr.mxu0 0.0
  %2849 = vmatpush1.msra.mxu0 0.0
  %2850 = vmatprep.subr.mxu0 0.0
  %2851 = vmatpush1.msra.mxu0 0.0
  %2852 = vmatprep.subr.mxu0 0.0
  %2853 = vmatpush1.msra.mxu0 0.0
  %2854 = vmatprep.subr.mxu0 0.0
  %2855 = vmatpush1.msra.mxu0 0.0
  %2856 = vmatprep.subr.mxu0 0.0
  %2857 = vmatpush1.msra.mxu0 0.0
  %2858 = vmatprep.subr.mxu0 0.0
  %2859 = vmatpush1.msra.mxu0 0.0
  %2860 = vmatprep.subr.mxu0 0.0
  %2861 = vmatpush1.msra.mxu0 0.0
  %2862 = vmatprep.subr.mxu0 0.0
  %2863 = vmatpush1.msra.mxu0 0.0
  %2864 = vmatprep.subr.mxu0 0.0
  %2865 = vmatpush1.msra.mxu0 0.0
  %2866 = vmatprep.subr.mxu0 0.0
  %2867 = vmatpush1.msra.mxu0 0.0
  %2868 = vmatprep.subr.mxu0 0.0
  %2869 = vmatpush1.msra.mxu0 0.0
  %2870 = vmatprep.subr.mxu0 0.0
  %2871 = vmatpush1.msra.mxu0 0.0
  %2872 = vmatprep.subr.mxu0 0.0
  %2873 = vmatpush1.msra.mxu0 0.0
  %2874 = vmatprep.subr.mxu0 0.0
  %2875 = vmatpush1.msra.mxu0 0.0
  %2876 = vmatprep.subr.mxu0 0.0
  %2877 = vmatpush1.msra.mxu0 0.0
  %2878 = vmatprep.mubr.f32.mxu0 0.0
  %2879 = vmatmul.mubr.f32.gmra.mrb[0].mxu0 %v2734
  %v2880 = vpop.f32.mrb[0].mxu0
  %v2881 = vadd.f32 0.0, %v2880
  %v2882 = vpop.f32.mrb[0].mxu0
  %2883 = vmatprep.mubr.f32.mxu0 0.0
  %2884 = vmatmul.mubr.f32.gmra.mrb[0].mxu0 %v2737
  %v2885 = vpop.f32.mrb[0].mxu0
  %v2886 = vadd.f32 0.0, %v2885
  %v2887 = vpop.f32.mrb[0].mxu0
  %2888 = vdwg.mxu0
  %2889 = vmatprep.subr.mxu0 0.0
  %2890 = vmatpush1.msra.mxu0 %v412
  %2891 = vmatprep.subr.mxu0 0.0
  %2892 = vmatpush1.msra.mxu0 0.0
  %2893 = vmatprep.subr.mxu0 0.0
  %2894 = vmatpush1.msra.mxu0 0.0
  %2895 = vmatprep.subr.mxu0 0.0
  %2896 = vmatpush1.msra.mxu0 0.0
  %2897 = vmatprep.subr.mxu0 0.0
  %2898 = vmatpush1.msra.mxu0 0.0
  %2899 = vmatprep.subr.mxu0 0.0
  %2900 = vmatpush1.msra.mxu0 0.0
  %2901 = vmatprep.subr.mxu0 0.0
  %2902 = vmatpush1.msra.mxu0 0.0
  %2903 = vmatprep.subr.mxu0 0.0
  %2904 = vmatpush1.msra.mxu0 0.0
  %2905 = vmatprep.subr.mxu0 0.0
  %2906 = vmatpush1.msra.mxu0 0.0
  %2907 = vmatprep.subr.mxu0 0.0
  %2908 = vmatpush1.msra.mxu0 0.0
  %2909 = vmatprep.subr.mxu0 0.0
  %2910 = vmatpush1.msra.mxu0 0.0
  %2911 = vmatprep.subr.mxu0 0.0
  %2912 = vmatpush1.msra.mxu0 0.0
  %2913 = vmatprep.subr.mxu0 0.0
  %2914 = vmatpush1.msra.mxu0 0.0
  %2915 = vmatprep.subr.mxu0 0.0
  %2916 = vmatpush1.msra.mxu0 0.0
  %2917 = vmatprep.subr.mxu0 0.0
  %2918 = vmatpush1.msra.mxu0 0.0
  %2919 = vmatprep.subr.mxu0 0.0
  %2920 = vmatpush1.msra.mxu0 0.0
  %2921 = vmatprep.subr.mxu0 0.0
  %2922 = vmatpush1.msra.mxu0 0.0
  %2923 = vmatprep.subr.mxu0 0.0
  %2924 = vmatpush1.msra.mxu0 0.0
  %2925 = vmatprep.subr.mxu0 0.0
  %2926 = vmatpush1.msra.mxu0 0.0
  %2927 = vmatprep.subr.mxu0 0.0
  %2928 = vmatpush1.msra.mxu0 0.0
  %2929 = vmatprep.subr.mxu0 0.0
  %2930 = vmatpush1.msra.mxu0 0.0
  %2931 = vmatprep.subr.mxu0 0.0
  %2932 = vmatpush1.msra.mxu0 0.0
  %2933 = vmatprep.subr.mxu0 0.0
  %2934 = vmatpush1.msra.mxu0 0.0
  %2935 = vmatprep.subr.mxu0 0.0
  %2936 = vmatpush1.msra.mxu0 0.0
  %2937 = vmatprep.subr.mxu0 0.0
  %2938 = vmatpush1.msra.mxu0 0.0
  %2939 = vmatprep.subr.mxu0 0.0
  %2940 = vmatpush1.msra.mxu0 0.0
  %2941 = vmatprep.subr.mxu0 0.0
  %2942 = vmatpush1.msra.mxu0 0.0
  %2943 = vmatprep.subr.mxu0 0.0
  %2944 = vmatpush1.msra.mxu0 0.0
  %2945 = vmatprep.subr.mxu0 0.0
  %2946 = vmatpush1.msra.mxu0 0.0
  %2947 = vmatprep.subr.mxu0 0.0
  %2948 = vmatpush1.msra.mxu0 0.0
  %2949 = vmatprep.subr.mxu0 0.0
  %2950 = vmatpush1.msra.mxu0 0.0
  %2951 = vmatprep.subr.mxu0 0.0
  %2952 = vmatpush1.msra.mxu0 0.0
  %2953 = vmatprep.mubr.f32.mxu0 0.0
  %2954 = vmatmul.mubr.f32.gmra.mrb[0].mxu0 %v2734
  %v2955 = vpop.f32.mrb[0].mxu0
  %v2956 = vadd.f32 0.0, %v2955
  %v2957 = vpop.f32.mrb[0].mxu0
  %2958 = vmatprep.mubr.f32.mxu0 0.0
  %2959 = vmatmul.mubr.f32.gmra.mrb[0].mxu0 %v2737
  %v2960 = vpop.f32.mrb[0].mxu0
  %v2961 = vadd.f32 0.0, %v2960
  %v2962 = vpop.f32.mrb[0].mxu0
  %2963 = vdwg.mxu0
  %s2964 = scalar_lea.vmem %s9, 32
  %v2965 = vld [vmem:[%s2964] sm:$0xff]
  %v2966 = vld [vmem:[%s2964 + $0x8] sm:$0xff]
  %v2967 = vld [vmem:[%s2964 + $0x10] sm:$0xff]
  %v2968 = vld [vmem:[%s2964 + $0x18] sm:$0xff]
  %s2969 = scalar_lea.vmem %s10, 32
  %v2970 = vld [vmem:[%s2969] sm:$0xff]
  %v2971 = vld [vmem:[%s2969 + $0x8] sm:$0xff]
  %v2972 = vld [vmem:[%s2969 + $0x10] sm:$0xff]
  %v2973 = vld [vmem:[%s2969 + $0x18] sm:$0xff]
  %2975 = vset.pattern.permute.xlu0 0
  %2976 = vperm.xlu0 %2975, %v2970
  %v2977 = vpop.permute.xlu0 %2976
  %2980 = vset.pattern.permute.xlu0 0
  %2981 = vperm.xlu0 %2980, %v2971
  %v2982 = vpop.permute.xlu0 %2981
  %2985 = vset.pattern.permute.xlu0 0
  %2986 = vperm.xlu0 %2985, %v2972
  %v2987 = vpop.permute.xlu0 %2986
  %2990 = vset.pattern.permute.xlu0 0
  %2991 = vperm.xlu0 %2990, %v2973
  %v2992 = vpop.permute.xlu0 %2991
  %v2995 = vsel %vm747, %v2965, 0
  %v2998 = vsel %vm747, %v2966, 0
  %v3001 = vsel %vm747, %v2967, 0
  %v3004 = vsel %vm747, %v2968, 0
  %3006 = vmatprep.subr.mxu0 0.0
  %3007 = vmatpush1.msra.mxu0 %v2806
  %3008 = vmatprep.subr.mxu0 0.0
  %3009 = vmatpush1.msra.mxu0 %v2811
  %3010 = vmatprep.subr.mxu0 0.0
  %3011 = vmatpush1.msra.mxu0 %v2881
  %3012 = vmatprep.subr.mxu0 0.0
  %3013 = vmatpush1.msra.mxu0 %v2886
  %3014 = vmatprep.subr.mxu0 0.0
  %3015 = vmatpush1.msra.mxu0 %v2956
  %3016 = vmatprep.subr.mxu0 0.0
  %3017 = vmatpush1.msra.mxu0 %v2961
  %3018 = vmatprep.subr.mxu0 0.0
  %3019 = vmatpush1.msra.mxu0 %v387
  %3020 = vmatprep.subr.mxu0 0.0
  %3021 = vmatpush1.msra.mxu0 %v388
  %3022 = vmatprep.subr.mxu0 0.0
  %3023 = vmatpush1.msra.mxu0 0.0
  %3024 = vmatprep.subr.mxu0 0.0
  %3025 = vmatpush1.msra.mxu0 0.0
  %3026 = vmatprep.subr.mxu0 0.0
  %3027 = vmatpush1.msra.mxu0 0.0
  %3028 = vmatprep.subr.mxu0 0.0
  %3029 = vmatpush1.msra.mxu0 0.0
  %3030 = vmatprep.subr.mxu0 0.0
  %3031 = vmatpush1.msra.mxu0 0.0
  %3032 = vmatprep.subr.mxu0 0.0
  %3033 = vmatpush1.msra.mxu0 0.0
  %3034 = vmatprep.subr.mxu0 0.0
  %3035 = vmatpush1.msra.mxu0 0.0
  %3036 = vmatprep.subr.mxu0 0.0
  %3037 = vmatpush1.msra.mxu0 0.0
  %3038 = vmatprep.subr.mxu0 0.0
  %3039 = vmatpush1.msra.mxu0 0.0
  %3040 = vmatprep.subr.mxu0 0.0
  %3041 = vmatpush1.msra.mxu0 0.0
  %3042 = vmatprep.subr.mxu0 0.0
  %3043 = vmatpush1.msra.mxu0 0.0
  %3044 = vmatprep.subr.mxu0 0.0
  %3045 = vmatpush1.msra.mxu0 0.0
  %3046 = vmatprep.subr.mxu0 0.0
  %3047 = vmatpush1.msra.mxu0 0.0
  %3048 = vmatprep.subr.mxu0 0.0
  %3049 = vmatpush1.msra.mxu0 0.0
  %3050 = vmatprep.subr.mxu0 0.0
  %3051 = vmatpush1.msra.mxu0 0.0
  %3052 = vmatprep.subr.mxu0 0.0
  %3053 = vmatpush1.msra.mxu0 0.0
  %3054 = vmatprep.subr.mxu0 0.0
  %3055 = vmatpush1.msra.mxu0 0.0
  %3056 = vmatprep.subr.mxu0 0.0
  %3057 = vmatpush1.msra.mxu0 0.0
  %3058 = vmatprep.subr.mxu0 0.0
  %3059 = vmatpush1.msra.mxu0 0.0
  %3060 = vmatprep.subr.mxu0 0.0
  %3061 = vmatpush1.msra.mxu0 0.0
  %3062 = vmatprep.subr.mxu0 0.0
  %3063 = vmatpush1.msra.mxu0 0.0
  %3064 = vmatprep.subr.mxu0 0.0
  %3065 = vmatpush1.msra.mxu0 0.0
  %3066 = vmatprep.subr.mxu0 0.0
  %3067 = vmatpush1.msra.mxu0 0.0
  %3068 = vmatprep.subr.mxu0 0.0
  %3069 = vmatpush1.msra.mxu0 0.0
  %3070 = vmatprep.mubr.f32.mxu0 0.0
  %3071 = vmatmul.mubr.f32.gmra.mrb[0].mxu0 %v2995
  %v3072 = vpop.f32.mrb[0].mxu0
  %v3073 = vadd.f32 %v2977, %v3072
  %v3074 = vpop.f32.mrb[0].mxu0
  %3075 = vmatprep.mubr.f32.mxu0 0.0
  %3076 = vmatmul.mubr.f32.gmra.mrb[0].mxu0 %v2998
  %v3077 = vpop.f32.mrb[0].mxu0
  %v3078 = vadd.f32 %v2982, %v3077
  %v3079 = vpop.f32.mrb[0].mxu0
  %3080 = vmatprep.mubr.f32.mxu0 0.0
  %3081 = vmatmul.mubr.f32.gmra.mrb[0].mxu0 %v3001
  %v3082 = vpop.f32.mrb[0].mxu0
  %v3083 = vadd.f32 %v2987, %v3082
  %v3084 = vpop.f32.mrb[0].mxu0
  %3085 = vmatprep.mubr.f32.mxu0 0.0
  %3086 = vmatmul.mubr.f32.gmra.mrb[0].mxu0 %v3004
  %v3087 = vpop.f32.mrb[0].mxu0
  %v3088 = vadd.f32 %v2992, %v3087
  %v3089 = vpop.f32.mrb[0].mxu0
  %3090 = vdwg.mxu0
  %s3091 = scalar_lea.vmem %s11, 32
  %v3092 = vld [vmem:[%s3091] sm:$0xff]
  %v3093 = vld [vmem:[%s3091 + $0x8] sm:$0xff]
  %v3094 = vld [vmem:[%s3091 + $0x10] sm:$0xff]
  %v3095 = vld [vmem:[%s3091 + $0x18] sm:$0xff]
  %s3096 = scalar_lea.vmem %s12, 32
  %v3097 = vld [vmem:[%s3096] sm:$0xff]
  %v3098 = vld [vmem:[%s3096 + $0x8] sm:$0xff]
  %v3099 = vld [vmem:[%s3096 + $0x10] sm:$0xff]
  %v3100 = vld [vmem:[%s3096 + $0x18] sm:$0xff]
  %v3101 = vmul.f32 %v3073, %v450
  %v3102 = vmul.f32 %v3078, %v451
  %v3103 = vmul.f32 %v3083, %v452
  %v3104 = vmul.f32 %v3088, %v453
  %v3106 = vsel %vm162, %v3101, 0
  %v3109 = vsel %vm162, %v3102, 0
  %v3112 = vsel %vm162, %v3103, 0
  %v3115 = vsel %vm162, %v3104, 0
  %3117 = vmatprep.subr.mxu0 0.0
  %3118 = vmatpush1.msra.mxu0 1.0
  %3119 = vmatprep.subr.mxu0 0.0
  %3120 = vmatpush1.msra.mxu0 1.0
  %3121 = vmatprep.subr.mxu0 0.0
  %3122 = vmatpush1.msra.mxu0 0.0
  %3123 = vmatprep.subr.mxu0 0.0
  %3124 = vmatpush1.msra.mxu0 0.0
  %3125 = vmatprep.subr.mxu0 0.0
  %3126 = vmatpush1.msra.mxu0 0.0
  %3127 = vmatprep.subr.mxu0 0.0
  %3128 = vmatpush1.msra.mxu0 0.0
  %3129 = vmatprep.subr.mxu0 0.0
  %3130 = vmatpush1.msra.mxu0 0.0
  %3131 = vmatprep.subr.mxu0 0.0
  %3132 = vmatpush1.msra.mxu0 0.0
  %3133 = vmatprep.subr.mxu0 0.0
  %3134 = vmatpush1.msra.mxu0 0.0
  %3135 = vmatprep.subr.mxu0 0.0
  %3136 = vmatpush1.msra.mxu0 0.0
  %3137 = vmatprep.subr.mxu0 0.0
  %3138 = vmatpush1.msra.mxu0 0.0
  %3139 = vmatprep.subr.mxu0 0.0
  %3140 = vmatpush1.msra.mxu0 0.0
  %3141 = vmatprep.subr.mxu0 0.0
  %3142 = vmatpush1.msra.mxu0 0.0
  %3143 = vmatprep.subr.mxu0 0.0
  %3144 = vmatpush1.msra.mxu0 0.0
  %3145 = vmatprep.subr.mxu0 0.0
  %3146 = vmatpush1.msra.mxu0 0.0
  %3147 = vmatprep.subr.mxu0 0.0
  %3148 = vmatpush1.msra.mxu0 0.0
  %3149 = vmatprep.subr.mxu0 0.0
  %3150 = vmatpush1.msra.mxu0 0.0
  %3151 = vmatprep.subr.mxu0 0.0
  %3152 = vmatpush1.msra.mxu0 0.0
  %3153 = vmatprep.subr.mxu0 0.0
  %3154 = vmatpush1.msra.mxu0 0.0
  %3155 = vmatprep.subr.mxu0 0.0
  %3156 = vmatpush1.msra.mxu0 0.0
  %3157 = vmatprep.subr.mxu0 0.0
  %3158 = vmatpush1.msra.mxu0 0.0
  %3159 = vmatprep.subr.mxu0 0.0
  %3160 = vmatpush1.msra.mxu0 0.0
  %3161 = vmatprep.subr.mxu0 0.0
  %3162 = vmatpush1.msra.mxu0 0.0
  %3163 = vmatprep.subr.mxu0 0.0
  %3164 = vmatpush1.msra.mxu0 0.0
  %3165 = vmatprep.subr.mxu0 0.0
  %3166 = vmatpush1.msra.mxu0 0.0
  %3167 = vmatprep.subr.mxu0 0.0
  %3168 = vmatpush1.msra.mxu0 0.0
  %3169 = vmatprep.subr.mxu0 0.0
  %3170 = vmatpush1.msra.mxu0 0.0
  %3171 = vmatprep.subr.mxu0 0.0
  %3172 = vmatpush1.msra.mxu0 0.0
  %3173 = vmatprep.subr.mxu0 0.0
  %3174 = vmatpush1.msra.mxu0 0.0
  %3175 = vmatprep.subr.mxu0 0.0
  %3176 = vmatpush1.msra.mxu0 0.0
  %3177 = vmatprep.subr.mxu0 0.0
  %3178 = vmatpush1.msra.mxu0 0.0
  %3179 = vmatprep.subr.mxu0 0.0
  %3180 = vmatpush1.msra.mxu0 0.0
  %3181 = vmatprep.mubr.f32.mxu0 0.0
  %3182 = vmatmul.mubr.f32.gmra.mrb[0].mxu0 %v3106
  %v3183 = vpop.f32.mrb[0].mxu0
  %v3184 = vadd.f32 0.0, %v3183
  %v3185 = vpop.f32.mrb[0].mxu0
  %3186 = vmatprep.mubr.f32.mxu0 0.0
  %3187 = vmatmul.mubr.f32.gmra.mrb[0].mxu0 %v3109
  %v3188 = vpop.f32.mrb[0].mxu0
  %v3189 = vadd.f32 0.0, %v3188
  %v3190 = vpop.f32.mrb[0].mxu0
  %3191 = vmatprep.mubr.f32.mxu0 0.0
  %3192 = vmatmul.mubr.f32.gmra.mrb[0].mxu0 %v3112
  %v3193 = vpop.f32.mrb[0].mxu0
  %v3194 = vadd.f32 0.0, %v3193
  %v3195 = vpop.f32.mrb[0].mxu0
  %3196 = vmatprep.mubr.f32.mxu0 0.0
  %3197 = vmatmul.mubr.f32.gmra.mrb[0].mxu0 %v3115
  %v3198 = vpop.f32.mrb[0].mxu0
  %v3199 = vadd.f32 0.0, %v3198
  %v3200 = vpop.f32.mrb[0].mxu0
  %3201 = vdwg.mxu0
  %v3202 = vmul.f32 %v3184, %v476
  %v3203 = vmul.f32 %v3189, %v478
  %v3204 = vmul.f32 %v3194, %v480
  %v3205 = vmul.f32 %v3199, %v482
  %3207 = vset.pattern.permute.xlu0 0
  %3208 = vperm.xlu0 %3207, %v3202
  %v3209 = vpop.permute.xlu0 %3208
  %3212 = vset.pattern.permute.xlu0 0
  %3213 = vperm.xlu0 %3212, %v3203
  %v3214 = vpop.permute.xlu0 %3213
  %3217 = vset.pattern.permute.xlu0 0
  %3218 = vperm.xlu0 %3217, %v3204
  %v3219 = vpop.permute.xlu0 %3218
  %3222 = vset.pattern.permute.xlu0 0
  %3223 = vperm.xlu0 %3222, %v3205
  %v3224 = vpop.permute.xlu0 %3223
  %v3226 = vsub.f32 %v3073, %v3209
  %v3227 = vsub.f32 %v3078, %v3214
  %v3228 = vsub.f32 %v3083, %v3219
  %v3229 = vsub.f32 %v3088, %v3224
  %v3230 = vmul.f32 %v3226, %v3226
  %v3231 = vmul.f32 %v3227, %v3227
  %v3232 = vmul.f32 %v3228, %v3228
  %v3233 = vmul.f32 %v3229, %v3229
  %v3234 = vmul.f32 %v3230, %v450
  %v3235 = vmul.f32 %v3231, %v451
  %v3236 = vmul.f32 %v3232, %v452
  %v3237 = vmul.f32 %v3233, %v453
  %v3239 = vsel %vm162, %v3234, 0
  %v3242 = vsel %vm162, %v3235, 0
  %v3245 = vsel %vm162, %v3236, 0
  %v3248 = vsel %vm162, %v3237, 0
  %3250 = vmatprep.subr.mxu0 0.0
  %3251 = vmatpush1.msra.mxu0 1.0
  %3252 = vmatprep.subr.mxu0 0.0
  %3253 = vmatpush1.msra.mxu0 1.0
  %3254 = vmatprep.subr.mxu0 0.0
  %3255 = vmatpush1.msra.mxu0 0.0
  %3256 = vmatprep.subr.mxu0 0.0
  %3257 = vmatpush1.msra.mxu0 0.0
  %3258 = vmatprep.subr.mxu0 0.0
  %3259 = vmatpush1.msra.mxu0 0.0
  %3260 = vmatprep.subr.mxu0 0.0
  %3261 = vmatpush1.msra.mxu0 0.0
  %3262 = vmatprep.subr.mxu0 0.0
  %3263 = vmatpush1.msra.mxu0 0.0
  %3264 = vmatprep.subr.mxu0 0.0
  %3265 = vmatpush1.msra.mxu0 0.0
  %3266 = vmatprep.subr.mxu0 0.0
  %3267 = vmatpush1.msra.mxu0 0.0
  %3268 = vmatprep.subr.mxu0 0.0
  %3269 = vmatpush1.msra.mxu0 0.0
  %3270 = vmatprep.subr.mxu0 0.0
  %3271 = vmatpush1.msra.mxu0 0.0
  %3272 = vmatprep.subr.mxu0 0.0
  %3273 = vmatpush1.msra.mxu0 0.0
  %3274 = vmatprep.subr.mxu0 0.0
  %3275 = vmatpush1.msra.mxu0 0.0
  %3276 = vmatprep.subr.mxu0 0.0
  %3277 = vmatpush1.msra.mxu0 0.0
  %3278 = vmatprep.subr.mxu0 0.0
  %3279 = vmatpush1.msra.mxu0 0.0
  %3280 = vmatprep.subr.mxu0 0.0
  %3281 = vmatpush1.msra.mxu0 0.0
  %3282 = vmatprep.subr.mxu0 0.0
  %3283 = vmatpush1.msra.mxu0 0.0
  %3284 = vmatprep.subr.mxu0 0.0
  %3285 = vmatpush1.msra.mxu0 0.0
  %3286 = vmatprep.subr.mxu0 0.0
  %3287 = vmatpush1.msra.mxu0 0.0
  %3288 = vmatprep.subr.mxu0 0.0
  %3289 = vmatpush1.msra.mxu0 0.0
  %3290 = vmatprep.subr.mxu0 0.0
  %3291 = vmatpush1.msra.mxu0 0.0
  %3292 = vmatprep.subr.mxu0 0.0
  %3293 = vmatpush1.msra.mxu0 0.0
  %3294 = vmatprep.subr.mxu0 0.0
  %3295 = vmatpush1.msra.mxu0 0.0
  %3296 = vmatprep.subr.mxu0 0.0
  %3297 = vmatpush1.msra.mxu0 0.0
  %3298 = vmatprep.subr.mxu0 0.0
  %3299 = vmatpush1.msra.mxu0 0.0
  %3300 = vmatprep.subr.mxu0 0.0
  %3301 = vmatpush1.msra.mxu0 0.0
  %3302 = vmatprep.subr.mxu0 0.0
  %3303 = vmatpush1.msra.mxu0 0.0
  %3304 = vmatprep.subr.mxu0 0.0
  %3305 = vmatpush1.msra.mxu0 0.0
  %3306 = vmatprep.subr.mxu0 0.0
  %3307 = vmatpush1.msra.mxu0 0.0
  %3308 = vmatprep.subr.mxu0 0.0
  %3309 = vmatpush1.msra.mxu0 0.0
  %3310 = vmatprep.subr.mxu0 0.0
  %3311 = vmatpush1.msra.mxu0 0.0
  %3312 = vmatprep.subr.mxu0 0.0
  %3313 = vmatpush1.msra.mxu0 0.0
  %3314 = vmatprep.mubr.f32.mxu0 0.0
  %3315 = vmatmul.mubr.f32.gmra.mrb[0].mxu0 %v3239
  %v3316 = vpop.f32.mrb[0].mxu0
  %v3317 = vadd.f32 0.0, %v3316
  %v3318 = vpop.f32.mrb[0].mxu0
  %3319 = vmatprep.mubr.f32.mxu0 0.0
  %3320 = vmatmul.mubr.f32.gmra.mrb[0].mxu0 %v3242
  %v3321 = vpop.f32.mrb[0].mxu0
  %v3322 = vadd.f32 0.0, %v3321
  %v3323 = vpop.f32.mrb[0].mxu0
  %3324 = vmatprep.mubr.f32.mxu0 0.0
  %3325 = vmatmul.mubr.f32.gmra.mrb[0].mxu0 %v3245
  %v3326 = vpop.f32.mrb[0].mxu0
  %v3327 = vadd.f32 0.0, %v3326
  %v3328 = vpop.f32.mrb[0].mxu0
  %3329 = vmatprep.mubr.f32.mxu0 0.0
  %3330 = vmatmul.mubr.f32.gmra.mrb[0].mxu0 %v3248
  %v3331 = vpop.f32.mrb[0].mxu0
  %v3332 = vadd.f32 0.0, %v3331
  %v3333 = vpop.f32.mrb[0].mxu0
  %3334 = vdwg.mxu0
  %v3335 = vmul.f32 %v3317, %v476
  %v3336 = vmul.f32 %v3322, %v478
  %v3337 = vmul.f32 %v3327, %v480
  %v3338 = vmul.f32 %v3332, %v482
  %v3339 = vadd.f32 %v3335, 1e-05
  %v3340 = vadd.f32 %v3336, 1e-05
  %v3341 = vadd.f32 %v3337, 1e-05
  %v3342 = vadd.f32 %v3338, 1e-05
  %v3343 = vrsqrt.pop %v3339
  %v3344 = vrsqrt.pop %v3340
  %v3345 = vrsqrt.pop %v3341
  %v3346 = vrsqrt.pop %v3342
  %3348 = vset.pattern.permute.xlu0 0
  %3349 = vperm.xlu0 %3348, %v3343
  %v3350 = vpop.permute.xlu0 %3349
  %3353 = vset.pattern.permute.xlu0 0
  %3354 = vperm.xlu0 %3353, %v3344
  %v3355 = vpop.permute.xlu0 %3354
  %3358 = vset.pattern.permute.xlu0 0
  %3359 = vperm.xlu0 %3358, %v3345
  %v3360 = vpop.permute.xlu0 %3359
  %3363 = vset.pattern.permute.xlu0 0
  %3364 = vperm.xlu0 %3363, %v3346
  %v3365 = vpop.permute.xlu0 %3364
  %v3367 = vmul.f32 %v3226, %v3350
  %v3368 = vmul.f32 %v3227, %v3355
  %v3369 = vmul.f32 %v3228, %v3360
  %v3370 = vmul.f32 %v3229, %v3365
  %3372 = vset.pattern.permute.xlu0 0
  %3373 = vperm.xlu0 %3372, %v3092
  %v3374 = vpop.permute.xlu0 %3373
  %3377 = vset.pattern.permute.xlu0 0
  %3378 = vperm.xlu0 %3377, %v3093
  %v3379 = vpop.permute.xlu0 %3378
  %3382 = vset.pattern.permute.xlu0 0
  %3383 = vperm.xlu0 %3382, %v3094
  %v3384 = vpop.permute.xlu0 %3383
  %3387 = vset.pattern.permute.xlu0 0
  %3388 = vperm.xlu0 %3387, %v3095
  %v3389 = vpop.permute.xlu0 %3388
  %v3391 = vmul.f32 %v3367, %v3374
  %v3392 = vmul.f32 %v3368, %v3379
  %v3393 = vmul.f32 %v3369, %v3384
  %v3394 = vmul.f32 %v3370, %v3389
  %3396 = vset.pattern.permute.xlu0 0
  %3397 = vperm.xlu0 %3396, %v3097
  %v3398 = vpop.permute.xlu0 %3397
  %3401 = vset.pattern.permute.xlu0 0
  %3402 = vperm.xlu0 %3401, %v3098
  %v3403 = vpop.permute.xlu0 %3402
  %3406 = vset.pattern.permute.xlu0 0
  %3407 = vperm.xlu0 %3406, %v3099
  %v3408 = vpop.permute.xlu0 %3407
  %3411 = vset.pattern.permute.xlu0 0
  %3412 = vperm.xlu0 %3411, %v3100
  %v3413 = vpop.permute.xlu0 %3412
  %v3415 = vadd.f32 %v3391, %v3398
  %v3416 = vadd.f32 %v3392, %v3403
  %v3417 = vadd.f32 %v3393, %v3408
  %v3418 = vadd.f32 %v3394, %v3413
  %v3419 = vmax.f32 %v3415, 0.0
  %v3420 = vmax.f32 %v3416, 0.0
  %v3421 = vmax.f32 %v3417, 0.0
  %v3422 = vmax.f32 %v3418, 0.0
  %s3423 = scalar_lea.vmem %s13, 96
  %v3424 = vld [vmem:[%s3423] sm:$0xff]
  %v3425 = vld [vmem:[%s3423 + $0x8] sm:$0xff]
  %v3426 = vld [vmem:[%s3423 + $0x10] sm:$0xff]
  %v3427 = vld [vmem:[%s3423 + $0x18] sm:$0xff]
  %s3428 = scalar_lea.vmem %s14, 96
  %v3429 = vld [vmem:[%s3428] sm:$0xff]
  %v3430 = vld [vmem:[%s3428 + $0x8] sm:$0xff]
  %v3431 = vld [vmem:[%s3428 + $0x10] sm:$0xff]
  %v3432 = vld [vmem:[%s3428 + $0x18] sm:$0xff]
  %3434 = vset.pattern.permute.xlu0 0
  %3435 = vperm.xlu0 %3434, %v3429
  %v3436 = vpop.permute.xlu0 %3435
  %3439 = vset.pattern.permute.xlu0 0
  %3440 = vperm.xlu0 %3439, %v3430
  %v3441 = vpop.permute.xlu0 %3440
  %3444 = vset.pattern.permute.xlu0 0
  %3445 = vperm.xlu0 %3444, %v3431
  %v3446 = vpop.permute.xlu0 %3445
  %3449 = vset.pattern.permute.xlu0 0
  %3450 = vperm.xlu0 %3449, %v3432
  %v3451 = vpop.permute.xlu0 %3450
  %v3454 = vsel %vm1203, %v3424, 0
  %v3457 = vsel %vm1203, %v3425, 0
  %v3460 = vsel %vm1203, %v3426, 0
  %v3463 = vsel %vm1203, %v3427, 0
  %3465 = vmatprep.subr.mxu0 0.0
  %3466 = vmatpush1.msra.mxu0 %v3419
  %3467 = vmatprep.subr.mxu0 0.0
  %3468 = vmatpush1.msra.mxu0 %v3420
  %3469 = vmatprep.subr.mxu0 0.0
  %3470 = vmatpush1.msra.mxu0 %v3421
  %3471 = vmatprep.subr.mxu0 0.0
  %3472 = vmatpush1.msra.mxu0 %v3422
  %3473 = vmatprep.subr.mxu0 0.0
  %3474 = vmatpush1.msra.mxu0 0.0
  %3475 = vmatprep.subr.mxu0 0.0
  %3476 = vmatpush1.msra.mxu0 0.0
  %3477 = vmatprep.subr.mxu0 0.0
  %3478 = vmatpush1.msra.mxu0 0.0
  %3479 = vmatprep.subr.mxu0 0.0
  %3480 = vmatpush1.msra.mxu0 0.0
  %3481 = vmatprep.subr.mxu0 0.0
  %3482 = vmatpush1.msra.mxu0 0.0
  %3483 = vmatprep.subr.mxu0 0.0
  %3484 = vmatpush1.msra.mxu0 0.0
  %3485 = vmatprep.subr.mxu0 0.0
  %3486 = vmatpush1.msra.mxu0 0.0
  %3487 = vmatprep.subr.mxu0 0.0
  %3488 = vmatpush1.msra.mxu0 0.0
  %3489 = vmatprep.subr.mxu0 0.0
  %3490 = vmatpush1.msra.mxu0 0.0
  %3491 = vmatprep.subr.mxu0 0.0
  %3492 = vmatpush1.msra.mxu0 0.0
  %3493 = vmatprep.subr.mxu0 0.0
  %3494 = vmatpush1.msra.mxu0 0.0
  %3495 = vmatprep.subr.mxu0 0.0
  %3496 = vmatpush1.msra.mxu0 0.0
  %3497 = vmatprep.subr.mxu0 0.0
  %3498 = vmatpush1.msra.mxu0 0.0
  %3499 = vmatprep.subr.mxu0 0.0
  %3500 = vmatpush1.msra.mxu0 0.0
  %3501 = vmatprep.subr.mxu0 0.0
  %3502 = vmatpush1.msra.mxu0 0.0
  %3503 = vmatprep.subr.mxu0 0.0
  %3504 = vmatpush1.msra.mxu0 0.0
  %3505 = vmatprep.subr.mxu0 0.0
  %3506 = vmatpush1.msra.mxu0 0.0
  %3507 = vmatprep.subr.mxu0 0.0
  %3508 = vmatpush1.msra.mxu0 0.0
  %3509 = vmatprep.subr.mxu0 0.0
  %3510 = vmatpush1.msra.mxu0 0.0
  %3511 = vmatprep.subr.mxu0 0.0
  %3512 = vmatpush1.msra.mxu0 0.0
  %3513 = vmatprep.subr.mxu0 0.0
  %3514 = vmatpush1.msra.mxu0 0.0
  %3515 = vmatprep.subr.mxu0 0.0
  %3516 = vmatpush1.msra.mxu0 0.0
  %3517 = vmatprep.subr.mxu0 0.0
  %3518 = vmatpush1.msra.mxu0 0.0
  %3519 = vmatprep.subr.mxu0 0.0
  %3520 = vmatpush1.msra.mxu0 0.0
  %3521 = vmatprep.subr.mxu0 0.0
  %3522 = vmatpush1.msra.mxu0 0.0
  %3523 = vmatprep.subr.mxu0 0.0
  %3524 = vmatpush1.msra.mxu0 0.0
  %3525 = vmatprep.subr.mxu0 0.0
  %3526 = vmatpush1.msra.mxu0 0.0
  %3527 = vmatprep.subr.mxu0 0.0
  %3528 = vmatpush1.msra.mxu0 0.0
  %3529 = vmatprep.mubr.f32.mxu0 0.0
  %3530 = vmatmul.mubr.f32.gmra.mrb[0].mxu0 %v3454
  %v3531 = vpop.f32.mrb[0].mxu0
  %v3532 = vadd.f32 %v3436, %v3531
  %v3533 = vpop.f32.mrb[0].mxu0
  %3534 = vmatprep.mubr.f32.mxu0 0.0
  %3535 = vmatmul.mubr.f32.gmra.mrb[0].mxu0 %v3457
  %v3536 = vpop.f32.mrb[0].mxu0
  %v3537 = vadd.f32 %v3441, %v3536
  %v3538 = vpop.f32.mrb[0].mxu0
  %3539 = vmatprep.mubr.f32.mxu0 0.0
  %3540 = vmatmul.mubr.f32.gmra.mrb[0].mxu0 %v3460
  %v3541 = vpop.f32.mrb[0].mxu0
  %v3542 = vadd.f32 %v3446, %v3541
  %v3543 = vpop.f32.mrb[0].mxu0
  %3544 = vmatprep.mubr.f32.mxu0 0.0
  %3545 = vmatmul.mubr.f32.gmra.mrb[0].mxu0 %v3463
  %v3546 = vpop.f32.mrb[0].mxu0
  %v3547 = vadd.f32 %v3451, %v3546
  %v3548 = vpop.f32.mrb[0].mxu0
  %3549 = vdwg.mxu0
  %s3550 = scalar_lea.vmem %s15, 96
  %v3551 = vld [vmem:[%s3550] sm:$0xff]
  %v3552 = vld [vmem:[%s3550 + $0x8] sm:$0xff]
  %v3553 = vld [vmem:[%s3550 + $0x10] sm:$0xff]
  %v3554 = vld [vmem:[%s3550 + $0x18] sm:$0xff]
  %s3555 = scalar_lea.vmem %s16, 96
  %v3556 = vld [vmem:[%s3555] sm:$0xff]
  %v3557 = vld [vmem:[%s3555 + $0x8] sm:$0xff]
  %v3558 = vld [vmem:[%s3555 + $0x10] sm:$0xff]
  %v3559 = vld [vmem:[%s3555 + $0x18] sm:$0xff]
  %v3560 = vmul.f32 %v3532, %v450
  %v3561 = vmul.f32 %v3537, %v451
  %v3562 = vmul.f32 %v3542, %v452
  %v3563 = vmul.f32 %v3547, %v453
  %v3565 = vsel %vm162, %v3560, 0
  %v3568 = vsel %vm162, %v3561, 0
  %v3571 = vsel %vm162, %v3562, 0
  %v3574 = vsel %vm162, %v3563, 0
  %3576 = vmatprep.subr.mxu0 0.0
  %3577 = vmatpush1.msra.mxu0 1.0
  %3578 = vmatprep.subr.mxu0 0.0
  %3579 = vmatpush1.msra.mxu0 1.0
  %3580 = vmatprep.subr.mxu0 0.0
  %3581 = vmatpush1.msra.mxu0 0.0
  %3582 = vmatprep.subr.mxu0 0.0
  %3583 = vmatpush1.msra.mxu0 0.0
  %3584 = vmatprep.subr.mxu0 0.0
  %3585 = vmatpush1.msra.mxu0 0.0
  %3586 = vmatprep.subr.mxu0 0.0
  %3587 = vmatpush1.msra.mxu0 0.0
  %3588 = vmatprep.subr.mxu0 0.0
  %3589 = vmatpush1.msra.mxu0 0.0
  %3590 = vmatprep.subr.mxu0 0.0
  %3591 = vmatpush1.msra.mxu0 0.0
  %3592 = vmatprep.subr.mxu0 0.0
  %3593 = vmatpush1.msra.mxu0 0.0
  %3594 = vmatprep.subr.mxu0 0.0
  %3595 = vmatpush1.msra.mxu0 0.0
  %3596 = vmatprep.subr.mxu0 0.0
  %3597 = vmatpush1.msra.mxu0 0.0
  %3598 = vmatprep.subr.mxu0 0.0
  %3599 = vmatpush1.msra.mxu0 0.0
  %3600 = vmatprep.subr.mxu0 0.0
  %3601 = vmatpush1.msra.mxu0 0.0
  %3602 = vmatprep.subr.mxu0 0.0
  %3603 = vmatpush1.msra.mxu0 0.0
  %3604 = vmatprep.subr.mxu0 0.0
  %3605 = vmatpush1.msra.mxu0 0.0
  %3606 = vmatprep.subr.mxu0 0.0
  %3607 = vmatpush1.msra.mxu0 0.0
  %3608 = vmatprep.subr.mxu0 0.0
  %3609 = vmatpush1.msra.mxu0 0.0
  %3610 = vmatprep.subr.mxu0 0.0
  %3611 = vmatpush1.msra.mxu0 0.0
  %3612 = vmatprep.subr.mxu0 0.0
  %3613 = vmatpush1.msra.mxu0 0.0
  %3614 = vmatprep.subr.mxu0 0.0
  %3615 = vmatpush1.msra.mxu0 0.0
  %3616 = vmatprep.subr.mxu0 0.0
  %3617 = vmatpush1.msra.mxu0 0.0
  %3618 = vmatprep.subr.mxu0 0.0
  %3619 = vmatpush1.msra.mxu0 0.0
  %3620 = vmatprep.subr.mxu0 0.0
  %3621 = vmatpush1.msra.mxu0 0.0
  %3622 = vmatprep.subr.mxu0 0.0
  %3623 = vmatpush1.msra.mxu0 0.0
  %3624 = vmatprep.subr.mxu0 0.0
  %3625 = vmatpush1.msra.mxu0 0.0
  %3626 = vmatprep.subr.mxu0 0.0
  %3627 = vmatpush1.msra.mxu0 0.0
  %3628 = vmatprep.subr.mxu0 0.0
  %3629 = vmatpush1.msra.mxu0 0.0
  %3630 = vmatprep.subr.mxu0 0.0
  %3631 = vmatpush1.msra.mxu0 0.0
  %3632 = vmatprep.subr.mxu0 0.0
  %3633 = vmatpush1.msra.mxu0 0.0
  %3634 = vmatprep.subr.mxu0 0.0
  %3635 = vmatpush1.msra.mxu0 0.0
  %3636 = vmatprep.subr.mxu0 0.0
  %3637 = vmatpush1.msra.mxu0 0.0
  %3638 = vmatprep.subr.mxu0 0.0
  %3639 = vmatpush1.msra.mxu0 0.0
  %3640 = vmatprep.mubr.f32.mxu0 0.0
  %3641 = vmatmul.mubr.f32.gmra.mrb[0].mxu0 %v3565
  %v3642 = vpop.f32.mrb[0].mxu0
  %v3643 = vadd.f32 0.0, %v3642
  %v3644 = vpop.f32.mrb[0].mxu0
  %3645 = vmatprep.mubr.f32.mxu0 0.0
  %3646 = vmatmul.mubr.f32.gmra.mrb[0].mxu0 %v3568
  %v3647 = vpop.f32.mrb[0].mxu0
  %v3648 = vadd.f32 0.0, %v3647
  %v3649 = vpop.f32.mrb[0].mxu0
  %3650 = vmatprep.mubr.f32.mxu0 0.0
  %3651 = vmatmul.mubr.f32.gmra.mrb[0].mxu0 %v3571
  %v3652 = vpop.f32.mrb[0].mxu0
  %v3653 = vadd.f32 0.0, %v3652
  %v3654 = vpop.f32.mrb[0].mxu0
  %3655 = vmatprep.mubr.f32.mxu0 0.0
  %3656 = vmatmul.mubr.f32.gmra.mrb[0].mxu0 %v3574
  %v3657 = vpop.f32.mrb[0].mxu0
  %v3658 = vadd.f32 0.0, %v3657
  %v3659 = vpop.f32.mrb[0].mxu0
  %3660 = vdwg.mxu0
  %v3661 = vmul.f32 %v3643, %v476
  %v3662 = vmul.f32 %v3648, %v478
  %v3663 = vmul.f32 %v3653, %v480
  %v3664 = vmul.f32 %v3658, %v482
  %3666 = vset.pattern.permute.xlu0 0
  %3667 = vperm.xlu0 %3666, %v3661
  %v3668 = vpop.permute.xlu0 %3667
  %3671 = vset.pattern.permute.xlu0 0
  %3672 = vperm.xlu0 %3671, %v3662
  %v3673 = vpop.permute.xlu0 %3672
  %3676 = vset.pattern.permute.xlu0 0
  %3677 = vperm.xlu0 %3676, %v3663
  %v3678 = vpop.permute.xlu0 %3677
  %3681 = vset.pattern.permute.xlu0 0
  %3682 = vperm.xlu0 %3681, %v3664
  %v3683 = vpop.permute.xlu0 %3682
  %v3685 = vsub.f32 %v3532, %v3668
  %v3686 = vsub.f32 %v3537, %v3673
  %v3687 = vsub.f32 %v3542, %v3678
  %v3688 = vsub.f32 %v3547, %v3683
  %v3689 = vmul.f32 %v3685, %v3685
  %v3690 = vmul.f32 %v3686, %v3686
  %v3691 = vmul.f32 %v3687, %v3687
  %v3692 = vmul.f32 %v3688, %v3688
  %v3693 = vmul.f32 %v3689, %v450
  %v3694 = vmul.f32 %v3690, %v451
  %v3695 = vmul.f32 %v3691, %v452
  %v3696 = vmul.f32 %v3692, %v453
  %v3698 = vsel %vm162, %v3693, 0
  %v3701 = vsel %vm162, %v3694, 0
  %v3704 = vsel %vm162, %v3695, 0
  %v3707 = vsel %vm162, %v3696, 0
  %3709 = vmatprep.subr.mxu0 0.0
  %3710 = vmatpush1.msra.mxu0 1.0
  %3711 = vmatprep.subr.mxu0 0.0
  %3712 = vmatpush1.msra.mxu0 1.0
  %3713 = vmatprep.subr.mxu0 0.0
  %3714 = vmatpush1.msra.mxu0 0.0
  %3715 = vmatprep.subr.mxu0 0.0
  %3716 = vmatpush1.msra.mxu0 0.0
  %3717 = vmatprep.subr.mxu0 0.0
  %3718 = vmatpush1.msra.mxu0 0.0
  %3719 = vmatprep.subr.mxu0 0.0
  %3720 = vmatpush1.msra.mxu0 0.0
  %3721 = vmatprep.subr.mxu0 0.0
  %3722 = vmatpush1.msra.mxu0 0.0
  %3723 = vmatprep.subr.mxu0 0.0
  %3724 = vmatpush1.msra.mxu0 0.0
  %3725 = vmatprep.subr.mxu0 0.0
  %3726 = vmatpush1.msra.mxu0 0.0
  %3727 = vmatprep.subr.mxu0 0.0
  %3728 = vmatpush1.msra.mxu0 0.0
  %3729 = vmatprep.subr.mxu0 0.0
  %3730 = vmatpush1.msra.mxu0 0.0
  %3731 = vmatprep.subr.mxu0 0.0
  %3732 = vmatpush1.msra.mxu0 0.0
  %3733 = vmatprep.subr.mxu0 0.0
  %3734 = vmatpush1.msra.mxu0 0.0
  %3735 = vmatprep.subr.mxu0 0.0
  %3736 = vmatpush1.msra.mxu0 0.0
  %3737 = vmatprep.subr.mxu0 0.0
  %3738 = vmatpush1.msra.mxu0 0.0
  %3739 = vmatprep.subr.mxu0 0.0
  %3740 = vmatpush1.msra.mxu0 0.0
  %3741 = vmatprep.subr.mxu0 0.0
  %3742 = vmatpush1.msra.mxu0 0.0
  %3743 = vmatprep.subr.mxu0 0.0
  %3744 = vmatpush1.msra.mxu0 0.0
  %3745 = vmatprep.subr.mxu0 0.0
  %3746 = vmatpush1.msra.mxu0 0.0
  %3747 = vmatprep.subr.mxu0 0.0
  %3748 = vmatpush1.msra.mxu0 0.0
  %3749 = vmatprep.subr.mxu0 0.0
  %3750 = vmatpush1.msra.mxu0 0.0
  %3751 = vmatprep.subr.mxu0 0.0
  %3752 = vmatpush1.msra.mxu0 0.0
  %3753 = vmatprep.subr.mxu0 0.0
  %3754 = vmatpush1.msra.mxu0 0.0
  %3755 = vmatprep.subr.mxu0 0.0
  %3756 = vmatpush1.msra.mxu0 0.0
  %3757 = vmatprep.subr.mxu0 0.0
  %3758 = vmatpush1.msra.mxu0 0.0
  %3759 = vmatprep.subr.mxu0 0.0
  %3760 = vmatpush1.msra.mxu0 0.0
  %3761 = vmatprep.subr.mxu0 0.0
  %3762 = vmatpush1.msra.mxu0 0.0
  %3763 = vmatprep.subr.mxu0 0.0
  %3764 = vmatpush1.msra.mxu0 0.0
  %3765 = vmatprep.subr.mxu0 0.0
  %3766 = vmatpush1.msra.mxu0 0.0
  %3767 = vmatprep.subr.mxu0 0.0
  %3768 = vmatpush1.msra.mxu0 0.0
  %3769 = vmatprep.subr.mxu0 0.0
  %3770 = vmatpush1.msra.mxu0 0.0
  %3771 = vmatprep.subr.mxu0 0.0
  %3772 = vmatpush1.msra.mxu0 0.0
  %3773 = vmatprep.mubr.f32.mxu0 0.0
  %3774 = vmatmul.mubr.f32.gmra.mrb[0].mxu0 %v3698
  %v3775 = vpop.f32.mrb[0].mxu0
  %v3776 = vadd.f32 0.0, %v3775
  %v3777 = vpop.f32.mrb[0].mxu0
  %3778 = vmatprep.mubr.f32.mxu0 0.0
  %3779 = vmatmul.mubr.f32.gmra.mrb[0].mxu0 %v3701
  %v3780 = vpop.f32.mrb[0].mxu0
  %v3781 = vadd.f32 0.0, %v3780
  %v3782 = vpop.f32.mrb[0].mxu0
  %3783 = vmatprep.mubr.f32.mxu0 0.0
  %3784 = vmatmul.mubr.f32.gmra.mrb[0].mxu0 %v3704
  %v3785 = vpop.f32.mrb[0].mxu0
  %v3786 = vadd.f32 0.0, %v3785
  %v3787 = vpop.f32.mrb[0].mxu0
  %3788 = vmatprep.mubr.f32.mxu0 0.0
  %3789 = vmatmul.mubr.f32.gmra.mrb[0].mxu0 %v3707
  %v3790 = vpop.f32.mrb[0].mxu0
  %v3791 = vadd.f32 0.0, %v3790
  %v3792 = vpop.f32.mrb[0].mxu0
  %3793 = vdwg.mxu0
  %v3794 = vmul.f32 %v3776, %v476
  %v3795 = vmul.f32 %v3781, %v478
  %v3796 = vmul.f32 %v3786, %v480
  %v3797 = vmul.f32 %v3791, %v482
  %v3798 = vadd.f32 %v3794, 1e-05
  %v3799 = vadd.f32 %v3795, 1e-05
  %v3800 = vadd.f32 %v3796, 1e-05
  %v3801 = vadd.f32 %v3797, 1e-05
  %v3802 = vrsqrt.pop %v3798
  %v3803 = vrsqrt.pop %v3799
  %v3804 = vrsqrt.pop %v3800
  %v3805 = vrsqrt.pop %v3801
  %3807 = vset.pattern.permute.xlu0 0
  %3808 = vperm.xlu0 %3807, %v3802
  %v3809 = vpop.permute.xlu0 %3808
  %3812 = vset.pattern.permute.xlu0 0
  %3813 = vperm.xlu0 %3812, %v3803
  %v3814 = vpop.permute.xlu0 %3813
  %3817 = vset.pattern.permute.xlu0 0
  %3818 = vperm.xlu0 %3817, %v3804
  %v3819 = vpop.permute.xlu0 %3818
  %3822 = vset.pattern.permute.xlu0 0
  %3823 = vperm.xlu0 %3822, %v3805
  %v3824 = vpop.permute.xlu0 %3823
  %v3826 = vmul.f32 %v3685, %v3809
  %v3827 = vmul.f32 %v3686, %v3814
  %v3828 = vmul.f32 %v3687, %v3819
  %v3829 = vmul.f32 %v3688, %v3824
  %3831 = vset.pattern.permute.xlu0 0
  %3832 = vperm.xlu0 %3831, %v3551
  %v3833 = vpop.permute.xlu0 %3832
  %3836 = vset.pattern.permute.xlu0 0
  %3837 = vperm.xlu0 %3836, %v3552
  %v3838 = vpop.permute.xlu0 %3837
  %3841 = vset.pattern.permute.xlu0 0
  %3842 = vperm.xlu0 %3841, %v3553
  %v3843 = vpop.permute.xlu0 %3842
  %3846 = vset.pattern.permute.xlu0 0
  %3847 = vperm.xlu0 %3846, %v3554
  %v3848 = vpop.permute.xlu0 %3847
  %v3850 = vmul.f32 %v3826, %v3833
  %v3851 = vmul.f32 %v3827, %v3838
  %v3852 = vmul.f32 %v3828, %v3843
  %v3853 = vmul.f32 %v3829, %v3848
  %3855 = vset.pattern.permute.xlu0 0
  %3856 = vperm.xlu0 %3855, %v3556
  %v3857 = vpop.permute.xlu0 %3856
  %3860 = vset.pattern.permute.xlu0 0
  %3861 = vperm.xlu0 %3860, %v3557
  %v3862 = vpop.permute.xlu0 %3861
  %3865 = vset.pattern.permute.xlu0 0
  %3866 = vperm.xlu0 %3865, %v3558
  %v3867 = vpop.permute.xlu0 %3866
  %3870 = vset.pattern.permute.xlu0 0
  %3871 = vperm.xlu0 %3870, %v3559
  %v3872 = vpop.permute.xlu0 %3871
  %v3874 = vadd.f32 %v3850, %v3857
  %v3875 = vadd.f32 %v3851, %v3862
  %v3876 = vadd.f32 %v3852, %v3867
  %v3877 = vadd.f32 %v3853, %v3872
  %v3878 = vmax.f32 %v3874, 0.0
  %v3879 = vmax.f32 %v3875, 0.0
  %v3880 = vmax.f32 %v3876, 0.0
  %v3881 = vmax.f32 %v3877, 0.0
  %s3882 = scalar_lea.vmem %s13, 128
  %v3883 = vld [vmem:[%s3882] sm:$0xff]
  %v3884 = vld [vmem:[%s3882 + $0x8] sm:$0xff]
  %v3885 = vld [vmem:[%s3882 + $0x10] sm:$0xff]
  %v3886 = vld [vmem:[%s3882 + $0x18] sm:$0xff]
  %s3887 = scalar_lea.vmem %s14, 128
  %v3888 = vld [vmem:[%s3887] sm:$0xff]
  %v3889 = vld [vmem:[%s3887 + $0x8] sm:$0xff]
  %v3890 = vld [vmem:[%s3887 + $0x10] sm:$0xff]
  %v3891 = vld [vmem:[%s3887 + $0x18] sm:$0xff]
  %3893 = vset.pattern.permute.xlu0 0
  %3894 = vperm.xlu0 %3893, %v3888
  %v3895 = vpop.permute.xlu0 %3894
  %3898 = vset.pattern.permute.xlu0 0
  %3899 = vperm.xlu0 %3898, %v3889
  %v3900 = vpop.permute.xlu0 %3899
  %3903 = vset.pattern.permute.xlu0 0
  %3904 = vperm.xlu0 %3903, %v3890
  %v3905 = vpop.permute.xlu0 %3904
  %3908 = vset.pattern.permute.xlu0 0
  %3909 = vperm.xlu0 %3908, %v3891
  %v3910 = vpop.permute.xlu0 %3909
  %v3913 = vsel %vm1203, %v3883, 0
  %v3916 = vsel %vm1203, %v3884, 0
  %v3919 = vsel %vm1203, %v3885, 0
  %v3922 = vsel %vm1203, %v3886, 0
  %3924 = vmatprep.subr.mxu0 0.0
  %3925 = vmatpush1.msra.mxu0 %v3878
  %3926 = vmatprep.subr.mxu0 0.0
  %3927 = vmatpush1.msra.mxu0 %v3879
  %3928 = vmatprep.subr.mxu0 0.0
  %3929 = vmatpush1.msra.mxu0 %v3880
  %3930 = vmatprep.subr.mxu0 0.0
  %3931 = vmatpush1.msra.mxu0 %v3881
  %3932 = vmatprep.subr.mxu0 0.0
  %3933 = vmatpush1.msra.mxu0 0.0
  %3934 = vmatprep.subr.mxu0 0.0
  %3935 = vmatpush1.msra.mxu0 0.0
  %3936 = vmatprep.subr.mxu0 0.0
  %3937 = vmatpush1.msra.mxu0 0.0
  %3938 = vmatprep.subr.mxu0 0.0
  %3939 = vmatpush1.msra.mxu0 0.0
  %3940 = vmatprep.subr.mxu0 0.0
  %3941 = vmatpush1.msra.mxu0 0.0
  %3942 = vmatprep.subr.mxu0 0.0
  %3943 = vmatpush1.msra.mxu0 0.0
  %3944 = vmatprep.subr.mxu0 0.0
  %3945 = vmatpush1.msra.mxu0 0.0
  %3946 = vmatprep.subr.mxu0 0.0
  %3947 = vmatpush1.msra.mxu0 0.0
  %3948 = vmatprep.subr.mxu0 0.0
  %3949 = vmatpush1.msra.mxu0 0.0
  %3950 = vmatprep.subr.mxu0 0.0
  %3951 = vmatpush1.msra.mxu0 0.0
  %3952 = vmatprep.subr.mxu0 0.0
  %3953 = vmatpush1.msra.mxu0 0.0
  %3954 = vmatprep.subr.mxu0 0.0
  %3955 = vmatpush1.msra.mxu0 0.0
  %3956 = vmatprep.subr.mxu0 0.0
  %3957 = vmatpush1.msra.mxu0 0.0
  %3958 = vmatprep.subr.mxu0 0.0
  %3959 = vmatpush1.msra.mxu0 0.0
  %3960 = vmatprep.subr.mxu0 0.0
  %3961 = vmatpush1.msra.mxu0 0.0
  %3962 = vmatprep.subr.mxu0 0.0
  %3963 = vmatpush1.msra.mxu0 0.0
  %3964 = vmatprep.subr.mxu0 0.0
  %3965 = vmatpush1.msra.mxu0 0.0
  %3966 = vmatprep.subr.mxu0 0.0
  %3967 = vmatpush1.msra.mxu0 0.0
  %3968 = vmatprep.subr.mxu0 0.0
  %3969 = vmatpush1.msra.mxu0 0.0
  %3970 = vmatprep.subr.mxu0 0.0
  %3971 = vmatpush1.msra.mxu0 0.0
  %3972 = vmatprep.subr.mxu0 0.0
  %3973 = vmatpush1.msra.mxu0 0.0
  %3974 = vmatprep.subr.mxu0 0.0
  %3975 = vmatpush1.msra.mxu0 0.0
  %3976 = vmatprep.subr.mxu0 0.0
  %3977 = vmatpush1.msra.mxu0 0.0
  %3978 = vmatprep.subr.mxu0 0.0
  %3979 = vmatpush1.msra.mxu0 0.0
  %3980 = vmatprep.subr.mxu0 0.0
  %3981 = vmatpush1.msra.mxu0 0.0
  %3982 = vmatprep.subr.mxu0 0.0
  %3983 = vmatpush1.msra.mxu0 0.0
  %3984 = vmatprep.subr.mxu0 0.0
  %3985 = vmatpush1.msra.mxu0 0.0
  %3986 = vmatprep.subr.mxu0 0.0
  %3987 = vmatpush1.msra.mxu0 0.0
  %3988 = vmatprep.mubr.f32.mxu0 0.0
  %3989 = vmatmul.mubr.f32.gmra.mrb[0].mxu0 %v3913
  %v3990 = vpop.f32.mrb[0].mxu0
  %v3991 = vadd.f32 %v3895, %v3990
  %v3992 = vpop.f32.mrb[0].mxu0
  %3993 = vmatprep.mubr.f32.mxu0 0.0
  %3994 = vmatmul.mubr.f32.gmra.mrb[0].mxu0 %v3916
  %v3995 = vpop.f32.mrb[0].mxu0
  %v3996 = vadd.f32 %v3900, %v3995
  %v3997 = vpop.f32.mrb[0].mxu0
  %3998 = vmatprep.mubr.f32.mxu0 0.0
  %3999 = vmatmul.mubr.f32.gmra.mrb[0].mxu0 %v3919
  %v4000 = vpop.f32.mrb[0].mxu0
  %v4001 = vadd.f32 %v3905, %v4000
  %v4002 = vpop.f32.mrb[0].mxu0
  %4003 = vmatprep.mubr.f32.mxu0 0.0
  %4004 = vmatmul.mubr.f32.gmra.mrb[0].mxu0 %v3922
  %v4005 = vpop.f32.mrb[0].mxu0
  %v4006 = vadd.f32 %v3910, %v4005
  %v4007 = vpop.f32.mrb[0].mxu0
  %4008 = vdwg.mxu0
  %s4009 = scalar_lea.vmem %s15, 128
  %v4010 = vld [vmem:[%s4009] sm:$0xff]
  %v4011 = vld [vmem:[%s4009 + $0x8] sm:$0xff]
  %v4012 = vld [vmem:[%s4009 + $0x10] sm:$0xff]
  %v4013 = vld [vmem:[%s4009 + $0x18] sm:$0xff]
  %s4014 = scalar_lea.vmem %s16, 128
  %v4015 = vld [vmem:[%s4014] sm:$0xff]
  %v4016 = vld [vmem:[%s4014 + $0x8] sm:$0xff]
  %v4017 = vld [vmem:[%s4014 + $0x10] sm:$0xff]
  %v4018 = vld [vmem:[%s4014 + $0x18] sm:$0xff]
  %v4019 = vmul.f32 %v3991, %v450
  %v4020 = vmul.f32 %v3996, %v451
  %v4021 = vmul.f32 %v4001, %v452
  %v4022 = vmul.f32 %v4006, %v453
  %v4024 = vsel %vm162, %v4019, 0
  %v4027 = vsel %vm162, %v4020, 0
  %v4030 = vsel %vm162, %v4021, 0
  %v4033 = vsel %vm162, %v4022, 0
  %4035 = vmatprep.subr.mxu0 0.0
  %4036 = vmatpush1.msra.mxu0 1.0
  %4037 = vmatprep.subr.mxu0 0.0
  %4038 = vmatpush1.msra.mxu0 1.0
  %4039 = vmatprep.subr.mxu0 0.0
  %4040 = vmatpush1.msra.mxu0 0.0
  %4041 = vmatprep.subr.mxu0 0.0
  %4042 = vmatpush1.msra.mxu0 0.0
  %4043 = vmatprep.subr.mxu0 0.0
  %4044 = vmatpush1.msra.mxu0 0.0
  %4045 = vmatprep.subr.mxu0 0.0
  %4046 = vmatpush1.msra.mxu0 0.0
  %4047 = vmatprep.subr.mxu0 0.0
  %4048 = vmatpush1.msra.mxu0 0.0
  %4049 = vmatprep.subr.mxu0 0.0
  %4050 = vmatpush1.msra.mxu0 0.0
  %4051 = vmatprep.subr.mxu0 0.0
  %4052 = vmatpush1.msra.mxu0 0.0
  %4053 = vmatprep.subr.mxu0 0.0
  %4054 = vmatpush1.msra.mxu0 0.0
  %4055 = vmatprep.subr.mxu0 0.0
  %4056 = vmatpush1.msra.mxu0 0.0
  %4057 = vmatprep.subr.mxu0 0.0
  %4058 = vmatpush1.msra.mxu0 0.0
  %4059 = vmatprep.subr.mxu0 0.0
  %4060 = vmatpush1.msra.mxu0 0.0
  %4061 = vmatprep.subr.mxu0 0.0
  %4062 = vmatpush1.msra.mxu0 0.0
  %4063 = vmatprep.subr.mxu0 0.0
  %4064 = vmatpush1.msra.mxu0 0.0
  %4065 = vmatprep.subr.mxu0 0.0
  %4066 = vmatpush1.msra.mxu0 0.0
  %4067 = vmatprep.subr.mxu0 0.0
  %4068 = vmatpush1.msra.mxu0 0.0
  %4069 = vmatprep.subr.mxu0 0.0
  %4070 = vmatpush1.msra.mxu0 0.0
  %4071 = vmatprep.subr.mxu0 0.0
  %4072 = vmatpush1.msra.mxu0 0.0
  %4073 = vmatprep.subr.mxu0 0.0
  %4074 = vmatpush1.msra.mxu0 0.0
  %4075 = vmatprep.subr.mxu0 0.0
  %4076 = vmatpush1.msra.mxu0 0.0
  %4077 = vmatprep.subr.mxu0 0.0
  %4078 = vmatpush1.msra.mxu0 0.0
  %4079 = vmatprep.subr.mxu0 0.0
  %4080 = vmatpush1.msra.mxu0 0.0
  %4081 = vmatprep.subr.mxu0 0.0
  %4082 = vmatpush1.msra.mxu0 0.0
  %4083 = vmatprep.subr.mxu0 0.0
  %4084 = vmatpush1.msra.mxu0 0.0
  %4085 = vmatprep.subr.mxu0 0.0
  %4086 = vmatpush1.msra.mxu0 0.0
  %4087 = vmatprep.subr.mxu0 0.0
  %4088 = vmatpush1.msra.mxu0 0.0
  %4089 = vmatprep.subr.mxu0 0.0
  %4090 = vmatpush1.msra.mxu0 0.0
  %4091 = vmatprep.subr.mxu0 0.0
  %4092 = vmatpush1.msra.mxu0 0.0
  %4093 = vmatprep.subr.mxu0 0.0
  %4094 = vmatpush1.msra.mxu0 0.0
  %4095 = vmatprep.subr.mxu0 0.0
  %4096 = vmatpush1.msra.mxu0 0.0
  %4097 = vmatprep.subr.mxu0 0.0
  %4098 = vmatpush1.msra.mxu0 0.0
  %4099 = vmatprep.mubr.f32.mxu0 0.0
  %4100 = vmatmul.mubr.f32.gmra.mrb[0].mxu0 %v4024
  %v4101 = vpop.f32.mrb[0].mxu0
  %v4102 = vadd.f32 0.0, %v4101
  %v4103 = vpop.f32.mrb[0].mxu0
  %4104 = vmatprep.mubr.f32.mxu0 0.0
  %4105 = vmatmul.mubr.f32.gmra.mrb[0].mxu0 %v4027
  %v4106 = vpop.f32.mrb[0].mxu0
  %v4107 = vadd.f32 0.0, %v4106
  %v4108 = vpop.f32.mrb[0].mxu0
  %4109 = vmatprep.mubr.f32.mxu0 0.0
  %4110 = vmatmul.mubr.f32.gmra.mrb[0].mxu0 %v4030
  %v4111 = vpop.f32.mrb[0].mxu0
  %v4112 = vadd.f32 0.0, %v4111
  %v4113 = vpop.f32.mrb[0].mxu0
  %4114 = vmatprep.mubr.f32.mxu0 0.0
  %4115 = vmatmul.mubr.f32.gmra.mrb[0].mxu0 %v4033
  %v4116 = vpop.f32.mrb[0].mxu0
  %v4117 = vadd.f32 0.0, %v4116
  %v4118 = vpop.f32.mrb[0].mxu0
  %4119 = vdwg.mxu0
  %v4120 = vmul.f32 %v4102, %v476
  %v4121 = vmul.f32 %v4107, %v478
  %v4122 = vmul.f32 %v4112, %v480
  %v4123 = vmul.f32 %v4117, %v482
  %4125 = vset.pattern.permute.xlu0 0
  %4126 = vperm.xlu0 %4125, %v4120
  %v4127 = vpop.permute.xlu0 %4126
  %4130 = vset.pattern.permute.xlu0 0
  %4131 = vperm.xlu0 %4130, %v4121
  %v4132 = vpop.permute.xlu0 %4131
  %4135 = vset.pattern.permute.xlu0 0
  %4136 = vperm.xlu0 %4135, %v4122
  %v4137 = vpop.permute.xlu0 %4136
  %4140 = vset.pattern.permute.xlu0 0
  %4141 = vperm.xlu0 %4140, %v4123
  %v4142 = vpop.permute.xlu0 %4141
  %v4144 = vsub.f32 %v3991, %v4127
  %v4145 = vsub.f32 %v3996, %v4132
  %v4146 = vsub.f32 %v4001, %v4137
  %v4147 = vsub.f32 %v4006, %v4142
  %v4148 = vmul.f32 %v4144, %v4144
  %v4149 = vmul.f32 %v4145, %v4145
  %v4150 = vmul.f32 %v4146, %v4146
  %v4151 = vmul.f32 %v4147, %v4147
  %v4152 = vmul.f32 %v4148, %v450
  %v4153 = vmul.f32 %v4149, %v451
  %v4154 = vmul.f32 %v4150, %v452
  %v4155 = vmul.f32 %v4151, %v453
  %v4157 = vsel %vm162, %v4152, 0
  %v4160 = vsel %vm162, %v4153, 0
  %v4163 = vsel %vm162, %v4154, 0
  %v4166 = vsel %vm162, %v4155, 0
  %4168 = vmatprep.subr.mxu0 0.0
  %4169 = vmatpush1.msra.mxu0 1.0
  %4170 = vmatprep.subr.mxu0 0.0
  %4171 = vmatpush1.msra.mxu0 1.0
  %4172 = vmatprep.subr.mxu0 0.0
  %4173 = vmatpush1.msra.mxu0 0.0
  %4174 = vmatprep.subr.mxu0 0.0
  %4175 = vmatpush1.msra.mxu0 0.0
  %4176 = vmatprep.subr.mxu0 0.0
  %4177 = vmatpush1.msra.mxu0 0.0
  %4178 = vmatprep.subr.mxu0 0.0
  %4179 = vmatpush1.msra.mxu0 0.0
  %4180 = vmatprep.subr.mxu0 0.0
  %4181 = vmatpush1.msra.mxu0 0.0
  %4182 = vmatprep.subr.mxu0 0.0
  %4183 = vmatpush1.msra.mxu0 0.0
  %4184 = vmatprep.subr.mxu0 0.0
  %4185 = vmatpush1.msra.mxu0 0.0
  %4186 = vmatprep.subr.mxu0 0.0
  %4187 = vmatpush1.msra.mxu0 0.0
  %4188 = vmatprep.subr.mxu0 0.0
  %4189 = vmatpush1.msra.mxu0 0.0
  %4190 = vmatprep.subr.mxu0 0.0
  %4191 = vmatpush1.msra.mxu0 0.0
  %4192 = vmatprep.subr.mxu0 0.0
  %4193 = vmatpush1.msra.mxu0 0.0
  %4194 = vmatprep.subr.mxu0 0.0
  %4195 = vmatpush1.msra.mxu0 0.0
  %4196 = vmatprep.subr.mxu0 0.0
  %4197 = vmatpush1.msra.mxu0 0.0
  %4198 = vmatprep.subr.mxu0 0.0
  %4199 = vmatpush1.msra.mxu0 0.0
  %4200 = vmatprep.subr.mxu0 0.0
  %4201 = vmatpush1.msra.mxu0 0.0
  %4202 = vmatprep.subr.mxu0 0.0
  %4203 = vmatpush1.msra.mxu0 0.0
  %4204 = vmatprep.subr.mxu0 0.0
  %4205 = vmatpush1.msra.mxu0 0.0
  %4206 = vmatprep.subr.mxu0 0.0
  %4207 = vmatpush1.msra.mxu0 0.0
  %4208 = vmatprep.subr.mxu0 0.0
  %4209 = vmatpush1.msra.mxu0 0.0
  %4210 = vmatprep.subr.mxu0 0.0
  %4211 = vmatpush1.msra.mxu0 0.0
  %4212 = vmatprep.subr.mxu0 0.0
  %4213 = vmatpush1.msra.mxu0 0.0
  %4214 = vmatprep.subr.mxu0 0.0
  %4215 = vmatpush1.msra.mxu0 0.0
  %4216 = vmatprep.subr.mxu0 0.0
  %4217 = vmatpush1.msra.mxu0 0.0
  %4218 = vmatprep.subr.mxu0 0.0
  %4219 = vmatpush1.msra.mxu0 0.0
  %4220 = vmatprep.subr.mxu0 0.0
  %4221 = vmatpush1.msra.mxu0 0.0
  %4222 = vmatprep.subr.mxu0 0.0
  %4223 = vmatpush1.msra.mxu0 0.0
  %4224 = vmatprep.subr.mxu0 0.0
  %4225 = vmatpush1.msra.mxu0 0.0
  %4226 = vmatprep.subr.mxu0 0.0
  %4227 = vmatpush1.msra.mxu0 0.0
  %4228 = vmatprep.subr.mxu0 0.0
  %4229 = vmatpush1.msra.mxu0 0.0
  %4230 = vmatprep.subr.mxu0 0.0
  %4231 = vmatpush1.msra.mxu0 0.0
  %4232 = vmatprep.mubr.f32.mxu0 0.0
  %4233 = vmatmul.mubr.f32.gmra.mrb[0].mxu0 %v4157
  %v4234 = vpop.f32.mrb[0].mxu0
  %v4235 = vadd.f32 0.0, %v4234
  %v4236 = vpop.f32.mrb[0].mxu0
  %4237 = vmatprep.mubr.f32.mxu0 0.0
  %4238 = vmatmul.mubr.f32.gmra.mrb[0].mxu0 %v4160
  %v4239 = vpop.f32.mrb[0].mxu0
  %v4240 = vadd.f32 0.0, %v4239
  %v4241 = vpop.f32.mrb[0].mxu0
  %4242 = vmatprep.mubr.f32.mxu0 0.0
  %4243 = vmatmul.mubr.f32.gmra.mrb[0].mxu0 %v4163
  %v4244 = vpop.f32.mrb[0].mxu0
  %v4245 = vadd.f32 0.0, %v4244
  %v4246 = vpop.f32.mrb[0].mxu0
  %4247 = vmatprep.mubr.f32.mxu0 0.0
  %4248 = vmatmul.mubr.f32.gmra.mrb[0].mxu0 %v4166
  %v4249 = vpop.f32.mrb[0].mxu0
  %v4250 = vadd.f32 0.0, %v4249
  %v4251 = vpop.f32.mrb[0].mxu0
  %4252 = vdwg.mxu0
  %v4253 = vmul.f32 %v4235, %v476
  %v4254 = vmul.f32 %v4240, %v478
  %v4255 = vmul.f32 %v4245, %v480
  %v4256 = vmul.f32 %v4250, %v482
  %v4257 = vadd.f32 %v4253, 1e-05
  %v4258 = vadd.f32 %v4254, 1e-05
  %v4259 = vadd.f32 %v4255, 1e-05
  %v4260 = vadd.f32 %v4256, 1e-05
  %v4261 = vrsqrt.pop %v4257
  %v4262 = vrsqrt.pop %v4258
  %v4263 = vrsqrt.pop %v4259
  %v4264 = vrsqrt.pop %v4260
  %4266 = vset.pattern.permute.xlu0 0
  %4267 = vperm.xlu0 %4266, %v4261
  %v4268 = vpop.permute.xlu0 %4267
  %4271 = vset.pattern.permute.xlu0 0
  %4272 = vperm.xlu0 %4271, %v4262
  %v4273 = vpop.permute.xlu0 %4272
  %4276 = vset.pattern.permute.xlu0 0
  %4277 = vperm.xlu0 %4276, %v4263
  %v4278 = vpop.permute.xlu0 %4277
  %4281 = vset.pattern.permute.xlu0 0
  %4282 = vperm.xlu0 %4281, %v4264
  %v4283 = vpop.permute.xlu0 %4282
  %v4285 = vmul.f32 %v4144, %v4268
  %v4286 = vmul.f32 %v4145, %v4273
  %v4287 = vmul.f32 %v4146, %v4278
  %v4288 = vmul.f32 %v4147, %v4283
  %4290 = vset.pattern.permute.xlu0 0
  %4291 = vperm.xlu0 %4290, %v4010
  %v4292 = vpop.permute.xlu0 %4291
  %4295 = vset.pattern.permute.xlu0 0
  %4296 = vperm.xlu0 %4295, %v4011
  %v4297 = vpop.permute.xlu0 %4296
  %4300 = vset.pattern.permute.xlu0 0
  %4301 = vperm.xlu0 %4300, %v4012
  %v4302 = vpop.permute.xlu0 %4301
  %4305 = vset.pattern.permute.xlu0 0
  %4306 = vperm.xlu0 %4305, %v4013
  %v4307 = vpop.permute.xlu0 %4306
  %v4309 = vmul.f32 %v4285, %v4292
  %v4310 = vmul.f32 %v4286, %v4297
  %v4311 = vmul.f32 %v4287, %v4302
  %v4312 = vmul.f32 %v4288, %v4307
  %4314 = vset.pattern.permute.xlu0 0
  %4315 = vperm.xlu0 %4314, %v4015
  %v4316 = vpop.permute.xlu0 %4315
  %4319 = vset.pattern.permute.xlu0 0
  %4320 = vperm.xlu0 %4319, %v4016
  %v4321 = vpop.permute.xlu0 %4320
  %4324 = vset.pattern.permute.xlu0 0
  %4325 = vperm.xlu0 %4324, %v4017
  %v4326 = vpop.permute.xlu0 %4325
  %4329 = vset.pattern.permute.xlu0 0
  %4330 = vperm.xlu0 %4329, %v4018
  %v4331 = vpop.permute.xlu0 %4330
  %v4333 = vadd.f32 %v4309, %v4316
  %v4334 = vadd.f32 %v4310, %v4321
  %v4335 = vadd.f32 %v4311, %v4326
  %v4336 = vadd.f32 %v4312, %v4331
  %v4337 = vmax.f32 %v4333, 0.0
  %v4338 = vmax.f32 %v4334, 0.0
  %v4339 = vmax.f32 %v4335, 0.0
  %v4340 = vmax.f32 %v4336, 0.0
  %s4341 = scalar_lea.vmem %s13, 160
  %v4342 = vld [vmem:[%s4341] sm:$0xff]
  %v4343 = vld [vmem:[%s4341 + $0x8] sm:$0xff]
  %v4344 = vld [vmem:[%s4341 + $0x10] sm:$0xff]
  %v4345 = vld [vmem:[%s4341 + $0x18] sm:$0xff]
  %s4346 = scalar_lea.vmem %s14, 160
  %v4347 = vld [vmem:[%s4346] sm:$0xff]
  %v4348 = vld [vmem:[%s4346 + $0x8] sm:$0xff]
  %v4349 = vld [vmem:[%s4346 + $0x10] sm:$0xff]
  %v4350 = vld [vmem:[%s4346 + $0x18] sm:$0xff]
  %4352 = vset.pattern.permute.xlu0 0
  %4353 = vperm.xlu0 %4352, %v4347
  %v4354 = vpop.permute.xlu0 %4353
  %4357 = vset.pattern.permute.xlu0 0
  %4358 = vperm.xlu0 %4357, %v4348
  %v4359 = vpop.permute.xlu0 %4358
  %4362 = vset.pattern.permute.xlu0 0
  %4363 = vperm.xlu0 %4362, %v4349
  %v4364 = vpop.permute.xlu0 %4363
  %4367 = vset.pattern.permute.xlu0 0
  %4368 = vperm.xlu0 %4367, %v4350
  %v4369 = vpop.permute.xlu0 %4368
  %v4372 = vsel %vm1203, %v4342, 0
  %v4375 = vsel %vm1203, %v4343, 0
  %v4378 = vsel %vm1203, %v4344, 0
  %v4381 = vsel %vm1203, %v4345, 0
  %4383 = vmatprep.subr.mxu0 0.0
  %4384 = vmatpush1.msra.mxu0 %v4337
  %4385 = vmatprep.subr.mxu0 0.0
  %4386 = vmatpush1.msra.mxu0 %v4338
  %4387 = vmatprep.subr.mxu0 0.0
  %4388 = vmatpush1.msra.mxu0 %v4339
  %4389 = vmatprep.subr.mxu0 0.0
  %4390 = vmatpush1.msra.mxu0 %v4340
  %4391 = vmatprep.subr.mxu0 0.0
  %4392 = vmatpush1.msra.mxu0 0.0
  %4393 = vmatprep.subr.mxu0 0.0
  %4394 = vmatpush1.msra.mxu0 0.0
  %4395 = vmatprep.subr.mxu0 0.0
  %4396 = vmatpush1.msra.mxu0 0.0
  %4397 = vmatprep.subr.mxu0 0.0
  %4398 = vmatpush1.msra.mxu0 0.0
  %4399 = vmatprep.subr.mxu0 0.0
  %4400 = vmatpush1.msra.mxu0 0.0
  %4401 = vmatprep.subr.mxu0 0.0
  %4402 = vmatpush1.msra.mxu0 0.0
  %4403 = vmatprep.subr.mxu0 0.0
  %4404 = vmatpush1.msra.mxu0 0.0
  %4405 = vmatprep.subr.mxu0 0.0
  %4406 = vmatpush1.msra.mxu0 0.0
  %4407 = vmatprep.subr.mxu0 0.0
  %4408 = vmatpush1.msra.mxu0 0.0
  %4409 = vmatprep.subr.mxu0 0.0
  %4410 = vmatpush1.msra.mxu0 0.0
  %4411 = vmatprep.subr.mxu0 0.0
  %4412 = vmatpush1.msra.mxu0 0.0
  %4413 = vmatprep.subr.mxu0 0.0
  %4414 = vmatpush1.msra.mxu0 0.0
  %4415 = vmatprep.subr.mxu0 0.0
  %4416 = vmatpush1.msra.mxu0 0.0
  %4417 = vmatprep.subr.mxu0 0.0
  %4418 = vmatpush1.msra.mxu0 0.0
  %4419 = vmatprep.subr.mxu0 0.0
  %4420 = vmatpush1.msra.mxu0 0.0
  %4421 = vmatprep.subr.mxu0 0.0
  %4422 = vmatpush1.msra.mxu0 0.0
  %4423 = vmatprep.subr.mxu0 0.0
  %4424 = vmatpush1.msra.mxu0 0.0
  %4425 = vmatprep.subr.mxu0 0.0
  %4426 = vmatpush1.msra.mxu0 0.0
  %4427 = vmatprep.subr.mxu0 0.0
  %4428 = vmatpush1.msra.mxu0 0.0
  %4429 = vmatprep.subr.mxu0 0.0
  %4430 = vmatpush1.msra.mxu0 0.0
  %4431 = vmatprep.subr.mxu0 0.0
  %4432 = vmatpush1.msra.mxu0 0.0
  %4433 = vmatprep.subr.mxu0 0.0
  %4434 = vmatpush1.msra.mxu0 0.0
  %4435 = vmatprep.subr.mxu0 0.0
  %4436 = vmatpush1.msra.mxu0 0.0
  %4437 = vmatprep.subr.mxu0 0.0
  %4438 = vmatpush1.msra.mxu0 0.0
  %4439 = vmatprep.subr.mxu0 0.0
  %4440 = vmatpush1.msra.mxu0 0.0
  %4441 = vmatprep.subr.mxu0 0.0
  %4442 = vmatpush1.msra.mxu0 0.0
  %4443 = vmatprep.subr.mxu0 0.0
  %4444 = vmatpush1.msra.mxu0 0.0
  %4445 = vmatprep.subr.mxu0 0.0
  %4446 = vmatpush1.msra.mxu0 0.0
  %4447 = vmatprep.mubr.f32.mxu0 0.0
  %4448 = vmatmul.mubr.f32.gmra.mrb[0].mxu0 %v4372
  %v4449 = vpop.f32.mrb[0].mxu0
  %v4450 = vadd.f32 %v4354, %v4449
  %v4451 = vpop.f32.mrb[0].mxu0
  %4452 = vmatprep.mubr.f32.mxu0 0.0
  %4453 = vmatmul.mubr.f32.gmra.mrb[0].mxu0 %v4375
  %v4454 = vpop.f32.mrb[0].mxu0
  %v4455 = vadd.f32 %v4359, %v4454
  %v4456 = vpop.f32.mrb[0].mxu0
  %4457 = vmatprep.mubr.f32.mxu0 0.0
  %4458 = vmatmul.mubr.f32.gmra.mrb[0].mxu0 %v4378
  %v4459 = vpop.f32.mrb[0].mxu0
  %v4460 = vadd.f32 %v4364, %v4459
  %v4461 = vpop.f32.mrb[0].mxu0
  %4462 = vmatprep.mubr.f32.mxu0 0.0
  %4463 = vmatmul.mubr.f32.gmra.mrb[0].mxu0 %v4381
  %v4464 = vpop.f32.mrb[0].mxu0
  %v4465 = vadd.f32 %v4369, %v4464
  %v4466 = vpop.f32.mrb[0].mxu0
  %4467 = vdwg.mxu0
  %s4468 = scalar_lea.vmem %s15, 160
  %v4469 = vld [vmem:[%s4468] sm:$0xff]
  %v4470 = vld [vmem:[%s4468 + $0x8] sm:$0xff]
  %v4471 = vld [vmem:[%s4468 + $0x10] sm:$0xff]
  %v4472 = vld [vmem:[%s4468 + $0x18] sm:$0xff]
  %s4473 = scalar_lea.vmem %s16, 160
  %v4474 = vld [vmem:[%s4473] sm:$0xff]
  %v4475 = vld [vmem:[%s4473 + $0x8] sm:$0xff]
  %v4476 = vld [vmem:[%s4473 + $0x10] sm:$0xff]
  %v4477 = vld [vmem:[%s4473 + $0x18] sm:$0xff]
  %v4478 = vmul.f32 %v4450, %v450
  %v4479 = vmul.f32 %v4455, %v451
  %v4480 = vmul.f32 %v4460, %v452
  %v4481 = vmul.f32 %v4465, %v453
  %v4483 = vsel %vm162, %v4478, 0
  %v4486 = vsel %vm162, %v4479, 0
  %v4489 = vsel %vm162, %v4480, 0
  %v4492 = vsel %vm162, %v4481, 0
  %4494 = vmatprep.subr.mxu0 0.0
  %4495 = vmatpush1.msra.mxu0 1.0
  %4496 = vmatprep.subr.mxu0 0.0
  %4497 = vmatpush1.msra.mxu0 1.0
  %4498 = vmatprep.subr.mxu0 0.0
  %4499 = vmatpush1.msra.mxu0 0.0
  %4500 = vmatprep.subr.mxu0 0.0
  %4501 = vmatpush1.msra.mxu0 0.0
  %4502 = vmatprep.subr.mxu0 0.0
  %4503 = vmatpush1.msra.mxu0 0.0
  %4504 = vmatprep.subr.mxu0 0.0
  %4505 = vmatpush1.msra.mxu0 0.0
  %4506 = vmatprep.subr.mxu0 0.0
  %4507 = vmatpush1.msra.mxu0 0.0
  %4508 = vmatprep.subr.mxu0 0.0
  %4509 = vmatpush1.msra.mxu0 0.0
  %4510 = vmatprep.subr.mxu0 0.0
  %4511 = vmatpush1.msra.mxu0 0.0
  %4512 = vmatprep.subr.mxu0 0.0
  %4513 = vmatpush1.msra.mxu0 0.0
  %4514 = vmatprep.subr.mxu0 0.0
  %4515 = vmatpush1.msra.mxu0 0.0
  %4516 = vmatprep.subr.mxu0 0.0
  %4517 = vmatpush1.msra.mxu0 0.0
  %4518 = vmatprep.subr.mxu0 0.0
  %4519 = vmatpush1.msra.mxu0 0.0
  %4520 = vmatprep.subr.mxu0 0.0
  %4521 = vmatpush1.msra.mxu0 0.0
  %4522 = vmatprep.subr.mxu0 0.0
  %4523 = vmatpush1.msra.mxu0 0.0
  %4524 = vmatprep.subr.mxu0 0.0
  %4525 = vmatpush1.msra.mxu0 0.0
  %4526 = vmatprep.subr.mxu0 0.0
  %4527 = vmatpush1.msra.mxu0 0.0
  %4528 = vmatprep.subr.mxu0 0.0
  %4529 = vmatpush1.msra.mxu0 0.0
  %4530 = vmatprep.subr.mxu0 0.0
  %4531 = vmatpush1.msra.mxu0 0.0
  %4532 = vmatprep.subr.mxu0 0.0
  %4533 = vmatpush1.msra.mxu0 0.0
  %4534 = vmatprep.subr.mxu0 0.0
  %4535 = vmatpush1.msra.mxu0 0.0
  %4536 = vmatprep.subr.mxu0 0.0
  %4537 = vmatpush1.msra.mxu0 0.0
  %4538 = vmatprep.subr.mxu0 0.0
  %4539 = vmatpush1.msra.mxu0 0.0
  %4540 = vmatprep.subr.mxu0 0.0
  %4541 = vmatpush1.msra.mxu0 0.0
  %4542 = vmatprep.subr.mxu0 0.0
  %4543 = vmatpush1.msra.mxu0 0.0
  %4544 = vmatprep.subr.mxu0 0.0
  %4545 = vmatpush1.msra.mxu0 0.0
  %4546 = vmatprep.subr.mxu0 0.0
  %4547 = vmatpush1.msra.mxu0 0.0
  %4548 = vmatprep.subr.mxu0 0.0
  %4549 = vmatpush1.msra.mxu0 0.0
  %4550 = vmatprep.subr.mxu0 0.0
  %4551 = vmatpush1.msra.mxu0 0.0
  %4552 = vmatprep.subr.mxu0 0.0
  %4553 = vmatpush1.msra.mxu0 0.0
  %4554 = vmatprep.subr.mxu0 0.0
  %4555 = vmatpush1.msra.mxu0 0.0
  %4556 = vmatprep.subr.mxu0 0.0
  %4557 = vmatpush1.msra.mxu0 0.0
  %4558 = vmatprep.mubr.f32.mxu0 0.0
  %4559 = vmatmul.mubr.f32.gmra.mrb[0].mxu0 %v4483
  %v4560 = vpop.f32.mrb[0].mxu0
  %v4561 = vadd.f32 0.0, %v4560
  %v4562 = vpop.f32.mrb[0].mxu0
  %4563 = vmatprep.mubr.f32.mxu0 0.0
  %4564 = vmatmul.mubr.f32.gmra.mrb[0].mxu0 %v4486
  %v4565 = vpop.f32.mrb[0].mxu0
  %v4566 = vadd.f32 0.0, %v4565
  %v4567 = vpop.f32.mrb[0].mxu0
  %4568 = vmatprep.mubr.f32.mxu0 0.0
  %4569 = vmatmul.mubr.f32.gmra.mrb[0].mxu0 %v4489
  %v4570 = vpop.f32.mrb[0].mxu0
  %v4571 = vadd.f32 0.0, %v4570
  %v4572 = vpop.f32.mrb[0].mxu0
  %4573 = vmatprep.mubr.f32.mxu0 0.0
  %4574 = vmatmul.mubr.f32.gmra.mrb[0].mxu0 %v4492
  %v4575 = vpop.f32.mrb[0].mxu0
  %v4576 = vadd.f32 0.0, %v4575
  %v4577 = vpop.f32.mrb[0].mxu0
  %4578 = vdwg.mxu0
  %v4579 = vmul.f32 %v4561, %v476
  %v4580 = vmul.f32 %v4566, %v478
  %v4581 = vmul.f32 %v4571, %v480
  %v4582 = vmul.f32 %v4576, %v482
  %4584 = vset.pattern.permute.xlu0 0
  %4585 = vperm.xlu0 %4584, %v4579
  %v4586 = vpop.permute.xlu0 %4585
  %4589 = vset.pattern.permute.xlu0 0
  %4590 = vperm.xlu0 %4589, %v4580
  %v4591 = vpop.permute.xlu0 %4590
  %4594 = vset.pattern.permute.xlu0 0
  %4595 = vperm.xlu0 %4594, %v4581
  %v4596 = vpop.permute.xlu0 %4595
  %4599 = vset.pattern.permute.xlu0 0
  %4600 = vperm.xlu0 %4599, %v4582
  %v4601 = vpop.permute.xlu0 %4600
  %v4603 = vsub.f32 %v4450, %v4586
  %v4604 = vsub.f32 %v4455, %v4591
  %v4605 = vsub.f32 %v4460, %v4596
  %v4606 = vsub.f32 %v4465, %v4601
  %v4607 = vmul.f32 %v4603, %v4603
  %v4608 = vmul.f32 %v4604, %v4604
  %v4609 = vmul.f32 %v4605, %v4605
  %v4610 = vmul.f32 %v4606, %v4606
  %v4611 = vmul.f32 %v4607, %v450
  %v4612 = vmul.f32 %v4608, %v451
  %v4613 = vmul.f32 %v4609, %v452
  %v4614 = vmul.f32 %v4610, %v453
  %v4616 = vsel %vm162, %v4611, 0
  %v4619 = vsel %vm162, %v4612, 0
  %v4622 = vsel %vm162, %v4613, 0
  %v4625 = vsel %vm162, %v4614, 0
  %4627 = vmatprep.subr.mxu0 0.0
  %4628 = vmatpush1.msra.mxu0 1.0
  %4629 = vmatprep.subr.mxu0 0.0
  %4630 = vmatpush1.msra.mxu0 1.0
  %4631 = vmatprep.subr.mxu0 0.0
  %4632 = vmatpush1.msra.mxu0 0.0
  %4633 = vmatprep.subr.mxu0 0.0
  %4634 = vmatpush1.msra.mxu0 0.0
  %4635 = vmatprep.subr.mxu0 0.0
  %4636 = vmatpush1.msra.mxu0 0.0
  %4637 = vmatprep.subr.mxu0 0.0
  %4638 = vmatpush1.msra.mxu0 0.0
  %4639 = vmatprep.subr.mxu0 0.0
  %4640 = vmatpush1.msra.mxu0 0.0
  %4641 = vmatprep.subr.mxu0 0.0
  %4642 = vmatpush1.msra.mxu0 0.0
  %4643 = vmatprep.subr.mxu0 0.0
  %4644 = vmatpush1.msra.mxu0 0.0
  %4645 = vmatprep.subr.mxu0 0.0
  %4646 = vmatpush1.msra.mxu0 0.0
  %4647 = vmatprep.subr.mxu0 0.0
  %4648 = vmatpush1.msra.mxu0 0.0
  %4649 = vmatprep.subr.mxu0 0.0
  %4650 = vmatpush1.msra.mxu0 0.0
  %4651 = vmatprep.subr.mxu0 0.0
  %4652 = vmatpush1.msra.mxu0 0.0
  %4653 = vmatprep.subr.mxu0 0.0
  %4654 = vmatpush1.msra.mxu0 0.0
  %4655 = vmatprep.subr.mxu0 0.0
  %4656 = vmatpush1.msra.mxu0 0.0
  %4657 = vmatprep.subr.mxu0 0.0
  %4658 = vmatpush1.msra.mxu0 0.0
  %4659 = vmatprep.subr.mxu0 0.0
  %4660 = vmatpush1.msra.mxu0 0.0
  %4661 = vmatprep.subr.mxu0 0.0
  %4662 = vmatpush1.msra.mxu0 0.0
  %4663 = vmatprep.subr.mxu0 0.0
  %4664 = vmatpush1.msra.mxu0 0.0
  %4665 = vmatprep.subr.mxu0 0.0
  %4666 = vmatpush1.msra.mxu0 0.0
  %4667 = vmatprep.subr.mxu0 0.0
  %4668 = vmatpush1.msra.mxu0 0.0
  %4669 = vmatprep.subr.mxu0 0.0
  %4670 = vmatpush1.msra.mxu0 0.0
  %4671 = vmatprep.subr.mxu0 0.0
  %4672 = vmatpush1.msra.mxu0 0.0
  %4673 = vmatprep.subr.mxu0 0.0
  %4674 = vmatpush1.msra.mxu0 0.0
  %4675 = vmatprep.subr.mxu0 0.0
  %4676 = vmatpush1.msra.mxu0 0.0
  %4677 = vmatprep.subr.mxu0 0.0
  %4678 = vmatpush1.msra.mxu0 0.0
  %4679 = vmatprep.subr.mxu0 0.0
  %4680 = vmatpush1.msra.mxu0 0.0
  %4681 = vmatprep.subr.mxu0 0.0
  %4682 = vmatpush1.msra.mxu0 0.0
  %4683 = vmatprep.subr.mxu0 0.0
  %4684 = vmatpush1.msra.mxu0 0.0
  %4685 = vmatprep.subr.mxu0 0.0
  %4686 = vmatpush1.msra.mxu0 0.0
  %4687 = vmatprep.subr.mxu0 0.0
  %4688 = vmatpush1.msra.mxu0 0.0
  %4689 = vmatprep.subr.mxu0 0.0
  %4690 = vmatpush1.msra.mxu0 0.0
  %4691 = vmatprep.mubr.f32.mxu0 0.0
  %4692 = vmatmul.mubr.f32.gmra.mrb[0].mxu0 %v4616
  %v4693 = vpop.f32.mrb[0].mxu0
  %v4694 = vadd.f32 0.0, %v4693
  %v4695 = vpop.f32.mrb[0].mxu0
  %4696 = vmatprep.mubr.f32.mxu0 0.0
  %4697 = vmatmul.mubr.f32.gmra.mrb[0].mxu0 %v4619
  %v4698 = vpop.f32.mrb[0].mxu0
  %v4699 = vadd.f32 0.0, %v4698
  %v4700 = vpop.f32.mrb[0].mxu0
  %4701 = vmatprep.mubr.f32.mxu0 0.0
  %4702 = vmatmul.mubr.f32.gmra.mrb[0].mxu0 %v4622
  %v4703 = vpop.f32.mrb[0].mxu0
  %v4704 = vadd.f32 0.0, %v4703
  %v4705 = vpop.f32.mrb[0].mxu0
  %4706 = vmatprep.mubr.f32.mxu0 0.0
  %4707 = vmatmul.mubr.f32.gmra.mrb[0].mxu0 %v4625
  %v4708 = vpop.f32.mrb[0].mxu0
  %v4709 = vadd.f32 0.0, %v4708
  %v4710 = vpop.f32.mrb[0].mxu0
  %4711 = vdwg.mxu0
  %v4712 = vmul.f32 %v4694, %v476
  %v4713 = vmul.f32 %v4699, %v478
  %v4714 = vmul.f32 %v4704, %v480
  %v4715 = vmul.f32 %v4709, %v482
  %v4716 = vadd.f32 %v4712, 1e-05
  %v4717 = vadd.f32 %v4713, 1e-05
  %v4718 = vadd.f32 %v4714, 1e-05
  %v4719 = vadd.f32 %v4715, 1e-05
  %v4720 = vrsqrt.pop %v4716
  %v4721 = vrsqrt.pop %v4717
  %v4722 = vrsqrt.pop %v4718
  %v4723 = vrsqrt.pop %v4719
  %4725 = vset.pattern.permute.xlu0 0
  %4726 = vperm.xlu0 %4725, %v4720
  %v4727 = vpop.permute.xlu0 %4726
  %4730 = vset.pattern.permute.xlu0 0
  %4731 = vperm.xlu0 %4730, %v4721
  %v4732 = vpop.permute.xlu0 %4731
  %4735 = vset.pattern.permute.xlu0 0
  %4736 = vperm.xlu0 %4735, %v4722
  %v4737 = vpop.permute.xlu0 %4736
  %4740 = vset.pattern.permute.xlu0 0
  %4741 = vperm.xlu0 %4740, %v4723
  %v4742 = vpop.permute.xlu0 %4741
  %v4744 = vmul.f32 %v4603, %v4727
  %v4745 = vmul.f32 %v4604, %v4732
  %v4746 = vmul.f32 %v4605, %v4737
  %v4747 = vmul.f32 %v4606, %v4742
  %4749 = vset.pattern.permute.xlu0 0
  %4750 = vperm.xlu0 %4749, %v4469
  %v4751 = vpop.permute.xlu0 %4750
  %4754 = vset.pattern.permute.xlu0 0
  %4755 = vperm.xlu0 %4754, %v4470
  %v4756 = vpop.permute.xlu0 %4755
  %4759 = vset.pattern.permute.xlu0 0
  %4760 = vperm.xlu0 %4759, %v4471
  %v4761 = vpop.permute.xlu0 %4760
  %4764 = vset.pattern.permute.xlu0 0
  %4765 = vperm.xlu0 %4764, %v4472
  %v4766 = vpop.permute.xlu0 %4765
  %v4768 = vmul.f32 %v4744, %v4751
  %v4769 = vmul.f32 %v4745, %v4756
  %v4770 = vmul.f32 %v4746, %v4761
  %v4771 = vmul.f32 %v4747, %v4766
  %4773 = vset.pattern.permute.xlu0 0
  %4774 = vperm.xlu0 %4773, %v4474
  %v4775 = vpop.permute.xlu0 %4774
  %4778 = vset.pattern.permute.xlu0 0
  %4779 = vperm.xlu0 %4778, %v4475
  %v4780 = vpop.permute.xlu0 %4779
  %4783 = vset.pattern.permute.xlu0 0
  %4784 = vperm.xlu0 %4783, %v4476
  %v4785 = vpop.permute.xlu0 %4784
  %4788 = vset.pattern.permute.xlu0 0
  %4789 = vperm.xlu0 %4788, %v4477
  %v4790 = vpop.permute.xlu0 %4789
  %v4792 = vadd.f32 %v4768, %v4775
  %v4793 = vadd.f32 %v4769, %v4780
  %v4794 = vadd.f32 %v4770, %v4785
  %v4795 = vadd.f32 %v4771, %v4790
  %v4796 = vmax.f32 %v4792, 0.0
  %v4797 = vmax.f32 %v4793, 0.0
  %v4798 = vmax.f32 %v4794, 0.0
  %v4799 = vmax.f32 %v4795, 0.0
  %v4800 = vmul.f32 %v4796, %v450
  %v4801 = vmul.f32 %v4797, %v451
  %v4802 = vmul.f32 %v4798, %v452
  %v4803 = vmul.f32 %v4799, %v453
  %v4805 = vsel %vm162, %v4800, 0
  %v4808 = vsel %vm162, %v4801, 0
  %v4811 = vsel %vm162, %v4802, 0
  %v4814 = vsel %vm162, %v4803, 0
  %4816 = vmatprep.subr.mxu0 0.0
  %4817 = vmatpush1.msra.mxu0 %v427
  %4818 = vmatprep.subr.mxu0 0.0
  %4819 = vmatpush1.msra.mxu0 %v428
  %4820 = vmatprep.subr.mxu0 0.0
  %4821 = vmatpush1.msra.mxu0 0.0
  %4822 = vmatprep.subr.mxu0 0.0
  %4823 = vmatpush1.msra.mxu0 0.0
  %4824 = vmatprep.subr.mxu0 0.0
  %4825 = vmatpush1.msra.mxu0 0.0
  %4826 = vmatprep.subr.mxu0 0.0
  %4827 = vmatpush1.msra.mxu0 0.0
  %4828 = vmatprep.subr.mxu0 0.0
  %4829 = vmatpush1.msra.mxu0 0.0
  %4830 = vmatprep.subr.mxu0 0.0
  %4831 = vmatpush1.msra.mxu0 0.0
  %4832 = vmatprep.subr.mxu0 0.0
  %4833 = vmatpush1.msra.mxu0 0.0
  %4834 = vmatprep.subr.mxu0 0.0
  %4835 = vmatpush1.msra.mxu0 0.0
  %4836 = vmatprep.subr.mxu0 0.0
  %4837 = vmatpush1.msra.mxu0 0.0
  %4838 = vmatprep.subr.mxu0 0.0
  %4839 = vmatpush1.msra.mxu0 0.0
  %4840 = vmatprep.subr.mxu0 0.0
  %4841 = vmatpush1.msra.mxu0 0.0
  %4842 = vmatprep.subr.mxu0 0.0
  %4843 = vmatpush1.msra.mxu0 0.0
  %4844 = vmatprep.subr.mxu0 0.0
  %4845 = vmatpush1.msra.mxu0 0.0
  %4846 = vmatprep.subr.mxu0 0.0
  %4847 = vmatpush1.msra.mxu0 0.0
  %4848 = vmatprep.subr.mxu0 0.0
  %4849 = vmatpush1.msra.mxu0 0.0
  %4850 = vmatprep.subr.mxu0 0.0
  %4851 = vmatpush1.msra.mxu0 0.0
  %4852 = vmatprep.subr.mxu0 0.0
  %4853 = vmatpush1.msra.mxu0 0.0
  %4854 = vmatprep.subr.mxu0 0.0
  %4855 = vmatpush1.msra.mxu0 0.0
  %4856 = vmatprep.subr.mxu0 0.0
  %4857 = vmatpush1.msra.mxu0 0.0
  %4858 = vmatprep.subr.mxu0 0.0
  %4859 = vmatpush1.msra.mxu0 0.0
  %4860 = vmatprep.subr.mxu0 0.0
  %4861 = vmatpush1.msra.mxu0 0.0
  %4862 = vmatprep.subr.mxu0 0.0
  %4863 = vmatpush1.msra.mxu0 0.0
  %4864 = vmatprep.subr.mxu0 0.0
  %4865 = vmatpush1.msra.mxu0 0.0
  %4866 = vmatprep.subr.mxu0 0.0
  %4867 = vmatpush1.msra.mxu0 0.0
  %4868 = vmatprep.subr.mxu0 0.0
  %4869 = vmatpush1.msra.mxu0 0.0
  %4870 = vmatprep.subr.mxu0 0.0
  %4871 = vmatpush1.msra.mxu0 0.0
  %4872 = vmatprep.subr.mxu0 0.0
  %4873 = vmatpush1.msra.mxu0 0.0
  %4874 = vmatprep.subr.mxu0 0.0
  %4875 = vmatpush1.msra.mxu0 0.0
  %4876 = vmatprep.subr.mxu0 0.0
  %4877 = vmatpush1.msra.mxu0 0.0
  %4878 = vmatprep.subr.mxu0 0.0
  %4879 = vmatpush1.msra.mxu0 0.0
  %4880 = vmatprep.mubr.f32.mxu0 0.0
  %4881 = vmatmul.mubr.f32.gmra.mrb[0].mxu0 %v4805
  %v4882 = vpop.f32.mrb[0].mxu0
  %v4883 = vadd.f32 0.0, %v4882
  %v4884 = vpop.f32.mrb[0].mxu0
  %4885 = vmatprep.mubr.f32.mxu0 0.0
  %4886 = vmatmul.mubr.f32.gmra.mrb[0].mxu0 %v4808
  %v4887 = vpop.f32.mrb[0].mxu0
  %v4888 = vadd.f32 0.0, %v4887
  %v4889 = vpop.f32.mrb[0].mxu0
  %4890 = vmatprep.mubr.f32.mxu0 0.0
  %4891 = vmatmul.mubr.f32.gmra.mrb[0].mxu0 %v4811
  %v4892 = vpop.f32.mrb[0].mxu0
  %v4893 = vadd.f32 0.0, %v4892
  %v4894 = vpop.f32.mrb[0].mxu0
  %4895 = vmatprep.mubr.f32.mxu0 0.0
  %4896 = vmatmul.mubr.f32.gmra.mrb[0].mxu0 %v4814
  %v4897 = vpop.f32.mrb[0].mxu0
  %v4898 = vadd.f32 0.0, %v4897
  %v4899 = vpop.f32.mrb[0].mxu0
  %4900 = vdwg.mxu0
  %4901 = vmatprep.subr.mxu0 0.0
  %4902 = vmatpush1.msra.mxu0 %v4883
  %4903 = vmatprep.subr.mxu0 0.0
  %4904 = vmatpush1.msra.mxu0 %v4888
  %4905 = vmatprep.subr.mxu0 0.0
  %4906 = vmatpush1.msra.mxu0 %v4893
  %4907 = vmatprep.subr.mxu0 0.0
  %4908 = vmatpush1.msra.mxu0 %v4898
  %4909 = vmatprep.subr.mxu0 0.0
  %4910 = vmatpush1.msra.mxu0 0.0
  %4911 = vmatprep.subr.mxu0 0.0
  %4912 = vmatpush1.msra.mxu0 0.0
  %4913 = vmatprep.subr.mxu0 0.0
  %4914 = vmatpush1.msra.mxu0 0.0
  %4915 = vmatprep.subr.mxu0 0.0
  %4916 = vmatpush1.msra.mxu0 0.0
  %4917 = vmatprep.subr.mxu0 0.0
  %4918 = vmatpush1.msra.mxu0 0.0
  %4919 = vmatprep.subr.mxu0 0.0
  %4920 = vmatpush1.msra.mxu0 0.0
  %4921 = vmatprep.subr.mxu0 0.0
  %4922 = vmatpush1.msra.mxu0 0.0
  %4923 = vmatprep.subr.mxu0 0.0
  %4924 = vmatpush1.msra.mxu0 0.0
  %4925 = vmatprep.subr.mxu0 0.0
  %4926 = vmatpush1.msra.mxu0 0.0
  %4927 = vmatprep.subr.mxu0 0.0
  %4928 = vmatpush1.msra.mxu0 0.0
  %4929 = vmatprep.subr.mxu0 0.0
  %4930 = vmatpush1.msra.mxu0 0.0
  %4931 = vmatprep.subr.mxu0 0.0
  %4932 = vmatpush1.msra.mxu0 0.0
  %4933 = vmatprep.subr.mxu0 0.0
  %4934 = vmatpush1.msra.mxu0 0.0
  %4935 = vmatprep.subr.mxu0 0.0
  %4936 = vmatpush1.msra.mxu0 0.0
  %4937 = vmatprep.subr.mxu0 0.0
  %4938 = vmatpush1.msra.mxu0 0.0
  %4939 = vmatprep.subr.mxu0 0.0
  %4940 = vmatpush1.msra.mxu0 0.0
  %4941 = vmatprep.subr.mxu0 0.0
  %4942 = vmatpush1.msra.mxu0 0.0
  %4943 = vmatprep.subr.mxu0 0.0
  %4944 = vmatpush1.msra.mxu0 0.0
  %4945 = vmatprep.subr.mxu0 0.0
  %4946 = vmatpush1.msra.mxu0 0.0
  %4947 = vmatprep.subr.mxu0 0.0
  %4948 = vmatpush1.msra.mxu0 0.0
  %4949 = vmatprep.subr.mxu0 0.0
  %4950 = vmatpush1.msra.mxu0 0.0
  %4951 = vmatprep.subr.mxu0 0.0
  %4952 = vmatpush1.msra.mxu0 0.0
  %4953 = vmatprep.subr.mxu0 0.0
  %4954 = vmatpush1.msra.mxu0 0.0
  %4955 = vmatprep.subr.mxu0 0.0
  %4956 = vmatpush1.msra.mxu0 0.0
  %4957 = vmatprep.subr.mxu0 0.0
  %4958 = vmatpush1.msra.mxu0 0.0
  %4959 = vmatprep.subr.mxu0 0.0
  %4960 = vmatpush1.msra.mxu0 0.0
  %4961 = vmatprep.subr.mxu0 0.0
  %4962 = vmatpush1.msra.mxu0 0.0
  %4963 = vmatprep.subr.mxu0 0.0
  %4964 = vmatpush1.msra.mxu0 0.0
  %4965 = vmatprep.mubr.f32.mxu0 0.0
  %4966 = vmatmul.mubr.f32.gmra.mrb[0].mxu0 %v2651
  %v4967 = vpop.f32.mrb[0].mxu0
  %v4968 = vadd.f32 0.0, %v4967
  %v4969 = vpop.f32.mrb[0].mxu0
  %4970 = vmatprep.mubr.f32.mxu0 0.0
  %4971 = vmatmul.mubr.f32.gmra.mrb[0].mxu0 %v2654
  %v4972 = vpop.f32.mrb[0].mxu0
  %v4973 = vadd.f32 0.0, %v4972
  %v4974 = vpop.f32.mrb[0].mxu0
  %4975 = vdwg.mxu0
  %s4976 = scalar_lea.vmem %s18, 16
  %4977 = vst.msk [vmem:[%s4976] sm:$0xff] %vm487, %v4968
  %4978 = vst.msk [vmem:[%s4976 + $0x8] sm:$0xff] %vm487, %v4973
  %v4980 = vsel %vm487, %v4968, 0
  %v4983 = vsel %vm487, %v4973, 0
  %4985 = vmatprep.subr.mxu0 0.0
  %4986 = vmatpush1.msra.mxu0 %v398
  %4987 = vmatprep.subr.mxu0 0.0
  %4988 = vmatpush1.msra.mxu0 0.0
  %4989 = vmatprep.subr.mxu0 0.0
  %4990 = vmatpush1.msra.mxu0 0.0
  %4991 = vmatprep.subr.mxu0 0.0
  %4992 = vmatpush1.msra.mxu0 0.0
  %4993 = vmatprep.subr.mxu0 0.0
  %4994 = vmatpush1.msra.mxu0 0.0
  %4995 = vmatprep.subr.mxu0 0.0
  %4996 = vmatpush1.msra.mxu0 0.0
  %4997 = vmatprep.subr.mxu0 0.0
  %4998 = vmatpush1.msra.mxu0 0.0
  %4999 = vmatprep.subr.mxu0 0.0
  %5000 = vmatpush1.msra.mxu0 0.0
  %5001 = vmatprep.subr.mxu0 0.0
  %5002 = vmatpush1.msra.mxu0 0.0
  %5003 = vmatprep.subr.mxu0 0.0
  %5004 = vmatpush1.msra.mxu0 0.0
  %5005 = vmatprep.subr.mxu0 0.0
  %5006 = vmatpush1.msra.mxu0 0.0
  %5007 = vmatprep.subr.mxu0 0.0
  %5008 = vmatpush1.msra.mxu0 0.0
  %5009 = vmatprep.subr.mxu0 0.0
  %5010 = vmatpush1.msra.mxu0 0.0
  %5011 = vmatprep.subr.mxu0 0.0
  %5012 = vmatpush1.msra.mxu0 0.0
  %5013 = vmatprep.subr.mxu0 0.0
  %5014 = vmatpush1.msra.mxu0 0.0
  %5015 = vmatprep.subr.mxu0 0.0
  %5016 = vmatpush1.msra.mxu0 0.0
  %5017 = vmatprep.subr.mxu0 0.0
  %5018 = vmatpush1.msra.mxu0 0.0
  %5019 = vmatprep.subr.mxu0 0.0
  %5020 = vmatpush1.msra.mxu0 0.0
  %5021 = vmatprep.subr.mxu0 0.0
  %5022 = vmatpush1.msra.mxu0 0.0
  %5023 = vmatprep.subr.mxu0 0.0
  %5024 = vmatpush1.msra.mxu0 0.0
  %5025 = vmatprep.subr.mxu0 0.0
  %5026 = vmatpush1.msra.mxu0 0.0
  %5027 = vmatprep.subr.mxu0 0.0
  %5028 = vmatpush1.msra.mxu0 0.0
  %5029 = vmatprep.subr.mxu0 0.0
  %5030 = vmatpush1.msra.mxu0 0.0
  %5031 = vmatprep.subr.mxu0 0.0
  %5032 = vmatpush1.msra.mxu0 0.0
  %5033 = vmatprep.subr.mxu0 0.0
  %5034 = vmatpush1.msra.mxu0 0.0
  %5035 = vmatprep.subr.mxu0 0.0
  %5036 = vmatpush1.msra.mxu0 0.0
  %5037 = vmatprep.subr.mxu0 0.0
  %5038 = vmatpush1.msra.mxu0 0.0
  %5039 = vmatprep.subr.mxu0 0.0
  %5040 = vmatpush1.msra.mxu0 0.0
  %5041 = vmatprep.subr.mxu0 0.0
  %5042 = vmatpush1.msra.mxu0 0.0
  %5043 = vmatprep.subr.mxu0 0.0
  %5044 = vmatpush1.msra.mxu0 0.0
  %5045 = vmatprep.subr.mxu0 0.0
  %5046 = vmatpush1.msra.mxu0 0.0
  %5047 = vmatprep.subr.mxu0 0.0
  %5048 = vmatpush1.msra.mxu0 0.0
  %5049 = vmatprep.mubr.f32.mxu0 0.0
  %5050 = vmatmul.mubr.f32.gmra.mrb[0].mxu0 %v4980
  %v5051 = vpop.f32.mrb[0].mxu0
  %v5052 = vadd.f32 0.0, %v5051
  %v5053 = vpop.f32.mrb[0].mxu0
  %5054 = vmatprep.mubr.f32.mxu0 0.0
  %5055 = vmatmul.mubr.f32.gmra.mrb[0].mxu0 %v4983
  %v5056 = vpop.f32.mrb[0].mxu0
  %v5057 = vadd.f32 0.0, %v5056
  %v5058 = vpop.f32.mrb[0].mxu0
  %5059 = vdwg.mxu0
  %5060 = vmatprep.subr.mxu0 0.0
  %5061 = vmatpush1.msra.mxu0 %v405
  %5062 = vmatprep.subr.mxu0 0.0
  %5063 = vmatpush1.msra.mxu0 0.0
  %5064 = vmatprep.subr.mxu0 0.0
  %5065 = vmatpush1.msra.mxu0 0.0
  %5066 = vmatprep.subr.mxu0 0.0
  %5067 = vmatpush1.msra.mxu0 0.0
  %5068 = vmatprep.subr.mxu0 0.0
  %5069 = vmatpush1.msra.mxu0 0.0
  %5070 = vmatprep.subr.mxu0 0.0
  %5071 = vmatpush1.msra.mxu0 0.0
  %5072 = vmatprep.subr.mxu0 0.0
  %5073 = vmatpush1.msra.mxu0 0.0
  %5074 = vmatprep.subr.mxu0 0.0
  %5075 = vmatpush1.msra.mxu0 0.0
  %5076 = vmatprep.subr.mxu0 0.0
  %5077 = vmatpush1.msra.mxu0 0.0
  %5078 = vmatprep.subr.mxu0 0.0
  %5079 = vmatpush1.msra.mxu0 0.0
  %5080 = vmatprep.subr.mxu0 0.0
  %5081 = vmatpush1.msra.mxu0 0.0
  %5082 = vmatprep.subr.mxu0 0.0
  %5083 = vmatpush1.msra.mxu0 0.0
  %5084 = vmatprep.subr.mxu0 0.0
  %5085 = vmatpush1.msra.mxu0 0.0
  %5086 = vmatprep.subr.mxu0 0.0
  %5087 = vmatpush1.msra.mxu0 0.0
  %5088 = vmatprep.subr.mxu0 0.0
  %5089 = vmatpush1.msra.mxu0 0.0
  %5090 = vmatprep.subr.mxu0 0.0
  %5091 = vmatpush1.msra.mxu0 0.0
  %5092 = vmatprep.subr.mxu0 0.0
  %5093 = vmatpush1.msra.mxu0 0.0
  %5094 = vmatprep.subr.mxu0 0.0
  %5095 = vmatpush1.msra.mxu0 0.0
  %5096 = vmatprep.subr.mxu0 0.0
  %5097 = vmatpush1.msra.mxu0 0.0
  %5098 = vmatprep.subr.mxu0 0.0
  %5099 = vmatpush1.msra.mxu0 0.0
  %5100 = vmatprep.subr.mxu0 0.0
  %5101 = vmatpush1.msra.mxu0 0.0
  %5102 = vmatprep.subr.mxu0 0.0
  %5103 = vmatpush1.msra.mxu0 0.0
  %5104 = vmatprep.subr.mxu0 0.0
  %5105 = vmatpush1.msra.mxu0 0.0
  %5106 = vmatprep.subr.mxu0 0.0
  %5107 = vmatpush1.msra.mxu0 0.0
  %5108 = vmatprep.subr.mxu0 0.0
  %5109 = vmatpush1.msra.mxu0 0.0
  %5110 = vmatprep.subr.mxu0 0.0
  %5111 = vmatpush1.msra.mxu0 0.0
  %5112 = vmatprep.subr.mxu0 0.0
  %5113 = vmatpush1.msra.mxu0 0.0
  %5114 = vmatprep.subr.mxu0 0.0
  %5115 = vmatpush1.msra.mxu0 0.0
  %5116 = vmatprep.subr.mxu0 0.0
  %5117 = vmatpush1.msra.mxu0 0.0
  %5118 = vmatprep.subr.mxu0 0.0
  %5119 = vmatpush1.msra.mxu0 0.0
  %5120 = vmatprep.subr.mxu0 0.0
  %5121 = vmatpush1.msra.mxu0 0.0
  %5122 = vmatprep.subr.mxu0 0.0
  %5123 = vmatpush1.msra.mxu0 0.0
  %5124 = vmatprep.mubr.f32.mxu0 0.0
  %5125 = vmatmul.mubr.f32.gmra.mrb[0].mxu0 %v4980
  %v5126 = vpop.f32.mrb[0].mxu0
  %v5127 = vadd.f32 0.0, %v5126
  %v5128 = vpop.f32.mrb[0].mxu0
  %5129 = vmatprep.mubr.f32.mxu0 0.0
  %5130 = vmatmul.mubr.f32.gmra.mrb[0].mxu0 %v4983
  %v5131 = vpop.f32.mrb[0].mxu0
  %v5132 = vadd.f32 0.0, %v5131
  %v5133 = vpop.f32.mrb[0].mxu0
  %5134 = vdwg.mxu0
  %5135 = vmatprep.subr.mxu0 0.0
  %5136 = vmatpush1.msra.mxu0 %v412
  %5137 = vmatprep.subr.mxu0 0.0
  %5138 = vmatpush1.msra.mxu0 0.0
  %5139 = vmatprep.subr.mxu0 0.0
  %5140 = vmatpush1.msra.mxu0 0.0
  %5141 = vmatprep.subr.mxu0 0.0
  %5142 = vmatpush1.msra.mxu0 0.0
  %5143 = vmatprep.subr.mxu0 0.0
  %5144 = vmatpush1.msra.mxu0 0.0
  %5145 = vmatprep.subr.mxu0 0.0
  %5146 = vmatpush1.msra.mxu0 0.0
  %5147 = vmatprep.subr.mxu0 0.0
  %5148 = vmatpush1.msra.mxu0 0.0
  %5149 = vmatprep.subr.mxu0 0.0
  %5150 = vmatpush1.msra.mxu0 0.0
  %5151 = vmatprep.subr.mxu0 0.0
  %5152 = vmatpush1.msra.mxu0 0.0
  %5153 = vmatprep.subr.mxu0 0.0
  %5154 = vmatpush1.msra.mxu0 0.0
  %5155 = vmatprep.subr.mxu0 0.0
  %5156 = vmatpush1.msra.mxu0 0.0
  %5157 = vmatprep.subr.mxu0 0.0
  %5158 = vmatpush1.msra.mxu0 0.0
  %5159 = vmatprep.subr.mxu0 0.0
  %5160 = vmatpush1.msra.mxu0 0.0
  %5161 = vmatprep.subr.mxu0 0.0
  %5162 = vmatpush1.msra.mxu0 0.0
  %5163 = vmatprep.subr.mxu0 0.0
  %5164 = vmatpush1.msra.mxu0 0.0
  %5165 = vmatprep.subr.mxu0 0.0
  %5166 = vmatpush1.msra.mxu0 0.0
  %5167 = vmatprep.subr.mxu0 0.0
  %5168 = vmatpush1.msra.mxu0 0.0
  %5169 = vmatprep.subr.mxu0 0.0
  %5170 = vmatpush1.msra.mxu0 0.0
  %5171 = vmatprep.subr.mxu0 0.0
  %5172 = vmatpush1.msra.mxu0 0.0
  %5173 = vmatprep.subr.mxu0 0.0
  %5174 = vmatpush1.msra.mxu0 0.0
  %5175 = vmatprep.subr.mxu0 0.0
  %5176 = vmatpush1.msra.mxu0 0.0
  %5177 = vmatprep.subr.mxu0 0.0
  %5178 = vmatpush1.msra.mxu0 0.0
  %5179 = vmatprep.subr.mxu0 0.0
  %5180 = vmatpush1.msra.mxu0 0.0
  %5181 = vmatprep.subr.mxu0 0.0
  %5182 = vmatpush1.msra.mxu0 0.0
  %5183 = vmatprep.subr.mxu0 0.0
  %5184 = vmatpush1.msra.mxu0 0.0
  %5185 = vmatprep.subr.mxu0 0.0
  %5186 = vmatpush1.msra.mxu0 0.0
  %5187 = vmatprep.subr.mxu0 0.0
  %5188 = vmatpush1.msra.mxu0 0.0
  %5189 = vmatprep.subr.mxu0 0.0
  %5190 = vmatpush1.msra.mxu0 0.0
  %5191 = vmatprep.subr.mxu0 0.0
  %5192 = vmatpush1.msra.mxu0 0.0
  %5193 = vmatprep.subr.mxu0 0.0
  %5194 = vmatpush1.msra.mxu0 0.0
  %5195 = vmatprep.subr.mxu0 0.0
  %5196 = vmatpush1.msra.mxu0 0.0
  %5197 = vmatprep.subr.mxu0 0.0
  %5198 = vmatpush1.msra.mxu0 0.0
  %5199 = vmatprep.mubr.f32.mxu0 0.0
  %5200 = vmatmul.mubr.f32.gmra.mrb[0].mxu0 %v4980
  %v5201 = vpop.f32.mrb[0].mxu0
  %v5202 = vadd.f32 0.0, %v5201
  %v5203 = vpop.f32.mrb[0].mxu0
  %5204 = vmatprep.mubr.f32.mxu0 0.0
  %5205 = vmatmul.mubr.f32.gmra.mrb[0].mxu0 %v4983
  %v5206 = vpop.f32.mrb[0].mxu0
  %v5207 = vadd.f32 0.0, %v5206
  %v5208 = vpop.f32.mrb[0].mxu0
  %5209 = vdwg.mxu0
  %s5210 = scalar_lea.vmem %s9, 64
  %v5211 = vld [vmem:[%s5210] sm:$0xff]
  %v5212 = vld [vmem:[%s5210 + $0x8] sm:$0xff]
  %v5213 = vld [vmem:[%s5210 + $0x10] sm:$0xff]
  %v5214 = vld [vmem:[%s5210 + $0x18] sm:$0xff]
  %s5215 = scalar_lea.vmem %s10, 64
  %v5216 = vld [vmem:[%s5215] sm:$0xff]
  %v5217 = vld [vmem:[%s5215 + $0x8] sm:$0xff]
  %v5218 = vld [vmem:[%s5215 + $0x10] sm:$0xff]
  %v5219 = vld [vmem:[%s5215 + $0x18] sm:$0xff]
  %5221 = vset.pattern.permute.xlu0 0
  %5222 = vperm.xlu0 %5221, %v5216
  %v5223 = vpop.permute.xlu0 %5222
  %5226 = vset.pattern.permute.xlu0 0
  %5227 = vperm.xlu0 %5226, %v5217
  %v5228 = vpop.permute.xlu0 %5227
  %5231 = vset.pattern.permute.xlu0 0
  %5232 = vperm.xlu0 %5231, %v5218
  %v5233 = vpop.permute.xlu0 %5232
  %5236 = vset.pattern.permute.xlu0 0
  %5237 = vperm.xlu0 %5236, %v5219
  %v5238 = vpop.permute.xlu0 %5237
  %v5241 = vsel %vm747, %v5211, 0
  %v5244 = vsel %vm747, %v5212, 0
  %v5247 = vsel %vm747, %v5213, 0
  %v5250 = vsel %vm747, %v5214, 0
  %5252 = vmatprep.subr.mxu0 0.0
  %5253 = vmatpush1.msra.mxu0 %v5052
  %5254 = vmatprep.subr.mxu0 0.0
  %5255 = vmatpush1.msra.mxu0 %v5057
  %5256 = vmatprep.subr.mxu0 0.0
  %5257 = vmatpush1.msra.mxu0 %v5127
  %5258 = vmatprep.subr.mxu0 0.0
  %5259 = vmatpush1.msra.mxu0 %v5132
  %5260 = vmatprep.subr.mxu0 0.0
  %5261 = vmatpush1.msra.mxu0 %v5202
  %5262 = vmatprep.subr.mxu0 0.0
  %5263 = vmatpush1.msra.mxu0 %v5207
  %5264 = vmatprep.subr.mxu0 0.0
  %5265 = vmatpush1.msra.mxu0 %v387
  %5266 = vmatprep.subr.mxu0 0.0
  %5267 = vmatpush1.msra.mxu0 %v388
  %5268 = vmatprep.subr.mxu0 0.0
  %5269 = vmatpush1.msra.mxu0 0.0
  %5270 = vmatprep.subr.mxu0 0.0
  %5271 = vmatpush1.msra.mxu0 0.0
  %5272 = vmatprep.subr.mxu0 0.0
  %5273 = vmatpush1.msra.mxu0 0.0
  %5274 = vmatprep.subr.mxu0 0.0
  %5275 = vmatpush1.msra.mxu0 0.0
  %5276 = vmatprep.subr.mxu0 0.0
  %5277 = vmatpush1.msra.mxu0 0.0
  %5278 = vmatprep.subr.mxu0 0.0
  %5279 = vmatpush1.msra.mxu0 0.0
  %5280 = vmatprep.subr.mxu0 0.0
  %5281 = vmatpush1.msra.mxu0 0.0
  %5282 = vmatprep.subr.mxu0 0.0
  %5283 = vmatpush1.msra.mxu0 0.0
  %5284 = vmatprep.subr.mxu0 0.0
  %5285 = vmatpush1.msra.mxu0 0.0
  %5286 = vmatprep.subr.mxu0 0.0
  %5287 = vmatpush1.msra.mxu0 0.0
  %5288 = vmatprep.subr.mxu0 0.0
  %5289 = vmatpush1.msra.mxu0 0.0
  %5290 = vmatprep.subr.mxu0 0.0
  %5291 = vmatpush1.msra.mxu0 0.0
  %5292 = vmatprep.subr.mxu0 0.0
  %5293 = vmatpush1.msra.mxu0 0.0
  %5294 = vmatprep.subr.mxu0 0.0
  %5295 = vmatpush1.msra.mxu0 0.0
  %5296 = vmatprep.subr.mxu0 0.0
  %5297 = vmatpush1.msra.mxu0 0.0
  %5298 = vmatprep.subr.mxu0 0.0
  %5299 = vmatpush1.msra.mxu0 0.0
  %5300 = vmatprep.subr.mxu0 0.0
  %5301 = vmatpush1.msra.mxu0 0.0
  %5302 = vmatprep.subr.mxu0 0.0
  %5303 = vmatpush1.msra.mxu0 0.0
  %5304 = vmatprep.subr.mxu0 0.0
  %5305 = vmatpush1.msra.mxu0 0.0
  %5306 = vmatprep.subr.mxu0 0.0
  %5307 = vmatpush1.msra.mxu0 0.0
  %5308 = vmatprep.subr.mxu0 0.0
  %5309 = vmatpush1.msra.mxu0 0.0
  %5310 = vmatprep.subr.mxu0 0.0
  %5311 = vmatpush1.msra.mxu0 0.0
  %5312 = vmatprep.subr.mxu0 0.0
  %5313 = vmatpush1.msra.mxu0 0.0
  %5314 = vmatprep.subr.mxu0 0.0
  %5315 = vmatpush1.msra.mxu0 0.0
  %5316 = vmatprep.mubr.f32.mxu0 0.0
  %5317 = vmatmul.mubr.f32.gmra.mrb[0].mxu0 %v5241
  %v5318 = vpop.f32.mrb[0].mxu0
  %v5319 = vadd.f32 %v5223, %v5318
  %v5320 = vpop.f32.mrb[0].mxu0
  %5321 = vmatprep.mubr.f32.mxu0 0.0
  %5322 = vmatmul.mubr.f32.gmra.mrb[0].mxu0 %v5244
  %v5323 = vpop.f32.mrb[0].mxu0
  %v5324 = vadd.f32 %v5228, %v5323
  %v5325 = vpop.f32.mrb[0].mxu0
  %5326 = vmatprep.mubr.f32.mxu0 0.0
  %5327 = vmatmul.mubr.f32.gmra.mrb[0].mxu0 %v5247
  %v5328 = vpop.f32.mrb[0].mxu0
  %v5329 = vadd.f32 %v5233, %v5328
  %v5330 = vpop.f32.mrb[0].mxu0
  %5331 = vmatprep.mubr.f32.mxu0 0.0
  %5332 = vmatmul.mubr.f32.gmra.mrb[0].mxu0 %v5250
  %v5333 = vpop.f32.mrb[0].mxu0
  %v5334 = vadd.f32 %v5238, %v5333
  %v5335 = vpop.f32.mrb[0].mxu0
  %5336 = vdwg.mxu0
  %s5337 = scalar_lea.vmem %s11, 64
  %v5338 = vld [vmem:[%s5337] sm:$0xff]
  %v5339 = vld [vmem:[%s5337 + $0x8] sm:$0xff]
  %v5340 = vld [vmem:[%s5337 + $0x10] sm:$0xff]
  %v5341 = vld [vmem:[%s5337 + $0x18] sm:$0xff]
  %s5342 = scalar_lea.vmem %s12, 64
  %v5343 = vld [vmem:[%s5342] sm:$0xff]
  %v5344 = vld [vmem:[%s5342 + $0x8] sm:$0xff]
  %v5345 = vld [vmem:[%s5342 + $0x10] sm:$0xff]
  %v5346 = vld [vmem:[%s5342 + $0x18] sm:$0xff]
  %v5347 = vmul.f32 %v5319, %v450
  %v5348 = vmul.f32 %v5324, %v451
  %v5349 = vmul.f32 %v5329, %v452
  %v5350 = vmul.f32 %v5334, %v453
  %v5352 = vsel %vm162, %v5347, 0
  %v5355 = vsel %vm162, %v5348, 0
  %v5358 = vsel %vm162, %v5349, 0
  %v5361 = vsel %vm162, %v5350, 0
  %5363 = vmatprep.subr.mxu0 0.0
  %5364 = vmatpush1.msra.mxu0 1.0
  %5365 = vmatprep.subr.mxu0 0.0
  %5366 = vmatpush1.msra.mxu0 1.0
  %5367 = vmatprep.subr.mxu0 0.0
  %5368 = vmatpush1.msra.mxu0 0.0
  %5369 = vmatprep.subr.mxu0 0.0
  %5370 = vmatpush1.msra.mxu0 0.0
  %5371 = vmatprep.subr.mxu0 0.0
  %5372 = vmatpush1.msra.mxu0 0.0
  %5373 = vmatprep.subr.mxu0 0.0
  %5374 = vmatpush1.msra.mxu0 0.0
  %5375 = vmatprep.subr.mxu0 0.0
  %5376 = vmatpush1.msra.mxu0 0.0
  %5377 = vmatprep.subr.mxu0 0.0
  %5378 = vmatpush1.msra.mxu0 0.0
  %5379 = vmatprep.subr.mxu0 0.0
  %5380 = vmatpush1.msra.mxu0 0.0
  %5381 = vmatprep.subr.mxu0 0.0
  %5382 = vmatpush1.msra.mxu0 0.0
  %5383 = vmatprep.subr.mxu0 0.0
  %5384 = vmatpush1.msra.mxu0 0.0
  %5385 = vmatprep.subr.mxu0 0.0
  %5386 = vmatpush1.msra.mxu0 0.0
  %5387 = vmatprep.subr.mxu0 0.0
  %5388 = vmatpush1.msra.mxu0 0.0
  %5389 = vmatprep.subr.mxu0 0.0
  %5390 = vmatpush1.msra.mxu0 0.0
  %5391 = vmatprep.subr.mxu0 0.0
  %5392 = vmatpush1.msra.mxu0 0.0
  %5393 = vmatprep.subr.mxu0 0.0
  %5394 = vmatpush1.msra.mxu0 0.0
  %5395 = vmatprep.subr.mxu0 0.0
  %5396 = vmatpush1.msra.mxu0 0.0
  %5397 = vmatprep.subr.mxu0 0.0
  %5398 = vmatpush1.msra.mxu0 0.0
  %5399 = vmatprep.subr.mxu0 0.0
  %5400 = vmatpush1.msra.mxu0 0.0
  %5401 = vmatprep.subr.mxu0 0.0
  %5402 = vmatpush1.msra.mxu0 0.0
  %5403 = vmatprep.subr.mxu0 0.0
  %5404 = vmatpush1.msra.mxu0 0.0
  %5405 = vmatprep.subr.mxu0 0.0
  %5406 = vmatpush1.msra.mxu0 0.0
  %5407 = vmatprep.subr.mxu0 0.0
  %5408 = vmatpush1.msra.mxu0 0.0
  %5409 = vmatprep.subr.mxu0 0.0
  %5410 = vmatpush1.msra.mxu0 0.0
  %5411 = vmatprep.subr.mxu0 0.0
  %5412 = vmatpush1.msra.mxu0 0.0
  %5413 = vmatprep.subr.mxu0 0.0
  %5414 = vmatpush1.msra.mxu0 0.0
  %5415 = vmatprep.subr.mxu0 0.0
  %5416 = vmatpush1.msra.mxu0 0.0
  %5417 = vmatprep.subr.mxu0 0.0
  %5418 = vmatpush1.msra.mxu0 0.0
  %5419 = vmatprep.subr.mxu0 0.0
  %5420 = vmatpush1.msra.mxu0 0.0
  %5421 = vmatprep.subr.mxu0 0.0
  %5422 = vmatpush1.msra.mxu0 0.0
  %5423 = vmatprep.subr.mxu0 0.0
  %5424 = vmatpush1.msra.mxu0 0.0
  %5425 = vmatprep.subr.mxu0 0.0
  %5426 = vmatpush1.msra.mxu0 0.0
  %5427 = vmatprep.mubr.f32.mxu0 0.0
  %5428 = vmatmul.mubr.f32.gmra.mrb[0].mxu0 %v5352
  %v5429 = vpop.f32.mrb[0].mxu0
  %v5430 = vadd.f32 0.0, %v5429
  %v5431 = vpop.f32.mrb[0].mxu0
  %5432 = vmatprep.mubr.f32.mxu0 0.0
  %5433 = vmatmul.mubr.f32.gmra.mrb[0].mxu0 %v5355
  %v5434 = vpop.f32.mrb[0].mxu0
  %v5435 = vadd.f32 0.0, %v5434
  %v5436 = vpop.f32.mrb[0].mxu0
  %5437 = vmatprep.mubr.f32.mxu0 0.0
  %5438 = vmatmul.mubr.f32.gmra.mrb[0].mxu0 %v5358
  %v5439 = vpop.f32.mrb[0].mxu0
  %v5440 = vadd.f32 0.0, %v5439
  %v5441 = vpop.f32.mrb[0].mxu0
  %5442 = vmatprep.mubr.f32.mxu0 0.0
  %5443 = vmatmul.mubr.f32.gmra.mrb[0].mxu0 %v5361
  %v5444 = vpop.f32.mrb[0].mxu0
  %v5445 = vadd.f32 0.0, %v5444
  %v5446 = vpop.f32.mrb[0].mxu0
  %5447 = vdwg.mxu0
  %v5448 = vmul.f32 %v5430, %v476
  %v5449 = vmul.f32 %v5435, %v478
  %v5450 = vmul.f32 %v5440, %v480
  %v5451 = vmul.f32 %v5445, %v482
  %5453 = vset.pattern.permute.xlu0 0
  %5454 = vperm.xlu0 %5453, %v5448
  %v5455 = vpop.permute.xlu0 %5454
  %5458 = vset.pattern.permute.xlu0 0
  %5459 = vperm.xlu0 %5458, %v5449
  %v5460 = vpop.permute.xlu0 %5459
  %5463 = vset.pattern.permute.xlu0 0
  %5464 = vperm.xlu0 %5463, %v5450
  %v5465 = vpop.permute.xlu0 %5464
  %5468 = vset.pattern.permute.xlu0 0
  %5469 = vperm.xlu0 %5468, %v5451
  %v5470 = vpop.permute.xlu0 %5469
  %v5472 = vsub.f32 %v5319, %v5455
  %v5473 = vsub.f32 %v5324, %v5460
  %v5474 = vsub.f32 %v5329, %v5465
  %v5475 = vsub.f32 %v5334, %v5470
  %v5476 = vmul.f32 %v5472, %v5472
  %v5477 = vmul.f32 %v5473, %v5473
  %v5478 = vmul.f32 %v5474, %v5474
  %v5479 = vmul.f32 %v5475, %v5475
  %v5480 = vmul.f32 %v5476, %v450
  %v5481 = vmul.f32 %v5477, %v451
  %v5482 = vmul.f32 %v5478, %v452
  %v5483 = vmul.f32 %v5479, %v453
  %v5485 = vsel %vm162, %v5480, 0
  %v5488 = vsel %vm162, %v5481, 0
  %v5491 = vsel %vm162, %v5482, 0
  %v5494 = vsel %vm162, %v5483, 0
  %5496 = vmatprep.subr.mxu0 0.0
  %5497 = vmatpush1.msra.mxu0 1.0
  %5498 = vmatprep.subr.mxu0 0.0
  %5499 = vmatpush1.msra.mxu0 1.0
  %5500 = vmatprep.subr.mxu0 0.0
  %5501 = vmatpush1.msra.mxu0 0.0
  %5502 = vmatprep.subr.mxu0 0.0
  %5503 = vmatpush1.msra.mxu0 0.0
  %5504 = vmatprep.subr.mxu0 0.0
  %5505 = vmatpush1.msra.mxu0 0.0
  %5506 = vmatprep.subr.mxu0 0.0
  %5507 = vmatpush1.msra.mxu0 0.0
  %5508 = vmatprep.subr.mxu0 0.0
  %5509 = vmatpush1.msra.mxu0 0.0
  %5510 = vmatprep.subr.mxu0 0.0
  %5511 = vmatpush1.msra.mxu0 0.0
  %5512 = vmatprep.subr.mxu0 0.0
  %5513 = vmatpush1.msra.mxu0 0.0
  %5514 = vmatprep.subr.mxu0 0.0
  %5515 = vmatpush1.msra.mxu0 0.0
  %5516 = vmatprep.subr.mxu0 0.0
  %5517 = vmatpush1.msra.mxu0 0.0
  %5518 = vmatprep.subr.mxu0 0.0
  %5519 = vmatpush1.msra.mxu0 0.0
  %5520 = vmatprep.subr.mxu0 0.0
  %5521 = vmatpush1.msra.mxu0 0.0
  %5522 = vmatprep.subr.mxu0 0.0
  %5523 = vmatpush1.msra.mxu0 0.0
  %5524 = vmatprep.subr.mxu0 0.0
  %5525 = vmatpush1.msra.mxu0 0.0
  %5526 = vmatprep.subr.mxu0 0.0
  %5527 = vmatpush1.msra.mxu0 0.0
  %5528 = vmatprep.subr.mxu0 0.0
  %5529 = vmatpush1.msra.mxu0 0.0
  %5530 = vmatprep.subr.mxu0 0.0
  %5531 = vmatpush1.msra.mxu0 0.0
  %5532 = vmatprep.subr.mxu0 0.0
  %5533 = vmatpush1.msra.mxu0 0.0
  %5534 = vmatprep.subr.mxu0 0.0
  %5535 = vmatpush1.msra.mxu0 0.0
  %5536 = vmatprep.subr.mxu0 0.0
  %5537 = vmatpush1.msra.mxu0 0.0
  %5538 = vmatprep.subr.mxu0 0.0
  %5539 = vmatpush1.msra.mxu0 0.0
  %5540 = vmatprep.subr.mxu0 0.0
  %5541 = vmatpush1.msra.mxu0 0.0
  %5542 = vmatprep.subr.mxu0 0.0
  %5543 = vmatpush1.msra.mxu0 0.0
  %5544 = vmatprep.subr.mxu0 0.0
  %5545 = vmatpush1.msra.mxu0 0.0
  %5546 = vmatprep.subr.mxu0 0.0
  %5547 = vmatpush1.msra.mxu0 0.0
  %5548 = vmatprep.subr.mxu0 0.0
  %5549 = vmatpush1.msra.mxu0 0.0
  %5550 = vmatprep.subr.mxu0 0.0
  %5551 = vmatpush1.msra.mxu0 0.0
  %5552 = vmatprep.subr.mxu0 0.0
  %5553 = vmatpush1.msra.mxu0 0.0
  %5554 = vmatprep.subr.mxu0 0.0
  %5555 = vmatpush1.msra.mxu0 0.0
  %5556 = vmatprep.subr.mxu0 0.0
  %5557 = vmatpush1.msra.mxu0 0.0
  %5558 = vmatprep.subr.mxu0 0.0
  %5559 = vmatpush1.msra.mxu0 0.0
  %5560 = vmatprep.mubr.f32.mxu0 0.0
  %5561 = vmatmul.mubr.f32.gmra.mrb[0].mxu0 %v5485
  %v5562 = vpop.f32.mrb[0].mxu0
  %v5563 = vadd.f32 0.0, %v5562
  %v5564 = vpop.f32.mrb[0].mxu0
  %5565 = vmatprep.mubr.f32.mxu0 0.0
  %5566 = vmatmul.mubr.f32.gmra.mrb[0].mxu0 %v5488
  %v5567 = vpop.f32.mrb[0].mxu0
  %v5568 = vadd.f32 0.0, %v5567
  %v5569 = vpop.f32.mrb[0].mxu0
  %5570 = vmatprep.mubr.f32.mxu0 0.0
  %5571 = vmatmul.mubr.f32.gmra.mrb[0].mxu0 %v5491
  %v5572 = vpop.f32.mrb[0].mxu0
  %v5573 = vadd.f32 0.0, %v5572
  %v5574 = vpop.f32.mrb[0].mxu0
  %5575 = vmatprep.mubr.f32.mxu0 0.0
  %5576 = vmatmul.mubr.f32.gmra.mrb[0].mxu0 %v5494
  %v5577 = vpop.f32.mrb[0].mxu0
  %v5578 = vadd.f32 0.0, %v5577
  %v5579 = vpop.f32.mrb[0].mxu0
  %5580 = vdwg.mxu0
  %v5581 = vmul.f32 %v5563, %v476
  %v5582 = vmul.f32 %v5568, %v478
  %v5583 = vmul.f32 %v5573, %v480
  %v5584 = vmul.f32 %v5578, %v482
  %v5585 = vadd.f32 %v5581, 1e-05
  %v5586 = vadd.f32 %v5582, 1e-05
  %v5587 = vadd.f32 %v5583, 1e-05
  %v5588 = vadd.f32 %v5584, 1e-05
  %v5589 = vrsqrt.pop %v5585
  %v5590 = vrsqrt.pop %v5586
  %v5591 = vrsqrt.pop %v5587
  %v5592 = vrsqrt.pop %v5588
  %5594 = vset.pattern.permute.xlu0 0
  %5595 = vperm.xlu0 %5594, %v5589
  %v5596 = vpop.permute.xlu0 %5595
  %5599 = vset.pattern.permute.xlu0 0
  %5600 = vperm.xlu0 %5599, %v5590
  %v5601 = vpop.permute.xlu0 %5600
  %5604 = vset.pattern.permute.xlu0 0
  %5605 = vperm.xlu0 %5604, %v5591
  %v5606 = vpop.permute.xlu0 %5605
  %5609 = vset.pattern.permute.xlu0 0
  %5610 = vperm.xlu0 %5609, %v5592
  %v5611 = vpop.permute.xlu0 %5610
  %v5613 = vmul.f32 %v5472, %v5596
  %v5614 = vmul.f32 %v5473, %v5601
  %v5615 = vmul.f32 %v5474, %v5606
  %v5616 = vmul.f32 %v5475, %v5611
  %5618 = vset.pattern.permute.xlu0 0
  %5619 = vperm.xlu0 %5618, %v5338
  %v5620 = vpop.permute.xlu0 %5619
  %5623 = vset.pattern.permute.xlu0 0
  %5624 = vperm.xlu0 %5623, %v5339
  %v5625 = vpop.permute.xlu0 %5624
  %5628 = vset.pattern.permute.xlu0 0
  %5629 = vperm.xlu0 %5628, %v5340
  %v5630 = vpop.permute.xlu0 %5629
  %5633 = vset.pattern.permute.xlu0 0
  %5634 = vperm.xlu0 %5633, %v5341
  %v5635 = vpop.permute.xlu0 %5634
  %v5637 = vmul.f32 %v5613, %v5620
  %v5638 = vmul.f32 %v5614, %v5625
  %v5639 = vmul.f32 %v5615, %v5630
  %v5640 = vmul.f32 %v5616, %v5635
  %5642 = vset.pattern.permute.xlu0 0
  %5643 = vperm.xlu0 %5642, %v5343
  %v5644 = vpop.permute.xlu0 %5643
  %5647 = vset.pattern.permute.xlu0 0
  %5648 = vperm.xlu0 %5647, %v5344
  %v5649 = vpop.permute.xlu0 %5648
  %5652 = vset.pattern.permute.xlu0 0
  %5653 = vperm.xlu0 %5652, %v5345
  %v5654 = vpop.permute.xlu0 %5653
  %5657 = vset.pattern.permute.xlu0 0
  %5658 = vperm.xlu0 %5657, %v5346
  %v5659 = vpop.permute.xlu0 %5658
  %v5661 = vadd.f32 %v5637, %v5644
  %v5662 = vadd.f32 %v5638, %v5649
  %v5663 = vadd.f32 %v5639, %v5654
  %v5664 = vadd.f32 %v5640, %v5659
  %v5665 = vmax.f32 %v5661, 0.0
  %v5666 = vmax.f32 %v5662, 0.0
  %v5667 = vmax.f32 %v5663, 0.0
  %v5668 = vmax.f32 %v5664, 0.0
  %s5669 = scalar_lea.vmem %s13, 192
  %v5670 = vld [vmem:[%s5669] sm:$0xff]
  %v5671 = vld [vmem:[%s5669 + $0x8] sm:$0xff]
  %v5672 = vld [vmem:[%s5669 + $0x10] sm:$0xff]
  %v5673 = vld [vmem:[%s5669 + $0x18] sm:$0xff]
  %s5674 = scalar_lea.vmem %s14, 192
  %v5675 = vld [vmem:[%s5674] sm:$0xff]
  %v5676 = vld [vmem:[%s5674 + $0x8] sm:$0xff]
  %v5677 = vld [vmem:[%s5674 + $0x10] sm:$0xff]
  %v5678 = vld [vmem:[%s5674 + $0x18] sm:$0xff]
  %5680 = vset.pattern.permute.xlu0 0
  %5681 = vperm.xlu0 %5680, %v5675
  %v5682 = vpop.permute.xlu0 %5681
  %5685 = vset.pattern.permute.xlu0 0
  %5686 = vperm.xlu0 %5685, %v5676
  %v5687 = vpop.permute.xlu0 %5686
  %5690 = vset.pattern.permute.xlu0 0
  %5691 = vperm.xlu0 %5690, %v5677
  %v5692 = vpop.permute.xlu0 %5691
  %5695 = vset.pattern.permute.xlu0 0
  %5696 = vperm.xlu0 %5695, %v5678
  %v5697 = vpop.permute.xlu0 %5696
  %v5700 = vsel %vm1203, %v5670, 0
  %v5703 = vsel %vm1203, %v5671, 0
  %v5706 = vsel %vm1203, %v5672, 0
  %v5709 = vsel %vm1203, %v5673, 0
  %5711 = vmatprep.subr.mxu0 0.0
  %5712 = vmatpush1.msra.mxu0 %v5665
  %5713 = vmatprep.subr.mxu0 0.0
  %5714 = vmatpush1.msra.mxu0 %v5666
  %5715 = vmatprep.subr.mxu0 0.0
  %5716 = vmatpush1.msra.mxu0 %v5667
  %5717 = vmatprep.subr.mxu0 0.0
  %5718 = vmatpush1.msra.mxu0 %v5668
  %5719 = vmatprep.subr.mxu0 0.0
  %5720 = vmatpush1.msra.mxu0 0.0
  %5721 = vmatprep.subr.mxu0 0.0
  %5722 = vmatpush1.msra.mxu0 0.0
  %5723 = vmatprep.subr.mxu0 0.0
  %5724 = vmatpush1.msra.mxu0 0.0
  %5725 = vmatprep.subr.mxu0 0.0
  %5726 = vmatpush1.msra.mxu0 0.0
  %5727 = vmatprep.subr.mxu0 0.0
  %5728 = vmatpush1.msra.mxu0 0.0
  %5729 = vmatprep.subr.mxu0 0.0
  %5730 = vmatpush1.msra.mxu0 0.0
  %5731 = vmatprep.subr.mxu0 0.0
  %5732 = vmatpush1.msra.mxu0 0.0
  %5733 = vmatprep.subr.mxu0 0.0
  %5734 = vmatpush1.msra.mxu0 0.0
  %5735 = vmatprep.subr.mxu0 0.0
  %5736 = vmatpush1.msra.mxu0 0.0
  %5737 = vmatprep.subr.mxu0 0.0
  %5738 = vmatpush1.msra.mxu0 0.0
  %5739 = vmatprep.subr.mxu0 0.0
  %5740 = vmatpush1.msra.mxu0 0.0
  %5741 = vmatprep.subr.mxu0 0.0
  %5742 = vmatpush1.msra.mxu0 0.0
  %5743 = vmatprep.subr.mxu0 0.0
  %5744 = vmatpush1.msra.mxu0 0.0
  %5745 = vmatprep.subr.mxu0 0.0
  %5746 = vmatpush1.msra.mxu0 0.0
  %5747 = vmatprep.subr.mxu0 0.0
  %5748 = vmatpush1.msra.mxu0 0.0
  %5749 = vmatprep.subr.mxu0 0.0
  %5750 = vmatpush1.msra.mxu0 0.0
  %5751 = vmatprep.subr.mxu0 0.0
  %5752 = vmatpush1.msra.mxu0 0.0
  %5753 = vmatprep.subr.mxu0 0.0
  %5754 = vmatpush1.msra.mxu0 0.0
  %5755 = vmatprep.subr.mxu0 0.0
  %5756 = vmatpush1.msra.mxu0 0.0
  %5757 = vmatprep.subr.mxu0 0.0
  %5758 = vmatpush1.msra.mxu0 0.0
  %5759 = vmatprep.subr.mxu0 0.0
  %5760 = vmatpush1.msra.mxu0 0.0
  %5761 = vmatprep.subr.mxu0 0.0
  %5762 = vmatpush1.msra.mxu0 0.0
  %5763 = vmatprep.subr.mxu0 0.0
  %5764 = vmatpush1.msra.mxu0 0.0
  %5765 = vmatprep.subr.mxu0 0.0
  %5766 = vmatpush1.msra.mxu0 0.0
  %5767 = vmatprep.subr.mxu0 0.0
  %5768 = vmatpush1.msra.mxu0 0.0
  %5769 = vmatprep.subr.mxu0 0.0
  %5770 = vmatpush1.msra.mxu0 0.0
  %5771 = vmatprep.subr.mxu0 0.0
  %5772 = vmatpush1.msra.mxu0 0.0
  %5773 = vmatprep.subr.mxu0 0.0
  %5774 = vmatpush1.msra.mxu0 0.0
  %5775 = vmatprep.mubr.f32.mxu0 0.0
  %5776 = vmatmul.mubr.f32.gmra.mrb[0].mxu0 %v5700
  %v5777 = vpop.f32.mrb[0].mxu0
  %v5778 = vadd.f32 %v5682, %v5777
  %v5779 = vpop.f32.mrb[0].mxu0
  %5780 = vmatprep.mubr.f32.mxu0 0.0
  %5781 = vmatmul.mubr.f32.gmra.mrb[0].mxu0 %v5703
  %v5782 = vpop.f32.mrb[0].mxu0
  %v5783 = vadd.f32 %v5687, %v5782
  %v5784 = vpop.f32.mrb[0].mxu0
  %5785 = vmatprep.mubr.f32.mxu0 0.0
  %5786 = vmatmul.mubr.f32.gmra.mrb[0].mxu0 %v5706
  %v5787 = vpop.f32.mrb[0].mxu0
  %v5788 = vadd.f32 %v5692, %v5787
  %v5789 = vpop.f32.mrb[0].mxu0
  %5790 = vmatprep.mubr.f32.mxu0 0.0
  %5791 = vmatmul.mubr.f32.gmra.mrb[0].mxu0 %v5709
  %v5792 = vpop.f32.mrb[0].mxu0
  %v5793 = vadd.f32 %v5697, %v5792
  %v5794 = vpop.f32.mrb[0].mxu0
  %5795 = vdwg.mxu0
  %s5796 = scalar_lea.vmem %s15, 192
  %v5797 = vld [vmem:[%s5796] sm:$0xff]
  %v5798 = vld [vmem:[%s5796 + $0x8] sm:$0xff]
  %v5799 = vld [vmem:[%s5796 + $0x10] sm:$0xff]
  %v5800 = vld [vmem:[%s5796 + $0x18] sm:$0xff]
  %s5801 = scalar_lea.vmem %s16, 192
  %v5802 = vld [vmem:[%s5801] sm:$0xff]
  %v5803 = vld [vmem:[%s5801 + $0x8] sm:$0xff]
  %v5804 = vld [vmem:[%s5801 + $0x10] sm:$0xff]
  %v5805 = vld [vmem:[%s5801 + $0x18] sm:$0xff]
  %v5806 = vmul.f32 %v5778, %v450
  %v5807 = vmul.f32 %v5783, %v451
  %v5808 = vmul.f32 %v5788, %v452
  %v5809 = vmul.f32 %v5793, %v453
  %v5811 = vsel %vm162, %v5806, 0
  %v5814 = vsel %vm162, %v5807, 0
  %v5817 = vsel %vm162, %v5808, 0
  %v5820 = vsel %vm162, %v5809, 0
  %5822 = vmatprep.subr.mxu0 0.0
  %5823 = vmatpush1.msra.mxu0 1.0
  %5824 = vmatprep.subr.mxu0 0.0
  %5825 = vmatpush1.msra.mxu0 1.0
  %5826 = vmatprep.subr.mxu0 0.0
  %5827 = vmatpush1.msra.mxu0 0.0
  %5828 = vmatprep.subr.mxu0 0.0
  %5829 = vmatpush1.msra.mxu0 0.0
  %5830 = vmatprep.subr.mxu0 0.0
  %5831 = vmatpush1.msra.mxu0 0.0
  %5832 = vmatprep.subr.mxu0 0.0
  %5833 = vmatpush1.msra.mxu0 0.0
  %5834 = vmatprep.subr.mxu0 0.0
  %5835 = vmatpush1.msra.mxu0 0.0
  %5836 = vmatprep.subr.mxu0 0.0
  %5837 = vmatpush1.msra.mxu0 0.0
  %5838 = vmatprep.subr.mxu0 0.0
  %5839 = vmatpush1.msra.mxu0 0.0
  %5840 = vmatprep.subr.mxu0 0.0
  %5841 = vmatpush1.msra.mxu0 0.0
  %5842 = vmatprep.subr.mxu0 0.0
  %5843 = vmatpush1.msra.mxu0 0.0
  %5844 = vmatprep.subr.mxu0 0.0
  %5845 = vmatpush1.msra.mxu0 0.0
  %5846 = vmatprep.subr.mxu0 0.0
  %5847 = vmatpush1.msra.mxu0 0.0
  %5848 = vmatprep.subr.mxu0 0.0
  %5849 = vmatpush1.msra.mxu0 0.0
  %5850 = vmatprep.subr.mxu0 0.0
  %5851 = vmatpush1.msra.mxu0 0.0
  %5852 = vmatprep.subr.mxu0 0.0
  %5853 = vmatpush1.msra.mxu0 0.0
  %5854 = vmatprep.subr.mxu0 0.0
  %5855 = vmatpush1.msra.mxu0 0.0
  %5856 = vmatprep.subr.mxu0 0.0
  %5857 = vmatpush1.msra.mxu0 0.0
  %5858 = vmatprep.subr.mxu0 0.0
  %5859 = vmatpush1.msra.mxu0 0.0
  %5860 = vmatprep.subr.mxu0 0.0
  %5861 = vmatpush1.msra.mxu0 0.0
  %5862 = vmatprep.subr.mxu0 0.0
  %5863 = vmatpush1.msra.mxu0 0.0
  %5864 = vmatprep.subr.mxu0 0.0
  %5865 = vmatpush1.msra.mxu0 0.0
  %5866 = vmatprep.subr.mxu0 0.0
  %5867 = vmatpush1.msra.mxu0 0.0
  %5868 = vmatprep.subr.mxu0 0.0
  %5869 = vmatpush1.msra.mxu0 0.0
  %5870 = vmatprep.subr.mxu0 0.0
  %5871 = vmatpush1.msra.mxu0 0.0
  %5872 = vmatprep.subr.mxu0 0.0
  %5873 = vmatpush1.msra.mxu0 0.0
  %5874 = vmatprep.subr.mxu0 0.0
  %5875 = vmatpush1.msra.mxu0 0.0
  %5876 = vmatprep.subr.mxu0 0.0
  %5877 = vmatpush1.msra.mxu0 0.0
  %5878 = vmatprep.subr.mxu0 0.0
  %5879 = vmatpush1.msra.mxu0 0.0
  %5880 = vmatprep.subr.mxu0 0.0
  %5881 = vmatpush1.msra.mxu0 0.0
  %5882 = vmatprep.subr.mxu0 0.0
  %5883 = vmatpush1.msra.mxu0 0.0
  %5884 = vmatprep.subr.mxu0 0.0
  %5885 = vmatpush1.msra.mxu0 0.0
  %5886 = vmatprep.mubr.f32.mxu0 0.0
  %5887 = vmatmul.mubr.f32.gmra.mrb[0].mxu0 %v5811
  %v5888 = vpop.f32.mrb[0].mxu0
  %v5889 = vadd.f32 0.0, %v5888
  %v5890 = vpop.f32.mrb[0].mxu0
  %5891 = vmatprep.mubr.f32.mxu0 0.0
  %5892 = vmatmul.mubr.f32.gmra.mrb[0].mxu0 %v5814
  %v5893 = vpop.f32.mrb[0].mxu0
  %v5894 = vadd.f32 0.0, %v5893
  %v5895 = vpop.f32.mrb[0].mxu0
  %5896 = vmatprep.mubr.f32.mxu0 0.0
  %5897 = vmatmul.mubr.f32.gmra.mrb[0].mxu0 %v5817
  %v5898 = vpop.f32.mrb[0].mxu0
  %v5899 = vadd.f32 0.0, %v5898
  %v5900 = vpop.f32.mrb[0].mxu0
  %5901 = vmatprep.mubr.f32.mxu0 0.0
  %5902 = vmatmul.mubr.f32.gmra.mrb[0].mxu0 %v5820
  %v5903 = vpop.f32.mrb[0].mxu0
  %v5904 = vadd.f32 0.0, %v5903
  %v5905 = vpop.f32.mrb[0].mxu0
  %5906 = vdwg.mxu0
  %v5907 = vmul.f32 %v5889, %v476
  %v5908 = vmul.f32 %v5894, %v478
  %v5909 = vmul.f32 %v5899, %v480
  %v5910 = vmul.f32 %v5904, %v482
  %5912 = vset.pattern.permute.xlu0 0
  %5913 = vperm.xlu0 %5912, %v5907
  %v5914 = vpop.permute.xlu0 %5913
  %5917 = vset.pattern.permute.xlu0 0
  %5918 = vperm.xlu0 %5917, %v5908
  %v5919 = vpop.permute.xlu0 %5918
  %5922 = vset.pattern.permute.xlu0 0
  %5923 = vperm.xlu0 %5922, %v5909
  %v5924 = vpop.permute.xlu0 %5923
  %5927 = vset.pattern.permute.xlu0 0
  %5928 = vperm.xlu0 %5927, %v5910
  %v5929 = vpop.permute.xlu0 %5928
  %v5931 = vsub.f32 %v5778, %v5914
  %v5932 = vsub.f32 %v5783, %v5919
  %v5933 = vsub.f32 %v5788, %v5924
  %v5934 = vsub.f32 %v5793, %v5929
  %v5935 = vmul.f32 %v5931, %v5931
  %v5936 = vmul.f32 %v5932, %v5932
  %v5937 = vmul.f32 %v5933, %v5933
  %v5938 = vmul.f32 %v5934, %v5934
  %v5939 = vmul.f32 %v5935, %v450
  %v5940 = vmul.f32 %v5936, %v451
  %v5941 = vmul.f32 %v5937, %v452
  %v5942 = vmul.f32 %v5938, %v453
  %v5944 = vsel %vm162, %v5939, 0
  %v5947 = vsel %vm162, %v5940, 0
  %v5950 = vsel %vm162, %v5941, 0
  %v5953 = vsel %vm162, %v5942, 0
  %5955 = vmatprep.subr.mxu0 0.0
  %5956 = vmatpush1.msra.mxu0 1.0
  %5957 = vmatprep.subr.mxu0 0.0
  %5958 = vmatpush1.msra.mxu0 1.0
  %5959 = vmatprep.subr.mxu0 0.0
  %5960 = vmatpush1.msra.mxu0 0.0
  %5961 = vmatprep.subr.mxu0 0.0
  %5962 = vmatpush1.msra.mxu0 0.0
  %5963 = vmatprep.subr.mxu0 0.0
  %5964 = vmatpush1.msra.mxu0 0.0
  %5965 = vmatprep.subr.mxu0 0.0
  %5966 = vmatpush1.msra.mxu0 0.0
  %5967 = vmatprep.subr.mxu0 0.0
  %5968 = vmatpush1.msra.mxu0 0.0
  %5969 = vmatprep.subr.mxu0 0.0
  %5970 = vmatpush1.msra.mxu0 0.0
  %5971 = vmatprep.subr.mxu0 0.0
  %5972 = vmatpush1.msra.mxu0 0.0
  %5973 = vmatprep.subr.mxu0 0.0
  %5974 = vmatpush1.msra.mxu0 0.0
  %5975 = vmatprep.subr.mxu0 0.0
  %5976 = vmatpush1.msra.mxu0 0.0
  %5977 = vmatprep.subr.mxu0 0.0
  %5978 = vmatpush1.msra.mxu0 0.0
  %5979 = vmatprep.subr.mxu0 0.0
  %5980 = vmatpush1.msra.mxu0 0.0
  %5981 = vmatprep.subr.mxu0 0.0
  %5982 = vmatpush1.msra.mxu0 0.0
  %5983 = vmatprep.subr.mxu0 0.0
  %5984 = vmatpush1.msra.mxu0 0.0
  %5985 = vmatprep.subr.mxu0 0.0
  %5986 = vmatpush1.msra.mxu0 0.0
  %5987 = vmatprep.subr.mxu0 0.0
  %5988 = vmatpush1.msra.mxu0 0.0
  %5989 = vmatprep.subr.mxu0 0.0
  %5990 = vmatpush1.msra.mxu0 0.0
  %5991 = vmatprep.subr.mxu0 0.0
  %5992 = vmatpush1.msra.mxu0 0.0
  %5993 = vmatprep.subr.mxu0 0.0
  %5994 = vmatpush1.msra.mxu0 0.0
  %5995 = vmatprep.subr.mxu0 0.0
  %5996 = vmatpush1.msra.mxu0 0.0
  %5997 = vmatprep.subr.mxu0 0.0
  %5998 = vmatpush1.msra.mxu0 0.0
  %5999 = vmatprep.subr.mxu0 0.0
  %6000 = vmatpush1.msra.mxu0 0.0
  %6001 = vmatprep.subr.mxu0 0.0
  %6002 = vmatpush1.msra.mxu0 0.0
  %6003 = vmatprep.subr.mxu0 0.0
  %6004 = vmatpush1.msra.mxu0 0.0
  %6005 = vmatprep.subr.mxu0 0.0
  %6006 = vmatpush1.msra.mxu0 0.0
  %6007 = vmatprep.subr.mxu0 0.0
  %6008 = vmatpush1.msra.mxu0 0.0
  %6009 = vmatprep.subr.mxu0 0.0
  %6010 = vmatpush1.msra.mxu0 0.0
  %6011 = vmatprep.subr.mxu0 0.0
  %6012 = vmatpush1.msra.mxu0 0.0
  %6013 = vmatprep.subr.mxu0 0.0
  %6014 = vmatpush1.msra.mxu0 0.0
  %6015 = vmatprep.subr.mxu0 0.0
  %6016 = vmatpush1.msra.mxu0 0.0
  %6017 = vmatprep.subr.mxu0 0.0
  %6018 = vmatpush1.msra.mxu0 0.0
  %6019 = vmatprep.mubr.f32.mxu0 0.0
  %6020 = vmatmul.mubr.f32.gmra.mrb[0].mxu0 %v5944
  %v6021 = vpop.f32.mrb[0].mxu0
  %v6022 = vadd.f32 0.0, %v6021
  %v6023 = vpop.f32.mrb[0].mxu0
  %6024 = vmatprep.mubr.f32.mxu0 0.0
  %6025 = vmatmul.mubr.f32.gmra.mrb[0].mxu0 %v5947
  %v6026 = vpop.f32.mrb[0].mxu0
  %v6027 = vadd.f32 0.0, %v6026
  %v6028 = vpop.f32.mrb[0].mxu0
  %6029 = vmatprep.mubr.f32.mxu0 0.0
  %6030 = vmatmul.mubr.f32.gmra.mrb[0].mxu0 %v5950
  %v6031 = vpop.f32.mrb[0].mxu0
  %v6032 = vadd.f32 0.0, %v6031
  %v6033 = vpop.f32.mrb[0].mxu0
  %6034 = vmatprep.mubr.f32.mxu0 0.0
  %6035 = vmatmul.mubr.f32.gmra.mrb[0].mxu0 %v5953
  %v6036 = vpop.f32.mrb[0].mxu0
  %v6037 = vadd.f32 0.0, %v6036
  %v6038 = vpop.f32.mrb[0].mxu0
  %6039 = vdwg.mxu0
  %v6040 = vmul.f32 %v6022, %v476
  %v6041 = vmul.f32 %v6027, %v478
  %v6042 = vmul.f32 %v6032, %v480
  %v6043 = vmul.f32 %v6037, %v482
  %v6044 = vadd.f32 %v6040, 1e-05
  %v6045 = vadd.f32 %v6041, 1e-05
  %v6046 = vadd.f32 %v6042, 1e-05
  %v6047 = vadd.f32 %v6043, 1e-05
  %v6048 = vrsqrt.pop %v6044
  %v6049 = vrsqrt.pop %v6045
  %v6050 = vrsqrt.pop %v6046
  %v6051 = vrsqrt.pop %v6047
  %6053 = vset.pattern.permute.xlu0 0
  %6054 = vperm.xlu0 %6053, %v6048
  %v6055 = vpop.permute.xlu0 %6054
  %6058 = vset.pattern.permute.xlu0 0
  %6059 = vperm.xlu0 %6058, %v6049
  %v6060 = vpop.permute.xlu0 %6059
  %6063 = vset.pattern.permute.xlu0 0
  %6064 = vperm.xlu0 %6063, %v6050
  %v6065 = vpop.permute.xlu0 %6064
  %6068 = vset.pattern.permute.xlu0 0
  %6069 = vperm.xlu0 %6068, %v6051
  %v6070 = vpop.permute.xlu0 %6069
  %v6072 = vmul.f32 %v5931, %v6055
  %v6073 = vmul.f32 %v5932, %v6060
  %v6074 = vmul.f32 %v5933, %v6065
  %v6075 = vmul.f32 %v5934, %v6070
  %6077 = vset.pattern.permute.xlu0 0
  %6078 = vperm.xlu0 %6077, %v5797
  %v6079 = vpop.permute.xlu0 %6078
  %6082 = vset.pattern.permute.xlu0 0
  %6083 = vperm.xlu0 %6082, %v5798
  %v6084 = vpop.permute.xlu0 %6083
  %6087 = vset.pattern.permute.xlu0 0
  %6088 = vperm.xlu0 %6087, %v5799
  %v6089 = vpop.permute.xlu0 %6088
  %6092 = vset.pattern.permute.xlu0 0
  %6093 = vperm.xlu0 %6092, %v5800
  %v6094 = vpop.permute.xlu0 %6093
  %v6096 = vmul.f32 %v6072, %v6079
  %v6097 = vmul.f32 %v6073, %v6084
  %v6098 = vmul.f32 %v6074, %v6089
  %v6099 = vmul.f32 %v6075, %v6094
  %6101 = vset.pattern.permute.xlu0 0
  %6102 = vperm.xlu0 %6101, %v5802
  %v6103 = vpop.permute.xlu0 %6102
  %6106 = vset.pattern.permute.xlu0 0
  %6107 = vperm.xlu0 %6106, %v5803
  %v6108 = vpop.permute.xlu0 %6107
  %6111 = vset.pattern.permute.xlu0 0
  %6112 = vperm.xlu0 %6111, %v5804
  %v6113 = vpop.permute.xlu0 %6112
  %6116 = vset.pattern.permute.xlu0 0
  %6117 = vperm.xlu0 %6116, %v5805
  %v6118 = vpop.permute.xlu0 %6117
  %v6120 = vadd.f32 %v6096, %v6103
  %v6121 = vadd.f32 %v6097, %v6108
  %v6122 = vadd.f32 %v6098, %v6113
  %v6123 = vadd.f32 %v6099, %v6118
  %v6124 = vmax.f32 %v6120, 0.0
  %v6125 = vmax.f32 %v6121, 0.0
  %v6126 = vmax.f32 %v6122, 0.0
  %v6127 = vmax.f32 %v6123, 0.0
  %s6128 = scalar_lea.vmem %s13, 224
  %v6129 = vld [vmem:[%s6128] sm:$0xff]
  %v6130 = vld [vmem:[%s6128 + $0x8] sm:$0xff]
  %v6131 = vld [vmem:[%s6128 + $0x10] sm:$0xff]
  %v6132 = vld [vmem:[%s6128 + $0x18] sm:$0xff]
  %s6133 = scalar_lea.vmem %s14, 224
  %v6134 = vld [vmem:[%s6133] sm:$0xff]
  %v6135 = vld [vmem:[%s6133 + $0x8] sm:$0xff]
  %v6136 = vld [vmem:[%s6133 + $0x10] sm:$0xff]
  %v6137 = vld [vmem:[%s6133 + $0x18] sm:$0xff]
  %6139 = vset.pattern.permute.xlu0 0
  %6140 = vperm.xlu0 %6139, %v6134
  %v6141 = vpop.permute.xlu0 %6140
  %6144 = vset.pattern.permute.xlu0 0
  %6145 = vperm.xlu0 %6144, %v6135
  %v6146 = vpop.permute.xlu0 %6145
  %6149 = vset.pattern.permute.xlu0 0
  %6150 = vperm.xlu0 %6149, %v6136
  %v6151 = vpop.permute.xlu0 %6150
  %6154 = vset.pattern.permute.xlu0 0
  %6155 = vperm.xlu0 %6154, %v6137
  %v6156 = vpop.permute.xlu0 %6155
  %v6159 = vsel %vm1203, %v6129, 0
  %v6162 = vsel %vm1203, %v6130, 0
  %v6165 = vsel %vm1203, %v6131, 0
  %v6168 = vsel %vm1203, %v6132, 0
  %6170 = vmatprep.subr.mxu0 0.0
  %6171 = vmatpush1.msra.mxu0 %v6124
  %6172 = vmatprep.subr.mxu0 0.0
  %6173 = vmatpush1.msra.mxu0 %v6125
  %6174 = vmatprep.subr.mxu0 0.0
  %6175 = vmatpush1.msra.mxu0 %v6126
  %6176 = vmatprep.subr.mxu0 0.0
  %6177 = vmatpush1.msra.mxu0 %v6127
  %6178 = vmatprep.subr.mxu0 0.0
  %6179 = vmatpush1.msra.mxu0 0.0
  %6180 = vmatprep.subr.mxu0 0.0
  %6181 = vmatpush1.msra.mxu0 0.0
  %6182 = vmatprep.subr.mxu0 0.0
  %6183 = vmatpush1.msra.mxu0 0.0
  %6184 = vmatprep.subr.mxu0 0.0
  %6185 = vmatpush1.msra.mxu0 0.0
  %6186 = vmatprep.subr.mxu0 0.0
  %6187 = vmatpush1.msra.mxu0 0.0
  %6188 = vmatprep.subr.mxu0 0.0
  %6189 = vmatpush1.msra.mxu0 0.0
  %6190 = vmatprep.subr.mxu0 0.0
  %6191 = vmatpush1.msra.mxu0 0.0
  %6192 = vmatprep.subr.mxu0 0.0
  %6193 = vmatpush1.msra.mxu0 0.0
  %6194 = vmatprep.subr.mxu0 0.0
  %6195 = vmatpush1.msra.mxu0 0.0
  %6196 = vmatprep.subr.mxu0 0.0
  %6197 = vmatpush1.msra.mxu0 0.0
  %6198 = vmatprep.subr.mxu0 0.0
  %6199 = vmatpush1.msra.mxu0 0.0
  %6200 = vmatprep.subr.mxu0 0.0
  %6201 = vmatpush1.msra.mxu0 0.0
  %6202 = vmatprep.subr.mxu0 0.0
  %6203 = vmatpush1.msra.mxu0 0.0
  %6204 = vmatprep.subr.mxu0 0.0
  %6205 = vmatpush1.msra.mxu0 0.0
  %6206 = vmatprep.subr.mxu0 0.0
  %6207 = vmatpush1.msra.mxu0 0.0
  %6208 = vmatprep.subr.mxu0 0.0
  %6209 = vmatpush1.msra.mxu0 0.0
  %6210 = vmatprep.subr.mxu0 0.0
  %6211 = vmatpush1.msra.mxu0 0.0
  %6212 = vmatprep.subr.mxu0 0.0
  %6213 = vmatpush1.msra.mxu0 0.0
  %6214 = vmatprep.subr.mxu0 0.0
  %6215 = vmatpush1.msra.mxu0 0.0
  %6216 = vmatprep.subr.mxu0 0.0
  %6217 = vmatpush1.msra.mxu0 0.0
  %6218 = vmatprep.subr.mxu0 0.0
  %6219 = vmatpush1.msra.mxu0 0.0
  %6220 = vmatprep.subr.mxu0 0.0
  %6221 = vmatpush1.msra.mxu0 0.0
  %6222 = vmatprep.subr.mxu0 0.0
  %6223 = vmatpush1.msra.mxu0 0.0
  %6224 = vmatprep.subr.mxu0 0.0
  %6225 = vmatpush1.msra.mxu0 0.0
  %6226 = vmatprep.subr.mxu0 0.0
  %6227 = vmatpush1.msra.mxu0 0.0
  %6228 = vmatprep.subr.mxu0 0.0
  %6229 = vmatpush1.msra.mxu0 0.0
  %6230 = vmatprep.subr.mxu0 0.0
  %6231 = vmatpush1.msra.mxu0 0.0
  %6232 = vmatprep.subr.mxu0 0.0
  %6233 = vmatpush1.msra.mxu0 0.0
  %6234 = vmatprep.mubr.f32.mxu0 0.0
  %6235 = vmatmul.mubr.f32.gmra.mrb[0].mxu0 %v6159
  %v6236 = vpop.f32.mrb[0].mxu0
  %v6237 = vadd.f32 %v6141, %v6236
  %v6238 = vpop.f32.mrb[0].mxu0
  %6239 = vmatprep.mubr.f32.mxu0 0.0
  %6240 = vmatmul.mubr.f32.gmra.mrb[0].mxu0 %v6162
  %v6241 = vpop.f32.mrb[0].mxu0
  %v6242 = vadd.f32 %v6146, %v6241
  %v6243 = vpop.f32.mrb[0].mxu0
  %6244 = vmatprep.mubr.f32.mxu0 0.0
  %6245 = vmatmul.mubr.f32.gmra.mrb[0].mxu0 %v6165
  %v6246 = vpop.f32.mrb[0].mxu0
  %v6247 = vadd.f32 %v6151, %v6246
  %v6248 = vpop.f32.mrb[0].mxu0
  %6249 = vmatprep.mubr.f32.mxu0 0.0
  %6250 = vmatmul.mubr.f32.gmra.mrb[0].mxu0 %v6168
  %v6251 = vpop.f32.mrb[0].mxu0
  %v6252 = vadd.f32 %v6156, %v6251
  %v6253 = vpop.f32.mrb[0].mxu0
  %6254 = vdwg.mxu0
  %s6255 = scalar_lea.vmem %s15, 224
  %v6256 = vld [vmem:[%s6255] sm:$0xff]
  %v6257 = vld [vmem:[%s6255 + $0x8] sm:$0xff]
  %v6258 = vld [vmem:[%s6255 + $0x10] sm:$0xff]
  %v6259 = vld [vmem:[%s6255 + $0x18] sm:$0xff]
  %s6260 = scalar_lea.vmem %s16, 224
  %v6261 = vld [vmem:[%s6260] sm:$0xff]
  %v6262 = vld [vmem:[%s6260 + $0x8] sm:$0xff]
  %v6263 = vld [vmem:[%s6260 + $0x10] sm:$0xff]
  %v6264 = vld [vmem:[%s6260 + $0x18] sm:$0xff]
  %v6265 = vmul.f32 %v6237, %v450
  %v6266 = vmul.f32 %v6242, %v451
  %v6267 = vmul.f32 %v6247, %v452
  %v6268 = vmul.f32 %v6252, %v453
  %v6270 = vsel %vm162, %v6265, 0
  %v6273 = vsel %vm162, %v6266, 0
  %v6276 = vsel %vm162, %v6267, 0
  %v6279 = vsel %vm162, %v6268, 0
  %6281 = vmatprep.subr.mxu0 0.0
  %6282 = vmatpush1.msra.mxu0 1.0
  %6283 = vmatprep.subr.mxu0 0.0
  %6284 = vmatpush1.msra.mxu0 1.0
  %6285 = vmatprep.subr.mxu0 0.0
  %6286 = vmatpush1.msra.mxu0 0.0
  %6287 = vmatprep.subr.mxu0 0.0
  %6288 = vmatpush1.msra.mxu0 0.0
  %6289 = vmatprep.subr.mxu0 0.0
  %6290 = vmatpush1.msra.mxu0 0.0
  %6291 = vmatprep.subr.mxu0 0.0
  %6292 = vmatpush1.msra.mxu0 0.0
  %6293 = vmatprep.subr.mxu0 0.0
  %6294 = vmatpush1.msra.mxu0 0.0
  %6295 = vmatprep.subr.mxu0 0.0
  %6296 = vmatpush1.msra.mxu0 0.0
  %6297 = vmatprep.subr.mxu0 0.0
  %6298 = vmatpush1.msra.mxu0 0.0
  %6299 = vmatprep.subr.mxu0 0.0
  %6300 = vmatpush1.msra.mxu0 0.0
  %6301 = vmatprep.subr.mxu0 0.0
  %6302 = vmatpush1.msra.mxu0 0.0
  %6303 = vmatprep.subr.mxu0 0.0
  %6304 = vmatpush1.msra.mxu0 0.0
  %6305 = vmatprep.subr.mxu0 0.0
  %6306 = vmatpush1.msra.mxu0 0.0
  %6307 = vmatprep.subr.mxu0 0.0
  %6308 = vmatpush1.msra.mxu0 0.0
  %6309 = vmatprep.subr.mxu0 0.0
  %6310 = vmatpush1.msra.mxu0 0.0
  %6311 = vmatprep.subr.mxu0 0.0
  %6312 = vmatpush1.msra.mxu0 0.0
  %6313 = vmatprep.subr.mxu0 0.0
  %6314 = vmatpush1.msra.mxu0 0.0
  %6315 = vmatprep.subr.mxu0 0.0
  %6316 = vmatpush1.msra.mxu0 0.0
  %6317 = vmatprep.subr.mxu0 0.0
  %6318 = vmatpush1.msra.mxu0 0.0
  %6319 = vmatprep.subr.mxu0 0.0
  %6320 = vmatpush1.msra.mxu0 0.0
  %6321 = vmatprep.subr.mxu0 0.0
  %6322 = vmatpush1.msra.mxu0 0.0
  %6323 = vmatprep.subr.mxu0 0.0
  %6324 = vmatpush1.msra.mxu0 0.0
  %6325 = vmatprep.subr.mxu0 0.0
  %6326 = vmatpush1.msra.mxu0 0.0
  %6327 = vmatprep.subr.mxu0 0.0
  %6328 = vmatpush1.msra.mxu0 0.0
  %6329 = vmatprep.subr.mxu0 0.0
  %6330 = vmatpush1.msra.mxu0 0.0
  %6331 = vmatprep.subr.mxu0 0.0
  %6332 = vmatpush1.msra.mxu0 0.0
  %6333 = vmatprep.subr.mxu0 0.0
  %6334 = vmatpush1.msra.mxu0 0.0
  %6335 = vmatprep.subr.mxu0 0.0
  %6336 = vmatpush1.msra.mxu0 0.0
  %6337 = vmatprep.subr.mxu0 0.0
  %6338 = vmatpush1.msra.mxu0 0.0
  %6339 = vmatprep.subr.mxu0 0.0
  %6340 = vmatpush1.msra.mxu0 0.0
  %6341 = vmatprep.subr.mxu0 0.0
  %6342 = vmatpush1.msra.mxu0 0.0
  %6343 = vmatprep.subr.mxu0 0.0
  %6344 = vmatpush1.msra.mxu0 0.0
  %6345 = vmatprep.mubr.f32.mxu0 0.0
  %6346 = vmatmul.mubr.f32.gmra.mrb[0].mxu0 %v6270
  %v6347 = vpop.f32.mrb[0].mxu0
  %v6348 = vadd.f32 0.0, %v6347
  %v6349 = vpop.f32.mrb[0].mxu0
  %6350 = vmatprep.mubr.f32.mxu0 0.0
  %6351 = vmatmul.mubr.f32.gmra.mrb[0].mxu0 %v6273
  %v6352 = vpop.f32.mrb[0].mxu0
  %v6353 = vadd.f32 0.0, %v6352
  %v6354 = vpop.f32.mrb[0].mxu0
  %6355 = vmatprep.mubr.f32.mxu0 0.0
  %6356 = vmatmul.mubr.f32.gmra.mrb[0].mxu0 %v6276
  %v6357 = vpop.f32.mrb[0].mxu0
  %v6358 = vadd.f32 0.0, %v6357
  %v6359 = vpop.f32.mrb[0].mxu0
  %6360 = vmatprep.mubr.f32.mxu0 0.0
  %6361 = vmatmul.mubr.f32.gmra.mrb[0].mxu0 %v6279
  %v6362 = vpop.f32.mrb[0].mxu0
  %v6363 = vadd.f32 0.0, %v6362
  %v6364 = vpop.f32.mrb[0].mxu0
  %6365 = vdwg.mxu0
  %v6366 = vmul.f32 %v6348, %v476
  %v6367 = vmul.f32 %v6353, %v478
  %v6368 = vmul.f32 %v6358, %v480
  %v6369 = vmul.f32 %v6363, %v482
  %6371 = vset.pattern.permute.xlu0 0
  %6372 = vperm.xlu0 %6371, %v6366
  %v6373 = vpop.permute.xlu0 %6372
  %6376 = vset.pattern.permute.xlu0 0
  %6377 = vperm.xlu0 %6376, %v6367
  %v6378 = vpop.permute.xlu0 %6377
  %6381 = vset.pattern.permute.xlu0 0
  %6382 = vperm.xlu0 %6381, %v6368
  %v6383 = vpop.permute.xlu0 %6382
  %6386 = vset.pattern.permute.xlu0 0
  %6387 = vperm.xlu0 %6386, %v6369
  %v6388 = vpop.permute.xlu0 %6387
  %v6390 = vsub.f32 %v6237, %v6373
  %v6391 = vsub.f32 %v6242, %v6378
  %v6392 = vsub.f32 %v6247, %v6383
  %v6393 = vsub.f32 %v6252, %v6388
  %v6394 = vmul.f32 %v6390, %v6390
  %v6395 = vmul.f32 %v6391, %v6391
  %v6396 = vmul.f32 %v6392, %v6392
  %v6397 = vmul.f32 %v6393, %v6393
  %v6398 = vmul.f32 %v6394, %v450
  %v6399 = vmul.f32 %v6395, %v451
  %v6400 = vmul.f32 %v6396, %v452
  %v6401 = vmul.f32 %v6397, %v453
  %v6403 = vsel %vm162, %v6398, 0
  %v6406 = vsel %vm162, %v6399, 0
  %v6409 = vsel %vm162, %v6400, 0
  %v6412 = vsel %vm162, %v6401, 0
  %6414 = vmatprep.subr.mxu0 0.0
  %6415 = vmatpush1.msra.mxu0 1.0
  %6416 = vmatprep.subr.mxu0 0.0
  %6417 = vmatpush1.msra.mxu0 1.0
  %6418 = vmatprep.subr.mxu0 0.0
  %6419 = vmatpush1.msra.mxu0 0.0
  %6420 = vmatprep.subr.mxu0 0.0
  %6421 = vmatpush1.msra.mxu0 0.0
  %6422 = vmatprep.subr.mxu0 0.0
  %6423 = vmatpush1.msra.mxu0 0.0
  %6424 = vmatprep.subr.mxu0 0.0
  %6425 = vmatpush1.msra.mxu0 0.0
  %6426 = vmatprep.subr.mxu0 0.0
  %6427 = vmatpush1.msra.mxu0 0.0
  %6428 = vmatprep.subr.mxu0 0.0
  %6429 = vmatpush1.msra.mxu0 0.0
  %6430 = vmatprep.subr.mxu0 0.0
  %6431 = vmatpush1.msra.mxu0 0.0
  %6432 = vmatprep.subr.mxu0 0.0
  %6433 = vmatpush1.msra.mxu0 0.0
  %6434 = vmatprep.subr.mxu0 0.0
  %6435 = vmatpush1.msra.mxu0 0.0
  %6436 = vmatprep.subr.mxu0 0.0
  %6437 = vmatpush1.msra.mxu0 0.0
  %6438 = vmatprep.subr.mxu0 0.0
  %6439 = vmatpush1.msra.mxu0 0.0
  %6440 = vmatprep.subr.mxu0 0.0
  %6441 = vmatpush1.msra.mxu0 0.0
  %6442 = vmatprep.subr.mxu0 0.0
  %6443 = vmatpush1.msra.mxu0 0.0
  %6444 = vmatprep.subr.mxu0 0.0
  %6445 = vmatpush1.msra.mxu0 0.0
  %6446 = vmatprep.subr.mxu0 0.0
  %6447 = vmatpush1.msra.mxu0 0.0
  %6448 = vmatprep.subr.mxu0 0.0
  %6449 = vmatpush1.msra.mxu0 0.0
  %6450 = vmatprep.subr.mxu0 0.0
  %6451 = vmatpush1.msra.mxu0 0.0
  %6452 = vmatprep.subr.mxu0 0.0
  %6453 = vmatpush1.msra.mxu0 0.0
  %6454 = vmatprep.subr.mxu0 0.0
  %6455 = vmatpush1.msra.mxu0 0.0
  %6456 = vmatprep.subr.mxu0 0.0
  %6457 = vmatpush1.msra.mxu0 0.0
  %6458 = vmatprep.subr.mxu0 0.0
  %6459 = vmatpush1.msra.mxu0 0.0
  %6460 = vmatprep.subr.mxu0 0.0
  %6461 = vmatpush1.msra.mxu0 0.0
  %6462 = vmatprep.subr.mxu0 0.0
  %6463 = vmatpush1.msra.mxu0 0.0
  %6464 = vmatprep.subr.mxu0 0.0
  %6465 = vmatpush1.msra.mxu0 0.0
  %6466 = vmatprep.subr.mxu0 0.0
  %6467 = vmatpush1.msra.mxu0 0.0
  %6468 = vmatprep.subr.mxu0 0.0
  %6469 = vmatpush1.msra.mxu0 0.0
  %6470 = vmatprep.subr.mxu0 0.0
  %6471 = vmatpush1.msra.mxu0 0.0
  %6472 = vmatprep.subr.mxu0 0.0
  %6473 = vmatpush1.msra.mxu0 0.0
  %6474 = vmatprep.subr.mxu0 0.0
  %6475 = vmatpush1.msra.mxu0 0.0
  %6476 = vmatprep.subr.mxu0 0.0
  %6477 = vmatpush1.msra.mxu0 0.0
  %6478 = vmatprep.mubr.f32.mxu0 0.0
  %6479 = vmatmul.mubr.f32.gmra.mrb[0].mxu0 %v6403
  %v6480 = vpop.f32.mrb[0].mxu0
  %v6481 = vadd.f32 0.0, %v6480
  %v6482 = vpop.f32.mrb[0].mxu0
  %6483 = vmatprep.mubr.f32.mxu0 0.0
  %6484 = vmatmul.mubr.f32.gmra.mrb[0].mxu0 %v6406
  %v6485 = vpop.f32.mrb[0].mxu0
  %v6486 = vadd.f32 0.0, %v6485
  %v6487 = vpop.f32.mrb[0].mxu0
  %6488 = vmatprep.mubr.f32.mxu0 0.0
  %6489 = vmatmul.mubr.f32.gmra.mrb[0].mxu0 %v6409
  %v6490 = vpop.f32.mrb[0].mxu0
  %v6491 = vadd.f32 0.0, %v6490
  %v6492 = vpop.f32.mrb[0].mxu0
  %6493 = vmatprep.mubr.f32.mxu0 0.0
  %6494 = vmatmul.mubr.f32.gmra.mrb[0].mxu0 %v6412
  %v6495 = vpop.f32.mrb[0].mxu0
  %v6496 = vadd.f32 0.0, %v6495
  %v6497 = vpop.f32.mrb[0].mxu0
  %6498 = vdwg.mxu0
  %v6499 = vmul.f32 %v6481, %v476
  %v6500 = vmul.f32 %v6486, %v478
  %v6501 = vmul.f32 %v6491, %v480
  %v6502 = vmul.f32 %v6496, %v482
  %v6503 = vadd.f32 %v6499, 1e-05
  %v6504 = vadd.f32 %v6500, 1e-05
  %v6505 = vadd.f32 %v6501, 1e-05
  %v6506 = vadd.f32 %v6502, 1e-05
  %v6507 = vrsqrt.pop %v6503
  %v6508 = vrsqrt.pop %v6504
  %v6509 = vrsqrt.pop %v6505
  %v6510 = vrsqrt.pop %v6506
  %6512 = vset.pattern.permute.xlu0 0
  %6513 = vperm.xlu0 %6512, %v6507
  %v6514 = vpop.permute.xlu0 %6513
  %6517 = vset.pattern.permute.xlu0 0
  %6518 = vperm.xlu0 %6517, %v6508
  %v6519 = vpop.permute.xlu0 %6518
  %6522 = vset.pattern.permute.xlu0 0
  %6523 = vperm.xlu0 %6522, %v6509
  %v6524 = vpop.permute.xlu0 %6523
  %6527 = vset.pattern.permute.xlu0 0
  %6528 = vperm.xlu0 %6527, %v6510
  %v6529 = vpop.permute.xlu0 %6528
  %v6531 = vmul.f32 %v6390, %v6514
  %v6532 = vmul.f32 %v6391, %v6519
  %v6533 = vmul.f32 %v6392, %v6524
  %v6534 = vmul.f32 %v6393, %v6529
  %6536 = vset.pattern.permute.xlu0 0
  %6537 = vperm.xlu0 %6536, %v6256
  %v6538 = vpop.permute.xlu0 %6537
  %6541 = vset.pattern.permute.xlu0 0
  %6542 = vperm.xlu0 %6541, %v6257
  %v6543 = vpop.permute.xlu0 %6542
  %6546 = vset.pattern.permute.xlu0 0
  %6547 = vperm.xlu0 %6546, %v6258
  %v6548 = vpop.permute.xlu0 %6547
  %6551 = vset.pattern.permute.xlu0 0
  %6552 = vperm.xlu0 %6551, %v6259
  %v6553 = vpop.permute.xlu0 %6552
  %v6555 = vmul.f32 %v6531, %v6538
  %v6556 = vmul.f32 %v6532, %v6543
  %v6557 = vmul.f32 %v6533, %v6548
  %v6558 = vmul.f32 %v6534, %v6553
  %6560 = vset.pattern.permute.xlu0 0
  %6561 = vperm.xlu0 %6560, %v6261
  %v6562 = vpop.permute.xlu0 %6561
  %6565 = vset.pattern.permute.xlu0 0
  %6566 = vperm.xlu0 %6565, %v6262
  %v6567 = vpop.permute.xlu0 %6566
  %6570 = vset.pattern.permute.xlu0 0
  %6571 = vperm.xlu0 %6570, %v6263
  %v6572 = vpop.permute.xlu0 %6571
  %6575 = vset.pattern.permute.xlu0 0
  %6576 = vperm.xlu0 %6575, %v6264
  %v6577 = vpop.permute.xlu0 %6576
  %v6579 = vadd.f32 %v6555, %v6562
  %v6580 = vadd.f32 %v6556, %v6567
  %v6581 = vadd.f32 %v6557, %v6572
  %v6582 = vadd.f32 %v6558, %v6577
  %v6583 = vmax.f32 %v6579, 0.0
  %v6584 = vmax.f32 %v6580, 0.0
  %v6585 = vmax.f32 %v6581, 0.0
  %v6586 = vmax.f32 %v6582, 0.0
  %s6587 = scalar_lea.vmem %s13, 256
  %v6588 = vld [vmem:[%s6587] sm:$0xff]
  %v6589 = vld [vmem:[%s6587 + $0x8] sm:$0xff]
  %v6590 = vld [vmem:[%s6587 + $0x10] sm:$0xff]
  %v6591 = vld [vmem:[%s6587 + $0x18] sm:$0xff]
  %s6592 = scalar_lea.vmem %s14, 256
  %v6593 = vld [vmem:[%s6592] sm:$0xff]
  %v6594 = vld [vmem:[%s6592 + $0x8] sm:$0xff]
  %v6595 = vld [vmem:[%s6592 + $0x10] sm:$0xff]
  %v6596 = vld [vmem:[%s6592 + $0x18] sm:$0xff]
  %6598 = vset.pattern.permute.xlu0 0
  %6599 = vperm.xlu0 %6598, %v6593
  %v6600 = vpop.permute.xlu0 %6599
  %6603 = vset.pattern.permute.xlu0 0
  %6604 = vperm.xlu0 %6603, %v6594
  %v6605 = vpop.permute.xlu0 %6604
  %6608 = vset.pattern.permute.xlu0 0
  %6609 = vperm.xlu0 %6608, %v6595
  %v6610 = vpop.permute.xlu0 %6609
  %6613 = vset.pattern.permute.xlu0 0
  %6614 = vperm.xlu0 %6613, %v6596
  %v6615 = vpop.permute.xlu0 %6614
  %v6618 = vsel %vm1203, %v6588, 0
  %v6621 = vsel %vm1203, %v6589, 0
  %v6624 = vsel %vm1203, %v6590, 0
  %v6627 = vsel %vm1203, %v6591, 0
  %6629 = vmatprep.subr.mxu0 0.0
  %6630 = vmatpush1.msra.mxu0 %v6583
  %6631 = vmatprep.subr.mxu0 0.0
  %6632 = vmatpush1.msra.mxu0 %v6584
  %6633 = vmatprep.subr.mxu0 0.0
  %6634 = vmatpush1.msra.mxu0 %v6585
  %6635 = vmatprep.subr.mxu0 0.0
  %6636 = vmatpush1.msra.mxu0 %v6586
  %6637 = vmatprep.subr.mxu0 0.0
  %6638 = vmatpush1.msra.mxu0 0.0
  %6639 = vmatprep.subr.mxu0 0.0
  %6640 = vmatpush1.msra.mxu0 0.0
  %6641 = vmatprep.subr.mxu0 0.0
  %6642 = vmatpush1.msra.mxu0 0.0
  %6643 = vmatprep.subr.mxu0 0.0
  %6644 = vmatpush1.msra.mxu0 0.0
  %6645 = vmatprep.subr.mxu0 0.0
  %6646 = vmatpush1.msra.mxu0 0.0
  %6647 = vmatprep.subr.mxu0 0.0
  %6648 = vmatpush1.msra.mxu0 0.0
  %6649 = vmatprep.subr.mxu0 0.0
  %6650 = vmatpush1.msra.mxu0 0.0
  %6651 = vmatprep.subr.mxu0 0.0
  %6652 = vmatpush1.msra.mxu0 0.0
  %6653 = vmatprep.subr.mxu0 0.0
  %6654 = vmatpush1.msra.mxu0 0.0
  %6655 = vmatprep.subr.mxu0 0.0
  %6656 = vmatpush1.msra.mxu0 0.0
  %6657 = vmatprep.subr.mxu0 0.0
  %6658 = vmatpush1.msra.mxu0 0.0
  %6659 = vmatprep.subr.mxu0 0.0
  %6660 = vmatpush1.msra.mxu0 0.0
  %6661 = vmatprep.subr.mxu0 0.0
  %6662 = vmatpush1.msra.mxu0 0.0
  %6663 = vmatprep.subr.mxu0 0.0
  %6664 = vmatpush1.msra.mxu0 0.0
  %6665 = vmatprep.subr.mxu0 0.0
  %6666 = vmatpush1.msra.mxu0 0.0
  %6667 = vmatprep.subr.mxu0 0.0
  %6668 = vmatpush1.msra.mxu0 0.0
  %6669 = vmatprep.subr.mxu0 0.0
  %6670 = vmatpush1.msra.mxu0 0.0
  %6671 = vmatprep.subr.mxu0 0.0
  %6672 = vmatpush1.msra.mxu0 0.0
  %6673 = vmatprep.subr.mxu0 0.0
  %6674 = vmatpush1.msra.mxu0 0.0
  %6675 = vmatprep.subr.mxu0 0.0
  %6676 = vmatpush1.msra.mxu0 0.0
  %6677 = vmatprep.subr.mxu0 0.0
  %6678 = vmatpush1.msra.mxu0 0.0
  %6679 = vmatprep.subr.mxu0 0.0
  %6680 = vmatpush1.msra.mxu0 0.0
  %6681 = vmatprep.subr.mxu0 0.0
  %6682 = vmatpush1.msra.mxu0 0.0
  %6683 = vmatprep.subr.mxu0 0.0
  %6684 = vmatpush1.msra.mxu0 0.0
  %6685 = vmatprep.subr.mxu0 0.0
  %6686 = vmatpush1.msra.mxu0 0.0
  %6687 = vmatprep.subr.mxu0 0.0
  %6688 = vmatpush1.msra.mxu0 0.0
  %6689 = vmatprep.subr.mxu0 0.0
  %6690 = vmatpush1.msra.mxu0 0.0
  %6691 = vmatprep.subr.mxu0 0.0
  %6692 = vmatpush1.msra.mxu0 0.0
  %6693 = vmatprep.mubr.f32.mxu0 0.0
  %6694 = vmatmul.mubr.f32.gmra.mrb[0].mxu0 %v6618
  %v6695 = vpop.f32.mrb[0].mxu0
  %v6696 = vadd.f32 %v6600, %v6695
  %v6697 = vpop.f32.mrb[0].mxu0
  %6698 = vmatprep.mubr.f32.mxu0 0.0
  %6699 = vmatmul.mubr.f32.gmra.mrb[0].mxu0 %v6621
  %v6700 = vpop.f32.mrb[0].mxu0
  %v6701 = vadd.f32 %v6605, %v6700
  %v6702 = vpop.f32.mrb[0].mxu0
  %6703 = vmatprep.mubr.f32.mxu0 0.0
  %6704 = vmatmul.mubr.f32.gmra.mrb[0].mxu0 %v6624
  %v6705 = vpop.f32.mrb[0].mxu0
  %v6706 = vadd.f32 %v6610, %v6705
  %v6707 = vpop.f32.mrb[0].mxu0
  %6708 = vmatprep.mubr.f32.mxu0 0.0
  %6709 = vmatmul.mubr.f32.gmra.mrb[0].mxu0 %v6627
  %v6710 = vpop.f32.mrb[0].mxu0
  %v6711 = vadd.f32 %v6615, %v6710
  %v6712 = vpop.f32.mrb[0].mxu0
  %6713 = vdwg.mxu0
  %s6714 = scalar_lea.vmem %s15, 256
  %v6715 = vld [vmem:[%s6714] sm:$0xff]
  %v6716 = vld [vmem:[%s6714 + $0x8] sm:$0xff]
  %v6717 = vld [vmem:[%s6714 + $0x10] sm:$0xff]
  %v6718 = vld [vmem:[%s6714 + $0x18] sm:$0xff]
  %s6719 = scalar_lea.vmem %s16, 256
  %v6720 = vld [vmem:[%s6719] sm:$0xff]
  %v6721 = vld [vmem:[%s6719 + $0x8] sm:$0xff]
  %v6722 = vld [vmem:[%s6719 + $0x10] sm:$0xff]
  %v6723 = vld [vmem:[%s6719 + $0x18] sm:$0xff]
  %v6724 = vmul.f32 %v6696, %v450
  %v6725 = vmul.f32 %v6701, %v451
  %v6726 = vmul.f32 %v6706, %v452
  %v6727 = vmul.f32 %v6711, %v453
  %v6729 = vsel %vm162, %v6724, 0
  %v6732 = vsel %vm162, %v6725, 0
  %v6735 = vsel %vm162, %v6726, 0
  %v6738 = vsel %vm162, %v6727, 0
  %6740 = vmatprep.subr.mxu0 0.0
  %6741 = vmatpush1.msra.mxu0 1.0
  %6742 = vmatprep.subr.mxu0 0.0
  %6743 = vmatpush1.msra.mxu0 1.0
  %6744 = vmatprep.subr.mxu0 0.0
  %6745 = vmatpush1.msra.mxu0 0.0
  %6746 = vmatprep.subr.mxu0 0.0
  %6747 = vmatpush1.msra.mxu0 0.0
  %6748 = vmatprep.subr.mxu0 0.0
  %6749 = vmatpush1.msra.mxu0 0.0
  %6750 = vmatprep.subr.mxu0 0.0
  %6751 = vmatpush1.msra.mxu0 0.0
  %6752 = vmatprep.subr.mxu0 0.0
  %6753 = vmatpush1.msra.mxu0 0.0
  %6754 = vmatprep.subr.mxu0 0.0
  %6755 = vmatpush1.msra.mxu0 0.0
  %6756 = vmatprep.subr.mxu0 0.0
  %6757 = vmatpush1.msra.mxu0 0.0
  %6758 = vmatprep.subr.mxu0 0.0
  %6759 = vmatpush1.msra.mxu0 0.0
  %6760 = vmatprep.subr.mxu0 0.0
  %6761 = vmatpush1.msra.mxu0 0.0
  %6762 = vmatprep.subr.mxu0 0.0
  %6763 = vmatpush1.msra.mxu0 0.0
  %6764 = vmatprep.subr.mxu0 0.0
  %6765 = vmatpush1.msra.mxu0 0.0
  %6766 = vmatprep.subr.mxu0 0.0
  %6767 = vmatpush1.msra.mxu0 0.0
  %6768 = vmatprep.subr.mxu0 0.0
  %6769 = vmatpush1.msra.mxu0 0.0
  %6770 = vmatprep.subr.mxu0 0.0
  %6771 = vmatpush1.msra.mxu0 0.0
  %6772 = vmatprep.subr.mxu0 0.0
  %6773 = vmatpush1.msra.mxu0 0.0
  %6774 = vmatprep.subr.mxu0 0.0
  %6775 = vmatpush1.msra.mxu0 0.0
  %6776 = vmatprep.subr.mxu0 0.0
  %6777 = vmatpush1.msra.mxu0 0.0
  %6778 = vmatprep.subr.mxu0 0.0
  %6779 = vmatpush1.msra.mxu0 0.0
  %6780 = vmatprep.subr.mxu0 0.0
  %6781 = vmatpush1.msra.mxu0 0.0
  %6782 = vmatprep.subr.mxu0 0.0
  %6783 = vmatpush1.msra.mxu0 0.0
  %6784 = vmatprep.subr.mxu0 0.0
  %6785 = vmatpush1.msra.mxu0 0.0
  %6786 = vmatprep.subr.mxu0 0.0
  %6787 = vmatpush1.msra.mxu0 0.0
  %6788 = vmatprep.subr.mxu0 0.0
  %6789 = vmatpush1.msra.mxu0 0.0
  %6790 = vmatprep.subr.mxu0 0.0
  %6791 = vmatpush1.msra.mxu0 0.0
  %6792 = vmatprep.subr.mxu0 0.0
  %6793 = vmatpush1.msra.mxu0 0.0
  %6794 = vmatprep.subr.mxu0 0.0
  %6795 = vmatpush1.msra.mxu0 0.0
  %6796 = vmatprep.subr.mxu0 0.0
  %6797 = vmatpush1.msra.mxu0 0.0
  %6798 = vmatprep.subr.mxu0 0.0
  %6799 = vmatpush1.msra.mxu0 0.0
  %6800 = vmatprep.subr.mxu0 0.0
  %6801 = vmatpush1.msra.mxu0 0.0
  %6802 = vmatprep.subr.mxu0 0.0
  %6803 = vmatpush1.msra.mxu0 0.0
  %6804 = vmatprep.mubr.f32.mxu0 0.0
  %6805 = vmatmul.mubr.f32.gmra.mrb[0].mxu0 %v6729
  %v6806 = vpop.f32.mrb[0].mxu0
  %v6807 = vadd.f32 0.0, %v6806
  %v6808 = vpop.f32.mrb[0].mxu0
  %6809 = vmatprep.mubr.f32.mxu0 0.0
  %6810 = vmatmul.mubr.f32.gmra.mrb[0].mxu0 %v6732
  %v6811 = vpop.f32.mrb[0].mxu0
  %v6812 = vadd.f32 0.0, %v6811
  %v6813 = vpop.f32.mrb[0].mxu0
  %6814 = vmatprep.mubr.f32.mxu0 0.0
  %6815 = vmatmul.mubr.f32.gmra.mrb[0].mxu0 %v6735
  %v6816 = vpop.f32.mrb[0].mxu0
  %v6817 = vadd.f32 0.0, %v6816
  %v6818 = vpop.f32.mrb[0].mxu0
  %6819 = vmatprep.mubr.f32.mxu0 0.0
  %6820 = vmatmul.mubr.f32.gmra.mrb[0].mxu0 %v6738
  %v6821 = vpop.f32.mrb[0].mxu0
  %v6822 = vadd.f32 0.0, %v6821
  %v6823 = vpop.f32.mrb[0].mxu0
  %6824 = vdwg.mxu0
  %v6825 = vmul.f32 %v6807, %v476
  %v6826 = vmul.f32 %v6812, %v478
  %v6827 = vmul.f32 %v6817, %v480
  %v6828 = vmul.f32 %v6822, %v482
  %6830 = vset.pattern.permute.xlu0 0
  %6831 = vperm.xlu0 %6830, %v6825
  %v6832 = vpop.permute.xlu0 %6831
  %6835 = vset.pattern.permute.xlu0 0
  %6836 = vperm.xlu0 %6835, %v6826
  %v6837 = vpop.permute.xlu0 %6836
  %6840 = vset.pattern.permute.xlu0 0
  %6841 = vperm.xlu0 %6840, %v6827
  %v6842 = vpop.permute.xlu0 %6841
  %6845 = vset.pattern.permute.xlu0 0
  %6846 = vperm.xlu0 %6845, %v6828
  %v6847 = vpop.permute.xlu0 %6846
  %v6849 = vsub.f32 %v6696, %v6832
  %v6850 = vsub.f32 %v6701, %v6837
  %v6851 = vsub.f32 %v6706, %v6842
  %v6852 = vsub.f32 %v6711, %v6847
  %v6853 = vmul.f32 %v6849, %v6849
  %v6854 = vmul.f32 %v6850, %v6850
  %v6855 = vmul.f32 %v6851, %v6851
  %v6856 = vmul.f32 %v6852, %v6852
  %v6857 = vmul.f32 %v6853, %v450
  %v6858 = vmul.f32 %v6854, %v451
  %v6859 = vmul.f32 %v6855, %v452
  %v6860 = vmul.f32 %v6856, %v453
  %v6862 = vsel %vm162, %v6857, 0
  %v6865 = vsel %vm162, %v6858, 0
  %v6868 = vsel %vm162, %v6859, 0
  %v6871 = vsel %vm162, %v6860, 0
  %6873 = vmatprep.subr.mxu0 0.0
  %6874 = vmatpush1.msra.mxu0 1.0
  %6875 = vmatprep.subr.mxu0 0.0
  %6876 = vmatpush1.msra.mxu0 1.0
  %6877 = vmatprep.subr.mxu0 0.0
  %6878 = vmatpush1.msra.mxu0 0.0
  %6879 = vmatprep.subr.mxu0 0.0
  %6880 = vmatpush1.msra.mxu0 0.0
  %6881 = vmatprep.subr.mxu0 0.0
  %6882 = vmatpush1.msra.mxu0 0.0
  %6883 = vmatprep.subr.mxu0 0.0
  %6884 = vmatpush1.msra.mxu0 0.0
  %6885 = vmatprep.subr.mxu0 0.0
  %6886 = vmatpush1.msra.mxu0 0.0
  %6887 = vmatprep.subr.mxu0 0.0
  %6888 = vmatpush1.msra.mxu0 0.0
  %6889 = vmatprep.subr.mxu0 0.0
  %6890 = vmatpush1.msra.mxu0 0.0
  %6891 = vmatprep.subr.mxu0 0.0
  %6892 = vmatpush1.msra.mxu0 0.0
  %6893 = vmatprep.subr.mxu0 0.0
  %6894 = vmatpush1.msra.mxu0 0.0
  %6895 = vmatprep.subr.mxu0 0.0
  %6896 = vmatpush1.msra.mxu0 0.0
  %6897 = vmatprep.subr.mxu0 0.0
  %6898 = vmatpush1.msra.mxu0 0.0
  %6899 = vmatprep.subr.mxu0 0.0
  %6900 = vmatpush1.msra.mxu0 0.0
  %6901 = vmatprep.subr.mxu0 0.0
  %6902 = vmatpush1.msra.mxu0 0.0
  %6903 = vmatprep.subr.mxu0 0.0
  %6904 = vmatpush1.msra.mxu0 0.0
  %6905 = vmatprep.subr.mxu0 0.0
  %6906 = vmatpush1.msra.mxu0 0.0
  %6907 = vmatprep.subr.mxu0 0.0
  %6908 = vmatpush1.msra.mxu0 0.0
  %6909 = vmatprep.subr.mxu0 0.0
  %6910 = vmatpush1.msra.mxu0 0.0
  %6911 = vmatprep.subr.mxu0 0.0
  %6912 = vmatpush1.msra.mxu0 0.0
  %6913 = vmatprep.subr.mxu0 0.0
  %6914 = vmatpush1.msra.mxu0 0.0
  %6915 = vmatprep.subr.mxu0 0.0
  %6916 = vmatpush1.msra.mxu0 0.0
  %6917 = vmatprep.subr.mxu0 0.0
  %6918 = vmatpush1.msra.mxu0 0.0
  %6919 = vmatprep.subr.mxu0 0.0
  %6920 = vmatpush1.msra.mxu0 0.0
  %6921 = vmatprep.subr.mxu0 0.0
  %6922 = vmatpush1.msra.mxu0 0.0
  %6923 = vmatprep.subr.mxu0 0.0
  %6924 = vmatpush1.msra.mxu0 0.0
  %6925 = vmatprep.subr.mxu0 0.0
  %6926 = vmatpush1.msra.mxu0 0.0
  %6927 = vmatprep.subr.mxu0 0.0
  %6928 = vmatpush1.msra.mxu0 0.0
  %6929 = vmatprep.subr.mxu0 0.0
  %6930 = vmatpush1.msra.mxu0 0.0
  %6931 = vmatprep.subr.mxu0 0.0
  %6932 = vmatpush1.msra.mxu0 0.0
  %6933 = vmatprep.subr.mxu0 0.0
  %6934 = vmatpush1.msra.mxu0 0.0
  %6935 = vmatprep.subr.mxu0 0.0
  %6936 = vmatpush1.msra.mxu0 0.0
  %6937 = vmatprep.mubr.f32.mxu0 0.0
  %6938 = vmatmul.mubr.f32.gmra.mrb[0].mxu0 %v6862
  %v6939 = vpop.f32.mrb[0].mxu0
  %v6940 = vadd.f32 0.0, %v6939
  %v6941 = vpop.f32.mrb[0].mxu0
  %6942 = vmatprep.mubr.f32.mxu0 0.0
  %6943 = vmatmul.mubr.f32.gmra.mrb[0].mxu0 %v6865
  %v6944 = vpop.f32.mrb[0].mxu0
  %v6945 = vadd.f32 0.0, %v6944
  %v6946 = vpop.f32.mrb[0].mxu0
  %6947 = vmatprep.mubr.f32.mxu0 0.0
  %6948 = vmatmul.mubr.f32.gmra.mrb[0].mxu0 %v6868
  %v6949 = vpop.f32.mrb[0].mxu0
  %v6950 = vadd.f32 0.0, %v6949
  %v6951 = vpop.f32.mrb[0].mxu0
  %6952 = vmatprep.mubr.f32.mxu0 0.0
  %6953 = vmatmul.mubr.f32.gmra.mrb[0].mxu0 %v6871
  %v6954 = vpop.f32.mrb[0].mxu0
  %v6955 = vadd.f32 0.0, %v6954
  %v6956 = vpop.f32.mrb[0].mxu0
  %6957 = vdwg.mxu0
  %v6958 = vmul.f32 %v6940, %v476
  %v6959 = vmul.f32 %v6945, %v478
  %v6960 = vmul.f32 %v6950, %v480
  %v6961 = vmul.f32 %v6955, %v482
  %v6962 = vadd.f32 %v6958, 1e-05
  %v6963 = vadd.f32 %v6959, 1e-05
  %v6964 = vadd.f32 %v6960, 1e-05
  %v6965 = vadd.f32 %v6961, 1e-05
  %v6966 = vrsqrt.pop %v6962
  %v6967 = vrsqrt.pop %v6963
  %v6968 = vrsqrt.pop %v6964
  %v6969 = vrsqrt.pop %v6965
  %6971 = vset.pattern.permute.xlu0 0
  %6972 = vperm.xlu0 %6971, %v6966
  %v6973 = vpop.permute.xlu0 %6972
  %6976 = vset.pattern.permute.xlu0 0
  %6977 = vperm.xlu0 %6976, %v6967
  %v6978 = vpop.permute.xlu0 %6977
  %6981 = vset.pattern.permute.xlu0 0
  %6982 = vperm.xlu0 %6981, %v6968
  %v6983 = vpop.permute.xlu0 %6982
  %6986 = vset.pattern.permute.xlu0 0
  %6987 = vperm.xlu0 %6986, %v6969
  %v6988 = vpop.permute.xlu0 %6987
  %v6990 = vmul.f32 %v6849, %v6973
  %v6991 = vmul.f32 %v6850, %v6978
  %v6992 = vmul.f32 %v6851, %v6983
  %v6993 = vmul.f32 %v6852, %v6988
  %6995 = vset.pattern.permute.xlu0 0
  %6996 = vperm.xlu0 %6995, %v6715
  %v6997 = vpop.permute.xlu0 %6996
  %7000 = vset.pattern.permute.xlu0 0
  %7001 = vperm.xlu0 %7000, %v6716
  %v7002 = vpop.permute.xlu0 %7001
  %7005 = vset.pattern.permute.xlu0 0
  %7006 = vperm.xlu0 %7005, %v6717
  %v7007 = vpop.permute.xlu0 %7006
  %7010 = vset.pattern.permute.xlu0 0
  %7011 = vperm.xlu0 %7010, %v6718
  %v7012 = vpop.permute.xlu0 %7011
  %v7014 = vmul.f32 %v6990, %v6997
  %v7015 = vmul.f32 %v6991, %v7002
  %v7016 = vmul.f32 %v6992, %v7007
  %v7017 = vmul.f32 %v6993, %v7012
  %7019 = vset.pattern.permute.xlu0 0
  %7020 = vperm.xlu0 %7019, %v6720
  %v7021 = vpop.permute.xlu0 %7020
  %7024 = vset.pattern.permute.xlu0 0
  %7025 = vperm.xlu0 %7024, %v6721
  %v7026 = vpop.permute.xlu0 %7025
  %7029 = vset.pattern.permute.xlu0 0
  %7030 = vperm.xlu0 %7029, %v6722
  %v7031 = vpop.permute.xlu0 %7030
  %7034 = vset.pattern.permute.xlu0 0
  %7035 = vperm.xlu0 %7034, %v6723
  %v7036 = vpop.permute.xlu0 %7035
  %v7038 = vadd.f32 %v7014, %v7021
  %v7039 = vadd.f32 %v7015, %v7026
  %v7040 = vadd.f32 %v7016, %v7031
  %v7041 = vadd.f32 %v7017, %v7036
  %v7042 = vmax.f32 %v7038, 0.0
  %v7043 = vmax.f32 %v7039, 0.0
  %v7044 = vmax.f32 %v7040, 0.0
  %v7045 = vmax.f32 %v7041, 0.0
  %v7046 = vmul.f32 %v7042, %v450
  %v7047 = vmul.f32 %v7043, %v451
  %v7048 = vmul.f32 %v7044, %v452
  %v7049 = vmul.f32 %v7045, %v453
  %v7051 = vsel %vm162, %v7046, 0
  %v7054 = vsel %vm162, %v7047, 0
  %v7057 = vsel %vm162, %v7048, 0
  %v7060 = vsel %vm162, %v7049, 0
  %7062 = vmatprep.subr.mxu0 0.0
  %7063 = vmatpush1.msra.mxu0 %v427
  %7064 = vmatprep.subr.mxu0 0.0
  %7065 = vmatpush1.msra.mxu0 %v428
  %7066 = vmatprep.subr.mxu0 0.0
  %7067 = vmatpush1.msra.mxu0 0.0
  %7068 = vmatprep.subr.mxu0 0.0
  %7069 = vmatpush1.msra.mxu0 0.0
  %7070 = vmatprep.subr.mxu0 0.0
  %7071 = vmatpush1.msra.mxu0 0.0
  %7072 = vmatprep.subr.mxu0 0.0
  %7073 = vmatpush1.msra.mxu0 0.0
  %7074 = vmatprep.subr.mxu0 0.0
  %7075 = vmatpush1.msra.mxu0 0.0
  %7076 = vmatprep.subr.mxu0 0.0
  %7077 = vmatpush1.msra.mxu0 0.0
  %7078 = vmatprep.subr.mxu0 0.0
  %7079 = vmatpush1.msra.mxu0 0.0
  %7080 = vmatprep.subr.mxu0 0.0
  %7081 = vmatpush1.msra.mxu0 0.0
  %7082 = vmatprep.subr.mxu0 0.0
  %7083 = vmatpush1.msra.mxu0 0.0
  %7084 = vmatprep.subr.mxu0 0.0
  %7085 = vmatpush1.msra.mxu0 0.0
  %7086 = vmatprep.subr.mxu0 0.0
  %7087 = vmatpush1.msra.mxu0 0.0
  %7088 = vmatprep.subr.mxu0 0.0
  %7089 = vmatpush1.msra.mxu0 0.0
  %7090 = vmatprep.subr.mxu0 0.0
  %7091 = vmatpush1.msra.mxu0 0.0
  %7092 = vmatprep.subr.mxu0 0.0
  %7093 = vmatpush1.msra.mxu0 0.0
  %7094 = vmatprep.subr.mxu0 0.0
  %7095 = vmatpush1.msra.mxu0 0.0
  %7096 = vmatprep.subr.mxu0 0.0
  %7097 = vmatpush1.msra.mxu0 0.0
  %7098 = vmatprep.subr.mxu0 0.0
  %7099 = vmatpush1.msra.mxu0 0.0
  %7100 = vmatprep.subr.mxu0 0.0
  %7101 = vmatpush1.msra.mxu0 0.0
  %7102 = vmatprep.subr.mxu0 0.0
  %7103 = vmatpush1.msra.mxu0 0.0
  %7104 = vmatprep.subr.mxu0 0.0
  %7105 = vmatpush1.msra.mxu0 0.0
  %7106 = vmatprep.subr.mxu0 0.0
  %7107 = vmatpush1.msra.mxu0 0.0
  %7108 = vmatprep.subr.mxu0 0.0
  %7109 = vmatpush1.msra.mxu0 0.0
  %7110 = vmatprep.subr.mxu0 0.0
  %7111 = vmatpush1.msra.mxu0 0.0
  %7112 = vmatprep.subr.mxu0 0.0
  %7113 = vmatpush1.msra.mxu0 0.0
  %7114 = vmatprep.subr.mxu0 0.0
  %7115 = vmatpush1.msra.mxu0 0.0
  %7116 = vmatprep.subr.mxu0 0.0
  %7117 = vmatpush1.msra.mxu0 0.0
  %7118 = vmatprep.subr.mxu0 0.0
  %7119 = vmatpush1.msra.mxu0 0.0
  %7120 = vmatprep.subr.mxu0 0.0
  %7121 = vmatpush1.msra.mxu0 0.0
  %7122 = vmatprep.subr.mxu0 0.0
  %7123 = vmatpush1.msra.mxu0 0.0
  %7124 = vmatprep.subr.mxu0 0.0
  %7125 = vmatpush1.msra.mxu0 0.0
  %7126 = vmatprep.mubr.f32.mxu0 0.0
  %7127 = vmatmul.mubr.f32.gmra.mrb[0].mxu0 %v7051
  %v7128 = vpop.f32.mrb[0].mxu0
  %v7129 = vadd.f32 0.0, %v7128
  %v7130 = vpop.f32.mrb[0].mxu0
  %7131 = vmatprep.mubr.f32.mxu0 0.0
  %7132 = vmatmul.mubr.f32.gmra.mrb[0].mxu0 %v7054
  %v7133 = vpop.f32.mrb[0].mxu0
  %v7134 = vadd.f32 0.0, %v7133
  %v7135 = vpop.f32.mrb[0].mxu0
  %7136 = vmatprep.mubr.f32.mxu0 0.0
  %7137 = vmatmul.mubr.f32.gmra.mrb[0].mxu0 %v7057
  %v7138 = vpop.f32.mrb[0].mxu0
  %v7139 = vadd.f32 0.0, %v7138
  %v7140 = vpop.f32.mrb[0].mxu0
  %7141 = vmatprep.mubr.f32.mxu0 0.0
  %7142 = vmatmul.mubr.f32.gmra.mrb[0].mxu0 %v7060
  %v7143 = vpop.f32.mrb[0].mxu0
  %v7144 = vadd.f32 0.0, %v7143
  %v7145 = vpop.f32.mrb[0].mxu0
  %7146 = vdwg.mxu0
  %7147 = vmatprep.subr.mxu0 0.0
  %7148 = vmatpush1.msra.mxu0 %v7129
  %7149 = vmatprep.subr.mxu0 0.0
  %7150 = vmatpush1.msra.mxu0 %v7134
  %7151 = vmatprep.subr.mxu0 0.0
  %7152 = vmatpush1.msra.mxu0 %v7139
  %7153 = vmatprep.subr.mxu0 0.0
  %7154 = vmatpush1.msra.mxu0 %v7144
  %7155 = vmatprep.subr.mxu0 0.0
  %7156 = vmatpush1.msra.mxu0 0.0
  %7157 = vmatprep.subr.mxu0 0.0
  %7158 = vmatpush1.msra.mxu0 0.0
  %7159 = vmatprep.subr.mxu0 0.0
  %7160 = vmatpush1.msra.mxu0 0.0
  %7161 = vmatprep.subr.mxu0 0.0
  %7162 = vmatpush1.msra.mxu0 0.0
  %7163 = vmatprep.subr.mxu0 0.0
  %7164 = vmatpush1.msra.mxu0 0.0
  %7165 = vmatprep.subr.mxu0 0.0
  %7166 = vmatpush1.msra.mxu0 0.0
  %7167 = vmatprep.subr.mxu0 0.0
  %7168 = vmatpush1.msra.mxu0 0.0
  %7169 = vmatprep.subr.mxu0 0.0
  %7170 = vmatpush1.msra.mxu0 0.0
  %7171 = vmatprep.subr.mxu0 0.0
  %7172 = vmatpush1.msra.mxu0 0.0
  %7173 = vmatprep.subr.mxu0 0.0
  %7174 = vmatpush1.msra.mxu0 0.0
  %7175 = vmatprep.subr.mxu0 0.0
  %7176 = vmatpush1.msra.mxu0 0.0
  %7177 = vmatprep.subr.mxu0 0.0
  %7178 = vmatpush1.msra.mxu0 0.0
  %7179 = vmatprep.subr.mxu0 0.0
  %7180 = vmatpush1.msra.mxu0 0.0
  %7181 = vmatprep.subr.mxu0 0.0
  %7182 = vmatpush1.msra.mxu0 0.0
  %7183 = vmatprep.subr.mxu0 0.0
  %7184 = vmatpush1.msra.mxu0 0.0
  %7185 = vmatprep.subr.mxu0 0.0
  %7186 = vmatpush1.msra.mxu0 0.0
  %7187 = vmatprep.subr.mxu0 0.0
  %7188 = vmatpush1.msra.mxu0 0.0
  %7189 = vmatprep.subr.mxu0 0.0
  %7190 = vmatpush1.msra.mxu0 0.0
  %7191 = vmatprep.subr.mxu0 0.0
  %7192 = vmatpush1.msra.mxu0 0.0
  %7193 = vmatprep.subr.mxu0 0.0
  %7194 = vmatpush1.msra.mxu0 0.0
  %7195 = vmatprep.subr.mxu0 0.0
  %7196 = vmatpush1.msra.mxu0 0.0
  %7197 = vmatprep.subr.mxu0 0.0
  %7198 = vmatpush1.msra.mxu0 0.0
  %7199 = vmatprep.subr.mxu0 0.0
  %7200 = vmatpush1.msra.mxu0 0.0
  %7201 = vmatprep.subr.mxu0 0.0
  %7202 = vmatpush1.msra.mxu0 0.0
  %7203 = vmatprep.subr.mxu0 0.0
  %7204 = vmatpush1.msra.mxu0 0.0
  %7205 = vmatprep.subr.mxu0 0.0
  %7206 = vmatpush1.msra.mxu0 0.0
  %7207 = vmatprep.subr.mxu0 0.0
  %7208 = vmatpush1.msra.mxu0 0.0
  %7209 = vmatprep.subr.mxu0 0.0
  %7210 = vmatpush1.msra.mxu0 0.0
  %7211 = vmatprep.mubr.f32.mxu0 0.0
  %7212 = vmatmul.mubr.f32.gmra.mrb[0].mxu0 %v2651
  %v7213 = vpop.f32.mrb[0].mxu0
  %v7214 = vadd.f32 0.0, %v7213
  %v7215 = vpop.f32.mrb[0].mxu0
  %7216 = vmatprep.mubr.f32.mxu0 0.0
  %7217 = vmatmul.mubr.f32.gmra.mrb[0].mxu0 %v2654
  %v7218 = vpop.f32.mrb[0].mxu0
  %v7219 = vadd.f32 0.0, %v7218
  %v7220 = vpop.f32.mrb[0].mxu0
  %7221 = vdwg.mxu0
  %s7222 = scalar_lea.vmem %s18, 32
  %7223 = vst.msk [vmem:[%s7222] sm:$0xff] %vm487, %v7214
  %7224 = vst.msk [vmem:[%s7222 + $0x8] sm:$0xff] %vm487, %v7219
  // Predicated region
  $region74: #{tpu_custom_call.1} parent=0 // pred_check
    _
  $region75: #{tpu_custom_call.1} parent=0 // pred_check_branch
    %7226 = sbr.rel (0) target = $region77
  $region76: #{tpu_custom_call.1} parent=0 // pred_region
    _
  $region77: #{tpu_custom_call.1} parent=0 // pred_fallthru
    _
  // Predicated region
  $region78: #{tpu_custom_call.1} parent=0 // pred_check
    _
  $region79: #{tpu_custom_call.1} parent=0 // pred_check_branch
    %7228 = sbr.rel (0) target = $region81
  $region80: #{tpu_custom_call.1} parent=0 // pred_region
    _
  $region81: #{tpu_custom_call.1} parent=0 // pred_fallthru
    _

</llo_original>
